<compile_context>
chip_gen: v6e
topology: v6e:2x2x1
jax: 0.10.0
libtpu: 0.0.40
codegen_flags: <defaults>
</compile_context>

<pallas_src>
import functools

import numpy as np
import jax
import jax.numpy as jnp
from jax.experimental import pallas as pl
from jax.experimental.pallas import tpu as pltpu


# ----------------------------------------------------------------------------
# Fused kernel: all LSTM layers + final Linear head in one pallas_call.
# PyTorch gate order [i, f, g, o]; weights are pre-transposed & per-gate:
#   w_ih: (4, D_in, H), w_hh: (4, H, H), b = b_ih + b_hh: (4, 1, H)
# so every matmul output is already a single gate (no lane-masked slicing).
# ----------------------------------------------------------------------------
def _fused_lstm_fc_kernel(*refs, seq_len, batch, hidden_dim, num_layers,
                          compute_dtype):
    T, B, H = seq_len, batch, hidden_dim
    x_ref = refs[0]                                   # (T, B, D0), time-major
    layer_refs = refs[1:1 + 3 * num_layers]           # (w_ih, w_hh, b) per layer
    fcw_ref = refs[1 + 3 * num_layers]                # (H, O)
    fcb_ref = refs[2 + 3 * num_layers]                # (1, O)
    out_ref = refs[3 + 3 * num_layers]                # (B, O)
    seq_ref = refs[4 + 3 * num_layers]                # VMEM scratch (T*B, H)

    def sig(v):
        # Exact sigmoid via tanh: one EUP push instead of exp + reciprocal.
        return 0.5 * jnp.tanh(0.5 * v) + 0.5

    # (T, B, D) -> (T*B, D): leading-dims collapse (B is a multiple of 8, so
    # this is relayout-free).
    d0 = x_ref.shape[-1]
    seq_in = x_ref[...].reshape(T * B, d0)

    h = None
    for layer in range(num_layers):
        w_ih = layer_refs[3 * layer]                  # (4, D_in, H)
        w_hh = layer_refs[3 * layer + 1]              # (4, H, H)
        bias = layer_refs[3 * layer + 2]              # (4, 1, H) f32

        # Hoisted input projection + bias, one matmul per gate; off the
        # serial recurrence path, each output is exactly one gate.
        gx = [jnp.dot(seq_in, w_ih[g], preferred_element_type=jnp.float32)
              + bias[g] for g in range(4)]            # 4 x (T*B, H) f32

        w_hh_g = [w_hh[g] for g in range(4)]          # 4 x (H, H)

        h = jnp.zeros((B, H), jnp.float32)
        c = jnp.zeros((B, H), jnp.float32)
        for t in range(T):                            # fully unrolled (small static T)
            hm = h.astype(compute_dtype)
            pre = [gx[g][t * B:(t + 1) * B, :]
                   + jnp.dot(hm, w_hh_g[g], preferred_element_type=jnp.float32)
                   for g in range(4)]                 # [i, f, g, o] pre-activations
            i_g = sig(pre[0])
            f_g = sig(pre[1])
            g_g = jnp.tanh(pre[2])
            o_g = sig(pre[3])
            c = f_g * c + i_g * g_g
            h = o_g * jnp.tanh(c)
            if layer + 1 < num_layers:
                # Bound live ranges: stream h into the VMEM sequence scratch
                # (aligned multiple-of-8 row block) instead of vreg-resident
                # concatenation.
                seq_ref[t * B:(t + 1) * B, :] = h.astype(seq_ref.dtype)
        if layer + 1 < num_layers:
            # TODO(synk): nn.LSTM inter-layer dropout is identity in eval mode.
            seq_in = seq_ref[...]                     # (T*B, H) next-layer input

    # self.dropout(out[:, -1, :]) is identity in eval mode; fused Linear head.
    out_ref[...] = (jnp.dot(h.astype(compute_dtype), fcw_ref[...],
                            preferred_element_type=jnp.float32)
                    + fcb_ref[...])


def lstm_model_forward(params, x, *, compute_dtype=jnp.float32):
    """x: (B, T, input_dim) float32 (batch_first, as in the PyTorch module)."""
    B, T, D = x.shape
    H = params["layers"][0]["w_hh"].shape[-1]
    O = params["fc_w_t"].shape[1]
    L = len(params["layers"])

    # Fill the sublanes: pad batch to a multiple of 8 (f32 sublane tile).
    # TODO(synk): pad to 16 when compute_dtype is bf16 (packed sublanes).
    B_pad = max(8, ((B + 7) // 8) * 8)

    # One-time wrapper-side layout work: cast, pad batch, go time-major.
    xp = x.astype(compute_dtype)
    if B_pad != B:
        xp = jnp.pad(xp, ((0, B_pad - B), (0, 0), (0, 0)))
    xp = jnp.transpose(xp, (1, 0, 2))                 # (T, B_pad, D)

    kernel = functools.partial(_fused_lstm_fc_kernel, seq_len=T, batch=B_pad,
                               hidden_dim=H, num_layers=L,
                               compute_dtype=compute_dtype)

    args = [xp]
    in_specs = [pl.BlockSpec(xp.shape, lambda: (0, 0, 0))]
    for lp in params["layers"]:
        w_ih = lp["w_ih"].astype(compute_dtype)       # (4, D_in, H)
        w_hh = lp["w_hh"].astype(compute_dtype)       # (4, H, H)
        b = lp["b"]                                   # (4, 1, H) f32 (post-accum add)
        args += [w_ih, w_hh, b]
        in_specs += [pl.BlockSpec(w_ih.shape, lambda: (0, 0, 0)),
                     pl.BlockSpec(w_hh.shape, lambda: (0, 0, 0)),
                     pl.BlockSpec(b.shape, lambda: (0, 0, 0))]
    fc_w = params["fc_w_t"].astype(compute_dtype)     # (H, O)
    fc_b = params["fc_b"]                             # (1, O) f32
    args += [fc_w, fc_b]
    in_specs += [pl.BlockSpec(fc_w.shape, lambda: (0, 0)),
                 pl.BlockSpec(fc_b.shape, lambda: (0, 0))]

    # VMEM limit sized from the actual resident footprint (all-resident grid=()
    # design): inputs + gates_x temporaries + sequence scratch + output.
    cdt_bytes = np.dtype(compute_dtype).itemsize
    resident = sum(int(a.size) * a.dtype.itemsize for a in args)
    resident += T * B_pad * H * cdt_bytes             # inter-layer seq scratch
    resident += 4 * T * B_pad * H * 4                 # gates_x (f32)
    resident += B_pad * O * 4                         # output
    vmem_limit = int(min(64 << 20, max(32 << 20, 2 * resident + (4 << 20))))

    out = pl.pallas_call(
        kernel,
        out_shape=jax.ShapeDtypeStruct((B_pad, O), jnp.float32),
        grid=(),
        in_specs=in_specs,
        out_specs=pl.BlockSpec((B_pad, O), lambda: (0, 0)),
        scratch_shapes=[pltpu.VMEM((T * B_pad, H), compute_dtype)],
        compiler_params=pltpu.CompilerParams(vmem_limit_bytes=vmem_limit),
    )(*args)
    return out[:B]


# ----------------------------------------------------------------------------
# Parameters (mirrors nn.LSTM / nn.Linear shapes, stored per-gate, transposed).
# ----------------------------------------------------------------------------
def init_lstm_model_params(key, input_dim, output_dim, hidden_dim, layer_dim):
    params = {"layers": []}
    bound = 1.0 / jnp.sqrt(jnp.float32(hidden_dim))
    for layer in range(layer_dim):
        d_in = input_dim if layer == 0 else hidden_dim
        key, k1, k2, k3, k4 = jax.random.split(key, 5)
        w_ih = jax.random.uniform(k1, (4, d_in, hidden_dim), jnp.float32,
                                  -bound, bound)
        w_hh = jax.random.uniform(k2, (4, hidden_dim, hidden_dim), jnp.float32,
                                  -bound, bound)
        b_ih = jax.random.uniform(k3, (4, 1, hidden_dim), jnp.float32,
                                  -bound, bound)
        b_hh = jax.random.uniform(k4, (4, 1, hidden_dim), jnp.float32,
                                  -bound, bound)
        params["layers"].append(dict(w_ih=w_ih, w_hh=w_hh, b=b_ih + b_hh))
    key, k5, k6 = jax.random.split(key, 3)
    fc_bound = 1.0 / jnp.sqrt(jnp.float32(hidden_dim))
    params["fc_w_t"] = jax.random.uniform(k5, (hidden_dim, output_dim),
                                          jnp.float32, -fc_bound, fc_bound)
    params["fc_b"] = jax.random.uniform(k6, (1, output_dim), jnp.float32,
                                        -fc_bound, fc_bound)
    return params


# ----------------------------------------------------------------------------
# Pure-JAX reference (correctness check; f32 throughout)
# ----------------------------------------------------------------------------
def _reference_forward(params, x):
    B, T, _ = x.shape
    h_in = jnp.transpose(x, (1, 0, 2))                # (T, B, D)
    for lp in params["layers"]:
        H = lp["w_hh"].shape[-1]
        h = jnp.zeros((B, H), jnp.float32)
        c = jnp.zeros((B, H), jnp.float32)
        outs = []
        for t in range(T):
            pre = [h_in[t] @ lp["w_ih"][g] + h @ lp["w_hh"][g] + lp["b"][g]
                   for g in range(4)]                 # [i, f, g, o]
            i_g = jax.nn.sigmoid(pre[0])
            f_g = jax.nn.sigmoid(pre[1])
            g_g = jnp.tanh(pre[2])
            o_g = jax.nn.sigmoid(pre[3])
            c = f_g * c + i_g * g_g
            h = o_g * jnp.tanh(c)
            outs.append(h)
        h_in = jnp.stack(outs, axis=0)
    return h_in[-1] @ params["fc_w_t"] + params["fc_b"]


if __name__ == "__main__":
    # Small shapes consistent with the module's forward (batch_first input):
    batch, seq, input_dim = 2, 8, 16
    hidden_dim, layer_dim, output_dim = 32, 2, 4
    dropout_prob = 0.1  # identity in inference mode

    key = jax.random.PRNGKey(0)
    key, pkey, xkey = jax.random.split(key, 3)

    params = init_lstm_model_params(pkey, input_dim, output_dim,
                                    hidden_dim, layer_dim)
    x = jax.random.normal(xkey, (batch, seq, input_dim), jnp.float32)

    ref = _reference_forward(params, x)

    # f32 path (default): tight match against the f32 reference.
    out = jax.block_until_ready(lstm_model_forward(params, x))
    assert out.shape == (batch, output_dim)
    assert jnp.allclose(out, ref, rtol=1e-4, atol=1e-4), "f32 mismatch vs reference"

    # bf16 matmul operands (recommended on v6e/v7x): relaxed tolerance.
    out_bf16 = jax.block_until_ready(
        lstm_model_forward(params, x, compute_dtype=jnp.bfloat16))
    assert out_bf16.shape == (batch, output_dim)
    assert jnp.allclose(out_bf16, ref, rtol=5e-2, atol=5e-2), "bf16 mismatch vs reference"

    print("KERNEL_OK")
</pallas_src>

<mosaic_0001>
module attributes {stable_mosaic.version = 11 : i64} {
  func.func @_fused_lstm_fc_kernel(%arg0: memref<8x8x16xf32, #tpu.memory_space<vmem>>, %arg1: memref<4x16x32xf32, #tpu.memory_space<vmem>>, %arg2: memref<4x32x32xf32, #tpu.memory_space<vmem>>, %arg3: memref<4x1x32xf32, #tpu.memory_space<vmem>>, %arg4: memref<4x32x32xf32, #tpu.memory_space<vmem>>, %arg5: memref<4x32x32xf32, #tpu.memory_space<vmem>>, %arg6: memref<4x1x32xf32, #tpu.memory_space<vmem>>, %arg7: memref<32x4xf32, #tpu.memory_space<vmem>>, %arg8: memref<1x4xf32, #tpu.memory_space<vmem>>, %arg9: memref<8x4xf32, #tpu.memory_space<vmem>>, %arg10: memref<64x32xf32, #tpu.memory_space<vmem>>) attributes {dimension_semantics = [], scalar_prefetch = 0 : i64, scratch_operands = 1 : i64, tpu.core_type = #tpu.core_type<tc>} {
    %c0 = arith.constant 0 : index
    %c0_0 = arith.constant 0 : index
    %c0_1 = arith.constant 0 : index
    %0 = vector.load %arg0[%c0, %c0_0, %c0_1] : memref<8x8x16xf32, #tpu.memory_space<vmem>>, vector<8x8x16xf32>
    %1 = vector.shape_cast %0 : vector<8x8x16xf32> to vector<64x16xf32>
    %c0_2 = arith.constant 0 : index
    %c0_3 = arith.constant 0 : index
    %c0_4 = arith.constant 0 : index
    %2 = vector.load %arg1[%c0_2, %c0_3, %c0_4] : memref<4x16x32xf32, #tpu.memory_space<vmem>>, vector<1x16x32xf32>
    %3 = vector.shape_cast %2 : vector<1x16x32xf32> to vector<16x32xf32>
    %cst = arith.constant dense<0.000000e+00> : vector<64x32xf32>
    %4 = tpu.matmul %1, %3, %cst {dimension_numbers = #tpu.dot_dimension_numbers<[1], [0], [0], [1], [0, 0, 1, 1], [], []>} : vector<64x16xf32>, vector<16x32xf32>, vector<64x32xf32> -> vector<64x32xf32>
    %c0_5 = arith.constant 0 : index
    %c0_6 = arith.constant 0 : index
    %c0_7 = arith.constant 0 : index
    %5 = vector.load %arg3[%c0_5, %c0_6, %c0_7] : memref<4x1x32xf32, #tpu.memory_space<vmem>>, vector<1x1x32xf32>
    %6 = vector.shape_cast %5 : vector<1x1x32xf32> to vector<1x32xf32>
    %7 = vector.broadcast %6 : vector<1x32xf32> to vector<64x32xf32>
    %8 = arith.addf %4, %7 : vector<64x32xf32>
    %c1 = arith.constant 1 : index
    %c0_8 = arith.constant 0 : index
    %c0_9 = arith.constant 0 : index
    %9 = vector.load %arg1[%c1, %c0_8, %c0_9] : memref<4x16x32xf32, #tpu.memory_space<vmem>>, vector<1x16x32xf32>
    %10 = vector.shape_cast %9 : vector<1x16x32xf32> to vector<16x32xf32>
    %cst_10 = arith.constant dense<0.000000e+00> : vector<64x32xf32>
    %11 = tpu.matmul %1, %10, %cst_10 {dimension_numbers = #tpu.dot_dimension_numbers<[1], [0], [0], [1], [0, 0, 1, 1], [], []>} : vector<64x16xf32>, vector<16x32xf32>, vector<64x32xf32> -> vector<64x32xf32>
    %c1_11 = arith.constant 1 : index
    %c0_12 = arith.constant 0 : index
    %c0_13 = arith.constant 0 : index
    %12 = vector.load %arg3[%c1_11, %c0_12, %c0_13] : memref<4x1x32xf32, #tpu.memory_space<vmem>>, vector<1x1x32xf32>
    %13 = vector.shape_cast %12 : vector<1x1x32xf32> to vector<1x32xf32>
    %14 = vector.broadcast %13 : vector<1x32xf32> to vector<64x32xf32>
    %15 = arith.addf %11, %14 : vector<64x32xf32>
    %c2 = arith.constant 2 : index
    %c0_14 = arith.constant 0 : index
    %c0_15 = arith.constant 0 : index
    %16 = vector.load %arg1[%c2, %c0_14, %c0_15] : memref<4x16x32xf32, #tpu.memory_space<vmem>>, vector<1x16x32xf32>
    %17 = vector.shape_cast %16 : vector<1x16x32xf32> to vector<16x32xf32>
    %cst_16 = arith.constant dense<0.000000e+00> : vector<64x32xf32>
    %18 = tpu.matmul %1, %17, %cst_16 {dimension_numbers = #tpu.dot_dimension_numbers<[1], [0], [0], [1], [0, 0, 1, 1], [], []>} : vector<64x16xf32>, vector<16x32xf32>, vector<64x32xf32> -> vector<64x32xf32>
    %c2_17 = arith.constant 2 : index
    %c0_18 = arith.constant 0 : index
    %c0_19 = arith.constant 0 : index
    %19 = vector.load %arg3[%c2_17, %c0_18, %c0_19] : memref<4x1x32xf32, #tpu.memory_space<vmem>>, vector<1x1x32xf32>
    %20 = vector.shape_cast %19 : vector<1x1x32xf32> to vector<1x32xf32>
    %21 = vector.broadcast %20 : vector<1x32xf32> to vector<64x32xf32>
    %22 = arith.addf %18, %21 : vector<64x32xf32>
    %c3 = arith.constant 3 : index
    %c0_20 = arith.constant 0 : index
    %c0_21 = arith.constant 0 : index
    %23 = vector.load %arg1[%c3, %c0_20, %c0_21] : memref<4x16x32xf32, #tpu.memory_space<vmem>>, vector<1x16x32xf32>
    %24 = vector.shape_cast %23 : vector<1x16x32xf32> to vector<16x32xf32>
    %cst_22 = arith.constant dense<0.000000e+00> : vector<64x32xf32>
    %25 = tpu.matmul %1, %24, %cst_22 {dimension_numbers = #tpu.dot_dimension_numbers<[1], [0], [0], [1], [0, 0, 1, 1], [], []>} : vector<64x16xf32>, vector<16x32xf32>, vector<64x32xf32> -> vector<64x32xf32>
    %c3_23 = arith.constant 3 : index
    %c0_24 = arith.constant 0 : index
    %c0_25 = arith.constant 0 : index
    %26 = vector.load %arg3[%c3_23, %c0_24, %c0_25] : memref<4x1x32xf32, #tpu.memory_space<vmem>>, vector<1x1x32xf32>
    %27 = vector.shape_cast %26 : vector<1x1x32xf32> to vector<1x32xf32>
    %28 = vector.broadcast %27 : vector<1x32xf32> to vector<64x32xf32>
    %29 = arith.addf %25, %28 : vector<64x32xf32>
    %c0_26 = arith.constant 0 : index
    %c0_27 = arith.constant 0 : index
    %c0_28 = arith.constant 0 : index
    %30 = vector.load %arg2[%c0_26, %c0_27, %c0_28] : memref<4x32x32xf32, #tpu.memory_space<vmem>>, vector<1x32x32xf32>
    %31 = vector.shape_cast %30 : vector<1x32x32xf32> to vector<32x32xf32>
    %c1_29 = arith.constant 1 : index
    %c0_30 = arith.constant 0 : index
    %c0_31 = arith.constant 0 : index
    %32 = vector.load %arg2[%c1_29, %c0_30, %c0_31] : memref<4x32x32xf32, #tpu.memory_space<vmem>>, vector<1x32x32xf32>
    %33 = vector.shape_cast %32 : vector<1x32x32xf32> to vector<32x32xf32>
    %c2_32 = arith.constant 2 : index
    %c0_33 = arith.constant 0 : index
    %c0_34 = arith.constant 0 : index
    %34 = vector.load %arg2[%c2_32, %c0_33, %c0_34] : memref<4x32x32xf32, #tpu.memory_space<vmem>>, vector<1x32x32xf32>
    %35 = vector.shape_cast %34 : vector<1x32x32xf32> to vector<32x32xf32>
    %c3_35 = arith.constant 3 : index
    %c0_36 = arith.constant 0 : index
    %c0_37 = arith.constant 0 : index
    %36 = vector.load %arg2[%c3_35, %c0_36, %c0_37] : memref<4x32x32xf32, #tpu.memory_space<vmem>>, vector<1x32x32xf32>
    %37 = vector.shape_cast %36 : vector<1x32x32xf32> to vector<32x32xf32>
    %cst_38 = arith.constant 0.000000e+00 : f32
    %38 = vector.broadcast %cst_38 : f32 to vector<8x32xf32>
    %cst_39 = arith.constant 0.000000e+00 : f32
    %39 = vector.broadcast %cst_39 : f32 to vector<8x32xf32>
    %40 = vector.extract_strided_slice %8 {offsets = [0, 0], sizes = [8, 32], strides = [1, 1]} : vector<64x32xf32> to vector<8x32xf32>
    %cst_40 = arith.constant dense<0.000000e+00> : vector<8x32xf32>
    %41 = tpu.matmul %38, %31, %cst_40 {dimension_numbers = #tpu.dot_dimension_numbers<[1], [0], [0], [1], [0, 0, 1, 1], [], []>} : vector<8x32xf32>, vector<32x32xf32>, vector<8x32xf32> -> vector<8x32xf32>
    %42 = arith.addf %40, %41 : vector<8x32xf32>
    %43 = vector.extract_strided_slice %15 {offsets = [0, 0], sizes = [8, 32], strides = [1, 1]} : vector<64x32xf32> to vector<8x32xf32>
    %cst_41 = arith.constant dense<0.000000e+00> : vector<8x32xf32>
    %44 = tpu.matmul %38, %33, %cst_41 {dimension_numbers = #tpu.dot_dimension_numbers<[1], [0], [0], [1], [0, 0, 1, 1], [], []>} : vector<8x32xf32>, vector<32x32xf32>, vector<8x32xf32> -> vector<8x32xf32>
    %45 = arith.addf %43, %44 : vector<8x32xf32>
    %46 = vector.extract_strided_slice %22 {offsets = [0, 0], sizes = [8, 32], strides = [1, 1]} : vector<64x32xf32> to vector<8x32xf32>
    %cst_42 = arith.constant dense<0.000000e+00> : vector<8x32xf32>
    %47 = tpu.matmul %38, %35, %cst_42 {dimension_numbers = #tpu.dot_dimension_numbers<[1], [0], [0], [1], [0, 0, 1, 1], [], []>} : vector<8x32xf32>, vector<32x32xf32>, vector<8x32xf32> -> vector<8x32xf32>
    %48 = arith.addf %46, %47 : vector<8x32xf32>
    %49 = vector.extract_strided_slice %29 {offsets = [0, 0], sizes = [8, 32], strides = [1, 1]} : vector<64x32xf32> to vector<8x32xf32>
    %cst_43 = arith.constant dense<0.000000e+00> : vector<8x32xf32>
    %50 = tpu.matmul %38, %37, %cst_43 {dimension_numbers = #tpu.dot_dimension_numbers<[1], [0], [0], [1], [0, 0, 1, 1], [], []>} : vector<8x32xf32>, vector<32x32xf32>, vector<8x32xf32> -> vector<8x32xf32>
    %51 = arith.addf %49, %50 : vector<8x32xf32>
    %cst_44 = arith.constant 5.000000e-01 : f32
    %52 = vector.broadcast %cst_44 : f32 to vector<8x32xf32>
    %53 = arith.mulf %52, %42 : vector<8x32xf32>
    %54 = math.tanh %53 : vector<8x32xf32>
    %cst_45 = arith.constant 5.000000e-01 : f32
    %55 = vector.broadcast %cst_45 : f32 to vector<8x32xf32>
    %56 = arith.mulf %55, %54 : vector<8x32xf32>
    %cst_46 = arith.constant 5.000000e-01 : f32
    %57 = vector.broadcast %cst_46 : f32 to vector<8x32xf32>
    %58 = arith.addf %56, %57 : vector<8x32xf32>
    %cst_47 = arith.constant 5.000000e-01 : f32
    %59 = vector.broadcast %cst_47 : f32 to vector<8x32xf32>
    %60 = arith.mulf %59, %45 : vector<8x32xf32>
    %61 = math.tanh %60 : vector<8x32xf32>
    %cst_48 = arith.constant 5.000000e-01 : f32
    %62 = vector.broadcast %cst_48 : f32 to vector<8x32xf32>
    %63 = arith.mulf %62, %61 : vector<8x32xf32>
    %cst_49 = arith.constant 5.000000e-01 : f32
    %64 = vector.broadcast %cst_49 : f32 to vector<8x32xf32>
    %65 = arith.addf %63, %64 : vector<8x32xf32>
    %66 = math.tanh %48 : vector<8x32xf32>
    %cst_50 = arith.constant 5.000000e-01 : f32
    %67 = vector.broadcast %cst_50 : f32 to vector<8x32xf32>
    %68 = arith.mulf %67, %51 : vector<8x32xf32>
    %69 = math.tanh %68 : vector<8x32xf32>
    %cst_51 = arith.constant 5.000000e-01 : f32
    %70 = vector.broadcast %cst_51 : f32 to vector<8x32xf32>
    %71 = arith.mulf %70, %69 : vector<8x32xf32>
    %cst_52 = arith.constant 5.000000e-01 : f32
    %72 = vector.broadcast %cst_52 : f32 to vector<8x32xf32>
    %73 = arith.addf %71, %72 : vector<8x32xf32>
    %74 = arith.mulf %65, %39 : vector<8x32xf32>
    %75 = arith.mulf %58, %66 : vector<8x32xf32>
    %76 = arith.addf %74, %75 : vector<8x32xf32>
    %77 = math.tanh %76 : vector<8x32xf32>
    %78 = arith.mulf %73, %77 : vector<8x32xf32>
    %c0_53 = arith.constant 0 : index
    %c0_54 = arith.constant 0 : index
    %79 = vector.load %arg10[%c0_53, %c0_54] : memref<64x32xf32, #tpu.memory_space<vmem>>, vector<8x32xf32>
    tpu.vector_store %arg10[%c0_53, %c0_54], %78 {strides = array<i32>} : memref<64x32xf32, #tpu.memory_space<vmem>>, vector<8x32xf32>,
    %80 = vector.extract_strided_slice %8 {offsets = [8, 0], sizes = [8, 32], strides = [1, 1]} : vector<64x32xf32> to vector<8x32xf32>
    %cst_55 = arith.constant dense<0.000000e+00> : vector<8x32xf32>
    %81 = tpu.matmul %78, %31, %cst_55 {dimension_numbers = #tpu.dot_dimension_numbers<[1], [0], [0], [1], [0, 0, 1, 1], [], []>} : vector<8x32xf32>, vector<32x32xf32>, vector<8x32xf32> -> vector<8x32xf32>
    %82 = arith.addf %80, %81 : vector<8x32xf32>
    %83 = vector.extract_strided_slice %15 {offsets = [8, 0], sizes = [8, 32], strides = [1, 1]} : vector<64x32xf32> to vector<8x32xf32>
    %cst_56 = arith.constant dense<0.000000e+00> : vector<8x32xf32>
    %84 = tpu.matmul %78, %33, %cst_56 {dimension_numbers = #tpu.dot_dimension_numbers<[1], [0], [0], [1], [0, 0, 1, 1], [], []>} : vector<8x32xf32>, vector<32x32xf32>, vector<8x32xf32> -> vector<8x32xf32>
    %85 = arith.addf %83, %84 : vector<8x32xf32>
    %86 = vector.extract_strided_slice %22 {offsets = [8, 0], sizes = [8, 32], strides = [1, 1]} : vector<64x32xf32> to vector<8x32xf32>
    %cst_57 = arith.constant dense<0.000000e+00> : vector<8x32xf32>
    %87 = tpu.matmul %78, %35, %cst_57 {dimension_numbers = #tpu.dot_dimension_numbers<[1], [0], [0], [1], [0, 0, 1, 1], [], []>} : vector<8x32xf32>, vector<32x32xf32>, vector<8x32xf32> -> vector<8x32xf32>
    %88 = arith.addf %86, %87 : vector<8x32xf32>
    %89 = vector.extract_strided_slice %29 {offsets = [8, 0], sizes = [8, 32], strides = [1, 1]} : vector<64x32xf32> to vector<8x32xf32>
    %cst_58 = arith.constant dense<0.000000e+00> : vector<8x32xf32>
    %90 = tpu.matmul %78, %37, %cst_58 {dimension_numbers = #tpu.dot_dimension_numbers<[1], [0], [0], [1], [0, 0, 1, 1], [], []>} : vector<8x32xf32>, vector<32x32xf32>, vector<8x32xf32> -> vector<8x32xf32>
    %91 = arith.addf %89, %90 : vector<8x32xf32>
    %cst_59 = arith.constant 5.000000e-01 : f32
    %92 = vector.broadcast %cst_59 : f32 to vector<8x32xf32>
    %93 = arith.mulf %92, %82 : vector<8x32xf32>
    %94 = math.tanh %93 : vector<8x32xf32>
    %cst_60 = arith.constant 5.000000e-01 : f32
    %95 = vector.broadcast %cst_60 : f32 to vector<8x32xf32>
    %96 = arith.mulf %95, %94 : vector<8x32xf32>
    %cst_61 = arith.constant 5.000000e-01 : f32
    %97 = vector.broadcast %cst_61 : f32 to vector<8x32xf32>
    %98 = arith.addf %96, %97 : vector<8x32xf32>
    %cst_62 = arith.constant 5.000000e-01 : f32
    %99 = vector.broadcast %cst_62 : f32 to vector<8x32xf32>
    %100 = arith.mulf %99, %85 : vector<8x32xf32>
    %101 = math.tanh %100 : vector<8x32xf32>
    %cst_63 = arith.constant 5.000000e-01 : f32
    %102 = vector.broadcast %cst_63 : f32 to vector<8x32xf32>
    %103 = arith.mulf %102, %101 : vector<8x32xf32>
    %cst_64 = arith.constant 5.000000e-01 : f32
    %104 = vector.broadcast %cst_64 : f32 to vector<8x32xf32>
    %105 = arith.addf %103, %104 : vector<8x32xf32>
    %106 = math.tanh %88 : vector<8x32xf32>
    %cst_65 = arith.constant 5.000000e-01 : f32
    %107 = vector.broadcast %cst_65 : f32 to vector<8x32xf32>
    %108 = arith.mulf %107, %91 : vector<8x32xf32>
    %109 = math.tanh %108 : vector<8x32xf32>
    %cst_66 = arith.constant 5.000000e-01 : f32
    %110 = vector.broadcast %cst_66 : f32 to vector<8x32xf32>
    %111 = arith.mulf %110, %109 : vector<8x32xf32>
    %cst_67 = arith.constant 5.000000e-01 : f32
    %112 = vector.broadcast %cst_67 : f32 to vector<8x32xf32>
    %113 = arith.addf %111, %112 : vector<8x32xf32>
    %114 = arith.mulf %105, %76 : vector<8x32xf32>
    %115 = arith.mulf %98, %106 : vector<8x32xf32>
    %116 = arith.addf %114, %115 : vector<8x32xf32>
    %117 = math.tanh %116 : vector<8x32xf32>
    %118 = arith.mulf %113, %117 : vector<8x32xf32>
    %c8 = arith.constant 8 : index
    %c0_68 = arith.constant 0 : index
    %119 = vector.load %arg10[%c8, %c0_68] : memref<64x32xf32, #tpu.memory_space<vmem>>, vector<8x32xf32>
    tpu.vector_store %arg10[%c8, %c0_68], %118 {strides = array<i32>} : memref<64x32xf32, #tpu.memory_space<vmem>>, vector<8x32xf32>,
    %120 = vector.extract_strided_slice %8 {offsets = [16, 0], sizes = [8, 32], strides = [1, 1]} : vector<64x32xf32> to vector<8x32xf32>
    %cst_69 = arith.constant dense<0.000000e+00> : vector<8x32xf32>
    %121 = tpu.matmul %118, %31, %cst_69 {dimension_numbers = #tpu.dot_dimension_numbers<[1], [0], [0], [1], [0, 0, 1, 1], [], []>} : vector<8x32xf32>, vector<32x32xf32>, vector<8x32xf32> -> vector<8x32xf32>
    %122 = arith.addf %120, %121 : vector<8x32xf32>
    %123 = vector.extract_strided_slice %15 {offsets = [16, 0], sizes = [8, 32], strides = [1, 1]} : vector<64x32xf32> to vector<8x32xf32>
    %cst_70 = arith.constant dense<0.000000e+00> : vector<8x32xf32>
    %124 = tpu.matmul %118, %33, %cst_70 {dimension_numbers = #tpu.dot_dimension_numbers<[1], [0], [0], [1], [0, 0, 1, 1], [], []>} : vector<8x32xf32>, vector<32x32xf32>, vector<8x32xf32> -> vector<8x32xf32>
    %125 = arith.addf %123, %124 : vector<8x32xf32>
    %126 = vector.extract_strided_slice %22 {offsets = [16, 0], sizes = [8, 32], strides = [1, 1]} : vector<64x32xf32> to vector<8x32xf32>
    %cst_71 = arith.constant dense<0.000000e+00> : vector<8x32xf32>
    %127 = tpu.matmul %118, %35, %cst_71 {dimension_numbers = #tpu.dot_dimension_numbers<[1], [0], [0], [1], [0, 0, 1, 1], [], []>} : vector<8x32xf32>, vector<32x32xf32>, vector<8x32xf32> -> vector<8x32xf32>
    %128 = arith.addf %126, %127 : vector<8x32xf32>
    %129 = vector.extract_strided_slice %29 {offsets = [16, 0], sizes = [8, 32], strides = [1, 1]} : vector<64x32xf32> to vector<8x32xf32>
    %cst_72 = arith.constant dense<0.000000e+00> : vector<8x32xf32>
    %130 = tpu.matmul %118, %37, %cst_72 {dimension_numbers = #tpu.dot_dimension_numbers<[1], [0], [0], [1], [0, 0, 1, 1], [], []>} : vector<8x32xf32>, vector<32x32xf32>, vector<8x32xf32> -> vector<8x32xf32>
    %131 = arith.addf %129, %130 : vector<8x32xf32>
    %cst_73 = arith.constant 5.000000e-01 : f32
    %132 = vector.broadcast %cst_73 : f32 to vector<8x32xf32>
    %133 = arith.mulf %132, %122 : vector<8x32xf32>
    %134 = math.tanh %133 : vector<8x32xf32>
    %cst_74 = arith.constant 5.000000e-01 : f32
    %135 = vector.broadcast %cst_74 : f32 to vector<8x32xf32>
    %136 = arith.mulf %135, %134 : vector<8x32xf32>
    %cst_75 = arith.constant 5.000000e-01 : f32
    %137 = vector.broadcast %cst_75 : f32 to vector<8x32xf32>
    %138 = arith.addf %136, %137 : vector<8x32xf32>
    %cst_76 = arith.constant 5.000000e-01 : f32
    %139 = vector.broadcast %cst_76 : f32 to vector<8x32xf32>
    %140 = arith.mulf %139, %125 : vector<8x32xf32>
    %141 = math.tanh %140 : vector<8x32xf32>
    %cst_77 = arith.constant 5.000000e-01 : f32
    %142 = vector.broadcast %cst_77 : f32 to vector<8x32xf32>
    %143 = arith.mulf %142, %141 : vector<8x32xf32>
    %cst_78 = arith.constant 5.000000e-01 : f32
    %144 = vector.broadcast %cst_78 : f32 to vector<8x32xf32>
    %145 = arith.addf %143, %144 : vector<8x32xf32>
    %146 = math.tanh %128 : vector<8x32xf32>
    %cst_79 = arith.constant 5.000000e-01 : f32
    %147 = vector.broadcast %cst_79 : f32 to vector<8x32xf32>
    %148 = arith.mulf %147, %131 : vector<8x32xf32>
    %149 = math.tanh %148 : vector<8x32xf32>
    %cst_80 = arith.constant 5.000000e-01 : f32
    %150 = vector.broadcast %cst_80 : f32 to vector<8x32xf32>
    %151 = arith.mulf %150, %149 : vector<8x32xf32>
    %cst_81 = arith.constant 5.000000e-01 : f32
    %152 = vector.broadcast %cst_81 : f32 to vector<8x32xf32>
    %153 = arith.addf %151, %152 : vector<8x32xf32>
    %154 = arith.mulf %145, %116 : vector<8x32xf32>
    %155 = arith.mulf %138, %146 : vector<8x32xf32>
    %156 = arith.addf %154, %155 : vector<8x32xf32>
    %157 = math.tanh %156 : vector<8x32xf32>
    %158 = arith.mulf %153, %157 : vector<8x32xf32>
    %c16 = arith.constant 16 : index
    %c0_82 = arith.constant 0 : index
    %159 = vector.load %arg10[%c16, %c0_82] : memref<64x32xf32, #tpu.memory_space<vmem>>, vector<8x32xf32>
    tpu.vector_store %arg10[%c16, %c0_82], %158 {strides = array<i32>} : memref<64x32xf32, #tpu.memory_space<vmem>>, vector<8x32xf32>,
    %160 = vector.extract_strided_slice %8 {offsets = [24, 0], sizes = [8, 32], strides = [1, 1]} : vector<64x32xf32> to vector<8x32xf32>
    %cst_83 = arith.constant dense<0.000000e+00> : vector<8x32xf32>
    %161 = tpu.matmul %158, %31, %cst_83 {dimension_numbers = #tpu.dot_dimension_numbers<[1], [0], [0], [1], [0, 0, 1, 1], [], []>} : vector<8x32xf32>, vector<32x32xf32>, vector<8x32xf32> -> vector<8x32xf32>
    %162 = arith.addf %160, %161 : vector<8x32xf32>
    %163 = vector.extract_strided_slice %15 {offsets = [24, 0], sizes = [8, 32], strides = [1, 1]} : vector<64x32xf32> to vector<8x32xf32>
    %cst_84 = arith.constant dense<0.000000e+00> : vector<8x32xf32>
    %164 = tpu.matmul %158, %33, %cst_84 {dimension_numbers = #tpu.dot_dimension_numbers<[1], [0], [0], [1], [0, 0, 1, 1], [], []>} : vector<8x32xf32>, vector<32x32xf32>, vector<8x32xf32> -> vector<8x32xf32>
    %165 = arith.addf %163, %164 : vector<8x32xf32>
    %166 = vector.extract_strided_slice %22 {offsets = [24, 0], sizes = [8, 32], strides = [1, 1]} : vector<64x32xf32> to vector<8x32xf32>
    %cst_85 = arith.constant dense<0.000000e+00> : vector<8x32xf32>
    %167 = tpu.matmul %158, %35, %cst_85 {dimension_numbers = #tpu.dot_dimension_numbers<[1], [0], [0], [1], [0, 0, 1, 1], [], []>} : vector<8x32xf32>, vector<32x32xf32>, vector<8x32xf32> -> vector<8x32xf32>
    %168 = arith.addf %166, %167 : vector<8x32xf32>
    %169 = vector.extract_strided_slice %29 {offsets = [24, 0], sizes = [8, 32], strides = [1, 1]} : vector<64x32xf32> to vector<8x32xf32>
    %cst_86 = arith.constant dense<0.000000e+00> : vector<8x32xf32>
    %170 = tpu.matmul %158, %37, %cst_86 {dimension_numbers = #tpu.dot_dimension_numbers<[1], [0], [0], [1], [0, 0, 1, 1], [], []>} : vector<8x32xf32>, vector<32x32xf32>, vector<8x32xf32> -> vector<8x32xf32>
    %171 = arith.addf %169, %170 : vector<8x32xf32>
    %cst_87 = arith.constant 5.000000e-01 : f32
    %172 = vector.broadcast %cst_87 : f32 to vector<8x32xf32>
    %173 = arith.mulf %172, %162 : vector<8x32xf32>
    %174 = math.tanh %173 : vector<8x32xf32>
    %cst_88 = arith.constant 5.000000e-01 : f32
    %175 = vector.broadcast %cst_88 : f32 to vector<8x32xf32>
    %176 = arith.mulf %175, %174 : vector<8x32xf32>
    %cst_89 = arith.constant 5.000000e-01 : f32
    %177 = vector.broadcast %cst_89 : f32 to vector<8x32xf32>
    %178 = arith.addf %176, %177 : vector<8x32xf32>
    %cst_90 = arith.constant 5.000000e-01 : f32
    %179 = vector.broadcast %cst_90 : f32 to vector<8x32xf32>
    %180 = arith.mulf %179, %165 : vector<8x32xf32>
    %181 = math.tanh %180 : vector<8x32xf32>
    %cst_91 = arith.constant 5.000000e-01 : f32
    %182 = vector.broadcast %cst_91 : f32 to vector<8x32xf32>
    %183 = arith.mulf %182, %181 : vector<8x32xf32>
    %cst_92 = arith.constant 5.000000e-01 : f32
    %184 = vector.broadcast %cst_92 : f32 to vector<8x32xf32>
    %185 = arith.addf %183, %184 : vector<8x32xf32>
    %186 = math.tanh %168 : vector<8x32xf32>
    %cst_93 = arith.constant 5.000000e-01 : f32
    %187 = vector.broadcast %cst_93 : f32 to vector<8x32xf32>
    %188 = arith.mulf %187, %171 : vector<8x32xf32>
    %189 = math.tanh %188 : vector<8x32xf32>
    %cst_94 = arith.constant 5.000000e-01 : f32
    %190 = vector.broadcast %cst_94 : f32 to vector<8x32xf32>
    %191 = arith.mulf %190, %189 : vector<8x32xf32>
    %cst_95 = arith.constant 5.000000e-01 : f32
    %192 = vector.broadcast %cst_95 : f32 to vector<8x32xf32>
    %193 = arith.addf %191, %192 : vector<8x32xf32>
    %194 = arith.mulf %185, %156 : vector<8x32xf32>
    %195 = arith.mulf %178, %186 : vector<8x32xf32>
    %196 = arith.addf %194, %195 : vector<8x32xf32>
    %197 = math.tanh %196 : vector<8x32xf32>
    %198 = arith.mulf %193, %197 : vector<8x32xf32>
    %c24 = arith.constant 24 : index
    %c0_96 = arith.constant 0 : index
    %199 = vector.load %arg10[%c24, %c0_96] : memref<64x32xf32, #tpu.memory_space<vmem>>, vector<8x32xf32>
    tpu.vector_store %arg10[%c24, %c0_96], %198 {strides = array<i32>} : memref<64x32xf32, #tpu.memory_space<vmem>>, vector<8x32xf32>,
    %200 = vector.extract_strided_slice %8 {offsets = [32, 0], sizes = [8, 32], strides = [1, 1]} : vector<64x32xf32> to vector<8x32xf32>
    %cst_97 = arith.constant dense<0.000000e+00> : vector<8x32xf32>
    %201 = tpu.matmul %198, %31, %cst_97 {dimension_numbers = #tpu.dot_dimension_numbers<[1], [0], [0], [1], [0, 0, 1, 1], [], []>} : vector<8x32xf32>, vector<32x32xf32>, vector<8x32xf32> -> vector<8x32xf32>
    %202 = arith.addf %200, %201 : vector<8x32xf32>
    %203 = vector.extract_strided_slice %15 {offsets = [32, 0], sizes = [8, 32], strides = [1, 1]} : vector<64x32xf32> to vector<8x32xf32>
    %cst_98 = arith.constant dense<0.000000e+00> : vector<8x32xf32>
    %204 = tpu.matmul %198, %33, %cst_98 {dimension_numbers = #tpu.dot_dimension_numbers<[1], [0], [0], [1], [0, 0, 1, 1], [], []>} : vector<8x32xf32>, vector<32x32xf32>, vector<8x32xf32> -> vector<8x32xf32>
    %205 = arith.addf %203, %204 : vector<8x32xf32>
    %206 = vector.extract_strided_slice %22 {offsets = [32, 0], sizes = [8, 32], strides = [1, 1]} : vector<64x32xf32> to vector<8x32xf32>
    %cst_99 = arith.constant dense<0.000000e+00> : vector<8x32xf32>
    %207 = tpu.matmul %198, %35, %cst_99 {dimension_numbers = #tpu.dot_dimension_numbers<[1], [0], [0], [1], [0, 0, 1, 1], [], []>} : vector<8x32xf32>, vector<32x32xf32>, vector<8x32xf32> -> vector<8x32xf32>
    %208 = arith.addf %206, %207 : vector<8x32xf32>
    %209 = vector.extract_strided_slice %29 {offsets = [32, 0], sizes = [8, 32], strides = [1, 1]} : vector<64x32xf32> to vector<8x32xf32>
    %cst_100 = arith.constant dense<0.000000e+00> : vector<8x32xf32>
    %210 = tpu.matmul %198, %37, %cst_100 {dimension_numbers = #tpu.dot_dimension_numbers<[1], [0], [0], [1], [0, 0, 1, 1], [], []>} : vector<8x32xf32>, vector<32x32xf32>, vector<8x32xf32> -> vector<8x32xf32>
    %211 = arith.addf %209, %210 : vector<8x32xf32>
    %cst_101 = arith.constant 5.000000e-01 : f32
    %212 = vector.broadcast %cst_101 : f32 to vector<8x32xf32>
    %213 = arith.mulf %212, %202 : vector<8x32xf32>
    %214 = math.tanh %213 : vector<8x32xf32>
    %cst_102 = arith.constant 5.000000e-01 : f32
    %215 = vector.broadcast %cst_102 : f32 to vector<8x32xf32>
    %216 = arith.mulf %215, %214 : vector<8x32xf32>
    %cst_103 = arith.constant 5.000000e-01 : f32
    %217 = vector.broadcast %cst_103 : f32 to vector<8x32xf32>
    %218 = arith.addf %216, %217 : vector<8x32xf32>
    %cst_104 = arith.constant 5.000000e-01 : f32
    %219 = vector.broadcast %cst_104 : f32 to vector<8x32xf32>
    %220 = arith.mulf %219, %205 : vector<8x32xf32>
    %221 = math.tanh %220 : vector<8x32xf32>
    %cst_105 = arith.constant 5.000000e-01 : f32
    %222 = vector.broadcast %cst_105 : f32 to vector<8x32xf32>
    %223 = arith.mulf %222, %221 : vector<8x32xf32>
    %cst_106 = arith.constant 5.000000e-01 : f32
    %224 = vector.broadcast %cst_106 : f32 to vector<8x32xf32>
    %225 = arith.addf %223, %224 : vector<8x32xf32>
    %226 = math.tanh %208 : vector<8x32xf32>
    %cst_107 = arith.constant 5.000000e-01 : f32
    %227 = vector.broadcast %cst_107 : f32 to vector<8x32xf32>
    %228 = arith.mulf %227, %211 : vector<8x32xf32>
    %229 = math.tanh %228 : vector<8x32xf32>
    %cst_108 = arith.constant 5.000000e-01 : f32
    %230 = vector.broadcast %cst_108 : f32 to vector<8x32xf32>
    %231 = arith.mulf %230, %229 : vector<8x32xf32>
    %cst_109 = arith.constant 5.000000e-01 : f32
    %232 = vector.broadcast %cst_109 : f32 to vector<8x32xf32>
    %233 = arith.addf %231, %232 : vector<8x32xf32>
    %234 = arith.mulf %225, %196 : vector<8x32xf32>
    %235 = arith.mulf %218, %226 : vector<8x32xf32>
    %236 = arith.addf %234, %235 : vector<8x32xf32>
    %237 = math.tanh %236 : vector<8x32xf32>
    %238 = arith.mulf %233, %237 : vector<8x32xf32>
    %c32 = arith.constant 32 : index
    %c0_110 = arith.constant 0 : index
    %239 = vector.load %arg10[%c32, %c0_110] : memref<64x32xf32, #tpu.memory_space<vmem>>, vector<8x32xf32>
    tpu.vector_store %arg10[%c32, %c0_110], %238 {strides = array<i32>} : memref<64x32xf32, #tpu.memory_space<vmem>>, vector<8x32xf32>,
    %240 = vector.extract_strided_slice %8 {offsets = [40, 0], sizes = [8, 32], strides = [1, 1]} : vector<64x32xf32> to vector<8x32xf32>
    %cst_111 = arith.constant dense<0.000000e+00> : vector<8x32xf32>
    %241 = tpu.matmul %238, %31, %cst_111 {dimension_numbers = #tpu.dot_dimension_numbers<[1], [0], [0], [1], [0, 0, 1, 1], [], []>} : vector<8x32xf32>, vector<32x32xf32>, vector<8x32xf32> -> vector<8x32xf32>
    %242 = arith.addf %240, %241 : vector<8x32xf32>
    %243 = vector.extract_strided_slice %15 {offsets = [40, 0], sizes = [8, 32], strides = [1, 1]} : vector<64x32xf32> to vector<8x32xf32>
    %cst_112 = arith.constant dense<0.000000e+00> : vector<8x32xf32>
    %244 = tpu.matmul %238, %33, %cst_112 {dimension_numbers = #tpu.dot_dimension_numbers<[1], [0], [0], [1], [0, 0, 1, 1], [], []>} : vector<8x32xf32>, vector<32x32xf32>, vector<8x32xf32> -> vector<8x32xf32>
    %245 = arith.addf %243, %244 : vector<8x32xf32>
    %246 = vector.extract_strided_slice %22 {offsets = [40, 0], sizes = [8, 32], strides = [1, 1]} : vector<64x32xf32> to vector<8x32xf32>
    %cst_113 = arith.constant dense<0.000000e+00> : vector<8x32xf32>
    %247 = tpu.matmul %238, %35, %cst_113 {dimension_numbers = #tpu.dot_dimension_numbers<[1], [0], [0], [1], [0, 0, 1, 1], [], []>} : vector<8x32xf32>, vector<32x32xf32>, vector<8x32xf32> -> vector<8x32xf32>
    %248 = arith.addf %246, %247 : vector<8x32xf32>
    %249 = vector.extract_strided_slice %29 {offsets = [40, 0], sizes = [8, 32], strides = [1, 1]} : vector<64x32xf32> to vector<8x32xf32>
    %cst_114 = arith.constant dense<0.000000e+00> : vector<8x32xf32>
    %250 = tpu.matmul %238, %37, %cst_114 {dimension_numbers = #tpu.dot_dimension_numbers<[1], [0], [0], [1], [0, 0, 1, 1], [], []>} : vector<8x32xf32>, vector<32x32xf32>, vector<8x32xf32> -> vector<8x32xf32>
    %251 = arith.addf %249, %250 : vector<8x32xf32>
    %cst_115 = arith.constant 5.000000e-01 : f32
    %252 = vector.broadcast %cst_115 : f32 to vector<8x32xf32>
    %253 = arith.mulf %252, %242 : vector<8x32xf32>
    %254 = math.tanh %253 : vector<8x32xf32>
    %cst_116 = arith.constant 5.000000e-01 : f32
    %255 = vector.broadcast %cst_116 : f32 to vector<8x32xf32>
    %256 = arith.mulf %255, %254 : vector<8x32xf32>
    %cst_117 = arith.constant 5.000000e-01 : f32
    %257 = vector.broadcast %cst_117 : f32 to vector<8x32xf32>
    %258 = arith.addf %256, %257 : vector<8x32xf32>
    %cst_118 = arith.constant 5.000000e-01 : f32
    %259 = vector.broadcast %cst_118 : f32 to vector<8x32xf32>
    %260 = arith.mulf %259, %245 : vector<8x32xf32>
    %261 = math.tanh %260 : vector<8x32xf32>
    %cst_119 = arith.constant 5.000000e-01 : f32
    %262 = vector.broadcast %cst_119 : f32 to vector<8x32xf32>
    %263 = arith.mulf %262, %261 : vector<8x32xf32>
    %cst_120 = arith.constant 5.000000e-01 : f32
    %264 = vector.broadcast %cst_120 : f32 to vector<8x32xf32>
    %265 = arith.addf %263, %264 : vector<8x32xf32>
    %266 = math.tanh %248 : vector<8x32xf32>
    %cst_121 = arith.constant 5.000000e-01 : f32
    %267 = vector.broadcast %cst_121 : f32 to vector<8x32xf32>
    %268 = arith.mulf %267, %251 : vector<8x32xf32>
    %269 = math.tanh %268 : vector<8x32xf32>
    %cst_122 = arith.constant 5.000000e-01 : f32
    %270 = vector.broadcast %cst_122 : f32 to vector<8x32xf32>
    %271 = arith.mulf %270, %269 : vector<8x32xf32>
    %cst_123 = arith.constant 5.000000e-01 : f32
    %272 = vector.broadcast %cst_123 : f32 to vector<8x32xf32>
    %273 = arith.addf %271, %272 : vector<8x32xf32>
    %274 = arith.mulf %265, %236 : vector<8x32xf32>
    %275 = arith.mulf %258, %266 : vector<8x32xf32>
    %276 = arith.addf %274, %275 : vector<8x32xf32>
    %277 = math.tanh %276 : vector<8x32xf32>
    %278 = arith.mulf %273, %277 : vector<8x32xf32>
    %c40 = arith.constant 40 : index
    %c0_124 = arith.constant 0 : index
    %279 = vector.load %arg10[%c40, %c0_124] : memref<64x32xf32, #tpu.memory_space<vmem>>, vector<8x32xf32>
    tpu.vector_store %arg10[%c40, %c0_124], %278 {strides = array<i32>} : memref<64x32xf32, #tpu.memory_space<vmem>>, vector<8x32xf32>,
    %280 = vector.extract_strided_slice %8 {offsets = [48, 0], sizes = [8, 32], strides = [1, 1]} : vector<64x32xf32> to vector<8x32xf32>
    %cst_125 = arith.constant dense<0.000000e+00> : vector<8x32xf32>
    %281 = tpu.matmul %278, %31, %cst_125 {dimension_numbers = #tpu.dot_dimension_numbers<[1], [0], [0], [1], [0, 0, 1, 1], [], []>} : vector<8x32xf32>, vector<32x32xf32>, vector<8x32xf32> -> vector<8x32xf32>
    %282 = arith.addf %280, %281 : vector<8x32xf32>
    %283 = vector.extract_strided_slice %15 {offsets = [48, 0], sizes = [8, 32], strides = [1, 1]} : vector<64x32xf32> to vector<8x32xf32>
    %cst_126 = arith.constant dense<0.000000e+00> : vector<8x32xf32>
    %284 = tpu.matmul %278, %33, %cst_126 {dimension_numbers = #tpu.dot_dimension_numbers<[1], [0], [0], [1], [0, 0, 1, 1], [], []>} : vector<8x32xf32>, vector<32x32xf32>, vector<8x32xf32> -> vector<8x32xf32>
    %285 = arith.addf %283, %284 : vector<8x32xf32>
    %286 = vector.extract_strided_slice %22 {offsets = [48, 0], sizes = [8, 32], strides = [1, 1]} : vector<64x32xf32> to vector<8x32xf32>
    %cst_127 = arith.constant dense<0.000000e+00> : vector<8x32xf32>
    %287 = tpu.matmul %278, %35, %cst_127 {dimension_numbers = #tpu.dot_dimension_numbers<[1], [0], [0], [1], [0, 0, 1, 1], [], []>} : vector<8x32xf32>, vector<32x32xf32>, vector<8x32xf32> -> vector<8x32xf32>
    %288 = arith.addf %286, %287 : vector<8x32xf32>
    %289 = vector.extract_strided_slice %29 {offsets = [48, 0], sizes = [8, 32], strides = [1, 1]} : vector<64x32xf32> to vector<8x32xf32>
    %cst_128 = arith.constant dense<0.000000e+00> : vector<8x32xf32>
    %290 = tpu.matmul %278, %37, %cst_128 {dimension_numbers = #tpu.dot_dimension_numbers<[1], [0], [0], [1], [0, 0, 1, 1], [], []>} : vector<8x32xf32>, vector<32x32xf32>, vector<8x32xf32> -> vector<8x32xf32>
    %291 = arith.addf %289, %290 : vector<8x32xf32>
    %cst_129 = arith.constant 5.000000e-01 : f32
    %292 = vector.broadcast %cst_129 : f32 to vector<8x32xf32>
    %293 = arith.mulf %292, %282 : vector<8x32xf32>
    %294 = math.tanh %293 : vector<8x32xf32>
    %cst_130 = arith.constant 5.000000e-01 : f32
    %295 = vector.broadcast %cst_130 : f32 to vector<8x32xf32>
    %296 = arith.mulf %295, %294 : vector<8x32xf32>
    %cst_131 = arith.constant 5.000000e-01 : f32
    %297 = vector.broadcast %cst_131 : f32 to vector<8x32xf32>
    %298 = arith.addf %296, %297 : vector<8x32xf32>
    %cst_132 = arith.constant 5.000000e-01 : f32
    %299 = vector.broadcast %cst_132 : f32 to vector<8x32xf32>
    %300 = arith.mulf %299, %285 : vector<8x32xf32>
    %301 = math.tanh %300 : vector<8x32xf32>
    %cst_133 = arith.constant 5.000000e-01 : f32
    %302 = vector.broadcast %cst_133 : f32 to vector<8x32xf32>
    %303 = arith.mulf %302, %301 : vector<8x32xf32>
    %cst_134 = arith.constant 5.000000e-01 : f32
    %304 = vector.broadcast %cst_134 : f32 to vector<8x32xf32>
    %305 = arith.addf %303, %304 : vector<8x32xf32>
    %306 = math.tanh %288 : vector<8x32xf32>
    %cst_135 = arith.constant 5.000000e-01 : f32
    %307 = vector.broadcast %cst_135 : f32 to vector<8x32xf32>
    %308 = arith.mulf %307, %291 : vector<8x32xf32>
    %309 = math.tanh %308 : vector<8x32xf32>
    %cst_136 = arith.constant 5.000000e-01 : f32
    %310 = vector.broadcast %cst_136 : f32 to vector<8x32xf32>
    %311 = arith.mulf %310, %309 : vector<8x32xf32>
    %cst_137 = arith.constant 5.000000e-01 : f32
    %312 = vector.broadcast %cst_137 : f32 to vector<8x32xf32>
    %313 = arith.addf %311, %312 : vector<8x32xf32>
    %314 = arith.mulf %305, %276 : vector<8x32xf32>
    %315 = arith.mulf %298, %306 : vector<8x32xf32>
    %316 = arith.addf %314, %315 : vector<8x32xf32>
    %317 = math.tanh %316 : vector<8x32xf32>
    %318 = arith.mulf %313, %317 : vector<8x32xf32>
    %c48 = arith.constant 48 : index
    %c0_138 = arith.constant 0 : index
    %319 = vector.load %arg10[%c48, %c0_138] : memref<64x32xf32, #tpu.memory_space<vmem>>, vector<8x32xf32>
    tpu.vector_store %arg10[%c48, %c0_138], %318 {strides = array<i32>} : memref<64x32xf32, #tpu.memory_space<vmem>>, vector<8x32xf32>,
    %320 = vector.extract_strided_slice %8 {offsets = [56, 0], sizes = [8, 32], strides = [1, 1]} : vector<64x32xf32> to vector<8x32xf32>
    %cst_139 = arith.constant dense<0.000000e+00> : vector<8x32xf32>
    %321 = tpu.matmul %318, %31, %cst_139 {dimension_numbers = #tpu.dot_dimension_numbers<[1], [0], [0], [1], [0, 0, 1, 1], [], []>} : vector<8x32xf32>, vector<32x32xf32>, vector<8x32xf32> -> vector<8x32xf32>
    %322 = arith.addf %320, %321 : vector<8x32xf32>
    %323 = vector.extract_strided_slice %15 {offsets = [56, 0], sizes = [8, 32], strides = [1, 1]} : vector<64x32xf32> to vector<8x32xf32>
    %cst_140 = arith.constant dense<0.000000e+00> : vector<8x32xf32>
    %324 = tpu.matmul %318, %33, %cst_140 {dimension_numbers = #tpu.dot_dimension_numbers<[1], [0], [0], [1], [0, 0, 1, 1], [], []>} : vector<8x32xf32>, vector<32x32xf32>, vector<8x32xf32> -> vector<8x32xf32>
    %325 = arith.addf %323, %324 : vector<8x32xf32>
    %326 = vector.extract_strided_slice %22 {offsets = [56, 0], sizes = [8, 32], strides = [1, 1]} : vector<64x32xf32> to vector<8x32xf32>
    %cst_141 = arith.constant dense<0.000000e+00> : vector<8x32xf32>
    %327 = tpu.matmul %318, %35, %cst_141 {dimension_numbers = #tpu.dot_dimension_numbers<[1], [0], [0], [1], [0, 0, 1, 1], [], []>} : vector<8x32xf32>, vector<32x32xf32>, vector<8x32xf32> -> vector<8x32xf32>
    %328 = arith.addf %326, %327 : vector<8x32xf32>
    %329 = vector.extract_strided_slice %29 {offsets = [56, 0], sizes = [8, 32], strides = [1, 1]} : vector<64x32xf32> to vector<8x32xf32>
    %cst_142 = arith.constant dense<0.000000e+00> : vector<8x32xf32>
    %330 = tpu.matmul %318, %37, %cst_142 {dimension_numbers = #tpu.dot_dimension_numbers<[1], [0], [0], [1], [0, 0, 1, 1], [], []>} : vector<8x32xf32>, vector<32x32xf32>, vector<8x32xf32> -> vector<8x32xf32>
    %331 = arith.addf %329, %330 : vector<8x32xf32>
    %cst_143 = arith.constant 5.000000e-01 : f32
    %332 = vector.broadcast %cst_143 : f32 to vector<8x32xf32>
    %333 = arith.mulf %332, %322 : vector<8x32xf32>
    %334 = math.tanh %333 : vector<8x32xf32>
    %cst_144 = arith.constant 5.000000e-01 : f32
    %335 = vector.broadcast %cst_144 : f32 to vector<8x32xf32>
    %336 = arith.mulf %335, %334 : vector<8x32xf32>
    %cst_145 = arith.constant 5.000000e-01 : f32
    %337 = vector.broadcast %cst_145 : f32 to vector<8x32xf32>
    %338 = arith.addf %336, %337 : vector<8x32xf32>
    %cst_146 = arith.constant 5.000000e-01 : f32
    %339 = vector.broadcast %cst_146 : f32 to vector<8x32xf32>
    %340 = arith.mulf %339, %325 : vector<8x32xf32>
    %341 = math.tanh %340 : vector<8x32xf32>
    %cst_147 = arith.constant 5.000000e-01 : f32
    %342 = vector.broadcast %cst_147 : f32 to vector<8x32xf32>
    %343 = arith.mulf %342, %341 : vector<8x32xf32>
    %cst_148 = arith.constant 5.000000e-01 : f32
    %344 = vector.broadcast %cst_148 : f32 to vector<8x32xf32>
    %345 = arith.addf %343, %344 : vector<8x32xf32>
    %346 = math.tanh %328 : vector<8x32xf32>
    %cst_149 = arith.constant 5.000000e-01 : f32
    %347 = vector.broadcast %cst_149 : f32 to vector<8x32xf32>
    %348 = arith.mulf %347, %331 : vector<8x32xf32>
    %349 = math.tanh %348 : vector<8x32xf32>
    %cst_150 = arith.constant 5.000000e-01 : f32
    %350 = vector.broadcast %cst_150 : f32 to vector<8x32xf32>
    %351 = arith.mulf %350, %349 : vector<8x32xf32>
    %cst_151 = arith.constant 5.000000e-01 : f32
    %352 = vector.broadcast %cst_151 : f32 to vector<8x32xf32>
    %353 = arith.addf %351, %352 : vector<8x32xf32>
    %354 = arith.mulf %345, %316 : vector<8x32xf32>
    %355 = arith.mulf %338, %346 : vector<8x32xf32>
    %356 = arith.addf %354, %355 : vector<8x32xf32>
    %357 = math.tanh %356 : vector<8x32xf32>
    %358 = arith.mulf %353, %357 : vector<8x32xf32>
    %c56 = arith.constant 56 : index
    %c0_152 = arith.constant 0 : index
    %359 = vector.load %arg10[%c56, %c0_152] : memref<64x32xf32, #tpu.memory_space<vmem>>, vector<8x32xf32>
    tpu.vector_store %arg10[%c56, %c0_152], %358 {strides = array<i32>} : memref<64x32xf32, #tpu.memory_space<vmem>>, vector<8x32xf32>,
    %c0_153 = arith.constant 0 : index
    %c0_154 = arith.constant 0 : index
    %360 = vector.load %arg10[%c0_153, %c0_154] : memref<64x32xf32, #tpu.memory_space<vmem>>, vector<64x32xf32>
    %c0_155 = arith.constant 0 : index
    %c0_156 = arith.constant 0 : index
    %c0_157 = arith.constant 0 : index
    %361 = vector.load %arg4[%c0_155, %c0_156, %c0_157] : memref<4x32x32xf32, #tpu.memory_space<vmem>>, vector<1x32x32xf32>
    %362 = vector.shape_cast %361 : vector<1x32x32xf32> to vector<32x32xf32>
    %cst_158 = arith.constant dense<0.000000e+00> : vector<64x32xf32>
    %363 = tpu.matmul %360, %362, %cst_158 {dimension_numbers = #tpu.dot_dimension_numbers<[1], [0], [0], [1], [0, 0, 1, 1], [], []>} : vector<64x32xf32>, vector<32x32xf32>, vector<64x32xf32> -> vector<64x32xf32>
    %c0_159 = arith.constant 0 : index
    %c0_160 = arith.constant 0 : index
    %c0_161 = arith.constant 0 : index
    %364 = vector.load %arg6[%c0_159, %c0_160, %c0_161] : memref<4x1x32xf32, #tpu.memory_space<vmem>>, vector<1x1x32xf32>
    %365 = vector.shape_cast %364 : vector<1x1x32xf32> to vector<1x32xf32>
    %366 = vector.broadcast %365 : vector<1x32xf32> to vector<64x32xf32>
    %367 = arith.addf %363, %366 : vector<64x32xf32>
    %c1_162 = arith.constant 1 : index
    %c0_163 = arith.constant 0 : index
    %c0_164 = arith.constant 0 : index
    %368 = vector.load %arg4[%c1_162, %c0_163, %c0_164] : memref<4x32x32xf32, #tpu.memory_space<vmem>>, vector<1x32x32xf32>
    %369 = vector.shape_cast %368 : vector<1x32x32xf32> to vector<32x32xf32>
    %cst_165 = arith.constant dense<0.000000e+00> : vector<64x32xf32>
    %370 = tpu.matmul %360, %369, %cst_165 {dimension_numbers = #tpu.dot_dimension_numbers<[1], [0], [0], [1], [0, 0, 1, 1], [], []>} : vector<64x32xf32>, vector<32x32xf32>, vector<64x32xf32> -> vector<64x32xf32>
    %c1_166 = arith.constant 1 : index
    %c0_167 = arith.constant 0 : index
    %c0_168 = arith.constant 0 : index
    %371 = vector.load %arg6[%c1_166, %c0_167, %c0_168] : memref<4x1x32xf32, #tpu.memory_space<vmem>>, vector<1x1x32xf32>
    %372 = vector.shape_cast %371 : vector<1x1x32xf32> to vector<1x32xf32>
    %373 = vector.broadcast %372 : vector<1x32xf32> to vector<64x32xf32>
    %374 = arith.addf %370, %373 : vector<64x32xf32>
    %c2_169 = arith.constant 2 : index
    %c0_170 = arith.constant 0 : index
    %c0_171 = arith.constant 0 : index
    %375 = vector.load %arg4[%c2_169, %c0_170, %c0_171] : memref<4x32x32xf32, #tpu.memory_space<vmem>>, vector<1x32x32xf32>
    %376 = vector.shape_cast %375 : vector<1x32x32xf32> to vector<32x32xf32>
    %cst_172 = arith.constant dense<0.000000e+00> : vector<64x32xf32>
    %377 = tpu.matmul %360, %376, %cst_172 {dimension_numbers = #tpu.dot_dimension_numbers<[1], [0], [0], [1], [0, 0, 1, 1], [], []>} : vector<64x32xf32>, vector<32x32xf32>, vector<64x32xf32> -> vector<64x32xf32>
    %c2_173 = arith.constant 2 : index
    %c0_174 = arith.constant 0 : index
    %c0_175 = arith.constant 0 : index
    %378 = vector.load %arg6[%c2_173, %c0_174, %c0_175] : memref<4x1x32xf32, #tpu.memory_space<vmem>>, vector<1x1x32xf32>
    %379 = vector.shape_cast %378 : vector<1x1x32xf32> to vector<1x32xf32>
    %380 = vector.broadcast %379 : vector<1x32xf32> to vector<64x32xf32>
    %381 = arith.addf %377, %380 : vector<64x32xf32>
    %c3_176 = arith.constant 3 : index
    %c0_177 = arith.constant 0 : index
    %c0_178 = arith.constant 0 : index
    %382 = vector.load %arg4[%c3_176, %c0_177, %c0_178] : memref<4x32x32xf32, #tpu.memory_space<vmem>>, vector<1x32x32xf32>
    %383 = vector.shape_cast %382 : vector<1x32x32xf32> to vector<32x32xf32>
    %cst_179 = arith.constant dense<0.000000e+00> : vector<64x32xf32>
    %384 = tpu.matmul %360, %383, %cst_179 {dimension_numbers = #tpu.dot_dimension_numbers<[1], [0], [0], [1], [0, 0, 1, 1], [], []>} : vector<64x32xf32>, vector<32x32xf32>, vector<64x32xf32> -> vector<64x32xf32>
    %c3_180 = arith.constant 3 : index
    %c0_181 = arith.constant 0 : index
    %c0_182 = arith.constant 0 : index
    %385 = vector.load %arg6[%c3_180, %c0_181, %c0_182] : memref<4x1x32xf32, #tpu.memory_space<vmem>>, vector<1x1x32xf32>
    %386 = vector.shape_cast %385 : vector<1x1x32xf32> to vector<1x32xf32>
    %387 = vector.broadcast %386 : vector<1x32xf32> to vector<64x32xf32>
    %388 = arith.addf %384, %387 : vector<64x32xf32>
    %c0_183 = arith.constant 0 : index
    %c0_184 = arith.constant 0 : index
    %c0_185 = arith.constant 0 : index
    %389 = vector.load %arg5[%c0_183, %c0_184, %c0_185] : memref<4x32x32xf32, #tpu.memory_space<vmem>>, vector<1x32x32xf32>
    %390 = vector.shape_cast %389 : vector<1x32x32xf32> to vector<32x32xf32>
    %c1_186 = arith.constant 1 : index
    %c0_187 = arith.constant 0 : index
    %c0_188 = arith.constant 0 : index
    %391 = vector.load %arg5[%c1_186, %c0_187, %c0_188] : memref<4x32x32xf32, #tpu.memory_space<vmem>>, vector<1x32x32xf32>
    %392 = vector.shape_cast %391 : vector<1x32x32xf32> to vector<32x32xf32>
    %c2_189 = arith.constant 2 : index
    %c0_190 = arith.constant 0 : index
    %c0_191 = arith.constant 0 : index
    %393 = vector.load %arg5[%c2_189, %c0_190, %c0_191] : memref<4x32x32xf32, #tpu.memory_space<vmem>>, vector<1x32x32xf32>
    %394 = vector.shape_cast %393 : vector<1x32x32xf32> to vector<32x32xf32>
    %c3_192 = arith.constant 3 : index
    %c0_193 = arith.constant 0 : index
    %c0_194 = arith.constant 0 : index
    %395 = vector.load %arg5[%c3_192, %c0_193, %c0_194] : memref<4x32x32xf32, #tpu.memory_space<vmem>>, vector<1x32x32xf32>
    %396 = vector.shape_cast %395 : vector<1x32x32xf32> to vector<32x32xf32>
    %cst_195 = arith.constant 0.000000e+00 : f32
    %397 = vector.broadcast %cst_195 : f32 to vector<8x32xf32>
    %cst_196 = arith.constant 0.000000e+00 : f32
    %398 = vector.broadcast %cst_196 : f32 to vector<8x32xf32>
    %399 = vector.extract_strided_slice %367 {offsets = [0, 0], sizes = [8, 32], strides = [1, 1]} : vector<64x32xf32> to vector<8x32xf32>
    %cst_197 = arith.constant dense<0.000000e+00> : vector<8x32xf32>
    %400 = tpu.matmul %397, %390, %cst_197 {dimension_numbers = #tpu.dot_dimension_numbers<[1], [0], [0], [1], [0, 0, 1, 1], [], []>} : vector<8x32xf32>, vector<32x32xf32>, vector<8x32xf32> -> vector<8x32xf32>
    %401 = arith.addf %399, %400 : vector<8x32xf32>
    %402 = vector.extract_strided_slice %374 {offsets = [0, 0], sizes = [8, 32], strides = [1, 1]} : vector<64x32xf32> to vector<8x32xf32>
    %cst_198 = arith.constant dense<0.000000e+00> : vector<8x32xf32>
    %403 = tpu.matmul %397, %392, %cst_198 {dimension_numbers = #tpu.dot_dimension_numbers<[1], [0], [0], [1], [0, 0, 1, 1], [], []>} : vector<8x32xf32>, vector<32x32xf32>, vector<8x32xf32> -> vector<8x32xf32>
    %404 = arith.addf %402, %403 : vector<8x32xf32>
    %405 = vector.extract_strided_slice %381 {offsets = [0, 0], sizes = [8, 32], strides = [1, 1]} : vector<64x32xf32> to vector<8x32xf32>
    %cst_199 = arith.constant dense<0.000000e+00> : vector<8x32xf32>
    %406 = tpu.matmul %397, %394, %cst_199 {dimension_numbers = #tpu.dot_dimension_numbers<[1], [0], [0], [1], [0, 0, 1, 1], [], []>} : vector<8x32xf32>, vector<32x32xf32>, vector<8x32xf32> -> vector<8x32xf32>
    %407 = arith.addf %405, %406 : vector<8x32xf32>
    %408 = vector.extract_strided_slice %388 {offsets = [0, 0], sizes = [8, 32], strides = [1, 1]} : vector<64x32xf32> to vector<8x32xf32>
    %cst_200 = arith.constant dense<0.000000e+00> : vector<8x32xf32>
    %409 = tpu.matmul %397, %396, %cst_200 {dimension_numbers = #tpu.dot_dimension_numbers<[1], [0], [0], [1], [0, 0, 1, 1], [], []>} : vector<8x32xf32>, vector<32x32xf32>, vector<8x32xf32> -> vector<8x32xf32>
    %410 = arith.addf %408, %409 : vector<8x32xf32>
    %cst_201 = arith.constant 5.000000e-01 : f32
    %411 = vector.broadcast %cst_201 : f32 to vector<8x32xf32>
    %412 = arith.mulf %411, %401 : vector<8x32xf32>
    %413 = math.tanh %412 : vector<8x32xf32>
    %cst_202 = arith.constant 5.000000e-01 : f32
    %414 = vector.broadcast %cst_202 : f32 to vector<8x32xf32>
    %415 = arith.mulf %414, %413 : vector<8x32xf32>
    %cst_203 = arith.constant 5.000000e-01 : f32
    %416 = vector.broadcast %cst_203 : f32 to vector<8x32xf32>
    %417 = arith.addf %415, %416 : vector<8x32xf32>
    %cst_204 = arith.constant 5.000000e-01 : f32
    %418 = vector.broadcast %cst_204 : f32 to vector<8x32xf32>
    %419 = arith.mulf %418, %404 : vector<8x32xf32>
    %420 = math.tanh %419 : vector<8x32xf32>
    %cst_205 = arith.constant 5.000000e-01 : f32
    %421 = vector.broadcast %cst_205 : f32 to vector<8x32xf32>
    %422 = arith.mulf %421, %420 : vector<8x32xf32>
    %cst_206 = arith.constant 5.000000e-01 : f32
    %423 = vector.broadcast %cst_206 : f32 to vector<8x32xf32>
    %424 = arith.addf %422, %423 : vector<8x32xf32>
    %425 = math.tanh %407 : vector<8x32xf32>
    %cst_207 = arith.constant 5.000000e-01 : f32
    %426 = vector.broadcast %cst_207 : f32 to vector<8x32xf32>
    %427 = arith.mulf %426, %410 : vector<8x32xf32>
    %428 = math.tanh %427 : vector<8x32xf32>
    %cst_208 = arith.constant 5.000000e-01 : f32
    %429 = vector.broadcast %cst_208 : f32 to vector<8x32xf32>
    %430 = arith.mulf %429, %428 : vector<8x32xf32>
    %cst_209 = arith.constant 5.000000e-01 : f32
    %431 = vector.broadcast %cst_209 : f32 to vector<8x32xf32>
    %432 = arith.addf %430, %431 : vector<8x32xf32>
    %433 = arith.mulf %424, %398 : vector<8x32xf32>
    %434 = arith.mulf %417, %425 : vector<8x32xf32>
    %435 = arith.addf %433, %434 : vector<8x32xf32>
    %436 = math.tanh %435 : vector<8x32xf32>
    %437 = arith.mulf %432, %436 : vector<8x32xf32>
    %438 = vector.extract_strided_slice %367 {offsets = [8, 0], sizes = [8, 32], strides = [1, 1]} : vector<64x32xf32> to vector<8x32xf32>
    %cst_210 = arith.constant dense<0.000000e+00> : vector<8x32xf32>
    %439 = tpu.matmul %437, %390, %cst_210 {dimension_numbers = #tpu.dot_dimension_numbers<[1], [0], [0], [1], [0, 0, 1, 1], [], []>} : vector<8x32xf32>, vector<32x32xf32>, vector<8x32xf32> -> vector<8x32xf32>
    %440 = arith.addf %438, %439 : vector<8x32xf32>
    %441 = vector.extract_strided_slice %374 {offsets = [8, 0], sizes = [8, 32], strides = [1, 1]} : vector<64x32xf32> to vector<8x32xf32>
    %cst_211 = arith.constant dense<0.000000e+00> : vector<8x32xf32>
    %442 = tpu.matmul %437, %392, %cst_211 {dimension_numbers = #tpu.dot_dimension_numbers<[1], [0], [0], [1], [0, 0, 1, 1], [], []>} : vector<8x32xf32>, vector<32x32xf32>, vector<8x32xf32> -> vector<8x32xf32>
    %443 = arith.addf %441, %442 : vector<8x32xf32>
    %444 = vector.extract_strided_slice %381 {offsets = [8, 0], sizes = [8, 32], strides = [1, 1]} : vector<64x32xf32> to vector<8x32xf32>
    %cst_212 = arith.constant dense<0.000000e+00> : vector<8x32xf32>
    %445 = tpu.matmul %437, %394, %cst_212 {dimension_numbers = #tpu.dot_dimension_numbers<[1], [0], [0], [1], [0, 0, 1, 1], [], []>} : vector<8x32xf32>, vector<32x32xf32>, vector<8x32xf32> -> vector<8x32xf32>
    %446 = arith.addf %444, %445 : vector<8x32xf32>
    %447 = vector.extract_strided_slice %388 {offsets = [8, 0], sizes = [8, 32], strides = [1, 1]} : vector<64x32xf32> to vector<8x32xf32>
    %cst_213 = arith.constant dense<0.000000e+00> : vector<8x32xf32>
    %448 = tpu.matmul %437, %396, %cst_213 {dimension_numbers = #tpu.dot_dimension_numbers<[1], [0], [0], [1], [0, 0, 1, 1], [], []>} : vector<8x32xf32>, vector<32x32xf32>, vector<8x32xf32> -> vector<8x32xf32>
    %449 = arith.addf %447, %448 : vector<8x32xf32>
    %cst_214 = arith.constant 5.000000e-01 : f32
    %450 = vector.broadcast %cst_214 : f32 to vector<8x32xf32>
    %451 = arith.mulf %450, %440 : vector<8x32xf32>
    %452 = math.tanh %451 : vector<8x32xf32>
    %cst_215 = arith.constant 5.000000e-01 : f32
    %453 = vector.broadcast %cst_215 : f32 to vector<8x32xf32>
    %454 = arith.mulf %453, %452 : vector<8x32xf32>
    %cst_216 = arith.constant 5.000000e-01 : f32
    %455 = vector.broadcast %cst_216 : f32 to vector<8x32xf32>
    %456 = arith.addf %454, %455 : vector<8x32xf32>
    %cst_217 = arith.constant 5.000000e-01 : f32
    %457 = vector.broadcast %cst_217 : f32 to vector<8x32xf32>
    %458 = arith.mulf %457, %443 : vector<8x32xf32>
    %459 = math.tanh %458 : vector<8x32xf32>
    %cst_218 = arith.constant 5.000000e-01 : f32
    %460 = vector.broadcast %cst_218 : f32 to vector<8x32xf32>
    %461 = arith.mulf %460, %459 : vector<8x32xf32>
    %cst_219 = arith.constant 5.000000e-01 : f32
    %462 = vector.broadcast %cst_219 : f32 to vector<8x32xf32>
    %463 = arith.addf %461, %462 : vector<8x32xf32>
    %464 = math.tanh %446 : vector<8x32xf32>
    %cst_220 = arith.constant 5.000000e-01 : f32
    %465 = vector.broadcast %cst_220 : f32 to vector<8x32xf32>
    %466 = arith.mulf %465, %449 : vector<8x32xf32>
    %467 = math.tanh %466 : vector<8x32xf32>
    %cst_221 = arith.constant 5.000000e-01 : f32
    %468 = vector.broadcast %cst_221 : f32 to vector<8x32xf32>
    %469 = arith.mulf %468, %467 : vector<8x32xf32>
    %cst_222 = arith.constant 5.000000e-01 : f32
    %470 = vector.broadcast %cst_222 : f32 to vector<8x32xf32>
    %471 = arith.addf %469, %470 : vector<8x32xf32>
    %472 = arith.mulf %463, %435 : vector<8x32xf32>
    %473 = arith.mulf %456, %464 : vector<8x32xf32>
    %474 = arith.addf %472, %473 : vector<8x32xf32>
    %475 = math.tanh %474 : vector<8x32xf32>
    %476 = arith.mulf %471, %475 : vector<8x32xf32>
    %477 = vector.extract_strided_slice %367 {offsets = [16, 0], sizes = [8, 32], strides = [1, 1]} : vector<64x32xf32> to vector<8x32xf32>
    %cst_223 = arith.constant dense<0.000000e+00> : vector<8x32xf32>
    %478 = tpu.matmul %476, %390, %cst_223 {dimension_numbers = #tpu.dot_dimension_numbers<[1], [0], [0], [1], [0, 0, 1, 1], [], []>} : vector<8x32xf32>, vector<32x32xf32>, vector<8x32xf32> -> vector<8x32xf32>
    %479 = arith.addf %477, %478 : vector<8x32xf32>
    %480 = vector.extract_strided_slice %374 {offsets = [16, 0], sizes = [8, 32], strides = [1, 1]} : vector<64x32xf32> to vector<8x32xf32>
    %cst_224 = arith.constant dense<0.000000e+00> : vector<8x32xf32>
    %481 = tpu.matmul %476, %392, %cst_224 {dimension_numbers = #tpu.dot_dimension_numbers<[1], [0], [0], [1], [0, 0, 1, 1], [], []>} : vector<8x32xf32>, vector<32x32xf32>, vector<8x32xf32> -> vector<8x32xf32>
    %482 = arith.addf %480, %481 : vector<8x32xf32>
    %483 = vector.extract_strided_slice %381 {offsets = [16, 0], sizes = [8, 32], strides = [1, 1]} : vector<64x32xf32> to vector<8x32xf32>
    %cst_225 = arith.constant dense<0.000000e+00> : vector<8x32xf32>
    %484 = tpu.matmul %476, %394, %cst_225 {dimension_numbers = #tpu.dot_dimension_numbers<[1], [0], [0], [1], [0, 0, 1, 1], [], []>} : vector<8x32xf32>, vector<32x32xf32>, vector<8x32xf32> -> vector<8x32xf32>
    %485 = arith.addf %483, %484 : vector<8x32xf32>
    %486 = vector.extract_strided_slice %388 {offsets = [16, 0], sizes = [8, 32], strides = [1, 1]} : vector<64x32xf32> to vector<8x32xf32>
    %cst_226 = arith.constant dense<0.000000e+00> : vector<8x32xf32>
    %487 = tpu.matmul %476, %396, %cst_226 {dimension_numbers = #tpu.dot_dimension_numbers<[1], [0], [0], [1], [0, 0, 1, 1], [], []>} : vector<8x32xf32>, vector<32x32xf32>, vector<8x32xf32> -> vector<8x32xf32>
    %488 = arith.addf %486, %487 : vector<8x32xf32>
    %cst_227 = arith.constant 5.000000e-01 : f32
    %489 = vector.broadcast %cst_227 : f32 to vector<8x32xf32>
    %490 = arith.mulf %489, %479 : vector<8x32xf32>
    %491 = math.tanh %490 : vector<8x32xf32>
    %cst_228 = arith.constant 5.000000e-01 : f32
    %492 = vector.broadcast %cst_228 : f32 to vector<8x32xf32>
    %493 = arith.mulf %492, %491 : vector<8x32xf32>
    %cst_229 = arith.constant 5.000000e-01 : f32
    %494 = vector.broadcast %cst_229 : f32 to vector<8x32xf32>
    %495 = arith.addf %493, %494 : vector<8x32xf32>
    %cst_230 = arith.constant 5.000000e-01 : f32
    %496 = vector.broadcast %cst_230 : f32 to vector<8x32xf32>
    %497 = arith.mulf %496, %482 : vector<8x32xf32>
    %498 = math.tanh %497 : vector<8x32xf32>
    %cst_231 = arith.constant 5.000000e-01 : f32
    %499 = vector.broadcast %cst_231 : f32 to vector<8x32xf32>
    %500 = arith.mulf %499, %498 : vector<8x32xf32>
    %cst_232 = arith.constant 5.000000e-01 : f32
    %501 = vector.broadcast %cst_232 : f32 to vector<8x32xf32>
    %502 = arith.addf %500, %501 : vector<8x32xf32>
    %503 = math.tanh %485 : vector<8x32xf32>
    %cst_233 = arith.constant 5.000000e-01 : f32
    %504 = vector.broadcast %cst_233 : f32 to vector<8x32xf32>
    %505 = arith.mulf %504, %488 : vector<8x32xf32>
    %506 = math.tanh %505 : vector<8x32xf32>
    %cst_234 = arith.constant 5.000000e-01 : f32
    %507 = vector.broadcast %cst_234 : f32 to vector<8x32xf32>
    %508 = arith.mulf %507, %506 : vector<8x32xf32>
    %cst_235 = arith.constant 5.000000e-01 : f32
    %509 = vector.broadcast %cst_235 : f32 to vector<8x32xf32>
    %510 = arith.addf %508, %509 : vector<8x32xf32>
    %511 = arith.mulf %502, %474 : vector<8x32xf32>
    %512 = arith.mulf %495, %503 : vector<8x32xf32>
    %513 = arith.addf %511, %512 : vector<8x32xf32>
    %514 = math.tanh %513 : vector<8x32xf32>
    %515 = arith.mulf %510, %514 : vector<8x32xf32>
    %516 = vector.extract_strided_slice %367 {offsets = [24, 0], sizes = [8, 32], strides = [1, 1]} : vector<64x32xf32> to vector<8x32xf32>
    %cst_236 = arith.constant dense<0.000000e+00> : vector<8x32xf32>
    %517 = tpu.matmul %515, %390, %cst_236 {dimension_numbers = #tpu.dot_dimension_numbers<[1], [0], [0], [1], [0, 0, 1, 1], [], []>} : vector<8x32xf32>, vector<32x32xf32>, vector<8x32xf32> -> vector<8x32xf32>
    %518 = arith.addf %516, %517 : vector<8x32xf32>
    %519 = vector.extract_strided_slice %374 {offsets = [24, 0], sizes = [8, 32], strides = [1, 1]} : vector<64x32xf32> to vector<8x32xf32>
    %cst_237 = arith.constant dense<0.000000e+00> : vector<8x32xf32>
    %520 = tpu.matmul %515, %392, %cst_237 {dimension_numbers = #tpu.dot_dimension_numbers<[1], [0], [0], [1], [0, 0, 1, 1], [], []>} : vector<8x32xf32>, vector<32x32xf32>, vector<8x32xf32> -> vector<8x32xf32>
    %521 = arith.addf %519, %520 : vector<8x32xf32>
    %522 = vector.extract_strided_slice %381 {offsets = [24, 0], sizes = [8, 32], strides = [1, 1]} : vector<64x32xf32> to vector<8x32xf32>
    %cst_238 = arith.constant dense<0.000000e+00> : vector<8x32xf32>
    %523 = tpu.matmul %515, %394, %cst_238 {dimension_numbers = #tpu.dot_dimension_numbers<[1], [0], [0], [1], [0, 0, 1, 1], [], []>} : vector<8x32xf32>, vector<32x32xf32>, vector<8x32xf32> -> vector<8x32xf32>
    %524 = arith.addf %522, %523 : vector<8x32xf32>
    %525 = vector.extract_strided_slice %388 {offsets = [24, 0], sizes = [8, 32], strides = [1, 1]} : vector<64x32xf32> to vector<8x32xf32>
    %cst_239 = arith.constant dense<0.000000e+00> : vector<8x32xf32>
    %526 = tpu.matmul %515, %396, %cst_239 {dimension_numbers = #tpu.dot_dimension_numbers<[1], [0], [0], [1], [0, 0, 1, 1], [], []>} : vector<8x32xf32>, vector<32x32xf32>, vector<8x32xf32> -> vector<8x32xf32>
    %527 = arith.addf %525, %526 : vector<8x32xf32>
    %cst_240 = arith.constant 5.000000e-01 : f32
    %528 = vector.broadcast %cst_240 : f32 to vector<8x32xf32>
    %529 = arith.mulf %528, %518 : vector<8x32xf32>
    %530 = math.tanh %529 : vector<8x32xf32>
    %cst_241 = arith.constant 5.000000e-01 : f32
    %531 = vector.broadcast %cst_241 : f32 to vector<8x32xf32>
    %532 = arith.mulf %531, %530 : vector<8x32xf32>
    %cst_242 = arith.constant 5.000000e-01 : f32
    %533 = vector.broadcast %cst_242 : f32 to vector<8x32xf32>
    %534 = arith.addf %532, %533 : vector<8x32xf32>
    %cst_243 = arith.constant 5.000000e-01 : f32
    %535 = vector.broadcast %cst_243 : f32 to vector<8x32xf32>
    %536 = arith.mulf %535, %521 : vector<8x32xf32>
    %537 = math.tanh %536 : vector<8x32xf32>
    %cst_244 = arith.constant 5.000000e-01 : f32
    %538 = vector.broadcast %cst_244 : f32 to vector<8x32xf32>
    %539 = arith.mulf %538, %537 : vector<8x32xf32>
    %cst_245 = arith.constant 5.000000e-01 : f32
    %540 = vector.broadcast %cst_245 : f32 to vector<8x32xf32>
    %541 = arith.addf %539, %540 : vector<8x32xf32>
    %542 = math.tanh %524 : vector<8x32xf32>
    %cst_246 = arith.constant 5.000000e-01 : f32
    %543 = vector.broadcast %cst_246 : f32 to vector<8x32xf32>
    %544 = arith.mulf %543, %527 : vector<8x32xf32>
    %545 = math.tanh %544 : vector<8x32xf32>
    %cst_247 = arith.constant 5.000000e-01 : f32
    %546 = vector.broadcast %cst_247 : f32 to vector<8x32xf32>
    %547 = arith.mulf %546, %545 : vector<8x32xf32>
    %cst_248 = arith.constant 5.000000e-01 : f32
    %548 = vector.broadcast %cst_248 : f32 to vector<8x32xf32>
    %549 = arith.addf %547, %548 : vector<8x32xf32>
    %550 = arith.mulf %541, %513 : vector<8x32xf32>
    %551 = arith.mulf %534, %542 : vector<8x32xf32>
    %552 = arith.addf %550, %551 : vector<8x32xf32>
    %553 = math.tanh %552 : vector<8x32xf32>
    %554 = arith.mulf %549, %553 : vector<8x32xf32>
    %555 = vector.extract_strided_slice %367 {offsets = [32, 0], sizes = [8, 32], strides = [1, 1]} : vector<64x32xf32> to vector<8x32xf32>
    %cst_249 = arith.constant dense<0.000000e+00> : vector<8x32xf32>
    %556 = tpu.matmul %554, %390, %cst_249 {dimension_numbers = #tpu.dot_dimension_numbers<[1], [0], [0], [1], [0, 0, 1, 1], [], []>} : vector<8x32xf32>, vector<32x32xf32>, vector<8x32xf32> -> vector<8x32xf32>
    %557 = arith.addf %555, %556 : vector<8x32xf32>
    %558 = vector.extract_strided_slice %374 {offsets = [32, 0], sizes = [8, 32], strides = [1, 1]} : vector<64x32xf32> to vector<8x32xf32>
    %cst_250 = arith.constant dense<0.000000e+00> : vector<8x32xf32>
    %559 = tpu.matmul %554, %392, %cst_250 {dimension_numbers = #tpu.dot_dimension_numbers<[1], [0], [0], [1], [0, 0, 1, 1], [], []>} : vector<8x32xf32>, vector<32x32xf32>, vector<8x32xf32> -> vector<8x32xf32>
    %560 = arith.addf %558, %559 : vector<8x32xf32>
    %561 = vector.extract_strided_slice %381 {offsets = [32, 0], sizes = [8, 32], strides = [1, 1]} : vector<64x32xf32> to vector<8x32xf32>
    %cst_251 = arith.constant dense<0.000000e+00> : vector<8x32xf32>
    %562 = tpu.matmul %554, %394, %cst_251 {dimension_numbers = #tpu.dot_dimension_numbers<[1], [0], [0], [1], [0, 0, 1, 1], [], []>} : vector<8x32xf32>, vector<32x32xf32>, vector<8x32xf32> -> vector<8x32xf32>
    %563 = arith.addf %561, %562 : vector<8x32xf32>
    %564 = vector.extract_strided_slice %388 {offsets = [32, 0], sizes = [8, 32], strides = [1, 1]} : vector<64x32xf32> to vector<8x32xf32>
    %cst_252 = arith.constant dense<0.000000e+00> : vector<8x32xf32>
    %565 = tpu.matmul %554, %396, %cst_252 {dimension_numbers = #tpu.dot_dimension_numbers<[1], [0], [0], [1], [0, 0, 1, 1], [], []>} : vector<8x32xf32>, vector<32x32xf32>, vector<8x32xf32> -> vector<8x32xf32>
    %566 = arith.addf %564, %565 : vector<8x32xf32>
    %cst_253 = arith.constant 5.000000e-01 : f32
    %567 = vector.broadcast %cst_253 : f32 to vector<8x32xf32>
    %568 = arith.mulf %567, %557 : vector<8x32xf32>
    %569 = math.tanh %568 : vector<8x32xf32>
    %cst_254 = arith.constant 5.000000e-01 : f32
    %570 = vector.broadcast %cst_254 : f32 to vector<8x32xf32>
    %571 = arith.mulf %570, %569 : vector<8x32xf32>
    %cst_255 = arith.constant 5.000000e-01 : f32
    %572 = vector.broadcast %cst_255 : f32 to vector<8x32xf32>
    %573 = arith.addf %571, %572 : vector<8x32xf32>
    %cst_256 = arith.constant 5.000000e-01 : f32
    %574 = vector.broadcast %cst_256 : f32 to vector<8x32xf32>
    %575 = arith.mulf %574, %560 : vector<8x32xf32>
    %576 = math.tanh %575 : vector<8x32xf32>
    %cst_257 = arith.constant 5.000000e-01 : f32
    %577 = vector.broadcast %cst_257 : f32 to vector<8x32xf32>
    %578 = arith.mulf %577, %576 : vector<8x32xf32>
    %cst_258 = arith.constant 5.000000e-01 : f32
    %579 = vector.broadcast %cst_258 : f32 to vector<8x32xf32>
    %580 = arith.addf %578, %579 : vector<8x32xf32>
    %581 = math.tanh %563 : vector<8x32xf32>
    %cst_259 = arith.constant 5.000000e-01 : f32
    %582 = vector.broadcast %cst_259 : f32 to vector<8x32xf32>
    %583 = arith.mulf %582, %566 : vector<8x32xf32>
    %584 = math.tanh %583 : vector<8x32xf32>
    %cst_260 = arith.constant 5.000000e-01 : f32
    %585 = vector.broadcast %cst_260 : f32 to vector<8x32xf32>
    %586 = arith.mulf %585, %584 : vector<8x32xf32>
    %cst_261 = arith.constant 5.000000e-01 : f32
    %587 = vector.broadcast %cst_261 : f32 to vector<8x32xf32>
    %588 = arith.addf %586, %587 : vector<8x32xf32>
    %589 = arith.mulf %580, %552 : vector<8x32xf32>
    %590 = arith.mulf %573, %581 : vector<8x32xf32>
    %591 = arith.addf %589, %590 : vector<8x32xf32>
    %592 = math.tanh %591 : vector<8x32xf32>
    %593 = arith.mulf %588, %592 : vector<8x32xf32>
    %594 = vector.extract_strided_slice %367 {offsets = [40, 0], sizes = [8, 32], strides = [1, 1]} : vector<64x32xf32> to vector<8x32xf32>
    %cst_262 = arith.constant dense<0.000000e+00> : vector<8x32xf32>
    %595 = tpu.matmul %593, %390, %cst_262 {dimension_numbers = #tpu.dot_dimension_numbers<[1], [0], [0], [1], [0, 0, 1, 1], [], []>} : vector<8x32xf32>, vector<32x32xf32>, vector<8x32xf32> -> vector<8x32xf32>
    %596 = arith.addf %594, %595 : vector<8x32xf32>
    %597 = vector.extract_strided_slice %374 {offsets = [40, 0], sizes = [8, 32], strides = [1, 1]} : vector<64x32xf32> to vector<8x32xf32>
    %cst_263 = arith.constant dense<0.000000e+00> : vector<8x32xf32>
    %598 = tpu.matmul %593, %392, %cst_263 {dimension_numbers = #tpu.dot_dimension_numbers<[1], [0], [0], [1], [0, 0, 1, 1], [], []>} : vector<8x32xf32>, vector<32x32xf32>, vector<8x32xf32> -> vector<8x32xf32>
    %599 = arith.addf %597, %598 : vector<8x32xf32>
    %600 = vector.extract_strided_slice %381 {offsets = [40, 0], sizes = [8, 32], strides = [1, 1]} : vector<64x32xf32> to vector<8x32xf32>
    %cst_264 = arith.constant dense<0.000000e+00> : vector<8x32xf32>
    %601 = tpu.matmul %593, %394, %cst_264 {dimension_numbers = #tpu.dot_dimension_numbers<[1], [0], [0], [1], [0, 0, 1, 1], [], []>} : vector<8x32xf32>, vector<32x32xf32>, vector<8x32xf32> -> vector<8x32xf32>
    %602 = arith.addf %600, %601 : vector<8x32xf32>
    %603 = vector.extract_strided_slice %388 {offsets = [40, 0], sizes = [8, 32], strides = [1, 1]} : vector<64x32xf32> to vector<8x32xf32>
    %cst_265 = arith.constant dense<0.000000e+00> : vector<8x32xf32>
    %604 = tpu.matmul %593, %396, %cst_265 {dimension_numbers = #tpu.dot_dimension_numbers<[1], [0], [0], [1], [0, 0, 1, 1], [], []>} : vector<8x32xf32>, vector<32x32xf32>, vector<8x32xf32> -> vector<8x32xf32>
    %605 = arith.addf %603, %604 : vector<8x32xf32>
    %cst_266 = arith.constant 5.000000e-01 : f32
    %606 = vector.broadcast %cst_266 : f32 to vector<8x32xf32>
    %607 = arith.mulf %606, %596 : vector<8x32xf32>
    %608 = math.tanh %607 : vector<8x32xf32>
    %cst_267 = arith.constant 5.000000e-01 : f32
    %609 = vector.broadcast %cst_267 : f32 to vector<8x32xf32>
    %610 = arith.mulf %609, %608 : vector<8x32xf32>
    %cst_268 = arith.constant 5.000000e-01 : f32
    %611 = vector.broadcast %cst_268 : f32 to vector<8x32xf32>
    %612 = arith.addf %610, %611 : vector<8x32xf32>
    %cst_269 = arith.constant 5.000000e-01 : f32
    %613 = vector.broadcast %cst_269 : f32 to vector<8x32xf32>
    %614 = arith.mulf %613, %599 : vector<8x32xf32>
    %615 = math.tanh %614 : vector<8x32xf32>
    %cst_270 = arith.constant 5.000000e-01 : f32
    %616 = vector.broadcast %cst_270 : f32 to vector<8x32xf32>
    %617 = arith.mulf %616, %615 : vector<8x32xf32>
    %cst_271 = arith.constant 5.000000e-01 : f32
    %618 = vector.broadcast %cst_271 : f32 to vector<8x32xf32>
    %619 = arith.addf %617, %618 : vector<8x32xf32>
    %620 = math.tanh %602 : vector<8x32xf32>
    %cst_272 = arith.constant 5.000000e-01 : f32
    %621 = vector.broadcast %cst_272 : f32 to vector<8x32xf32>
    %622 = arith.mulf %621, %605 : vector<8x32xf32>
    %623 = math.tanh %622 : vector<8x32xf32>
    %cst_273 = arith.constant 5.000000e-01 : f32
    %624 = vector.broadcast %cst_273 : f32 to vector<8x32xf32>
    %625 = arith.mulf %624, %623 : vector<8x32xf32>
    %cst_274 = arith.constant 5.000000e-01 : f32
    %626 = vector.broadcast %cst_274 : f32 to vector<8x32xf32>
    %627 = arith.addf %625, %626 : vector<8x32xf32>
    %628 = arith.mulf %619, %591 : vector<8x32xf32>
    %629 = arith.mulf %612, %620 : vector<8x32xf32>
    %630 = arith.addf %628, %629 : vector<8x32xf32>
    %631 = math.tanh %630 : vector<8x32xf32>
    %632 = arith.mulf %627, %631 : vector<8x32xf32>
    %633 = vector.extract_strided_slice %367 {offsets = [48, 0], sizes = [8, 32], strides = [1, 1]} : vector<64x32xf32> to vector<8x32xf32>
    %cst_275 = arith.constant dense<0.000000e+00> : vector<8x32xf32>
    %634 = tpu.matmul %632, %390, %cst_275 {dimension_numbers = #tpu.dot_dimension_numbers<[1], [0], [0], [1], [0, 0, 1, 1], [], []>} : vector<8x32xf32>, vector<32x32xf32>, vector<8x32xf32> -> vector<8x32xf32>
    %635 = arith.addf %633, %634 : vector<8x32xf32>
    %636 = vector.extract_strided_slice %374 {offsets = [48, 0], sizes = [8, 32], strides = [1, 1]} : vector<64x32xf32> to vector<8x32xf32>
    %cst_276 = arith.constant dense<0.000000e+00> : vector<8x32xf32>
    %637 = tpu.matmul %632, %392, %cst_276 {dimension_numbers = #tpu.dot_dimension_numbers<[1], [0], [0], [1], [0, 0, 1, 1], [], []>} : vector<8x32xf32>, vector<32x32xf32>, vector<8x32xf32> -> vector<8x32xf32>
    %638 = arith.addf %636, %637 : vector<8x32xf32>
    %639 = vector.extract_strided_slice %381 {offsets = [48, 0], sizes = [8, 32], strides = [1, 1]} : vector<64x32xf32> to vector<8x32xf32>
    %cst_277 = arith.constant dense<0.000000e+00> : vector<8x32xf32>
    %640 = tpu.matmul %632, %394, %cst_277 {dimension_numbers = #tpu.dot_dimension_numbers<[1], [0], [0], [1], [0, 0, 1, 1], [], []>} : vector<8x32xf32>, vector<32x32xf32>, vector<8x32xf32> -> vector<8x32xf32>
    %641 = arith.addf %639, %640 : vector<8x32xf32>
    %642 = vector.extract_strided_slice %388 {offsets = [48, 0], sizes = [8, 32], strides = [1, 1]} : vector<64x32xf32> to vector<8x32xf32>
    %cst_278 = arith.constant dense<0.000000e+00> : vector<8x32xf32>
    %643 = tpu.matmul %632, %396, %cst_278 {dimension_numbers = #tpu.dot_dimension_numbers<[1], [0], [0], [1], [0, 0, 1, 1], [], []>} : vector<8x32xf32>, vector<32x32xf32>, vector<8x32xf32> -> vector<8x32xf32>
    %644 = arith.addf %642, %643 : vector<8x32xf32>
    %cst_279 = arith.constant 5.000000e-01 : f32
    %645 = vector.broadcast %cst_279 : f32 to vector<8x32xf32>
    %646 = arith.mulf %645, %635 : vector<8x32xf32>
    %647 = math.tanh %646 : vector<8x32xf32>
    %cst_280 = arith.constant 5.000000e-01 : f32
    %648 = vector.broadcast %cst_280 : f32 to vector<8x32xf32>
    %649 = arith.mulf %648, %647 : vector<8x32xf32>
    %cst_281 = arith.constant 5.000000e-01 : f32
    %650 = vector.broadcast %cst_281 : f32 to vector<8x32xf32>
    %651 = arith.addf %649, %650 : vector<8x32xf32>
    %cst_282 = arith.constant 5.000000e-01 : f32
    %652 = vector.broadcast %cst_282 : f32 to vector<8x32xf32>
    %653 = arith.mulf %652, %638 : vector<8x32xf32>
    %654 = math.tanh %653 : vector<8x32xf32>
    %cst_283 = arith.constant 5.000000e-01 : f32
    %655 = vector.broadcast %cst_283 : f32 to vector<8x32xf32>
    %656 = arith.mulf %655, %654 : vector<8x32xf32>
    %cst_284 = arith.constant 5.000000e-01 : f32
    %657 = vector.broadcast %cst_284 : f32 to vector<8x32xf32>
    %658 = arith.addf %656, %657 : vector<8x32xf32>
    %659 = math.tanh %641 : vector<8x32xf32>
    %cst_285 = arith.constant 5.000000e-01 : f32
    %660 = vector.broadcast %cst_285 : f32 to vector<8x32xf32>
    %661 = arith.mulf %660, %644 : vector<8x32xf32>
    %662 = math.tanh %661 : vector<8x32xf32>
    %cst_286 = arith.constant 5.000000e-01 : f32
    %663 = vector.broadcast %cst_286 : f32 to vector<8x32xf32>
    %664 = arith.mulf %663, %662 : vector<8x32xf32>
    %cst_287 = arith.constant 5.000000e-01 : f32
    %665 = vector.broadcast %cst_287 : f32 to vector<8x32xf32>
    %666 = arith.addf %664, %665 : vector<8x32xf32>
    %667 = arith.mulf %658, %630 : vector<8x32xf32>
    %668 = arith.mulf %651, %659 : vector<8x32xf32>
    %669 = arith.addf %667, %668 : vector<8x32xf32>
    %670 = math.tanh %669 : vector<8x32xf32>
    %671 = arith.mulf %666, %670 : vector<8x32xf32>
    %672 = vector.extract_strided_slice %367 {offsets = [56, 0], sizes = [8, 32], strides = [1, 1]} : vector<64x32xf32> to vector<8x32xf32>
    %cst_288 = arith.constant dense<0.000000e+00> : vector<8x32xf32>
    %673 = tpu.matmul %671, %390, %cst_288 {dimension_numbers = #tpu.dot_dimension_numbers<[1], [0], [0], [1], [0, 0, 1, 1], [], []>} : vector<8x32xf32>, vector<32x32xf32>, vector<8x32xf32> -> vector<8x32xf32>
    %674 = arith.addf %672, %673 : vector<8x32xf32>
    %675 = vector.extract_strided_slice %374 {offsets = [56, 0], sizes = [8, 32], strides = [1, 1]} : vector<64x32xf32> to vector<8x32xf32>
    %cst_289 = arith.constant dense<0.000000e+00> : vector<8x32xf32>
    %676 = tpu.matmul %671, %392, %cst_289 {dimension_numbers = #tpu.dot_dimension_numbers<[1], [0], [0], [1], [0, 0, 1, 1], [], []>} : vector<8x32xf32>, vector<32x32xf32>, vector<8x32xf32> -> vector<8x32xf32>
    %677 = arith.addf %675, %676 : vector<8x32xf32>
    %678 = vector.extract_strided_slice %381 {offsets = [56, 0], sizes = [8, 32], strides = [1, 1]} : vector<64x32xf32> to vector<8x32xf32>
    %cst_290 = arith.constant dense<0.000000e+00> : vector<8x32xf32>
    %679 = tpu.matmul %671, %394, %cst_290 {dimension_numbers = #tpu.dot_dimension_numbers<[1], [0], [0], [1], [0, 0, 1, 1], [], []>} : vector<8x32xf32>, vector<32x32xf32>, vector<8x32xf32> -> vector<8x32xf32>
    %680 = arith.addf %678, %679 : vector<8x32xf32>
    %681 = vector.extract_strided_slice %388 {offsets = [56, 0], sizes = [8, 32], strides = [1, 1]} : vector<64x32xf32> to vector<8x32xf32>
    %cst_291 = arith.constant dense<0.000000e+00> : vector<8x32xf32>
    %682 = tpu.matmul %671, %396, %cst_291 {dimension_numbers = #tpu.dot_dimension_numbers<[1], [0], [0], [1], [0, 0, 1, 1], [], []>} : vector<8x32xf32>, vector<32x32xf32>, vector<8x32xf32> -> vector<8x32xf32>
    %683 = arith.addf %681, %682 : vector<8x32xf32>
    %cst_292 = arith.constant 5.000000e-01 : f32
    %684 = vector.broadcast %cst_292 : f32 to vector<8x32xf32>
    %685 = arith.mulf %684, %674 : vector<8x32xf32>
    %686 = math.tanh %685 : vector<8x32xf32>
    %cst_293 = arith.constant 5.000000e-01 : f32
    %687 = vector.broadcast %cst_293 : f32 to vector<8x32xf32>
    %688 = arith.mulf %687, %686 : vector<8x32xf32>
    %cst_294 = arith.constant 5.000000e-01 : f32
    %689 = vector.broadcast %cst_294 : f32 to vector<8x32xf32>
    %690 = arith.addf %688, %689 : vector<8x32xf32>
    %cst_295 = arith.constant 5.000000e-01 : f32
    %691 = vector.broadcast %cst_295 : f32 to vector<8x32xf32>
    %692 = arith.mulf %691, %677 : vector<8x32xf32>
    %693 = math.tanh %692 : vector<8x32xf32>
    %cst_296 = arith.constant 5.000000e-01 : f32
    %694 = vector.broadcast %cst_296 : f32 to vector<8x32xf32>
    %695 = arith.mulf %694, %693 : vector<8x32xf32>
    %cst_297 = arith.constant 5.000000e-01 : f32
    %696 = vector.broadcast %cst_297 : f32 to vector<8x32xf32>
    %697 = arith.addf %695, %696 : vector<8x32xf32>
    %698 = math.tanh %680 : vector<8x32xf32>
    %cst_298 = arith.constant 5.000000e-01 : f32
    %699 = vector.broadcast %cst_298 : f32 to vector<8x32xf32>
    %700 = arith.mulf %699, %683 : vector<8x32xf32>
    %701 = math.tanh %700 : vector<8x32xf32>
    %cst_299 = arith.constant 5.000000e-01 : f32
    %702 = vector.broadcast %cst_299 : f32 to vector<8x32xf32>
    %703 = arith.mulf %702, %701 : vector<8x32xf32>
    %cst_300 = arith.constant 5.000000e-01 : f32
    %704 = vector.broadcast %cst_300 : f32 to vector<8x32xf32>
    %705 = arith.addf %703, %704 : vector<8x32xf32>
    %706 = arith.mulf %697, %669 : vector<8x32xf32>
    %707 = arith.mulf %690, %698 : vector<8x32xf32>
    %708 = arith.addf %706, %707 : vector<8x32xf32>
    %709 = math.tanh %708 : vector<8x32xf32>
    %710 = arith.mulf %705, %709 : vector<8x32xf32>
    %c0_301 = arith.constant 0 : index
    %c0_302 = arith.constant 0 : index
    %711 = vector.load %arg7[%c0_301, %c0_302] : memref<32x4xf32, #tpu.memory_space<vmem>>, vector<32x4xf32>
    %cst_303 = arith.constant dense<0.000000e+00> : vector<8x4xf32>
    %712 = tpu.matmul %710, %711, %cst_303 {dimension_numbers = #tpu.dot_dimension_numbers<[1], [0], [0], [1], [0, 0, 1, 1], [], []>} : vector<8x32xf32>, vector<32x4xf32>, vector<8x4xf32> -> vector<8x4xf32>
    %c0_304 = arith.constant 0 : index
    %c0_305 = arith.constant 0 : index
    %713 = vector.load %arg8[%c0_304, %c0_305] : memref<1x4xf32, #tpu.memory_space<vmem>>, vector<1x4xf32>
    %714 = vector.broadcast %713 : vector<1x4xf32> to vector<8x4xf32>
    %715 = arith.addf %712, %714 : vector<8x4xf32>
    %c0_306 = arith.constant 0 : index
    %c0_307 = arith.constant 0 : index
    %716 = vector.load %arg9[%c0_306, %c0_307] : memref<8x4xf32, #tpu.memory_space<vmem>>, vector<8x4xf32>
    tpu.vector_store %arg9[%c0_306, %c0_307], %715 {strides = array<i32>} : memref<8x4xf32, #tpu.memory_space<vmem>>, vector<8x4xf32>,
    return
  }
}

</mosaic_0001>

<llo_original>
// kernel: tpu_custom_call.1
$region0: #{tpu_custom_call.1}
  #allocation0 [shape = 'u32[]', space=smem, size = 0x4, offset = 0x4, fixed_abs, tag = 'smem constant byte address 0x4 - core index']
  #allocation1 [shape = 'u32[144,128]{1,0:T(1,128)}', space=vmem, size = 0x12000, scoped, tag = 'internal scratch']
  #allocation2 [shape = 'f32[64,32]{1,0:T(8,128)}', space=vmem, size = 0x8000, scoped, tag = 'scratch operand']
  %s0 = inlined_call_operand.hbm [shape: f32[8,8,16], index: 0, kind: input, shape index: {}]
  %s1 = inlined_call_operand.hbm [shape: f32[4,16,32], index: 1, kind: input, shape index: {}]
  %s2 = inlined_call_operand.hbm [shape: f32[4,32,32], index: 2, kind: input, shape index: {}]
  %s3 = inlined_call_operand.vmem [shape: f32[4,1,32], index: 3, kind: input, shape index: {}]
  %s4 = inlined_call_operand.hbm [shape: f32[4,32,32], index: 4, kind: input, shape index: {}]
  %s5 = inlined_call_operand.hbm [shape: f32[4,32,32], index: 5, kind: input, shape index: {}]
  %s6 = inlined_call_operand.vmem [shape: f32[4,1,32], index: 6, kind: input, shape index: {}]
  %s7 = inlined_call_operand.vmem [shape: f32[32,4], index: 7, kind: input, shape index: {}]
  %s8 = inlined_call_operand.vmem [shape: f32[1,4], index: 8, kind: input, shape index: {}]
  %s9 = inlined_call_operand.vmem [shape: f32[8,4], index: 9, kind: output, shape index: {}]
  %s10 = sld [smem:[#allocation0]]
  $region66: #{tpu_custom_call.1} parent=0
    _
  %s12 = ssub.s32 1, %s10
  %s13 = scalar_select 0, %s12, %s10
  $region1: #{tpu_custom_call.1} parent=0
    #allocation3 [shape = 'u8[32768]{0}', space=vmem, size = 0x8000, scoped, tag = 'input window, operand 0, single buffered']
    #allocation4 [shape = 's32[1]{0}', space=sflag, size = 0x4, scoped, tag = 'scoped memory for tpu_custom_call.1']
    #allocation5 [shape = 'u8[32768]{0}', space=vmem, size = 0x8000, scoped, tag = 'input window, operand 1, single buffered']
    #allocation6 [shape = 's32[1]{0}', space=sflag, size = 0x4, scoped, tag = 'scoped memory for tpu_custom_call.1']
    #allocation7 [shape = 'u8[65536]{0}', space=vmem, size = 0x10000, scoped, tag = 'input window, operand 2, single buffered']
    #allocation8 [shape = 'u8[65536]{0}', space=vmem, size = 0x10000, scoped, tag = 'input window, operand 4, single buffered']
    #allocation9 [shape = 's32[1]{0}', space=sflag, size = 0x4, scoped, tag = 'scoped memory for tpu_custom_call.1']
    #allocation10 [shape = 'u8[65536]{0}', space=vmem, size = 0x10000, scoped, tag = 'input window, operand 5, single buffered']
    %14 = vsyncpa [#allocation4], 0
    %15 = vsyncpa [#allocation6], 0
    %16 = vsyncpa [#allocation9], 0
    // Predicated region
    $region2: #{tpu_custom_call.1} parent=1 // pred_check
      _
    $region3: #{tpu_custom_call.1} parent=1 // pred_check_branch
      %18 = sbr.rel (0) target = $region5
    $region4: #{tpu_custom_call.1} parent=1 // pred_region
      %s20 = ssub.s32 1024, 1024
      %21 = vsyncadd [#allocation4], %s20
      %s22 = sshll.u32 [#allocation3], 4
      %s23 = int_to_ptr.vmem [resolvable:$true] %s22
      %28 = dma.hbm_to_vmem [thread:$0]  %s0, 1024, %s23, [#allocation4], 128, 128, 8
    $region5: #{tpu_custom_call.1} parent=1 // pred_fallthru
      _
    // Predicated region
    $region6: #{tpu_custom_call.1} parent=1 // pred_check
      _
    $region7: #{tpu_custom_call.1} parent=1 // pred_check_branch
      %30 = sbr.rel (0) target = $region9
    $region8: #{tpu_custom_call.1} parent=1 // pred_region
      %s32 = ssub.s32 1024, 1024
      %33 = vsyncadd [#allocation6], %s32
      %s34 = sshll.u32 [#allocation5], 4
      %s35 = int_to_ptr.vmem [resolvable:$true] %s34
      %40 = dma.hbm_to_vmem [thread:$0]  %s1, 1024, %s35, [#allocation6], 128, 128, 8
    $region9: #{tpu_custom_call.1} parent=1 // pred_fallthru
      _
    // Predicated region
    $region10: #{tpu_custom_call.1} parent=1 // pred_check
      _
    $region11: #{tpu_custom_call.1} parent=1 // pred_check_branch
      %42 = sbr.rel (0) target = $region13
    $region12: #{tpu_custom_call.1} parent=1 // pred_region
      %s44 = ssub.s32 2048, 2048
      %45 = vsyncadd [#allocation6], %s44
      %s46 = sshll.u32 [#allocation7], 4
      %s47 = int_to_ptr.vmem [resolvable:$true] %s46
      %52 = dma.hbm_to_vmem [thread:$0]  %s2, 2048, %s47, [#allocation6], 128, 128, 8
    $region13: #{tpu_custom_call.1} parent=1 // pred_fallthru
      _
    // Predicated region
    $region14: #{tpu_custom_call.1} parent=1 // pred_check
      _
    $region15: #{tpu_custom_call.1} parent=1 // pred_check_branch
      %54 = sbr.rel (0) target = $region17
    $region16: #{tpu_custom_call.1} parent=1 // pred_region
      _
    $region17: #{tpu_custom_call.1} parent=1 // pred_fallthru
      _
    // Predicated region
    $region18: #{tpu_custom_call.1} parent=1 // pred_check
      _
    $region19: #{tpu_custom_call.1} parent=1 // pred_check_branch
      %56 = sbr.rel (0) target = $region21
    $region20: #{tpu_custom_call.1} parent=1 // pred_region
      %s58 = ssub.s32 2048, 2048
      %59 = vsyncadd [#allocation9], %s58
      %s60 = sshll.u32 [#allocation8], 4
      %s61 = int_to_ptr.vmem [resolvable:$true] %s60
      %66 = dma.hbm_to_vmem [thread:$0]  %s4, 2048, %s61, [#allocation9], 128, 128, 8
    $region21: #{tpu_custom_call.1} parent=1 // pred_fallthru
      _
    // Predicated region
    $region22: #{tpu_custom_call.1} parent=1 // pred_check
      _
    $region23: #{tpu_custom_call.1} parent=1 // pred_check_branch
      %68 = sbr.rel (0) target = $region25
    $region24: #{tpu_custom_call.1} parent=1 // pred_region
      %s70 = ssub.s32 2048, 2048
      %71 = vsyncadd [#allocation9], %s70
      %s72 = sshll.u32 [#allocation10], 4
      %s73 = int_to_ptr.vmem [resolvable:$true] %s72
      %78 = dma.hbm_to_vmem [thread:$0]  %s5, 2048, %s73, [#allocation9], 128, 128, 8
    $region25: #{tpu_custom_call.1} parent=1 // pred_fallthru
      _
    // Predicated region
    $region26: #{tpu_custom_call.1} parent=1 // pred_check
      _
    $region27: #{tpu_custom_call.1} parent=1 // pred_check_branch
      %80 = sbr.rel (0) target = $region29
    $region28: #{tpu_custom_call.1} parent=1 // pred_region
      _
    $region29: #{tpu_custom_call.1} parent=1 // pred_fallthru
      _
    // Predicated region
    $region30: #{tpu_custom_call.1} parent=1 // pred_check
      _
    $region31: #{tpu_custom_call.1} parent=1 // pred_check_branch
      %82 = sbr.rel (0) target = $region33
    $region32: #{tpu_custom_call.1} parent=1 // pred_region
      _
    $region33: #{tpu_custom_call.1} parent=1 // pred_fallthru
      _
    // Predicated region
    $region34: #{tpu_custom_call.1} parent=1 // pred_check
      _
    $region35: #{tpu_custom_call.1} parent=1 // pred_check_branch
      %84 = sbr.rel (0) target = $region37
    $region36: #{tpu_custom_call.1} parent=1 // pred_region
      _
    $region37: #{tpu_custom_call.1} parent=1 // pred_fallthru
      _
    // Predicated region
    $region38: #{tpu_custom_call.1} parent=1 // pred_check
      _
    $region39: #{tpu_custom_call.1} parent=1 // pred_check_branch
      %86 = sbr.rel (0) target = $region41
    $region40: #{tpu_custom_call.1} parent=1 // pred_region
      %87 = dma.done [#allocation4], 1024
    $region41: #{tpu_custom_call.1} parent=1 // pred_fallthru
      _
    // Predicated region
    $region42: #{tpu_custom_call.1} parent=1 // pred_check
      _
    $region43: #{tpu_custom_call.1} parent=1 // pred_check_branch
      %89 = sbr.rel (0) target = $region45
    $region44: #{tpu_custom_call.1} parent=1 // pred_region
      %90 = dma.done [#allocation6], 1024
    $region45: #{tpu_custom_call.1} parent=1 // pred_fallthru
      _
    // Predicated region
    $region46: #{tpu_custom_call.1} parent=1 // pred_check
      _
    $region47: #{tpu_custom_call.1} parent=1 // pred_check_branch
      %92 = sbr.rel (0) target = $region49
    $region48: #{tpu_custom_call.1} parent=1 // pred_region
      %93 = dma.done [#allocation6], 2048
    $region49: #{tpu_custom_call.1} parent=1 // pred_fallthru
      _
    // Predicated region
    $region50: #{tpu_custom_call.1} parent=1 // pred_check
      _
    $region51: #{tpu_custom_call.1} parent=1 // pred_check_branch
      %95 = sbr.rel (0) target = $region53
    $region52: #{tpu_custom_call.1} parent=1 // pred_region
      %96 = dma.done [#allocation9], 2048
    $region53: #{tpu_custom_call.1} parent=1 // pred_fallthru
      _
    // Predicated region
    $region54: #{tpu_custom_call.1} parent=1 // pred_check
      _
    $region55: #{tpu_custom_call.1} parent=1 // pred_check_branch
      %98 = sbr.rel (0) target = $region57
    $region56: #{tpu_custom_call.1} parent=1 // pred_region
      %99 = dma.done [#allocation9], 2048
    $region57: #{tpu_custom_call.1} parent=1 // pred_fallthru
      _
    %v100 = vld [vmem:[#allocation3] sm:$0xff]
    %v101 = vld [vmem:[#allocation3 + $0x8] sm:$0xff]
    %v102 = vld [vmem:[#allocation3 + $0x10] sm:$0xff]
    %v103 = vld [vmem:[#allocation3 + $0x18] sm:$0xff]
    %v104 = vld [vmem:[#allocation3 + $0x20] sm:$0xff]
    %v105 = vld [vmem:[#allocation3 + $0x28] sm:$0xff]
    %v106 = vld [vmem:[#allocation3 + $0x30] sm:$0xff]
    %v107 = vld [vmem:[#allocation3 + $0x38] sm:$0xff]
    %v108 = vld [vmem:[#allocation5] sm:$0xff]
    %v109 = vld [vmem:[#allocation5 + $0x8] sm:$0xff]
    %v110 = vld [vmem:[%s3] sm:$0x1]
    %v112 = vlaneseq
    %v113 = vshrl.u32 %v112, 7
    %v114 = vsub.s32 0, %v113
    %v115 = vrot.slane %v110, %v114
    %vm117 = vcmask 130048
    %v119 = vsel %vm117, %v100, 0
    %v122 = vsel %vm117, %v101, 0
    %v125 = vsel %vm117, %v102, 0
    %v128 = vsel %vm117, %v103, 0
    %v131 = vsel %vm117, %v104, 0
    %v134 = vsel %vm117, %v105, 0
    %v137 = vsel %vm117, %v106, 0
    %v140 = vsel %vm117, %v107, 0
    %142 = vmatprep.subr.mxu0 0.0
    %143 = vmatpush1.msra.mxu0 0.0
    %144 = vmatprep.subr.mxu0 0.0
    %145 = vmatpush1.msra.mxu0 0.0
    %146 = vmatprep.subr.mxu0 0.0
    %147 = vmatpush1.msra.mxu0 0.0
    %148 = vmatprep.subr.mxu0 0.0
    %149 = vmatpush1.msra.mxu0 0.0
    %150 = vmatprep.subr.mxu0 0.0
    %151 = vmatpush1.msra.mxu0 0.0
    %152 = vmatprep.subr.mxu0 0.0
    %153 = vmatpush1.msra.mxu0 0.0
    %154 = vmatprep.subr.mxu0 0.0
    %155 = vmatpush1.msra.mxu0 0.0
    %156 = vmatprep.subr.mxu0 0.0
    %157 = vmatpush1.msra.mxu0 0.0
    %158 = vmatprep.subr.mxu0 0.0
    %159 = vmatpush1.msra.mxu0 0.0
    %160 = vmatprep.subr.mxu0 0.0
    %161 = vmatpush1.msra.mxu0 0.0
    %162 = vmatprep.subr.mxu0 0.0
    %163 = vmatpush1.msra.mxu0 0.0
    %164 = vmatprep.subr.mxu0 0.0
    %165 = vmatpush1.msra.mxu0 0.0
    %166 = vmatprep.subr.mxu0 0.0
    %167 = vmatpush1.msra.mxu0 0.0
    %168 = vmatprep.subr.mxu0 0.0
    %169 = vmatpush1.msra.mxu0 0.0
    %170 = vmatprep.subr.mxu0 0.0
    %171 = vmatpush1.msra.mxu0 %v109
    %172 = vmatprep.subr.mxu0 0.0
    %173 = vmatpush1.msra.mxu0 %v108
    %174 = vmatprep.subr.mxu0 0.0
    %175 = vmatpush2.msra.mxu0 0.0
    %176 = vmatprep.subr.mxu0 0.0
    %177 = vmatpush2.msra.mxu0 0.0
    %178 = vmatprep.subr.mxu0 0.0
    %179 = vmatpush2.msra.mxu0 0.0
    %180 = vmatprep.subr.mxu0 0.0
    %181 = vmatpush2.msra.mxu0 0.0
    %182 = vmatprep.subr.mxu0 0.0
    %183 = vmatpush2.msra.mxu0 0.0
    %184 = vmatprep.subr.mxu0 0.0
    %185 = vmatpush2.msra.mxu0 0.0
    %186 = vmatprep.subr.mxu0 0.0
    %187 = vmatpush2.msra.mxu0 0.0
    %188 = vmatprep.subr.mxu0 0.0
    %189 = vmatpush2.msra.mxu0 0.0
    %190 = vmatprep.subr.mxu0 0.0
    %191 = vmatpush2.msra.mxu0 0.0
    %192 = vmatprep.subr.mxu0 0.0
    %193 = vmatpush2.msra.mxu0 0.0
    %194 = vmatprep.subr.mxu0 0.0
    %195 = vmatpush2.msra.mxu0 0.0
    %196 = vmatprep.subr.mxu0 0.0
    %197 = vmatpush2.msra.mxu0 0.0
    %198 = vmatprep.subr.mxu0 0.0
    %199 = vmatpush2.msra.mxu0 0.0
    %200 = vmatprep.subr.mxu0 0.0
    %201 = vmatpush2.msra.mxu0 0.0
    %202 = vmatprep.subr.mxu0 0.0
    %203 = vmatpush2.msra.mxu0 0.0
    %204 = vmatprep.subr.mxu0 0.0
    %205 = vmatpush2.msra.mxu0 0.0
    %206 = vmatprep.mubr.f32.mxu0 0.0
    %207 = vmatmul.mubr.f32.gmra.mxu0 %v119
    %v208 = vpop.f32.mrf.mxu0
    %v209 = vadd.f32 %v115, %v208
    %v210 = vpop.f32.mrf.mxu0
    %211 = vmatprep.mubr.f32.mxu0 0.0
    %212 = vmatmul.mubr.f32.gmra.mxu0 %v122
    %v213 = vpop.f32.mrf.mxu0
    %v214 = vadd.f32 %v115, %v213
    %v215 = vpop.f32.mrf.mxu0
    %216 = vmatprep.mubr.f32.mxu0 0.0
    %217 = vmatmul.mubr.f32.gmra.mxu0 %v125
    %v218 = vpop.f32.mrf.mxu0
    %v219 = vadd.f32 %v115, %v218
    %v220 = vpop.f32.mrf.mxu0
    %221 = vmatprep.mubr.f32.mxu0 0.0
    %222 = vmatmul.mubr.f32.gmra.mxu0 %v128
    %v223 = vpop.f32.mrf.mxu0
    %v224 = vadd.f32 %v115, %v223
    %v225 = vpop.f32.mrf.mxu0
    %226 = vmatprep.mubr.f32.mxu0 0.0
    %227 = vmatmul.mubr.f32.gmra.mxu0 %v131
    %v228 = vpop.f32.mrf.mxu0
    %v229 = vadd.f32 %v115, %v228
    %v230 = vpop.f32.mrf.mxu0
    %231 = vmatprep.mubr.f32.mxu0 0.0
    %232 = vmatmul.mubr.f32.gmra.mxu0 %v134
    %v233 = vpop.f32.mrf.mxu0
    %v234 = vadd.f32 %v115, %v233
    %v235 = vpop.f32.mrf.mxu0
    %236 = vmatprep.mubr.f32.mxu0 0.0
    %237 = vmatmul.mubr.f32.gmra.mxu0 %v137
    %v238 = vpop.f32.mrf.mxu0
    %v239 = vadd.f32 %v115, %v238
    %v240 = vpop.f32.mrf.mxu0
    %241 = vmatprep.mubr.f32.mxu0 0.0
    %242 = vmatmul.mubr.f32.gmra.mxu0 %v140
    %v243 = vpop.f32.mrf.mxu0
    %v244 = vadd.f32 %v115, %v243
    %v245 = vpop.f32.mrf.mxu0
    %246 = vdwg.mxu0
    %s247 = scalar_lea.vmem [#allocation5], 16
    %v248 = vld [vmem:[%s247] sm:$0xff]
    %v249 = vld [vmem:[%s247 + $0x8] sm:$0xff]
    %s250 = scalar_lea.vmem %s3, 1
    %v251 = vld [vmem:[%s250] sm:$0x1]
    %v253 = vlaneseq
    %v254 = vshrl.u32 %v253, 7
    %v255 = vsub.s32 0, %v254
    %v256 = vrot.slane %v251, %v255
    %258 = vmatprep.subr.mxu0 0.0
    %259 = vmatpush1.msra.mxu0 0.0
    %260 = vmatprep.subr.mxu0 0.0
    %261 = vmatpush1.msra.mxu0 0.0
    %262 = vmatprep.subr.mxu0 0.0
    %263 = vmatpush1.msra.mxu0 0.0
    %264 = vmatprep.subr.mxu0 0.0
    %265 = vmatpush1.msra.mxu0 0.0
    %266 = vmatprep.subr.mxu0 0.0
    %267 = vmatpush1.msra.mxu0 0.0
    %268 = vmatprep.subr.mxu0 0.0
    %269 = vmatpush1.msra.mxu0 0.0
    %270 = vmatprep.subr.mxu0 0.0
    %271 = vmatpush1.msra.mxu0 0.0
    %272 = vmatprep.subr.mxu0 0.0
    %273 = vmatpush1.msra.mxu0 0.0
    %274 = vmatprep.subr.mxu0 0.0
    %275 = vmatpush1.msra.mxu0 0.0
    %276 = vmatprep.subr.mxu0 0.0
    %277 = vmatpush1.msra.mxu0 0.0
    %278 = vmatprep.subr.mxu0 0.0
    %279 = vmatpush1.msra.mxu0 0.0
    %280 = vmatprep.subr.mxu0 0.0
    %281 = vmatpush1.msra.mxu0 0.0
    %282 = vmatprep.subr.mxu0 0.0
    %283 = vmatpush1.msra.mxu0 0.0
    %284 = vmatprep.subr.mxu0 0.0
    %285 = vmatpush1.msra.mxu0 0.0
    %286 = vmatprep.subr.mxu0 0.0
    %287 = vmatpush1.msra.mxu0 %v249
    %288 = vmatprep.subr.mxu0 0.0
    %289 = vmatpush1.msra.mxu0 %v248
    %290 = vmatprep.subr.mxu0 0.0
    %291 = vmatpush2.msra.mxu0 0.0
    %292 = vmatprep.subr.mxu0 0.0
    %293 = vmatpush2.msra.mxu0 0.0
    %294 = vmatprep.subr.mxu0 0.0
    %295 = vmatpush2.msra.mxu0 0.0
    %296 = vmatprep.subr.mxu0 0.0
    %297 = vmatpush2.msra.mxu0 0.0
    %298 = vmatprep.subr.mxu0 0.0
    %299 = vmatpush2.msra.mxu0 0.0
    %300 = vmatprep.subr.mxu0 0.0
    %301 = vmatpush2.msra.mxu0 0.0
    %302 = vmatprep.subr.mxu0 0.0
    %303 = vmatpush2.msra.mxu0 0.0
    %304 = vmatprep.subr.mxu0 0.0
    %305 = vmatpush2.msra.mxu0 0.0
    %306 = vmatprep.subr.mxu0 0.0
    %307 = vmatpush2.msra.mxu0 0.0
    %308 = vmatprep.subr.mxu0 0.0
    %309 = vmatpush2.msra.mxu0 0.0
    %310 = vmatprep.subr.mxu0 0.0
    %311 = vmatpush2.msra.mxu0 0.0
    %312 = vmatprep.subr.mxu0 0.0
    %313 = vmatpush2.msra.mxu0 0.0
    %314 = vmatprep.subr.mxu0 0.0
    %315 = vmatpush2.msra.mxu0 0.0
    %316 = vmatprep.subr.mxu0 0.0
    %317 = vmatpush2.msra.mxu0 0.0
    %318 = vmatprep.subr.mxu0 0.0
    %319 = vmatpush2.msra.mxu0 0.0
    %320 = vmatprep.subr.mxu0 0.0
    %321 = vmatpush2.msra.mxu0 0.0
    %322 = vmatprep.mubr.f32.mxu0 0.0
    %323 = vmatmul.mubr.f32.gmra.mxu0 %v119
    %v324 = vpop.f32.mrf.mxu0
    %v325 = vadd.f32 %v256, %v324
    %v326 = vpop.f32.mrf.mxu0
    %327 = vmatprep.mubr.f32.mxu0 0.0
    %328 = vmatmul.mubr.f32.gmra.mxu0 %v122
    %v329 = vpop.f32.mrf.mxu0
    %v330 = vadd.f32 %v256, %v329
    %v331 = vpop.f32.mrf.mxu0
    %332 = vmatprep.mubr.f32.mxu0 0.0
    %333 = vmatmul.mubr.f32.gmra.mxu0 %v125
    %v334 = vpop.f32.mrf.mxu0
    %v335 = vadd.f32 %v256, %v334
    %v336 = vpop.f32.mrf.mxu0
    %337 = vmatprep.mubr.f32.mxu0 0.0
    %338 = vmatmul.mubr.f32.gmra.mxu0 %v128
    %v339 = vpop.f32.mrf.mxu0
    %v340 = vadd.f32 %v256, %v339
    %v341 = vpop.f32.mrf.mxu0
    %342 = vmatprep.mubr.f32.mxu0 0.0
    %343 = vmatmul.mubr.f32.gmra.mxu0 %v131
    %v344 = vpop.f32.mrf.mxu0
    %v345 = vadd.f32 %v256, %v344
    %v346 = vpop.f32.mrf.mxu0
    %347 = vmatprep.mubr.f32.mxu0 0.0
    %348 = vmatmul.mubr.f32.gmra.mxu0 %v134
    %v349 = vpop.f32.mrf.mxu0
    %v350 = vadd.f32 %v256, %v349
    %v351 = vpop.f32.mrf.mxu0
    %352 = vmatprep.mubr.f32.mxu0 0.0
    %353 = vmatmul.mubr.f32.gmra.mxu0 %v137
    %v354 = vpop.f32.mrf.mxu0
    %v355 = vadd.f32 %v256, %v354
    %v356 = vpop.f32.mrf.mxu0
    %357 = vmatprep.mubr.f32.mxu0 0.0
    %358 = vmatmul.mubr.f32.gmra.mxu0 %v140
    %v359 = vpop.f32.mrf.mxu0
    %v360 = vadd.f32 %v256, %v359
    %v361 = vpop.f32.mrf.mxu0
    %362 = vdwg.mxu0
    %s363 = scalar_lea.vmem [#allocation5], 32
    %v364 = vld [vmem:[%s363] sm:$0xff]
    %v365 = vld [vmem:[%s363 + $0x8] sm:$0xff]
    %s366 = scalar_lea.vmem %s3, 2
    %v367 = vld [vmem:[%s366] sm:$0x1]
    %v369 = vlaneseq
    %v370 = vshrl.u32 %v369, 7
    %v371 = vsub.s32 0, %v370
    %v372 = vrot.slane %v367, %v371
    %374 = vmatprep.subr.mxu0 0.0
    %375 = vmatpush1.msra.mxu0 0.0
    %376 = vmatprep.subr.mxu0 0.0
    %377 = vmatpush1.msra.mxu0 0.0
    %378 = vmatprep.subr.mxu0 0.0
    %379 = vmatpush1.msra.mxu0 0.0
    %380 = vmatprep.subr.mxu0 0.0
    %381 = vmatpush1.msra.mxu0 0.0
    %382 = vmatprep.subr.mxu0 0.0
    %383 = vmatpush1.msra.mxu0 0.0
    %384 = vmatprep.subr.mxu0 0.0
    %385 = vmatpush1.msra.mxu0 0.0
    %386 = vmatprep.subr.mxu0 0.0
    %387 = vmatpush1.msra.mxu0 0.0
    %388 = vmatprep.subr.mxu0 0.0
    %389 = vmatpush1.msra.mxu0 0.0
    %390 = vmatprep.subr.mxu0 0.0
    %391 = vmatpush1.msra.mxu0 0.0
    %392 = vmatprep.subr.mxu0 0.0
    %393 = vmatpush1.msra.mxu0 0.0
    %394 = vmatprep.subr.mxu0 0.0
    %395 = vmatpush1.msra.mxu0 0.0
    %396 = vmatprep.subr.mxu0 0.0
    %397 = vmatpush1.msra.mxu0 0.0
    %398 = vmatprep.subr.mxu0 0.0
    %399 = vmatpush1.msra.mxu0 0.0
    %400 = vmatprep.subr.mxu0 0.0
    %401 = vmatpush1.msra.mxu0 0.0
    %402 = vmatprep.subr.mxu0 0.0
    %403 = vmatpush1.msra.mxu0 %v365
    %404 = vmatprep.subr.mxu0 0.0
    %405 = vmatpush1.msra.mxu0 %v364
    %406 = vmatprep.subr.mxu0 0.0
    %407 = vmatpush2.msra.mxu0 0.0
    %408 = vmatprep.subr.mxu0 0.0
    %409 = vmatpush2.msra.mxu0 0.0
    %410 = vmatprep.subr.mxu0 0.0
    %411 = vmatpush2.msra.mxu0 0.0
    %412 = vmatprep.subr.mxu0 0.0
    %413 = vmatpush2.msra.mxu0 0.0
    %414 = vmatprep.subr.mxu0 0.0
    %415 = vmatpush2.msra.mxu0 0.0
    %416 = vmatprep.subr.mxu0 0.0
    %417 = vmatpush2.msra.mxu0 0.0
    %418 = vmatprep.subr.mxu0 0.0
    %419 = vmatpush2.msra.mxu0 0.0
    %420 = vmatprep.subr.mxu0 0.0
    %421 = vmatpush2.msra.mxu0 0.0
    %422 = vmatprep.subr.mxu0 0.0
    %423 = vmatpush2.msra.mxu0 0.0
    %424 = vmatprep.subr.mxu0 0.0
    %425 = vmatpush2.msra.mxu0 0.0
    %426 = vmatprep.subr.mxu0 0.0
    %427 = vmatpush2.msra.mxu0 0.0
    %428 = vmatprep.subr.mxu0 0.0
    %429 = vmatpush2.msra.mxu0 0.0
    %430 = vmatprep.subr.mxu0 0.0
    %431 = vmatpush2.msra.mxu0 0.0
    %432 = vmatprep.subr.mxu0 0.0
    %433 = vmatpush2.msra.mxu0 0.0
    %434 = vmatprep.subr.mxu0 0.0
    %435 = vmatpush2.msra.mxu0 0.0
    %436 = vmatprep.subr.mxu0 0.0
    %437 = vmatpush2.msra.mxu0 0.0
    %438 = vmatprep.mubr.f32.mxu0 0.0
    %439 = vmatmul.mubr.f32.gmra.mxu0 %v119
    %v440 = vpop.f32.mrf.mxu0
    %v441 = vadd.f32 %v372, %v440
    %v442 = vpop.f32.mrf.mxu0
    %443 = vmatprep.mubr.f32.mxu0 0.0
    %444 = vmatmul.mubr.f32.gmra.mxu0 %v122
    %v445 = vpop.f32.mrf.mxu0
    %v446 = vadd.f32 %v372, %v445
    %v447 = vpop.f32.mrf.mxu0
    %448 = vmatprep.mubr.f32.mxu0 0.0
    %449 = vmatmul.mubr.f32.gmra.mxu0 %v125
    %v450 = vpop.f32.mrf.mxu0
    %v451 = vadd.f32 %v372, %v450
    %v452 = vpop.f32.mrf.mxu0
    %453 = vmatprep.mubr.f32.mxu0 0.0
    %454 = vmatmul.mubr.f32.gmra.mxu0 %v128
    %v455 = vpop.f32.mrf.mxu0
    %v456 = vadd.f32 %v372, %v455
    %v457 = vpop.f32.mrf.mxu0
    %458 = vmatprep.mubr.f32.mxu0 0.0
    %459 = vmatmul.mubr.f32.gmra.mxu0 %v131
    %v460 = vpop.f32.mrf.mxu0
    %v461 = vadd.f32 %v372, %v460
    %v462 = vpop.f32.mrf.mxu0
    %463 = vmatprep.mubr.f32.mxu0 0.0
    %464 = vmatmul.mubr.f32.gmra.mxu0 %v134
    %v465 = vpop.f32.mrf.mxu0
    %v466 = vadd.f32 %v372, %v465
    %v467 = vpop.f32.mrf.mxu0
    %468 = vmatprep.mubr.f32.mxu0 0.0
    %469 = vmatmul.mubr.f32.gmra.mxu0 %v137
    %v470 = vpop.f32.mrf.mxu0
    %v471 = vadd.f32 %v372, %v470
    %v472 = vpop.f32.mrf.mxu0
    %473 = vmatprep.mubr.f32.mxu0 0.0
    %474 = vmatmul.mubr.f32.gmra.mxu0 %v140
    %v475 = vpop.f32.mrf.mxu0
    %v476 = vadd.f32 %v372, %v475
    %v477 = vpop.f32.mrf.mxu0
    %478 = vdwg.mxu0
    %s479 = scalar_lea.vmem [#allocation5], 48
    %v480 = vld [vmem:[%s479] sm:$0xff]
    %v481 = vld [vmem:[%s479 + $0x8] sm:$0xff]
    %s482 = scalar_lea.vmem %s3, 3
    %v483 = vld [vmem:[%s482] sm:$0x1]
    %v485 = vlaneseq
    %v486 = vshrl.u32 %v485, 7
    %v487 = vsub.s32 0, %v486
    %v488 = vrot.slane %v483, %v487
    %490 = vmatprep.subr.mxu0 0.0
    %491 = vmatpush1.msra.mxu0 0.0
    %492 = vmatprep.subr.mxu0 0.0
    %493 = vmatpush1.msra.mxu0 0.0
    %494 = vmatprep.subr.mxu0 0.0
    %495 = vmatpush1.msra.mxu0 0.0
    %496 = vmatprep.subr.mxu0 0.0
    %497 = vmatpush1.msra.mxu0 0.0
    %498 = vmatprep.subr.mxu0 0.0
    %499 = vmatpush1.msra.mxu0 0.0
    %500 = vmatprep.subr.mxu0 0.0
    %501 = vmatpush1.msra.mxu0 0.0
    %502 = vmatprep.subr.mxu0 0.0
    %503 = vmatpush1.msra.mxu0 0.0
    %504 = vmatprep.subr.mxu0 0.0
    %505 = vmatpush1.msra.mxu0 0.0
    %506 = vmatprep.subr.mxu0 0.0
    %507 = vmatpush1.msra.mxu0 0.0
    %508 = vmatprep.subr.mxu0 0.0
    %509 = vmatpush1.msra.mxu0 0.0
    %510 = vmatprep.subr.mxu0 0.0
    %511 = vmatpush1.msra.mxu0 0.0
    %512 = vmatprep.subr.mxu0 0.0
    %513 = vmatpush1.msra.mxu0 0.0
    %514 = vmatprep.subr.mxu0 0.0
    %515 = vmatpush1.msra.mxu0 0.0
    %516 = vmatprep.subr.mxu0 0.0
    %517 = vmatpush1.msra.mxu0 0.0
    %518 = vmatprep.subr.mxu0 0.0
    %519 = vmatpush1.msra.mxu0 %v481
    %520 = vmatprep.subr.mxu0 0.0
    %521 = vmatpush1.msra.mxu0 %v480
    %522 = vmatprep.subr.mxu0 0.0
    %523 = vmatpush2.msra.mxu0 0.0
    %524 = vmatprep.subr.mxu0 0.0
    %525 = vmatpush2.msra.mxu0 0.0
    %526 = vmatprep.subr.mxu0 0.0
    %527 = vmatpush2.msra.mxu0 0.0
    %528 = vmatprep.subr.mxu0 0.0
    %529 = vmatpush2.msra.mxu0 0.0
    %530 = vmatprep.subr.mxu0 0.0
    %531 = vmatpush2.msra.mxu0 0.0
    %532 = vmatprep.subr.mxu0 0.0
    %533 = vmatpush2.msra.mxu0 0.0
    %534 = vmatprep.subr.mxu0 0.0
    %535 = vmatpush2.msra.mxu0 0.0
    %536 = vmatprep.subr.mxu0 0.0
    %537 = vmatpush2.msra.mxu0 0.0
    %538 = vmatprep.subr.mxu0 0.0
    %539 = vmatpush2.msra.mxu0 0.0
    %540 = vmatprep.subr.mxu0 0.0
    %541 = vmatpush2.msra.mxu0 0.0
    %542 = vmatprep.subr.mxu0 0.0
    %543 = vmatpush2.msra.mxu0 0.0
    %544 = vmatprep.subr.mxu0 0.0
    %545 = vmatpush2.msra.mxu0 0.0
    %546 = vmatprep.subr.mxu0 0.0
    %547 = vmatpush2.msra.mxu0 0.0
    %548 = vmatprep.subr.mxu0 0.0
    %549 = vmatpush2.msra.mxu0 0.0
    %550 = vmatprep.subr.mxu0 0.0
    %551 = vmatpush2.msra.mxu0 0.0
    %552 = vmatprep.subr.mxu0 0.0
    %553 = vmatpush2.msra.mxu0 0.0
    %554 = vmatprep.mubr.f32.mxu0 0.0
    %555 = vmatmul.mubr.f32.gmra.mxu0 %v119
    %v556 = vpop.f32.mrf.mxu0
    %v557 = vadd.f32 %v488, %v556
    %v558 = vpop.f32.mrf.mxu0
    %559 = vmatprep.mubr.f32.mxu0 0.0
    %560 = vmatmul.mubr.f32.gmra.mxu0 %v122
    %v561 = vpop.f32.mrf.mxu0
    %v562 = vadd.f32 %v488, %v561
    %v563 = vpop.f32.mrf.mxu0
    %564 = vmatprep.mubr.f32.mxu0 0.0
    %565 = vmatmul.mubr.f32.gmra.mxu0 %v125
    %v566 = vpop.f32.mrf.mxu0
    %v567 = vadd.f32 %v488, %v566
    %v568 = vpop.f32.mrf.mxu0
    %569 = vmatprep.mubr.f32.mxu0 0.0
    %570 = vmatmul.mubr.f32.gmra.mxu0 %v128
    %v571 = vpop.f32.mrf.mxu0
    %v572 = vadd.f32 %v488, %v571
    %v573 = vpop.f32.mrf.mxu0
    %574 = vmatprep.mubr.f32.mxu0 0.0
    %575 = vmatmul.mubr.f32.gmra.mxu0 %v131
    %v576 = vpop.f32.mrf.mxu0
    %v577 = vadd.f32 %v488, %v576
    %v578 = vpop.f32.mrf.mxu0
    %579 = vmatprep.mubr.f32.mxu0 0.0
    %580 = vmatmul.mubr.f32.gmra.mxu0 %v134
    %v581 = vpop.f32.mrf.mxu0
    %v582 = vadd.f32 %v488, %v581
    %v583 = vpop.f32.mrf.mxu0
    %584 = vmatprep.mubr.f32.mxu0 0.0
    %585 = vmatmul.mubr.f32.gmra.mxu0 %v137
    %v586 = vpop.f32.mrf.mxu0
    %v587 = vadd.f32 %v488, %v586
    %v588 = vpop.f32.mrf.mxu0
    %589 = vmatprep.mubr.f32.mxu0 0.0
    %590 = vmatmul.mubr.f32.gmra.mxu0 %v140
    %v591 = vpop.f32.mrf.mxu0
    %v592 = vadd.f32 %v488, %v591
    %v593 = vpop.f32.mrf.mxu0
    %594 = vdwg.mxu0
    %v595 = vld [vmem:[#allocation7] sm:$0xff]
    %v596 = vld [vmem:[#allocation7 + $0x8] sm:$0xff]
    %v597 = vld [vmem:[#allocation7 + $0x10] sm:$0xff]
    %v598 = vld [vmem:[#allocation7 + $0x18] sm:$0xff]
    %s599 = scalar_lea.vmem [#allocation7], 32
    %v600 = vld [vmem:[%s599] sm:$0xff]
    %v601 = vld [vmem:[%s599 + $0x8] sm:$0xff]
    %v602 = vld [vmem:[%s599 + $0x10] sm:$0xff]
    %v603 = vld [vmem:[%s599 + $0x18] sm:$0xff]
    %s604 = scalar_lea.vmem [#allocation7], 64
    %v605 = vld [vmem:[%s604] sm:$0xff]
    %v606 = vld [vmem:[%s604 + $0x8] sm:$0xff]
    %v607 = vld [vmem:[%s604 + $0x10] sm:$0xff]
    %v608 = vld [vmem:[%s604 + $0x18] sm:$0xff]
    %s609 = scalar_lea.vmem [#allocation7], 96
    %v610 = vld [vmem:[%s609] sm:$0xff]
    %v611 = vld [vmem:[%s609 + $0x8] sm:$0xff]
    %v612 = vld [vmem:[%s609 + $0x10] sm:$0xff]
    %v613 = vld [vmem:[%s609 + $0x18] sm:$0xff]
    %vm614 = vcmask 261120
    %v616 = vsel %vm614, 0.0, 0
    %618 = vmatprep.subr.mxu0 0.0
    %619 = vmatpush1.msra.mxu0 0.0
    %620 = vmatprep.subr.mxu0 0.0
    %621 = vmatpush1.msra.mxu0 0.0
    %622 = vmatprep.subr.mxu0 0.0
    %623 = vmatpush1.msra.mxu0 0.0
    %624 = vmatprep.subr.mxu0 0.0
    %625 = vmatpush1.msra.mxu0 0.0
    %626 = vmatprep.subr.mxu0 0.0
    %627 = vmatpush1.msra.mxu0 0.0
    %628 = vmatprep.subr.mxu0 0.0
    %629 = vmatpush1.msra.mxu0 0.0
    %630 = vmatprep.subr.mxu0 0.0
    %631 = vmatpush1.msra.mxu0 0.0
    %632 = vmatprep.subr.mxu0 0.0
    %633 = vmatpush1.msra.mxu0 0.0
    %634 = vmatprep.subr.mxu0 0.0
    %635 = vmatpush1.msra.mxu0 0.0
    %636 = vmatprep.subr.mxu0 0.0
    %637 = vmatpush1.msra.mxu0 0.0
    %638 = vmatprep.subr.mxu0 0.0
    %639 = vmatpush1.msra.mxu0 0.0
    %640 = vmatprep.subr.mxu0 0.0
    %641 = vmatpush1.msra.mxu0 0.0
    %642 = vmatprep.subr.mxu0 0.0
    %643 = vmatpush1.msra.mxu0 %v598
    %644 = vmatprep.subr.mxu0 0.0
    %645 = vmatpush1.msra.mxu0 %v597
    %646 = vmatprep.subr.mxu0 0.0
    %647 = vmatpush1.msra.mxu0 %v596
    %648 = vmatprep.subr.mxu0 0.0
    %649 = vmatpush1.msra.mxu0 %v595
    %650 = vmatprep.subr.mxu0 0.0
    %651 = vmatpush2.msra.mxu0 0.0
    %652 = vmatprep.subr.mxu0 0.0
    %653 = vmatpush2.msra.mxu0 0.0
    %654 = vmatprep.subr.mxu0 0.0
    %655 = vmatpush2.msra.mxu0 0.0
    %656 = vmatprep.subr.mxu0 0.0
    %657 = vmatpush2.msra.mxu0 0.0
    %658 = vmatprep.subr.mxu0 0.0
    %659 = vmatpush2.msra.mxu0 0.0
    %660 = vmatprep.subr.mxu0 0.0
    %661 = vmatpush2.msra.mxu0 0.0
    %662 = vmatprep.subr.mxu0 0.0
    %663 = vmatpush2.msra.mxu0 0.0
    %664 = vmatprep.subr.mxu0 0.0
    %665 = vmatpush2.msra.mxu0 0.0
    %666 = vmatprep.subr.mxu0 0.0
    %667 = vmatpush2.msra.mxu0 0.0
    %668 = vmatprep.subr.mxu0 0.0
    %669 = vmatpush2.msra.mxu0 0.0
    %670 = vmatprep.subr.mxu0 0.0
    %671 = vmatpush2.msra.mxu0 0.0
    %672 = vmatprep.subr.mxu0 0.0
    %673 = vmatpush2.msra.mxu0 0.0
    %674 = vmatprep.subr.mxu0 0.0
    %675 = vmatpush2.msra.mxu0 0.0
    %676 = vmatprep.subr.mxu0 0.0
    %677 = vmatpush2.msra.mxu0 0.0
    %678 = vmatprep.subr.mxu0 0.0
    %679 = vmatpush2.msra.mxu0 0.0
    %680 = vmatprep.subr.mxu0 0.0
    %681 = vmatpush2.msra.mxu0 0.0
    %682 = vmatprep.mubr.f32.mxu0 0.0
    %683 = vmatmul.mubr.f32.gmra.mxu0 %v616
    %v684 = vpop.f32.mrf.mxu0
    %v685 = vadd.f32 0.0, %v684
    %v686 = vpop.f32.mrf.mxu0
    %687 = vdwg.mxu0
    %v688 = vadd.f32 %v209, %v685
    %689 = vmatprep.subr.mxu0 0.0
    %690 = vmatpush1.msra.mxu0 0.0
    %691 = vmatprep.subr.mxu0 0.0
    %692 = vmatpush1.msra.mxu0 0.0
    %693 = vmatprep.subr.mxu0 0.0
    %694 = vmatpush1.msra.mxu0 0.0
    %695 = vmatprep.subr.mxu0 0.0
    %696 = vmatpush1.msra.mxu0 0.0
    %697 = vmatprep.subr.mxu0 0.0
    %698 = vmatpush1.msra.mxu0 0.0
    %699 = vmatprep.subr.mxu0 0.0
    %700 = vmatpush1.msra.mxu0 0.0
    %701 = vmatprep.subr.mxu0 0.0
    %702 = vmatpush1.msra.mxu0 0.0
    %703 = vmatprep.subr.mxu0 0.0
    %704 = vmatpush1.msra.mxu0 0.0
    %705 = vmatprep.subr.mxu0 0.0
    %706 = vmatpush1.msra.mxu0 0.0
    %707 = vmatprep.subr.mxu0 0.0
    %708 = vmatpush1.msra.mxu0 0.0
    %709 = vmatprep.subr.mxu0 0.0
    %710 = vmatpush1.msra.mxu0 0.0
    %711 = vmatprep.subr.mxu0 0.0
    %712 = vmatpush1.msra.mxu0 0.0
    %713 = vmatprep.subr.mxu0 0.0
    %714 = vmatpush1.msra.mxu0 %v603
    %715 = vmatprep.subr.mxu0 0.0
    %716 = vmatpush1.msra.mxu0 %v602
    %717 = vmatprep.subr.mxu0 0.0
    %718 = vmatpush1.msra.mxu0 %v601
    %719 = vmatprep.subr.mxu0 0.0
    %720 = vmatpush1.msra.mxu0 %v600
    %721 = vmatprep.subr.mxu0 0.0
    %722 = vmatpush2.msra.mxu0 0.0
    %723 = vmatprep.subr.mxu0 0.0
    %724 = vmatpush2.msra.mxu0 0.0
    %725 = vmatprep.subr.mxu0 0.0
    %726 = vmatpush2.msra.mxu0 0.0
    %727 = vmatprep.subr.mxu0 0.0
    %728 = vmatpush2.msra.mxu0 0.0
    %729 = vmatprep.subr.mxu0 0.0
    %730 = vmatpush2.msra.mxu0 0.0
    %731 = vmatprep.subr.mxu0 0.0
    %732 = vmatpush2.msra.mxu0 0.0
    %733 = vmatprep.subr.mxu0 0.0
    %734 = vmatpush2.msra.mxu0 0.0
    %735 = vmatprep.subr.mxu0 0.0
    %736 = vmatpush2.msra.mxu0 0.0
    %737 = vmatprep.subr.mxu0 0.0
    %738 = vmatpush2.msra.mxu0 0.0
    %739 = vmatprep.subr.mxu0 0.0
    %740 = vmatpush2.msra.mxu0 0.0
    %741 = vmatprep.subr.mxu0 0.0
    %742 = vmatpush2.msra.mxu0 0.0
    %743 = vmatprep.subr.mxu0 0.0
    %744 = vmatpush2.msra.mxu0 0.0
    %745 = vmatprep.subr.mxu0 0.0
    %746 = vmatpush2.msra.mxu0 0.0
    %747 = vmatprep.subr.mxu0 0.0
    %748 = vmatpush2.msra.mxu0 0.0
    %749 = vmatprep.subr.mxu0 0.0
    %750 = vmatpush2.msra.mxu0 0.0
    %751 = vmatprep.subr.mxu0 0.0
    %752 = vmatpush2.msra.mxu0 0.0
    %753 = vmatprep.mubr.f32.mxu0 0.0
    %754 = vmatmul.mubr.f32.gmra.mxu0 %v616
    %v755 = vpop.f32.mrf.mxu0
    %v756 = vadd.f32 0.0, %v755
    %v757 = vpop.f32.mrf.mxu0
    %758 = vdwg.mxu0
    %v759 = vadd.f32 %v325, %v756
    %760 = vmatprep.subr.mxu0 0.0
    %761 = vmatpush1.msra.mxu0 0.0
    %762 = vmatprep.subr.mxu0 0.0
    %763 = vmatpush1.msra.mxu0 0.0
    %764 = vmatprep.subr.mxu0 0.0
    %765 = vmatpush1.msra.mxu0 0.0
    %766 = vmatprep.subr.mxu0 0.0
    %767 = vmatpush1.msra.mxu0 0.0
    %768 = vmatprep.subr.mxu0 0.0
    %769 = vmatpush1.msra.mxu0 0.0
    %770 = vmatprep.subr.mxu0 0.0
    %771 = vmatpush1.msra.mxu0 0.0
    %772 = vmatprep.subr.mxu0 0.0
    %773 = vmatpush1.msra.mxu0 0.0
    %774 = vmatprep.subr.mxu0 0.0
    %775 = vmatpush1.msra.mxu0 0.0
    %776 = vmatprep.subr.mxu0 0.0
    %777 = vmatpush1.msra.mxu0 0.0
    %778 = vmatprep.subr.mxu0 0.0
    %779 = vmatpush1.msra.mxu0 0.0
    %780 = vmatprep.subr.mxu0 0.0
    %781 = vmatpush1.msra.mxu0 0.0
    %782 = vmatprep.subr.mxu0 0.0
    %783 = vmatpush1.msra.mxu0 0.0
    %784 = vmatprep.subr.mxu0 0.0
    %785 = vmatpush1.msra.mxu0 %v608
    %786 = vmatprep.subr.mxu0 0.0
    %787 = vmatpush1.msra.mxu0 %v607
    %788 = vmatprep.subr.mxu0 0.0
    %789 = vmatpush1.msra.mxu0 %v606
    %790 = vmatprep.subr.mxu0 0.0
    %791 = vmatpush1.msra.mxu0 %v605
    %792 = vmatprep.subr.mxu0 0.0
    %793 = vmatpush2.msra.mxu0 0.0
    %794 = vmatprep.subr.mxu0 0.0
    %795 = vmatpush2.msra.mxu0 0.0
    %796 = vmatprep.subr.mxu0 0.0
    %797 = vmatpush2.msra.mxu0 0.0
    %798 = vmatprep.subr.mxu0 0.0
    %799 = vmatpush2.msra.mxu0 0.0
    %800 = vmatprep.subr.mxu0 0.0
    %801 = vmatpush2.msra.mxu0 0.0
    %802 = vmatprep.subr.mxu0 0.0
    %803 = vmatpush2.msra.mxu0 0.0
    %804 = vmatprep.subr.mxu0 0.0
    %805 = vmatpush2.msra.mxu0 0.0
    %806 = vmatprep.subr.mxu0 0.0
    %807 = vmatpush2.msra.mxu0 0.0
    %808 = vmatprep.subr.mxu0 0.0
    %809 = vmatpush2.msra.mxu0 0.0
    %810 = vmatprep.subr.mxu0 0.0
    %811 = vmatpush2.msra.mxu0 0.0
    %812 = vmatprep.subr.mxu0 0.0
    %813 = vmatpush2.msra.mxu0 0.0
    %814 = vmatprep.subr.mxu0 0.0
    %815 = vmatpush2.msra.mxu0 0.0
    %816 = vmatprep.subr.mxu0 0.0
    %817 = vmatpush2.msra.mxu0 0.0
    %818 = vmatprep.subr.mxu0 0.0
    %819 = vmatpush2.msra.mxu0 0.0
    %820 = vmatprep.subr.mxu0 0.0
    %821 = vmatpush2.msra.mxu0 0.0
    %822 = vmatprep.subr.mxu0 0.0
    %823 = vmatpush2.msra.mxu0 0.0
    %824 = vmatprep.mubr.f32.mxu0 0.0
    %825 = vmatmul.mubr.f32.gmra.mxu0 %v616
    %v826 = vpop.f32.mrf.mxu0
    %v827 = vadd.f32 0.0, %v826
    %v828 = vpop.f32.mrf.mxu0
    %829 = vdwg.mxu0
    %v830 = vadd.f32 %v441, %v827
    %831 = vmatprep.subr.mxu0 0.0
    %832 = vmatpush1.msra.mxu0 0.0
    %833 = vmatprep.subr.mxu0 0.0
    %834 = vmatpush1.msra.mxu0 0.0
    %835 = vmatprep.subr.mxu0 0.0
    %836 = vmatpush1.msra.mxu0 0.0
    %837 = vmatprep.subr.mxu0 0.0
    %838 = vmatpush1.msra.mxu0 0.0
    %839 = vmatprep.subr.mxu0 0.0
    %840 = vmatpush1.msra.mxu0 0.0
    %841 = vmatprep.subr.mxu0 0.0
    %842 = vmatpush1.msra.mxu0 0.0
    %843 = vmatprep.subr.mxu0 0.0
    %844 = vmatpush1.msra.mxu0 0.0
    %845 = vmatprep.subr.mxu0 0.0
    %846 = vmatpush1.msra.mxu0 0.0
    %847 = vmatprep.subr.mxu0 0.0
    %848 = vmatpush1.msra.mxu0 0.0
    %849 = vmatprep.subr.mxu0 0.0
    %850 = vmatpush1.msra.mxu0 0.0
    %851 = vmatprep.subr.mxu0 0.0
    %852 = vmatpush1.msra.mxu0 0.0
    %853 = vmatprep.subr.mxu0 0.0
    %854 = vmatpush1.msra.mxu0 0.0
    %855 = vmatprep.subr.mxu0 0.0
    %856 = vmatpush1.msra.mxu0 %v613
    %857 = vmatprep.subr.mxu0 0.0
    %858 = vmatpush1.msra.mxu0 %v612
    %859 = vmatprep.subr.mxu0 0.0
    %860 = vmatpush1.msra.mxu0 %v611
    %861 = vmatprep.subr.mxu0 0.0
    %862 = vmatpush1.msra.mxu0 %v610
    %863 = vmatprep.subr.mxu0 0.0
    %864 = vmatpush2.msra.mxu0 0.0
    %865 = vmatprep.subr.mxu0 0.0
    %866 = vmatpush2.msra.mxu0 0.0
    %867 = vmatprep.subr.mxu0 0.0
    %868 = vmatpush2.msra.mxu0 0.0
    %869 = vmatprep.subr.mxu0 0.0
    %870 = vmatpush2.msra.mxu0 0.0
    %871 = vmatprep.subr.mxu0 0.0
    %872 = vmatpush2.msra.mxu0 0.0
    %873 = vmatprep.subr.mxu0 0.0
    %874 = vmatpush2.msra.mxu0 0.0
    %875 = vmatprep.subr.mxu0 0.0
    %876 = vmatpush2.msra.mxu0 0.0
    %877 = vmatprep.subr.mxu0 0.0
    %878 = vmatpush2.msra.mxu0 0.0
    %879 = vmatprep.subr.mxu0 0.0
    %880 = vmatpush2.msra.mxu0 0.0
    %881 = vmatprep.subr.mxu0 0.0
    %882 = vmatpush2.msra.mxu0 0.0
    %883 = vmatprep.subr.mxu0 0.0
    %884 = vmatpush2.msra.mxu0 0.0
    %885 = vmatprep.subr.mxu0 0.0
    %886 = vmatpush2.msra.mxu0 0.0
    %887 = vmatprep.subr.mxu0 0.0
    %888 = vmatpush2.msra.mxu0 0.0
    %889 = vmatprep.subr.mxu0 0.0
    %890 = vmatpush2.msra.mxu0 0.0
    %891 = vmatprep.subr.mxu0 0.0
    %892 = vmatpush2.msra.mxu0 0.0
    %893 = vmatprep.subr.mxu0 0.0
    %894 = vmatpush2.msra.mxu0 0.0
    %895 = vmatprep.mubr.f32.mxu0 0.0
    %896 = vmatmul.mubr.f32.gmra.mxu0 %v616
    %v897 = vpop.f32.mrf.mxu0
    %v898 = vadd.f32 0.0, %v897
    %v899 = vpop.f32.mrf.mxu0
    %900 = vdwg.mxu0
    %v901 = vadd.f32 %v557, %v898
    %v902 = vmul.f32 %v688, 0.5
    %v903 = vtanh.pop %v902
    %v904 = vmul.f32 %v903, 0.5
    %v905 = vadd.f32 %v904, 0.5
    %v906 = vmul.f32 %v759, 0.5
    %v907 = vtanh.pop %v906
    %v908 = vmul.f32 %v907, 0.5
    %v909 = vadd.f32 %v908, 0.5
    %v910 = vtanh.pop %v830
    %v911 = vmul.f32 %v901, 0.5
    %v912 = vtanh.pop %v911
    %v913 = vmul.f32 %v912, 0.5
    %v914 = vadd.f32 %v913, 0.5
    %v915 = vmul.f32 %v909, 0.0
    %v916 = vmul.f32 %v905, %v910
    %v917 = vadd.f32 %v915, %v916
    %v918 = vtanh.pop %v917
    %v919 = vmul.f32 %v914, %v918
    %920 = vst.msk [vmem:[#allocation2] sm:$0xff] %vm614, %v919
    %v922 = vsel %vm614, %v919, 0
    %924 = vmatprep.subr.mxu0 0.0
    %925 = vmatpush1.msra.mxu0 0.0
    %926 = vmatprep.subr.mxu0 0.0
    %927 = vmatpush1.msra.mxu0 0.0
    %928 = vmatprep.subr.mxu0 0.0
    %929 = vmatpush1.msra.mxu0 0.0
    %930 = vmatprep.subr.mxu0 0.0
    %931 = vmatpush1.msra.mxu0 0.0
    %932 = vmatprep.subr.mxu0 0.0
    %933 = vmatpush1.msra.mxu0 0.0
    %934 = vmatprep.subr.mxu0 0.0
    %935 = vmatpush1.msra.mxu0 0.0
    %936 = vmatprep.subr.mxu0 0.0
    %937 = vmatpush1.msra.mxu0 0.0
    %938 = vmatprep.subr.mxu0 0.0
    %939 = vmatpush1.msra.mxu0 0.0
    %940 = vmatprep.subr.mxu0 0.0
    %941 = vmatpush1.msra.mxu0 0.0
    %942 = vmatprep.subr.mxu0 0.0
    %943 = vmatpush1.msra.mxu0 0.0
    %944 = vmatprep.subr.mxu0 0.0
    %945 = vmatpush1.msra.mxu0 0.0
    %946 = vmatprep.subr.mxu0 0.0
    %947 = vmatpush1.msra.mxu0 0.0
    %948 = vmatprep.subr.mxu0 0.0
    %949 = vmatpush1.msra.mxu0 %v598
    %950 = vmatprep.subr.mxu0 0.0
    %951 = vmatpush1.msra.mxu0 %v597
    %952 = vmatprep.subr.mxu0 0.0
    %953 = vmatpush1.msra.mxu0 %v596
    %954 = vmatprep.subr.mxu0 0.0
    %955 = vmatpush1.msra.mxu0 %v595
    %956 = vmatprep.subr.mxu0 0.0
    %957 = vmatpush2.msra.mxu0 0.0
    %958 = vmatprep.subr.mxu0 0.0
    %959 = vmatpush2.msra.mxu0 0.0
    %960 = vmatprep.subr.mxu0 0.0
    %961 = vmatpush2.msra.mxu0 0.0
    %962 = vmatprep.subr.mxu0 0.0
    %963 = vmatpush2.msra.mxu0 0.0
    %964 = vmatprep.subr.mxu0 0.0
    %965 = vmatpush2.msra.mxu0 0.0
    %966 = vmatprep.subr.mxu0 0.0
    %967 = vmatpush2.msra.mxu0 0.0
    %968 = vmatprep.subr.mxu0 0.0
    %969 = vmatpush2.msra.mxu0 0.0
    %970 = vmatprep.subr.mxu0 0.0
    %971 = vmatpush2.msra.mxu0 0.0
    %972 = vmatprep.subr.mxu0 0.0
    %973 = vmatpush2.msra.mxu0 0.0
    %974 = vmatprep.subr.mxu0 0.0
    %975 = vmatpush2.msra.mxu0 0.0
    %976 = vmatprep.subr.mxu0 0.0
    %977 = vmatpush2.msra.mxu0 0.0
    %978 = vmatprep.subr.mxu0 0.0
    %979 = vmatpush2.msra.mxu0 0.0
    %980 = vmatprep.subr.mxu0 0.0
    %981 = vmatpush2.msra.mxu0 0.0
    %982 = vmatprep.subr.mxu0 0.0
    %983 = vmatpush2.msra.mxu0 0.0
    %984 = vmatprep.subr.mxu0 0.0
    %985 = vmatpush2.msra.mxu0 0.0
    %986 = vmatprep.subr.mxu0 0.0
    %987 = vmatpush2.msra.mxu0 0.0
    %988 = vmatprep.mubr.f32.mxu0 0.0
    %989 = vmatmul.mubr.f32.gmra.mxu0 %v922
    %v990 = vpop.f32.mrf.mxu0
    %v991 = vadd.f32 0.0, %v990
    %v992 = vpop.f32.mrf.mxu0
    %993 = vdwg.mxu0
    %v994 = vadd.f32 %v214, %v991
    %995 = vmatprep.subr.mxu0 0.0
    %996 = vmatpush1.msra.mxu0 0.0
    %997 = vmatprep.subr.mxu0 0.0
    %998 = vmatpush1.msra.mxu0 0.0
    %999 = vmatprep.subr.mxu0 0.0
    %1000 = vmatpush1.msra.mxu0 0.0
    %1001 = vmatprep.subr.mxu0 0.0
    %1002 = vmatpush1.msra.mxu0 0.0
    %1003 = vmatprep.subr.mxu0 0.0
    %1004 = vmatpush1.msra.mxu0 0.0
    %1005 = vmatprep.subr.mxu0 0.0
    %1006 = vmatpush1.msra.mxu0 0.0
    %1007 = vmatprep.subr.mxu0 0.0
    %1008 = vmatpush1.msra.mxu0 0.0
    %1009 = vmatprep.subr.mxu0 0.0
    %1010 = vmatpush1.msra.mxu0 0.0
    %1011 = vmatprep.subr.mxu0 0.0
    %1012 = vmatpush1.msra.mxu0 0.0
    %1013 = vmatprep.subr.mxu0 0.0
    %1014 = vmatpush1.msra.mxu0 0.0
    %1015 = vmatprep.subr.mxu0 0.0
    %1016 = vmatpush1.msra.mxu0 0.0
    %1017 = vmatprep.subr.mxu0 0.0
    %1018 = vmatpush1.msra.mxu0 0.0
    %1019 = vmatprep.subr.mxu0 0.0
    %1020 = vmatpush1.msra.mxu0 %v603
    %1021 = vmatprep.subr.mxu0 0.0
    %1022 = vmatpush1.msra.mxu0 %v602
    %1023 = vmatprep.subr.mxu0 0.0
    %1024 = vmatpush1.msra.mxu0 %v601
    %1025 = vmatprep.subr.mxu0 0.0
    %1026 = vmatpush1.msra.mxu0 %v600
    %1027 = vmatprep.subr.mxu0 0.0
    %1028 = vmatpush2.msra.mxu0 0.0
    %1029 = vmatprep.subr.mxu0 0.0
    %1030 = vmatpush2.msra.mxu0 0.0
    %1031 = vmatprep.subr.mxu0 0.0
    %1032 = vmatpush2.msra.mxu0 0.0
    %1033 = vmatprep.subr.mxu0 0.0
    %1034 = vmatpush2.msra.mxu0 0.0
    %1035 = vmatprep.subr.mxu0 0.0
    %1036 = vmatpush2.msra.mxu0 0.0
    %1037 = vmatprep.subr.mxu0 0.0
    %1038 = vmatpush2.msra.mxu0 0.0
    %1039 = vmatprep.subr.mxu0 0.0
    %1040 = vmatpush2.msra.mxu0 0.0
    %1041 = vmatprep.subr.mxu0 0.0
    %1042 = vmatpush2.msra.mxu0 0.0
    %1043 = vmatprep.subr.mxu0 0.0
    %1044 = vmatpush2.msra.mxu0 0.0
    %1045 = vmatprep.subr.mxu0 0.0
    %1046 = vmatpush2.msra.mxu0 0.0
    %1047 = vmatprep.subr.mxu0 0.0
    %1048 = vmatpush2.msra.mxu0 0.0
    %1049 = vmatprep.subr.mxu0 0.0
    %1050 = vmatpush2.msra.mxu0 0.0
    %1051 = vmatprep.subr.mxu0 0.0
    %1052 = vmatpush2.msra.mxu0 0.0
    %1053 = vmatprep.subr.mxu0 0.0
    %1054 = vmatpush2.msra.mxu0 0.0
    %1055 = vmatprep.subr.mxu0 0.0
    %1056 = vmatpush2.msra.mxu0 0.0
    %1057 = vmatprep.subr.mxu0 0.0
    %1058 = vmatpush2.msra.mxu0 0.0
    %1059 = vmatprep.mubr.f32.mxu0 0.0
    %1060 = vmatmul.mubr.f32.gmra.mxu0 %v922
    %v1061 = vpop.f32.mrf.mxu0
    %v1062 = vadd.f32 0.0, %v1061
    %v1063 = vpop.f32.mrf.mxu0
    %1064 = vdwg.mxu0
    %v1065 = vadd.f32 %v330, %v1062
    %1066 = vmatprep.subr.mxu0 0.0
    %1067 = vmatpush1.msra.mxu0 0.0
    %1068 = vmatprep.subr.mxu0 0.0
    %1069 = vmatpush1.msra.mxu0 0.0
    %1070 = vmatprep.subr.mxu0 0.0
    %1071 = vmatpush1.msra.mxu0 0.0
    %1072 = vmatprep.subr.mxu0 0.0
    %1073 = vmatpush1.msra.mxu0 0.0
    %1074 = vmatprep.subr.mxu0 0.0
    %1075 = vmatpush1.msra.mxu0 0.0
    %1076 = vmatprep.subr.mxu0 0.0
    %1077 = vmatpush1.msra.mxu0 0.0
    %1078 = vmatprep.subr.mxu0 0.0
    %1079 = vmatpush1.msra.mxu0 0.0
    %1080 = vmatprep.subr.mxu0 0.0
    %1081 = vmatpush1.msra.mxu0 0.0
    %1082 = vmatprep.subr.mxu0 0.0
    %1083 = vmatpush1.msra.mxu0 0.0
    %1084 = vmatprep.subr.mxu0 0.0
    %1085 = vmatpush1.msra.mxu0 0.0
    %1086 = vmatprep.subr.mxu0 0.0
    %1087 = vmatpush1.msra.mxu0 0.0
    %1088 = vmatprep.subr.mxu0 0.0
    %1089 = vmatpush1.msra.mxu0 0.0
    %1090 = vmatprep.subr.mxu0 0.0
    %1091 = vmatpush1.msra.mxu0 %v608
    %1092 = vmatprep.subr.mxu0 0.0
    %1093 = vmatpush1.msra.mxu0 %v607
    %1094 = vmatprep.subr.mxu0 0.0
    %1095 = vmatpush1.msra.mxu0 %v606
    %1096 = vmatprep.subr.mxu0 0.0
    %1097 = vmatpush1.msra.mxu0 %v605
    %1098 = vmatprep.subr.mxu0 0.0
    %1099 = vmatpush2.msra.mxu0 0.0
    %1100 = vmatprep.subr.mxu0 0.0
    %1101 = vmatpush2.msra.mxu0 0.0
    %1102 = vmatprep.subr.mxu0 0.0
    %1103 = vmatpush2.msra.mxu0 0.0
    %1104 = vmatprep.subr.mxu0 0.0
    %1105 = vmatpush2.msra.mxu0 0.0
    %1106 = vmatprep.subr.mxu0 0.0
    %1107 = vmatpush2.msra.mxu0 0.0
    %1108 = vmatprep.subr.mxu0 0.0
    %1109 = vmatpush2.msra.mxu0 0.0
    %1110 = vmatprep.subr.mxu0 0.0
    %1111 = vmatpush2.msra.mxu0 0.0
    %1112 = vmatprep.subr.mxu0 0.0
    %1113 = vmatpush2.msra.mxu0 0.0
    %1114 = vmatprep.subr.mxu0 0.0
    %1115 = vmatpush2.msra.mxu0 0.0
    %1116 = vmatprep.subr.mxu0 0.0
    %1117 = vmatpush2.msra.mxu0 0.0
    %1118 = vmatprep.subr.mxu0 0.0
    %1119 = vmatpush2.msra.mxu0 0.0
    %1120 = vmatprep.subr.mxu0 0.0
    %1121 = vmatpush2.msra.mxu0 0.0
    %1122 = vmatprep.subr.mxu0 0.0
    %1123 = vmatpush2.msra.mxu0 0.0
    %1124 = vmatprep.subr.mxu0 0.0
    %1125 = vmatpush2.msra.mxu0 0.0
    %1126 = vmatprep.subr.mxu0 0.0
    %1127 = vmatpush2.msra.mxu0 0.0
    %1128 = vmatprep.subr.mxu0 0.0
    %1129 = vmatpush2.msra.mxu0 0.0
    %1130 = vmatprep.mubr.f32.mxu0 0.0
    %1131 = vmatmul.mubr.f32.gmra.mxu0 %v922
    %v1132 = vpop.f32.mrf.mxu0
    %v1133 = vadd.f32 0.0, %v1132
    %v1134 = vpop.f32.mrf.mxu0
    %1135 = vdwg.mxu0
    %v1136 = vadd.f32 %v446, %v1133
    %1137 = vmatprep.subr.mxu0 0.0
    %1138 = vmatpush1.msra.mxu0 0.0
    %1139 = vmatprep.subr.mxu0 0.0
    %1140 = vmatpush1.msra.mxu0 0.0
    %1141 = vmatprep.subr.mxu0 0.0
    %1142 = vmatpush1.msra.mxu0 0.0
    %1143 = vmatprep.subr.mxu0 0.0
    %1144 = vmatpush1.msra.mxu0 0.0
    %1145 = vmatprep.subr.mxu0 0.0
    %1146 = vmatpush1.msra.mxu0 0.0
    %1147 = vmatprep.subr.mxu0 0.0
    %1148 = vmatpush1.msra.mxu0 0.0
    %1149 = vmatprep.subr.mxu0 0.0
    %1150 = vmatpush1.msra.mxu0 0.0
    %1151 = vmatprep.subr.mxu0 0.0
    %1152 = vmatpush1.msra.mxu0 0.0
    %1153 = vmatprep.subr.mxu0 0.0
    %1154 = vmatpush1.msra.mxu0 0.0
    %1155 = vmatprep.subr.mxu0 0.0
    %1156 = vmatpush1.msra.mxu0 0.0
    %1157 = vmatprep.subr.mxu0 0.0
    %1158 = vmatpush1.msra.mxu0 0.0
    %1159 = vmatprep.subr.mxu0 0.0
    %1160 = vmatpush1.msra.mxu0 0.0
    %1161 = vmatprep.subr.mxu0 0.0
    %1162 = vmatpush1.msra.mxu0 %v613
    %1163 = vmatprep.subr.mxu0 0.0
    %1164 = vmatpush1.msra.mxu0 %v612
    %1165 = vmatprep.subr.mxu0 0.0
    %1166 = vmatpush1.msra.mxu0 %v611
    %1167 = vmatprep.subr.mxu0 0.0
    %1168 = vmatpush1.msra.mxu0 %v610
    %1169 = vmatprep.subr.mxu0 0.0
    %1170 = vmatpush2.msra.mxu0 0.0
    %1171 = vmatprep.subr.mxu0 0.0
    %1172 = vmatpush2.msra.mxu0 0.0
    %1173 = vmatprep.subr.mxu0 0.0
    %1174 = vmatpush2.msra.mxu0 0.0
    %1175 = vmatprep.subr.mxu0 0.0
    %1176 = vmatpush2.msra.mxu0 0.0
    %1177 = vmatprep.subr.mxu0 0.0
    %1178 = vmatpush2.msra.mxu0 0.0
    %1179 = vmatprep.subr.mxu0 0.0
    %1180 = vmatpush2.msra.mxu0 0.0
    %1181 = vmatprep.subr.mxu0 0.0
    %1182 = vmatpush2.msra.mxu0 0.0
    %1183 = vmatprep.subr.mxu0 0.0
    %1184 = vmatpush2.msra.mxu0 0.0
    %1185 = vmatprep.subr.mxu0 0.0
    %1186 = vmatpush2.msra.mxu0 0.0
    %1187 = vmatprep.subr.mxu0 0.0
    %1188 = vmatpush2.msra.mxu0 0.0
    %1189 = vmatprep.subr.mxu0 0.0
    %1190 = vmatpush2.msra.mxu0 0.0
    %1191 = vmatprep.subr.mxu0 0.0
    %1192 = vmatpush2.msra.mxu0 0.0
    %1193 = vmatprep.subr.mxu0 0.0
    %1194 = vmatpush2.msra.mxu0 0.0
    %1195 = vmatprep.subr.mxu0 0.0
    %1196 = vmatpush2.msra.mxu0 0.0
    %1197 = vmatprep.subr.mxu0 0.0
    %1198 = vmatpush2.msra.mxu0 0.0
    %1199 = vmatprep.subr.mxu0 0.0
    %1200 = vmatpush2.msra.mxu0 0.0
    %1201 = vmatprep.mubr.f32.mxu0 0.0
    %1202 = vmatmul.mubr.f32.gmra.mxu0 %v922
    %v1203 = vpop.f32.mrf.mxu0
    %v1204 = vadd.f32 0.0, %v1203
    %v1205 = vpop.f32.mrf.mxu0
    %1206 = vdwg.mxu0
    %v1207 = vadd.f32 %v562, %v1204
    %v1208 = vmul.f32 %v994, 0.5
    %v1209 = vtanh.pop %v1208
    %v1210 = vmul.f32 %v1209, 0.5
    %v1211 = vadd.f32 %v1210, 0.5
    %v1212 = vmul.f32 %v1065, 0.5
    %v1213 = vtanh.pop %v1212
    %v1214 = vmul.f32 %v1213, 0.5
    %v1215 = vadd.f32 %v1214, 0.5
    %v1216 = vtanh.pop %v1136
    %v1217 = vmul.f32 %v1207, 0.5
    %v1218 = vtanh.pop %v1217
    %v1219 = vmul.f32 %v1218, 0.5
    %v1220 = vadd.f32 %v1219, 0.5
    %v1221 = vmul.f32 %v1215, %v917
    %v1222 = vmul.f32 %v1211, %v1216
    %v1223 = vadd.f32 %v1221, %v1222
    %v1224 = vtanh.pop %v1223
    %v1225 = vmul.f32 %v1220, %v1224
    %1226 = vst.msk [vmem:[#allocation2 + $0x8] sm:$0xff] %vm614, %v1225
    %v1228 = vsel %vm614, %v1225, 0
    %1230 = vmatprep.subr.mxu0 0.0
    %1231 = vmatpush1.msra.mxu0 0.0
    %1232 = vmatprep.subr.mxu0 0.0
    %1233 = vmatpush1.msra.mxu0 0.0
    %1234 = vmatprep.subr.mxu0 0.0
    %1235 = vmatpush1.msra.mxu0 0.0
    %1236 = vmatprep.subr.mxu0 0.0
    %1237 = vmatpush1.msra.mxu0 0.0
    %1238 = vmatprep.subr.mxu0 0.0
    %1239 = vmatpush1.msra.mxu0 0.0
    %1240 = vmatprep.subr.mxu0 0.0
    %1241 = vmatpush1.msra.mxu0 0.0
    %1242 = vmatprep.subr.mxu0 0.0
    %1243 = vmatpush1.msra.mxu0 0.0
    %1244 = vmatprep.subr.mxu0 0.0
    %1245 = vmatpush1.msra.mxu0 0.0
    %1246 = vmatprep.subr.mxu0 0.0
    %1247 = vmatpush1.msra.mxu0 0.0
    %1248 = vmatprep.subr.mxu0 0.0
    %1249 = vmatpush1.msra.mxu0 0.0
    %1250 = vmatprep.subr.mxu0 0.0
    %1251 = vmatpush1.msra.mxu0 0.0
    %1252 = vmatprep.subr.mxu0 0.0
    %1253 = vmatpush1.msra.mxu0 0.0
    %1254 = vmatprep.subr.mxu0 0.0
    %1255 = vmatpush1.msra.mxu0 %v598
    %1256 = vmatprep.subr.mxu0 0.0
    %1257 = vmatpush1.msra.mxu0 %v597
    %1258 = vmatprep.subr.mxu0 0.0
    %1259 = vmatpush1.msra.mxu0 %v596
    %1260 = vmatprep.subr.mxu0 0.0
    %1261 = vmatpush1.msra.mxu0 %v595
    %1262 = vmatprep.subr.mxu0 0.0
    %1263 = vmatpush2.msra.mxu0 0.0
    %1264 = vmatprep.subr.mxu0 0.0
    %1265 = vmatpush2.msra.mxu0 0.0
    %1266 = vmatprep.subr.mxu0 0.0
    %1267 = vmatpush2.msra.mxu0 0.0
    %1268 = vmatprep.subr.mxu0 0.0
    %1269 = vmatpush2.msra.mxu0 0.0
    %1270 = vmatprep.subr.mxu0 0.0
    %1271 = vmatpush2.msra.mxu0 0.0
    %1272 = vmatprep.subr.mxu0 0.0
    %1273 = vmatpush2.msra.mxu0 0.0
    %1274 = vmatprep.subr.mxu0 0.0
    %1275 = vmatpush2.msra.mxu0 0.0
    %1276 = vmatprep.subr.mxu0 0.0
    %1277 = vmatpush2.msra.mxu0 0.0
    %1278 = vmatprep.subr.mxu0 0.0
    %1279 = vmatpush2.msra.mxu0 0.0
    %1280 = vmatprep.subr.mxu0 0.0
    %1281 = vmatpush2.msra.mxu0 0.0
    %1282 = vmatprep.subr.mxu0 0.0
    %1283 = vmatpush2.msra.mxu0 0.0
    %1284 = vmatprep.subr.mxu0 0.0
    %1285 = vmatpush2.msra.mxu0 0.0
    %1286 = vmatprep.subr.mxu0 0.0
    %1287 = vmatpush2.msra.mxu0 0.0
    %1288 = vmatprep.subr.mxu0 0.0
    %1289 = vmatpush2.msra.mxu0 0.0
    %1290 = vmatprep.subr.mxu0 0.0
    %1291 = vmatpush2.msra.mxu0 0.0
    %1292 = vmatprep.subr.mxu0 0.0
    %1293 = vmatpush2.msra.mxu0 0.0
    %1294 = vmatprep.mubr.f32.mxu0 0.0
    %1295 = vmatmul.mubr.f32.gmra.mxu0 %v1228
    %v1296 = vpop.f32.mrf.mxu0
    %v1297 = vadd.f32 0.0, %v1296
    %v1298 = vpop.f32.mrf.mxu0
    %1299 = vdwg.mxu0
    %v1300 = vadd.f32 %v219, %v1297
    %1301 = vmatprep.subr.mxu0 0.0
    %1302 = vmatpush1.msra.mxu0 0.0
    %1303 = vmatprep.subr.mxu0 0.0
    %1304 = vmatpush1.msra.mxu0 0.0
    %1305 = vmatprep.subr.mxu0 0.0
    %1306 = vmatpush1.msra.mxu0 0.0
    %1307 = vmatprep.subr.mxu0 0.0
    %1308 = vmatpush1.msra.mxu0 0.0
    %1309 = vmatprep.subr.mxu0 0.0
    %1310 = vmatpush1.msra.mxu0 0.0
    %1311 = vmatprep.subr.mxu0 0.0
    %1312 = vmatpush1.msra.mxu0 0.0
    %1313 = vmatprep.subr.mxu0 0.0
    %1314 = vmatpush1.msra.mxu0 0.0
    %1315 = vmatprep.subr.mxu0 0.0
    %1316 = vmatpush1.msra.mxu0 0.0
    %1317 = vmatprep.subr.mxu0 0.0
    %1318 = vmatpush1.msra.mxu0 0.0
    %1319 = vmatprep.subr.mxu0 0.0
    %1320 = vmatpush1.msra.mxu0 0.0
    %1321 = vmatprep.subr.mxu0 0.0
    %1322 = vmatpush1.msra.mxu0 0.0
    %1323 = vmatprep.subr.mxu0 0.0
    %1324 = vmatpush1.msra.mxu0 0.0
    %1325 = vmatprep.subr.mxu0 0.0
    %1326 = vmatpush1.msra.mxu0 %v603
    %1327 = vmatprep.subr.mxu0 0.0
    %1328 = vmatpush1.msra.mxu0 %v602
    %1329 = vmatprep.subr.mxu0 0.0
    %1330 = vmatpush1.msra.mxu0 %v601
    %1331 = vmatprep.subr.mxu0 0.0
    %1332 = vmatpush1.msra.mxu0 %v600
    %1333 = vmatprep.subr.mxu0 0.0
    %1334 = vmatpush2.msra.mxu0 0.0
    %1335 = vmatprep.subr.mxu0 0.0
    %1336 = vmatpush2.msra.mxu0 0.0
    %1337 = vmatprep.subr.mxu0 0.0
    %1338 = vmatpush2.msra.mxu0 0.0
    %1339 = vmatprep.subr.mxu0 0.0
    %1340 = vmatpush2.msra.mxu0 0.0
    %1341 = vmatprep.subr.mxu0 0.0
    %1342 = vmatpush2.msra.mxu0 0.0
    %1343 = vmatprep.subr.mxu0 0.0
    %1344 = vmatpush2.msra.mxu0 0.0
    %1345 = vmatprep.subr.mxu0 0.0
    %1346 = vmatpush2.msra.mxu0 0.0
    %1347 = vmatprep.subr.mxu0 0.0
    %1348 = vmatpush2.msra.mxu0 0.0
    %1349 = vmatprep.subr.mxu0 0.0
    %1350 = vmatpush2.msra.mxu0 0.0
    %1351 = vmatprep.subr.mxu0 0.0
    %1352 = vmatpush2.msra.mxu0 0.0
    %1353 = vmatprep.subr.mxu0 0.0
    %1354 = vmatpush2.msra.mxu0 0.0
    %1355 = vmatprep.subr.mxu0 0.0
    %1356 = vmatpush2.msra.mxu0 0.0
    %1357 = vmatprep.subr.mxu0 0.0
    %1358 = vmatpush2.msra.mxu0 0.0
    %1359 = vmatprep.subr.mxu0 0.0
    %1360 = vmatpush2.msra.mxu0 0.0
    %1361 = vmatprep.subr.mxu0 0.0
    %1362 = vmatpush2.msra.mxu0 0.0
    %1363 = vmatprep.subr.mxu0 0.0
    %1364 = vmatpush2.msra.mxu0 0.0
    %1365 = vmatprep.mubr.f32.mxu0 0.0
    %1366 = vmatmul.mubr.f32.gmra.mxu0 %v1228
    %v1367 = vpop.f32.mrf.mxu0
    %v1368 = vadd.f32 0.0, %v1367
    %v1369 = vpop.f32.mrf.mxu0
    %1370 = vdwg.mxu0
    %v1371 = vadd.f32 %v335, %v1368
    %1372 = vmatprep.subr.mxu0 0.0
    %1373 = vmatpush1.msra.mxu0 0.0
    %1374 = vmatprep.subr.mxu0 0.0
    %1375 = vmatpush1.msra.mxu0 0.0
    %1376 = vmatprep.subr.mxu0 0.0
    %1377 = vmatpush1.msra.mxu0 0.0
    %1378 = vmatprep.subr.mxu0 0.0
    %1379 = vmatpush1.msra.mxu0 0.0
    %1380 = vmatprep.subr.mxu0 0.0
    %1381 = vmatpush1.msra.mxu0 0.0
    %1382 = vmatprep.subr.mxu0 0.0
    %1383 = vmatpush1.msra.mxu0 0.0
    %1384 = vmatprep.subr.mxu0 0.0
    %1385 = vmatpush1.msra.mxu0 0.0
    %1386 = vmatprep.subr.mxu0 0.0
    %1387 = vmatpush1.msra.mxu0 0.0
    %1388 = vmatprep.subr.mxu0 0.0
    %1389 = vmatpush1.msra.mxu0 0.0
    %1390 = vmatprep.subr.mxu0 0.0
    %1391 = vmatpush1.msra.mxu0 0.0
    %1392 = vmatprep.subr.mxu0 0.0
    %1393 = vmatpush1.msra.mxu0 0.0
    %1394 = vmatprep.subr.mxu0 0.0
    %1395 = vmatpush1.msra.mxu0 0.0
    %1396 = vmatprep.subr.mxu0 0.0
    %1397 = vmatpush1.msra.mxu0 %v608
    %1398 = vmatprep.subr.mxu0 0.0
    %1399 = vmatpush1.msra.mxu0 %v607
    %1400 = vmatprep.subr.mxu0 0.0
    %1401 = vmatpush1.msra.mxu0 %v606
    %1402 = vmatprep.subr.mxu0 0.0
    %1403 = vmatpush1.msra.mxu0 %v605
    %1404 = vmatprep.subr.mxu0 0.0
    %1405 = vmatpush2.msra.mxu0 0.0
    %1406 = vmatprep.subr.mxu0 0.0
    %1407 = vmatpush2.msra.mxu0 0.0
    %1408 = vmatprep.subr.mxu0 0.0
    %1409 = vmatpush2.msra.mxu0 0.0
    %1410 = vmatprep.subr.mxu0 0.0
    %1411 = vmatpush2.msra.mxu0 0.0
    %1412 = vmatprep.subr.mxu0 0.0
    %1413 = vmatpush2.msra.mxu0 0.0
    %1414 = vmatprep.subr.mxu0 0.0
    %1415 = vmatpush2.msra.mxu0 0.0
    %1416 = vmatprep.subr.mxu0 0.0
    %1417 = vmatpush2.msra.mxu0 0.0
    %1418 = vmatprep.subr.mxu0 0.0
    %1419 = vmatpush2.msra.mxu0 0.0
    %1420 = vmatprep.subr.mxu0 0.0
    %1421 = vmatpush2.msra.mxu0 0.0
    %1422 = vmatprep.subr.mxu0 0.0
    %1423 = vmatpush2.msra.mxu0 0.0
    %1424 = vmatprep.subr.mxu0 0.0
    %1425 = vmatpush2.msra.mxu0 0.0
    %1426 = vmatprep.subr.mxu0 0.0
    %1427 = vmatpush2.msra.mxu0 0.0
    %1428 = vmatprep.subr.mxu0 0.0
    %1429 = vmatpush2.msra.mxu0 0.0
    %1430 = vmatprep.subr.mxu0 0.0
    %1431 = vmatpush2.msra.mxu0 0.0
    %1432 = vmatprep.subr.mxu0 0.0
    %1433 = vmatpush2.msra.mxu0 0.0
    %1434 = vmatprep.subr.mxu0 0.0
    %1435 = vmatpush2.msra.mxu0 0.0
    %1436 = vmatprep.mubr.f32.mxu0 0.0
    %1437 = vmatmul.mubr.f32.gmra.mxu0 %v1228
    %v1438 = vpop.f32.mrf.mxu0
    %v1439 = vadd.f32 0.0, %v1438
    %v1440 = vpop.f32.mrf.mxu0
    %1441 = vdwg.mxu0
    %v1442 = vadd.f32 %v451, %v1439
    %1443 = vmatprep.subr.mxu0 0.0
    %1444 = vmatpush1.msra.mxu0 0.0
    %1445 = vmatprep.subr.mxu0 0.0
    %1446 = vmatpush1.msra.mxu0 0.0
    %1447 = vmatprep.subr.mxu0 0.0
    %1448 = vmatpush1.msra.mxu0 0.0
    %1449 = vmatprep.subr.mxu0 0.0
    %1450 = vmatpush1.msra.mxu0 0.0
    %1451 = vmatprep.subr.mxu0 0.0
    %1452 = vmatpush1.msra.mxu0 0.0
    %1453 = vmatprep.subr.mxu0 0.0
    %1454 = vmatpush1.msra.mxu0 0.0
    %1455 = vmatprep.subr.mxu0 0.0
    %1456 = vmatpush1.msra.mxu0 0.0
    %1457 = vmatprep.subr.mxu0 0.0
    %1458 = vmatpush1.msra.mxu0 0.0
    %1459 = vmatprep.subr.mxu0 0.0
    %1460 = vmatpush1.msra.mxu0 0.0
    %1461 = vmatprep.subr.mxu0 0.0
    %1462 = vmatpush1.msra.mxu0 0.0
    %1463 = vmatprep.subr.mxu0 0.0
    %1464 = vmatpush1.msra.mxu0 0.0
    %1465 = vmatprep.subr.mxu0 0.0
    %1466 = vmatpush1.msra.mxu0 0.0
    %1467 = vmatprep.subr.mxu0 0.0
    %1468 = vmatpush1.msra.mxu0 %v613
    %1469 = vmatprep.subr.mxu0 0.0
    %1470 = vmatpush1.msra.mxu0 %v612
    %1471 = vmatprep.subr.mxu0 0.0
    %1472 = vmatpush1.msra.mxu0 %v611
    %1473 = vmatprep.subr.mxu0 0.0
    %1474 = vmatpush1.msra.mxu0 %v610
    %1475 = vmatprep.subr.mxu0 0.0
    %1476 = vmatpush2.msra.mxu0 0.0
    %1477 = vmatprep.subr.mxu0 0.0
    %1478 = vmatpush2.msra.mxu0 0.0
    %1479 = vmatprep.subr.mxu0 0.0
    %1480 = vmatpush2.msra.mxu0 0.0
    %1481 = vmatprep.subr.mxu0 0.0
    %1482 = vmatpush2.msra.mxu0 0.0
    %1483 = vmatprep.subr.mxu0 0.0
    %1484 = vmatpush2.msra.mxu0 0.0
    %1485 = vmatprep.subr.mxu0 0.0
    %1486 = vmatpush2.msra.mxu0 0.0
    %1487 = vmatprep.subr.mxu0 0.0
    %1488 = vmatpush2.msra.mxu0 0.0
    %1489 = vmatprep.subr.mxu0 0.0
    %1490 = vmatpush2.msra.mxu0 0.0
    %1491 = vmatprep.subr.mxu0 0.0
    %1492 = vmatpush2.msra.mxu0 0.0
    %1493 = vmatprep.subr.mxu0 0.0
    %1494 = vmatpush2.msra.mxu0 0.0
    %1495 = vmatprep.subr.mxu0 0.0
    %1496 = vmatpush2.msra.mxu0 0.0
    %1497 = vmatprep.subr.mxu0 0.0
    %1498 = vmatpush2.msra.mxu0 0.0
    %1499 = vmatprep.subr.mxu0 0.0
    %1500 = vmatpush2.msra.mxu0 0.0
    %1501 = vmatprep.subr.mxu0 0.0
    %1502 = vmatpush2.msra.mxu0 0.0
    %1503 = vmatprep.subr.mxu0 0.0
    %1504 = vmatpush2.msra.mxu0 0.0
    %1505 = vmatprep.subr.mxu0 0.0
    %1506 = vmatpush2.msra.mxu0 0.0
    %1507 = vmatprep.mubr.f32.mxu0 0.0
    %1508 = vmatmul.mubr.f32.gmra.mxu0 %v1228
    %v1509 = vpop.f32.mrf.mxu0
    %v1510 = vadd.f32 0.0, %v1509
    %v1511 = vpop.f32.mrf.mxu0
    %1512 = vdwg.mxu0
    %v1513 = vadd.f32 %v567, %v1510
    %v1514 = vmul.f32 %v1300, 0.5
    %v1515 = vtanh.pop %v1514
    %v1516 = vmul.f32 %v1515, 0.5
    %v1517 = vadd.f32 %v1516, 0.5
    %v1518 = vmul.f32 %v1371, 0.5
    %v1519 = vtanh.pop %v1518
    %v1520 = vmul.f32 %v1519, 0.5
    %v1521 = vadd.f32 %v1520, 0.5
    %v1522 = vtanh.pop %v1442
    %v1523 = vmul.f32 %v1513, 0.5
    %v1524 = vtanh.pop %v1523
    %v1525 = vmul.f32 %v1524, 0.5
    %v1526 = vadd.f32 %v1525, 0.5
    %v1527 = vmul.f32 %v1521, %v1223
    %v1528 = vmul.f32 %v1517, %v1522
    %v1529 = vadd.f32 %v1527, %v1528
    %v1530 = vtanh.pop %v1529
    %v1531 = vmul.f32 %v1526, %v1530
    %1532 = vst.msk [vmem:[#allocation2 + $0x10] sm:$0xff] %vm614, %v1531
    %v1534 = vsel %vm614, %v1531, 0
    %1536 = vmatprep.subr.mxu0 0.0
    %1537 = vmatpush1.msra.mxu0 0.0
    %1538 = vmatprep.subr.mxu0 0.0
    %1539 = vmatpush1.msra.mxu0 0.0
    %1540 = vmatprep.subr.mxu0 0.0
    %1541 = vmatpush1.msra.mxu0 0.0
    %1542 = vmatprep.subr.mxu0 0.0
    %1543 = vmatpush1.msra.mxu0 0.0
    %1544 = vmatprep.subr.mxu0 0.0
    %1545 = vmatpush1.msra.mxu0 0.0
    %1546 = vmatprep.subr.mxu0 0.0
    %1547 = vmatpush1.msra.mxu0 0.0
    %1548 = vmatprep.subr.mxu0 0.0
    %1549 = vmatpush1.msra.mxu0 0.0
    %1550 = vmatprep.subr.mxu0 0.0
    %1551 = vmatpush1.msra.mxu0 0.0
    %1552 = vmatprep.subr.mxu0 0.0
    %1553 = vmatpush1.msra.mxu0 0.0
    %1554 = vmatprep.subr.mxu0 0.0
    %1555 = vmatpush1.msra.mxu0 0.0
    %1556 = vmatprep.subr.mxu0 0.0
    %1557 = vmatpush1.msra.mxu0 0.0
    %1558 = vmatprep.subr.mxu0 0.0
    %1559 = vmatpush1.msra.mxu0 0.0
    %1560 = vmatprep.subr.mxu0 0.0
    %1561 = vmatpush1.msra.mxu0 %v598
    %1562 = vmatprep.subr.mxu0 0.0
    %1563 = vmatpush1.msra.mxu0 %v597
    %1564 = vmatprep.subr.mxu0 0.0
    %1565 = vmatpush1.msra.mxu0 %v596
    %1566 = vmatprep.subr.mxu0 0.0
    %1567 = vmatpush1.msra.mxu0 %v595
    %1568 = vmatprep.subr.mxu0 0.0
    %1569 = vmatpush2.msra.mxu0 0.0
    %1570 = vmatprep.subr.mxu0 0.0
    %1571 = vmatpush2.msra.mxu0 0.0
    %1572 = vmatprep.subr.mxu0 0.0
    %1573 = vmatpush2.msra.mxu0 0.0
    %1574 = vmatprep.subr.mxu0 0.0
    %1575 = vmatpush2.msra.mxu0 0.0
    %1576 = vmatprep.subr.mxu0 0.0
    %1577 = vmatpush2.msra.mxu0 0.0
    %1578 = vmatprep.subr.mxu0 0.0
    %1579 = vmatpush2.msra.mxu0 0.0
    %1580 = vmatprep.subr.mxu0 0.0
    %1581 = vmatpush2.msra.mxu0 0.0
    %1582 = vmatprep.subr.mxu0 0.0
    %1583 = vmatpush2.msra.mxu0 0.0
    %1584 = vmatprep.subr.mxu0 0.0
    %1585 = vmatpush2.msra.mxu0 0.0
    %1586 = vmatprep.subr.mxu0 0.0
    %1587 = vmatpush2.msra.mxu0 0.0
    %1588 = vmatprep.subr.mxu0 0.0
    %1589 = vmatpush2.msra.mxu0 0.0
    %1590 = vmatprep.subr.mxu0 0.0
    %1591 = vmatpush2.msra.mxu0 0.0
    %1592 = vmatprep.subr.mxu0 0.0
    %1593 = vmatpush2.msra.mxu0 0.0
    %1594 = vmatprep.subr.mxu0 0.0
    %1595 = vmatpush2.msra.mxu0 0.0
    %1596 = vmatprep.subr.mxu0 0.0
    %1597 = vmatpush2.msra.mxu0 0.0
    %1598 = vmatprep.subr.mxu0 0.0
    %1599 = vmatpush2.msra.mxu0 0.0
    %1600 = vmatprep.mubr.f32.mxu0 0.0
    %1601 = vmatmul.mubr.f32.gmra.mxu0 %v1534
    %v1602 = vpop.f32.mrf.mxu0
    %v1603 = vadd.f32 0.0, %v1602
    %v1604 = vpop.f32.mrf.mxu0
    %1605 = vdwg.mxu0
    %v1606 = vadd.f32 %v224, %v1603
    %1607 = vmatprep.subr.mxu0 0.0
    %1608 = vmatpush1.msra.mxu0 0.0
    %1609 = vmatprep.subr.mxu0 0.0
    %1610 = vmatpush1.msra.mxu0 0.0
    %1611 = vmatprep.subr.mxu0 0.0
    %1612 = vmatpush1.msra.mxu0 0.0
    %1613 = vmatprep.subr.mxu0 0.0
    %1614 = vmatpush1.msra.mxu0 0.0
    %1615 = vmatprep.subr.mxu0 0.0
    %1616 = vmatpush1.msra.mxu0 0.0
    %1617 = vmatprep.subr.mxu0 0.0
    %1618 = vmatpush1.msra.mxu0 0.0
    %1619 = vmatprep.subr.mxu0 0.0
    %1620 = vmatpush1.msra.mxu0 0.0
    %1621 = vmatprep.subr.mxu0 0.0
    %1622 = vmatpush1.msra.mxu0 0.0
    %1623 = vmatprep.subr.mxu0 0.0
    %1624 = vmatpush1.msra.mxu0 0.0
    %1625 = vmatprep.subr.mxu0 0.0
    %1626 = vmatpush1.msra.mxu0 0.0
    %1627 = vmatprep.subr.mxu0 0.0
    %1628 = vmatpush1.msra.mxu0 0.0
    %1629 = vmatprep.subr.mxu0 0.0
    %1630 = vmatpush1.msra.mxu0 0.0
    %1631 = vmatprep.subr.mxu0 0.0
    %1632 = vmatpush1.msra.mxu0 %v603
    %1633 = vmatprep.subr.mxu0 0.0
    %1634 = vmatpush1.msra.mxu0 %v602
    %1635 = vmatprep.subr.mxu0 0.0
    %1636 = vmatpush1.msra.mxu0 %v601
    %1637 = vmatprep.subr.mxu0 0.0
    %1638 = vmatpush1.msra.mxu0 %v600
    %1639 = vmatprep.subr.mxu0 0.0
    %1640 = vmatpush2.msra.mxu0 0.0
    %1641 = vmatprep.subr.mxu0 0.0
    %1642 = vmatpush2.msra.mxu0 0.0
    %1643 = vmatprep.subr.mxu0 0.0
    %1644 = vmatpush2.msra.mxu0 0.0
    %1645 = vmatprep.subr.mxu0 0.0
    %1646 = vmatpush2.msra.mxu0 0.0
    %1647 = vmatprep.subr.mxu0 0.0
    %1648 = vmatpush2.msra.mxu0 0.0
    %1649 = vmatprep.subr.mxu0 0.0
    %1650 = vmatpush2.msra.mxu0 0.0
    %1651 = vmatprep.subr.mxu0 0.0
    %1652 = vmatpush2.msra.mxu0 0.0
    %1653 = vmatprep.subr.mxu0 0.0
    %1654 = vmatpush2.msra.mxu0 0.0
    %1655 = vmatprep.subr.mxu0 0.0
    %1656 = vmatpush2.msra.mxu0 0.0
    %1657 = vmatprep.subr.mxu0 0.0
    %1658 = vmatpush2.msra.mxu0 0.0
    %1659 = vmatprep.subr.mxu0 0.0
    %1660 = vmatpush2.msra.mxu0 0.0
    %1661 = vmatprep.subr.mxu0 0.0
    %1662 = vmatpush2.msra.mxu0 0.0
    %1663 = vmatprep.subr.mxu0 0.0
    %1664 = vmatpush2.msra.mxu0 0.0
    %1665 = vmatprep.subr.mxu0 0.0
    %1666 = vmatpush2.msra.mxu0 0.0
    %1667 = vmatprep.subr.mxu0 0.0
    %1668 = vmatpush2.msra.mxu0 0.0
    %1669 = vmatprep.subr.mxu0 0.0
    %1670 = vmatpush2.msra.mxu0 0.0
    %1671 = vmatprep.mubr.f32.mxu0 0.0
    %1672 = vmatmul.mubr.f32.gmra.mxu0 %v1534
    %v1673 = vpop.f32.mrf.mxu0
    %v1674 = vadd.f32 0.0, %v1673
    %v1675 = vpop.f32.mrf.mxu0
    %1676 = vdwg.mxu0
    %v1677 = vadd.f32 %v340, %v1674
    %1678 = vmatprep.subr.mxu0 0.0
    %1679 = vmatpush1.msra.mxu0 0.0
    %1680 = vmatprep.subr.mxu0 0.0
    %1681 = vmatpush1.msra.mxu0 0.0
    %1682 = vmatprep.subr.mxu0 0.0
    %1683 = vmatpush1.msra.mxu0 0.0
    %1684 = vmatprep.subr.mxu0 0.0
    %1685 = vmatpush1.msra.mxu0 0.0
    %1686 = vmatprep.subr.mxu0 0.0
    %1687 = vmatpush1.msra.mxu0 0.0
    %1688 = vmatprep.subr.mxu0 0.0
    %1689 = vmatpush1.msra.mxu0 0.0
    %1690 = vmatprep.subr.mxu0 0.0
    %1691 = vmatpush1.msra.mxu0 0.0
    %1692 = vmatprep.subr.mxu0 0.0
    %1693 = vmatpush1.msra.mxu0 0.0
    %1694 = vmatprep.subr.mxu0 0.0
    %1695 = vmatpush1.msra.mxu0 0.0
    %1696 = vmatprep.subr.mxu0 0.0
    %1697 = vmatpush1.msra.mxu0 0.0
    %1698 = vmatprep.subr.mxu0 0.0
    %1699 = vmatpush1.msra.mxu0 0.0
    %1700 = vmatprep.subr.mxu0 0.0
    %1701 = vmatpush1.msra.mxu0 0.0
    %1702 = vmatprep.subr.mxu0 0.0
    %1703 = vmatpush1.msra.mxu0 %v608
    %1704 = vmatprep.subr.mxu0 0.0
    %1705 = vmatpush1.msra.mxu0 %v607
    %1706 = vmatprep.subr.mxu0 0.0
    %1707 = vmatpush1.msra.mxu0 %v606
    %1708 = vmatprep.subr.mxu0 0.0
    %1709 = vmatpush1.msra.mxu0 %v605
    %1710 = vmatprep.subr.mxu0 0.0
    %1711 = vmatpush2.msra.mxu0 0.0
    %1712 = vmatprep.subr.mxu0 0.0
    %1713 = vmatpush2.msra.mxu0 0.0
    %1714 = vmatprep.subr.mxu0 0.0
    %1715 = vmatpush2.msra.mxu0 0.0
    %1716 = vmatprep.subr.mxu0 0.0
    %1717 = vmatpush2.msra.mxu0 0.0
    %1718 = vmatprep.subr.mxu0 0.0
    %1719 = vmatpush2.msra.mxu0 0.0
    %1720 = vmatprep.subr.mxu0 0.0
    %1721 = vmatpush2.msra.mxu0 0.0
    %1722 = vmatprep.subr.mxu0 0.0
    %1723 = vmatpush2.msra.mxu0 0.0
    %1724 = vmatprep.subr.mxu0 0.0
    %1725 = vmatpush2.msra.mxu0 0.0
    %1726 = vmatprep.subr.mxu0 0.0
    %1727 = vmatpush2.msra.mxu0 0.0
    %1728 = vmatprep.subr.mxu0 0.0
    %1729 = vmatpush2.msra.mxu0 0.0
    %1730 = vmatprep.subr.mxu0 0.0
    %1731 = vmatpush2.msra.mxu0 0.0
    %1732 = vmatprep.subr.mxu0 0.0
    %1733 = vmatpush2.msra.mxu0 0.0
    %1734 = vmatprep.subr.mxu0 0.0
    %1735 = vmatpush2.msra.mxu0 0.0
    %1736 = vmatprep.subr.mxu0 0.0
    %1737 = vmatpush2.msra.mxu0 0.0
    %1738 = vmatprep.subr.mxu0 0.0
    %1739 = vmatpush2.msra.mxu0 0.0
    %1740 = vmatprep.subr.mxu0 0.0
    %1741 = vmatpush2.msra.mxu0 0.0
    %1742 = vmatprep.mubr.f32.mxu0 0.0
    %1743 = vmatmul.mubr.f32.gmra.mxu0 %v1534
    %v1744 = vpop.f32.mrf.mxu0
    %v1745 = vadd.f32 0.0, %v1744
    %v1746 = vpop.f32.mrf.mxu0
    %1747 = vdwg.mxu0
    %v1748 = vadd.f32 %v456, %v1745
    %1749 = vmatprep.subr.mxu0 0.0
    %1750 = vmatpush1.msra.mxu0 0.0
    %1751 = vmatprep.subr.mxu0 0.0
    %1752 = vmatpush1.msra.mxu0 0.0
    %1753 = vmatprep.subr.mxu0 0.0
    %1754 = vmatpush1.msra.mxu0 0.0
    %1755 = vmatprep.subr.mxu0 0.0
    %1756 = vmatpush1.msra.mxu0 0.0
    %1757 = vmatprep.subr.mxu0 0.0
    %1758 = vmatpush1.msra.mxu0 0.0
    %1759 = vmatprep.subr.mxu0 0.0
    %1760 = vmatpush1.msra.mxu0 0.0
    %1761 = vmatprep.subr.mxu0 0.0
    %1762 = vmatpush1.msra.mxu0 0.0
    %1763 = vmatprep.subr.mxu0 0.0
    %1764 = vmatpush1.msra.mxu0 0.0
    %1765 = vmatprep.subr.mxu0 0.0
    %1766 = vmatpush1.msra.mxu0 0.0
    %1767 = vmatprep.subr.mxu0 0.0
    %1768 = vmatpush1.msra.mxu0 0.0
    %1769 = vmatprep.subr.mxu0 0.0
    %1770 = vmatpush1.msra.mxu0 0.0
    %1771 = vmatprep.subr.mxu0 0.0
    %1772 = vmatpush1.msra.mxu0 0.0
    %1773 = vmatprep.subr.mxu0 0.0
    %1774 = vmatpush1.msra.mxu0 %v613
    %1775 = vmatprep.subr.mxu0 0.0
    %1776 = vmatpush1.msra.mxu0 %v612
    %1777 = vmatprep.subr.mxu0 0.0
    %1778 = vmatpush1.msra.mxu0 %v611
    %1779 = vmatprep.subr.mxu0 0.0
    %1780 = vmatpush1.msra.mxu0 %v610
    %1781 = vmatprep.subr.mxu0 0.0
    %1782 = vmatpush2.msra.mxu0 0.0
    %1783 = vmatprep.subr.mxu0 0.0
    %1784 = vmatpush2.msra.mxu0 0.0
    %1785 = vmatprep.subr.mxu0 0.0
    %1786 = vmatpush2.msra.mxu0 0.0
    %1787 = vmatprep.subr.mxu0 0.0
    %1788 = vmatpush2.msra.mxu0 0.0
    %1789 = vmatprep.subr.mxu0 0.0
    %1790 = vmatpush2.msra.mxu0 0.0
    %1791 = vmatprep.subr.mxu0 0.0
    %1792 = vmatpush2.msra.mxu0 0.0
    %1793 = vmatprep.subr.mxu0 0.0
    %1794 = vmatpush2.msra.mxu0 0.0
    %1795 = vmatprep.subr.mxu0 0.0
    %1796 = vmatpush2.msra.mxu0 0.0
    %1797 = vmatprep.subr.mxu0 0.0
    %1798 = vmatpush2.msra.mxu0 0.0
    %1799 = vmatprep.subr.mxu0 0.0
    %1800 = vmatpush2.msra.mxu0 0.0
    %1801 = vmatprep.subr.mxu0 0.0
    %1802 = vmatpush2.msra.mxu0 0.0
    %1803 = vmatprep.subr.mxu0 0.0
    %1804 = vmatpush2.msra.mxu0 0.0
    %1805 = vmatprep.subr.mxu0 0.0
    %1806 = vmatpush2.msra.mxu0 0.0
    %1807 = vmatprep.subr.mxu0 0.0
    %1808 = vmatpush2.msra.mxu0 0.0
    %1809 = vmatprep.subr.mxu0 0.0
    %1810 = vmatpush2.msra.mxu0 0.0
    %1811 = vmatprep.subr.mxu0 0.0
    %1812 = vmatpush2.msra.mxu0 0.0
    %1813 = vmatprep.mubr.f32.mxu0 0.0
    %1814 = vmatmul.mubr.f32.gmra.mxu0 %v1534
    %v1815 = vpop.f32.mrf.mxu0
    %v1816 = vadd.f32 0.0, %v1815
    %v1817 = vpop.f32.mrf.mxu0
    %1818 = vdwg.mxu0
    %v1819 = vadd.f32 %v572, %v1816
    %v1820 = vmul.f32 %v1606, 0.5
    %v1821 = vtanh.pop %v1820
    %v1822 = vmul.f32 %v1821, 0.5
    %v1823 = vadd.f32 %v1822, 0.5
    %v1824 = vmul.f32 %v1677, 0.5
    %v1825 = vtanh.pop %v1824
    %v1826 = vmul.f32 %v1825, 0.5
    %v1827 = vadd.f32 %v1826, 0.5
    %v1828 = vtanh.pop %v1748
    %v1829 = vmul.f32 %v1819, 0.5
    %v1830 = vtanh.pop %v1829
    %v1831 = vmul.f32 %v1830, 0.5
    %v1832 = vadd.f32 %v1831, 0.5
    %v1833 = vmul.f32 %v1827, %v1529
    %v1834 = vmul.f32 %v1823, %v1828
    %v1835 = vadd.f32 %v1833, %v1834
    %v1836 = vtanh.pop %v1835
    %v1837 = vmul.f32 %v1832, %v1836
    %1838 = vst.msk [vmem:[#allocation2 + $0x18] sm:$0xff] %vm614, %v1837
    %v1840 = vsel %vm614, %v1837, 0
    %1842 = vmatprep.subr.mxu0 0.0
    %1843 = vmatpush1.msra.mxu0 0.0
    %1844 = vmatprep.subr.mxu0 0.0
    %1845 = vmatpush1.msra.mxu0 0.0
    %1846 = vmatprep.subr.mxu0 0.0
    %1847 = vmatpush1.msra.mxu0 0.0
    %1848 = vmatprep.subr.mxu0 0.0
    %1849 = vmatpush1.msra.mxu0 0.0
    %1850 = vmatprep.subr.mxu0 0.0
    %1851 = vmatpush1.msra.mxu0 0.0
    %1852 = vmatprep.subr.mxu0 0.0
    %1853 = vmatpush1.msra.mxu0 0.0
    %1854 = vmatprep.subr.mxu0 0.0
    %1855 = vmatpush1.msra.mxu0 0.0
    %1856 = vmatprep.subr.mxu0 0.0
    %1857 = vmatpush1.msra.mxu0 0.0
    %1858 = vmatprep.subr.mxu0 0.0
    %1859 = vmatpush1.msra.mxu0 0.0
    %1860 = vmatprep.subr.mxu0 0.0
    %1861 = vmatpush1.msra.mxu0 0.0
    %1862 = vmatprep.subr.mxu0 0.0
    %1863 = vmatpush1.msra.mxu0 0.0
    %1864 = vmatprep.subr.mxu0 0.0
    %1865 = vmatpush1.msra.mxu0 0.0
    %1866 = vmatprep.subr.mxu0 0.0
    %1867 = vmatpush1.msra.mxu0 %v598
    %1868 = vmatprep.subr.mxu0 0.0
    %1869 = vmatpush1.msra.mxu0 %v597
    %1870 = vmatprep.subr.mxu0 0.0
    %1871 = vmatpush1.msra.mxu0 %v596
    %1872 = vmatprep.subr.mxu0 0.0
    %1873 = vmatpush1.msra.mxu0 %v595
    %1874 = vmatprep.subr.mxu0 0.0
    %1875 = vmatpush2.msra.mxu0 0.0
    %1876 = vmatprep.subr.mxu0 0.0
    %1877 = vmatpush2.msra.mxu0 0.0
    %1878 = vmatprep.subr.mxu0 0.0
    %1879 = vmatpush2.msra.mxu0 0.0
    %1880 = vmatprep.subr.mxu0 0.0
    %1881 = vmatpush2.msra.mxu0 0.0
    %1882 = vmatprep.subr.mxu0 0.0
    %1883 = vmatpush2.msra.mxu0 0.0
    %1884 = vmatprep.subr.mxu0 0.0
    %1885 = vmatpush2.msra.mxu0 0.0
    %1886 = vmatprep.subr.mxu0 0.0
    %1887 = vmatpush2.msra.mxu0 0.0
    %1888 = vmatprep.subr.mxu0 0.0
    %1889 = vmatpush2.msra.mxu0 0.0
    %1890 = vmatprep.subr.mxu0 0.0
    %1891 = vmatpush2.msra.mxu0 0.0
    %1892 = vmatprep.subr.mxu0 0.0
    %1893 = vmatpush2.msra.mxu0 0.0
    %1894 = vmatprep.subr.mxu0 0.0
    %1895 = vmatpush2.msra.mxu0 0.0
    %1896 = vmatprep.subr.mxu0 0.0
    %1897 = vmatpush2.msra.mxu0 0.0
    %1898 = vmatprep.subr.mxu0 0.0
    %1899 = vmatpush2.msra.mxu0 0.0
    %1900 = vmatprep.subr.mxu0 0.0
    %1901 = vmatpush2.msra.mxu0 0.0
    %1902 = vmatprep.subr.mxu0 0.0
    %1903 = vmatpush2.msra.mxu0 0.0
    %1904 = vmatprep.subr.mxu0 0.0
    %1905 = vmatpush2.msra.mxu0 0.0
    %1906 = vmatprep.mubr.f32.mxu0 0.0
    %1907 = vmatmul.mubr.f32.gmra.mxu0 %v1840
    %v1908 = vpop.f32.mrf.mxu0
    %v1909 = vadd.f32 0.0, %v1908
    %v1910 = vpop.f32.mrf.mxu0
    %1911 = vdwg.mxu0
    %v1912 = vadd.f32 %v229, %v1909
    %1913 = vmatprep.subr.mxu0 0.0
    %1914 = vmatpush1.msra.mxu0 0.0
    %1915 = vmatprep.subr.mxu0 0.0
    %1916 = vmatpush1.msra.mxu0 0.0
    %1917 = vmatprep.subr.mxu0 0.0
    %1918 = vmatpush1.msra.mxu0 0.0
    %1919 = vmatprep.subr.mxu0 0.0
    %1920 = vmatpush1.msra.mxu0 0.0
    %1921 = vmatprep.subr.mxu0 0.0
    %1922 = vmatpush1.msra.mxu0 0.0
    %1923 = vmatprep.subr.mxu0 0.0
    %1924 = vmatpush1.msra.mxu0 0.0
    %1925 = vmatprep.subr.mxu0 0.0
    %1926 = vmatpush1.msra.mxu0 0.0
    %1927 = vmatprep.subr.mxu0 0.0
    %1928 = vmatpush1.msra.mxu0 0.0
    %1929 = vmatprep.subr.mxu0 0.0
    %1930 = vmatpush1.msra.mxu0 0.0
    %1931 = vmatprep.subr.mxu0 0.0
    %1932 = vmatpush1.msra.mxu0 0.0
    %1933 = vmatprep.subr.mxu0 0.0
    %1934 = vmatpush1.msra.mxu0 0.0
    %1935 = vmatprep.subr.mxu0 0.0
    %1936 = vmatpush1.msra.mxu0 0.0
    %1937 = vmatprep.subr.mxu0 0.0
    %1938 = vmatpush1.msra.mxu0 %v603
    %1939 = vmatprep.subr.mxu0 0.0
    %1940 = vmatpush1.msra.mxu0 %v602
    %1941 = vmatprep.subr.mxu0 0.0
    %1942 = vmatpush1.msra.mxu0 %v601
    %1943 = vmatprep.subr.mxu0 0.0
    %1944 = vmatpush1.msra.mxu0 %v600
    %1945 = vmatprep.subr.mxu0 0.0
    %1946 = vmatpush2.msra.mxu0 0.0
    %1947 = vmatprep.subr.mxu0 0.0
    %1948 = vmatpush2.msra.mxu0 0.0
    %1949 = vmatprep.subr.mxu0 0.0
    %1950 = vmatpush2.msra.mxu0 0.0
    %1951 = vmatprep.subr.mxu0 0.0
    %1952 = vmatpush2.msra.mxu0 0.0
    %1953 = vmatprep.subr.mxu0 0.0
    %1954 = vmatpush2.msra.mxu0 0.0
    %1955 = vmatprep.subr.mxu0 0.0
    %1956 = vmatpush2.msra.mxu0 0.0
    %1957 = vmatprep.subr.mxu0 0.0
    %1958 = vmatpush2.msra.mxu0 0.0
    %1959 = vmatprep.subr.mxu0 0.0
    %1960 = vmatpush2.msra.mxu0 0.0
    %1961 = vmatprep.subr.mxu0 0.0
    %1962 = vmatpush2.msra.mxu0 0.0
    %1963 = vmatprep.subr.mxu0 0.0
    %1964 = vmatpush2.msra.mxu0 0.0
    %1965 = vmatprep.subr.mxu0 0.0
    %1966 = vmatpush2.msra.mxu0 0.0
    %1967 = vmatprep.subr.mxu0 0.0
    %1968 = vmatpush2.msra.mxu0 0.0
    %1969 = vmatprep.subr.mxu0 0.0
    %1970 = vmatpush2.msra.mxu0 0.0
    %1971 = vmatprep.subr.mxu0 0.0
    %1972 = vmatpush2.msra.mxu0 0.0
    %1973 = vmatprep.subr.mxu0 0.0
    %1974 = vmatpush2.msra.mxu0 0.0
    %1975 = vmatprep.subr.mxu0 0.0
    %1976 = vmatpush2.msra.mxu0 0.0
    %1977 = vmatprep.mubr.f32.mxu0 0.0
    %1978 = vmatmul.mubr.f32.gmra.mxu0 %v1840
    %v1979 = vpop.f32.mrf.mxu0
    %v1980 = vadd.f32 0.0, %v1979
    %v1981 = vpop.f32.mrf.mxu0
    %1982 = vdwg.mxu0
    %v1983 = vadd.f32 %v345, %v1980
    %1984 = vmatprep.subr.mxu0 0.0
    %1985 = vmatpush1.msra.mxu0 0.0
    %1986 = vmatprep.subr.mxu0 0.0
    %1987 = vmatpush1.msra.mxu0 0.0
    %1988 = vmatprep.subr.mxu0 0.0
    %1989 = vmatpush1.msra.mxu0 0.0
    %1990 = vmatprep.subr.mxu0 0.0
    %1991 = vmatpush1.msra.mxu0 0.0
    %1992 = vmatprep.subr.mxu0 0.0
    %1993 = vmatpush1.msra.mxu0 0.0
    %1994 = vmatprep.subr.mxu0 0.0
    %1995 = vmatpush1.msra.mxu0 0.0
    %1996 = vmatprep.subr.mxu0 0.0
    %1997 = vmatpush1.msra.mxu0 0.0
    %1998 = vmatprep.subr.mxu0 0.0
    %1999 = vmatpush1.msra.mxu0 0.0
    %2000 = vmatprep.subr.mxu0 0.0
    %2001 = vmatpush1.msra.mxu0 0.0
    %2002 = vmatprep.subr.mxu0 0.0
    %2003 = vmatpush1.msra.mxu0 0.0
    %2004 = vmatprep.subr.mxu0 0.0
    %2005 = vmatpush1.msra.mxu0 0.0
    %2006 = vmatprep.subr.mxu0 0.0
    %2007 = vmatpush1.msra.mxu0 0.0
    %2008 = vmatprep.subr.mxu0 0.0
    %2009 = vmatpush1.msra.mxu0 %v608
    %2010 = vmatprep.subr.mxu0 0.0
    %2011 = vmatpush1.msra.mxu0 %v607
    %2012 = vmatprep.subr.mxu0 0.0
    %2013 = vmatpush1.msra.mxu0 %v606
    %2014 = vmatprep.subr.mxu0 0.0
    %2015 = vmatpush1.msra.mxu0 %v605
    %2016 = vmatprep.subr.mxu0 0.0
    %2017 = vmatpush2.msra.mxu0 0.0
    %2018 = vmatprep.subr.mxu0 0.0
    %2019 = vmatpush2.msra.mxu0 0.0
    %2020 = vmatprep.subr.mxu0 0.0
    %2021 = vmatpush2.msra.mxu0 0.0
    %2022 = vmatprep.subr.mxu0 0.0
    %2023 = vmatpush2.msra.mxu0 0.0
    %2024 = vmatprep.subr.mxu0 0.0
    %2025 = vmatpush2.msra.mxu0 0.0
    %2026 = vmatprep.subr.mxu0 0.0
    %2027 = vmatpush2.msra.mxu0 0.0
    %2028 = vmatprep.subr.mxu0 0.0
    %2029 = vmatpush2.msra.mxu0 0.0
    %2030 = vmatprep.subr.mxu0 0.0
    %2031 = vmatpush2.msra.mxu0 0.0
    %2032 = vmatprep.subr.mxu0 0.0
    %2033 = vmatpush2.msra.mxu0 0.0
    %2034 = vmatprep.subr.mxu0 0.0
    %2035 = vmatpush2.msra.mxu0 0.0
    %2036 = vmatprep.subr.mxu0 0.0
    %2037 = vmatpush2.msra.mxu0 0.0
    %2038 = vmatprep.subr.mxu0 0.0
    %2039 = vmatpush2.msra.mxu0 0.0
    %2040 = vmatprep.subr.mxu0 0.0
    %2041 = vmatpush2.msra.mxu0 0.0
    %2042 = vmatprep.subr.mxu0 0.0
    %2043 = vmatpush2.msra.mxu0 0.0
    %2044 = vmatprep.subr.mxu0 0.0
    %2045 = vmatpush2.msra.mxu0 0.0
    %2046 = vmatprep.subr.mxu0 0.0
    %2047 = vmatpush2.msra.mxu0 0.0
    %2048 = vmatprep.mubr.f32.mxu0 0.0
    %2049 = vmatmul.mubr.f32.gmra.mxu0 %v1840
    %v2050 = vpop.f32.mrf.mxu0
    %v2051 = vadd.f32 0.0, %v2050
    %v2052 = vpop.f32.mrf.mxu0
    %2053 = vdwg.mxu0
    %v2054 = vadd.f32 %v461, %v2051
    %2055 = vmatprep.subr.mxu0 0.0
    %2056 = vmatpush1.msra.mxu0 0.0
    %2057 = vmatprep.subr.mxu0 0.0
    %2058 = vmatpush1.msra.mxu0 0.0
    %2059 = vmatprep.subr.mxu0 0.0
    %2060 = vmatpush1.msra.mxu0 0.0
    %2061 = vmatprep.subr.mxu0 0.0
    %2062 = vmatpush1.msra.mxu0 0.0
    %2063 = vmatprep.subr.mxu0 0.0
    %2064 = vmatpush1.msra.mxu0 0.0
    %2065 = vmatprep.subr.mxu0 0.0
    %2066 = vmatpush1.msra.mxu0 0.0
    %2067 = vmatprep.subr.mxu0 0.0
    %2068 = vmatpush1.msra.mxu0 0.0
    %2069 = vmatprep.subr.mxu0 0.0
    %2070 = vmatpush1.msra.mxu0 0.0
    %2071 = vmatprep.subr.mxu0 0.0
    %2072 = vmatpush1.msra.mxu0 0.0
    %2073 = vmatprep.subr.mxu0 0.0
    %2074 = vmatpush1.msra.mxu0 0.0
    %2075 = vmatprep.subr.mxu0 0.0
    %2076 = vmatpush1.msra.mxu0 0.0
    %2077 = vmatprep.subr.mxu0 0.0
    %2078 = vmatpush1.msra.mxu0 0.0
    %2079 = vmatprep.subr.mxu0 0.0
    %2080 = vmatpush1.msra.mxu0 %v613
    %2081 = vmatprep.subr.mxu0 0.0
    %2082 = vmatpush1.msra.mxu0 %v612
    %2083 = vmatprep.subr.mxu0 0.0
    %2084 = vmatpush1.msra.mxu0 %v611
    %2085 = vmatprep.subr.mxu0 0.0
    %2086 = vmatpush1.msra.mxu0 %v610
    %2087 = vmatprep.subr.mxu0 0.0
    %2088 = vmatpush2.msra.mxu0 0.0
    %2089 = vmatprep.subr.mxu0 0.0
    %2090 = vmatpush2.msra.mxu0 0.0
    %2091 = vmatprep.subr.mxu0 0.0
    %2092 = vmatpush2.msra.mxu0 0.0
    %2093 = vmatprep.subr.mxu0 0.0
    %2094 = vmatpush2.msra.mxu0 0.0
    %2095 = vmatprep.subr.mxu0 0.0
    %2096 = vmatpush2.msra.mxu0 0.0
    %2097 = vmatprep.subr.mxu0 0.0
    %2098 = vmatpush2.msra.mxu0 0.0
    %2099 = vmatprep.subr.mxu0 0.0
    %2100 = vmatpush2.msra.mxu0 0.0
    %2101 = vmatprep.subr.mxu0 0.0
    %2102 = vmatpush2.msra.mxu0 0.0
    %2103 = vmatprep.subr.mxu0 0.0
    %2104 = vmatpush2.msra.mxu0 0.0
    %2105 = vmatprep.subr.mxu0 0.0
    %2106 = vmatpush2.msra.mxu0 0.0
    %2107 = vmatprep.subr.mxu0 0.0
    %2108 = vmatpush2.msra.mxu0 0.0
    %2109 = vmatprep.subr.mxu0 0.0
    %2110 = vmatpush2.msra.mxu0 0.0
    %2111 = vmatprep.subr.mxu0 0.0
    %2112 = vmatpush2.msra.mxu0 0.0
    %2113 = vmatprep.subr.mxu0 0.0
    %2114 = vmatpush2.msra.mxu0 0.0
    %2115 = vmatprep.subr.mxu0 0.0
    %2116 = vmatpush2.msra.mxu0 0.0
    %2117 = vmatprep.subr.mxu0 0.0
    %2118 = vmatpush2.msra.mxu0 0.0
    %2119 = vmatprep.mubr.f32.mxu0 0.0
    %2120 = vmatmul.mubr.f32.gmra.mxu0 %v1840
    %v2121 = vpop.f32.mrf.mxu0
    %v2122 = vadd.f32 0.0, %v2121
    %v2123 = vpop.f32.mrf.mxu0
    %2124 = vdwg.mxu0
    %v2125 = vadd.f32 %v577, %v2122
    %v2126 = vmul.f32 %v1912, 0.5
    %v2127 = vtanh.pop %v2126
    %v2128 = vmul.f32 %v2127, 0.5
    %v2129 = vadd.f32 %v2128, 0.5
    %v2130 = vmul.f32 %v1983, 0.5
    %v2131 = vtanh.pop %v2130
    %v2132 = vmul.f32 %v2131, 0.5
    %v2133 = vadd.f32 %v2132, 0.5
    %v2134 = vtanh.pop %v2054
    %v2135 = vmul.f32 %v2125, 0.5
    %v2136 = vtanh.pop %v2135
    %v2137 = vmul.f32 %v2136, 0.5
    %v2138 = vadd.f32 %v2137, 0.5
    %v2139 = vmul.f32 %v2133, %v1835
    %v2140 = vmul.f32 %v2129, %v2134
    %v2141 = vadd.f32 %v2139, %v2140
    %v2142 = vtanh.pop %v2141
    %v2143 = vmul.f32 %v2138, %v2142
    %2144 = vst.msk [vmem:[#allocation2 + $0x20] sm:$0xff] %vm614, %v2143
    %v2146 = vsel %vm614, %v2143, 0
    %2148 = vmatprep.subr.mxu0 0.0
    %2149 = vmatpush1.msra.mxu0 0.0
    %2150 = vmatprep.subr.mxu0 0.0
    %2151 = vmatpush1.msra.mxu0 0.0
    %2152 = vmatprep.subr.mxu0 0.0
    %2153 = vmatpush1.msra.mxu0 0.0
    %2154 = vmatprep.subr.mxu0 0.0
    %2155 = vmatpush1.msra.mxu0 0.0
    %2156 = vmatprep.subr.mxu0 0.0
    %2157 = vmatpush1.msra.mxu0 0.0
    %2158 = vmatprep.subr.mxu0 0.0
    %2159 = vmatpush1.msra.mxu0 0.0
    %2160 = vmatprep.subr.mxu0 0.0
    %2161 = vmatpush1.msra.mxu0 0.0
    %2162 = vmatprep.subr.mxu0 0.0
    %2163 = vmatpush1.msra.mxu0 0.0
    %2164 = vmatprep.subr.mxu0 0.0
    %2165 = vmatpush1.msra.mxu0 0.0
    %2166 = vmatprep.subr.mxu0 0.0
    %2167 = vmatpush1.msra.mxu0 0.0
    %2168 = vmatprep.subr.mxu0 0.0
    %2169 = vmatpush1.msra.mxu0 0.0
    %2170 = vmatprep.subr.mxu0 0.0
    %2171 = vmatpush1.msra.mxu0 0.0
    %2172 = vmatprep.subr.mxu0 0.0
    %2173 = vmatpush1.msra.mxu0 %v598
    %2174 = vmatprep.subr.mxu0 0.0
    %2175 = vmatpush1.msra.mxu0 %v597
    %2176 = vmatprep.subr.mxu0 0.0
    %2177 = vmatpush1.msra.mxu0 %v596
    %2178 = vmatprep.subr.mxu0 0.0
    %2179 = vmatpush1.msra.mxu0 %v595
    %2180 = vmatprep.subr.mxu0 0.0
    %2181 = vmatpush2.msra.mxu0 0.0
    %2182 = vmatprep.subr.mxu0 0.0
    %2183 = vmatpush2.msra.mxu0 0.0
    %2184 = vmatprep.subr.mxu0 0.0
    %2185 = vmatpush2.msra.mxu0 0.0
    %2186 = vmatprep.subr.mxu0 0.0
    %2187 = vmatpush2.msra.mxu0 0.0
    %2188 = vmatprep.subr.mxu0 0.0
    %2189 = vmatpush2.msra.mxu0 0.0
    %2190 = vmatprep.subr.mxu0 0.0
    %2191 = vmatpush2.msra.mxu0 0.0
    %2192 = vmatprep.subr.mxu0 0.0
    %2193 = vmatpush2.msra.mxu0 0.0
    %2194 = vmatprep.subr.mxu0 0.0
    %2195 = vmatpush2.msra.mxu0 0.0
    %2196 = vmatprep.subr.mxu0 0.0
    %2197 = vmatpush2.msra.mxu0 0.0
    %2198 = vmatprep.subr.mxu0 0.0
    %2199 = vmatpush2.msra.mxu0 0.0
    %2200 = vmatprep.subr.mxu0 0.0
    %2201 = vmatpush2.msra.mxu0 0.0
    %2202 = vmatprep.subr.mxu0 0.0
    %2203 = vmatpush2.msra.mxu0 0.0
    %2204 = vmatprep.subr.mxu0 0.0
    %2205 = vmatpush2.msra.mxu0 0.0
    %2206 = vmatprep.subr.mxu0 0.0
    %2207 = vmatpush2.msra.mxu0 0.0
    %2208 = vmatprep.subr.mxu0 0.0
    %2209 = vmatpush2.msra.mxu0 0.0
    %2210 = vmatprep.subr.mxu0 0.0
    %2211 = vmatpush2.msra.mxu0 0.0
    %2212 = vmatprep.mubr.f32.mxu0 0.0
    %2213 = vmatmul.mubr.f32.gmra.mxu0 %v2146
    %v2214 = vpop.f32.mrf.mxu0
    %v2215 = vadd.f32 0.0, %v2214
    %v2216 = vpop.f32.mrf.mxu0
    %2217 = vdwg.mxu0
    %v2218 = vadd.f32 %v234, %v2215
    %2219 = vmatprep.subr.mxu0 0.0
    %2220 = vmatpush1.msra.mxu0 0.0
    %2221 = vmatprep.subr.mxu0 0.0
    %2222 = vmatpush1.msra.mxu0 0.0
    %2223 = vmatprep.subr.mxu0 0.0
    %2224 = vmatpush1.msra.mxu0 0.0
    %2225 = vmatprep.subr.mxu0 0.0
    %2226 = vmatpush1.msra.mxu0 0.0
    %2227 = vmatprep.subr.mxu0 0.0
    %2228 = vmatpush1.msra.mxu0 0.0
    %2229 = vmatprep.subr.mxu0 0.0
    %2230 = vmatpush1.msra.mxu0 0.0
    %2231 = vmatprep.subr.mxu0 0.0
    %2232 = vmatpush1.msra.mxu0 0.0
    %2233 = vmatprep.subr.mxu0 0.0
    %2234 = vmatpush1.msra.mxu0 0.0
    %2235 = vmatprep.subr.mxu0 0.0
    %2236 = vmatpush1.msra.mxu0 0.0
    %2237 = vmatprep.subr.mxu0 0.0
    %2238 = vmatpush1.msra.mxu0 0.0
    %2239 = vmatprep.subr.mxu0 0.0
    %2240 = vmatpush1.msra.mxu0 0.0
    %2241 = vmatprep.subr.mxu0 0.0
    %2242 = vmatpush1.msra.mxu0 0.0
    %2243 = vmatprep.subr.mxu0 0.0
    %2244 = vmatpush1.msra.mxu0 %v603
    %2245 = vmatprep.subr.mxu0 0.0
    %2246 = vmatpush1.msra.mxu0 %v602
    %2247 = vmatprep.subr.mxu0 0.0
    %2248 = vmatpush1.msra.mxu0 %v601
    %2249 = vmatprep.subr.mxu0 0.0
    %2250 = vmatpush1.msra.mxu0 %v600
    %2251 = vmatprep.subr.mxu0 0.0
    %2252 = vmatpush2.msra.mxu0 0.0
    %2253 = vmatprep.subr.mxu0 0.0
    %2254 = vmatpush2.msra.mxu0 0.0
    %2255 = vmatprep.subr.mxu0 0.0
    %2256 = vmatpush2.msra.mxu0 0.0
    %2257 = vmatprep.subr.mxu0 0.0
    %2258 = vmatpush2.msra.mxu0 0.0
    %2259 = vmatprep.subr.mxu0 0.0
    %2260 = vmatpush2.msra.mxu0 0.0
    %2261 = vmatprep.subr.mxu0 0.0
    %2262 = vmatpush2.msra.mxu0 0.0
    %2263 = vmatprep.subr.mxu0 0.0
    %2264 = vmatpush2.msra.mxu0 0.0
    %2265 = vmatprep.subr.mxu0 0.0
    %2266 = vmatpush2.msra.mxu0 0.0
    %2267 = vmatprep.subr.mxu0 0.0
    %2268 = vmatpush2.msra.mxu0 0.0
    %2269 = vmatprep.subr.mxu0 0.0
    %2270 = vmatpush2.msra.mxu0 0.0
    %2271 = vmatprep.subr.mxu0 0.0
    %2272 = vmatpush2.msra.mxu0 0.0
    %2273 = vmatprep.subr.mxu0 0.0
    %2274 = vmatpush2.msra.mxu0 0.0
    %2275 = vmatprep.subr.mxu0 0.0
    %2276 = vmatpush2.msra.mxu0 0.0
    %2277 = vmatprep.subr.mxu0 0.0
    %2278 = vmatpush2.msra.mxu0 0.0
    %2279 = vmatprep.subr.mxu0 0.0
    %2280 = vmatpush2.msra.mxu0 0.0
    %2281 = vmatprep.subr.mxu0 0.0
    %2282 = vmatpush2.msra.mxu0 0.0
    %2283 = vmatprep.mubr.f32.mxu0 0.0
    %2284 = vmatmul.mubr.f32.gmra.mxu0 %v2146
    %v2285 = vpop.f32.mrf.mxu0
    %v2286 = vadd.f32 0.0, %v2285
    %v2287 = vpop.f32.mrf.mxu0
    %2288 = vdwg.mxu0
    %v2289 = vadd.f32 %v350, %v2286
    %2290 = vmatprep.subr.mxu0 0.0
    %2291 = vmatpush1.msra.mxu0 0.0
    %2292 = vmatprep.subr.mxu0 0.0
    %2293 = vmatpush1.msra.mxu0 0.0
    %2294 = vmatprep.subr.mxu0 0.0
    %2295 = vmatpush1.msra.mxu0 0.0
    %2296 = vmatprep.subr.mxu0 0.0
    %2297 = vmatpush1.msra.mxu0 0.0
    %2298 = vmatprep.subr.mxu0 0.0
    %2299 = vmatpush1.msra.mxu0 0.0
    %2300 = vmatprep.subr.mxu0 0.0
    %2301 = vmatpush1.msra.mxu0 0.0
    %2302 = vmatprep.subr.mxu0 0.0
    %2303 = vmatpush1.msra.mxu0 0.0
    %2304 = vmatprep.subr.mxu0 0.0
    %2305 = vmatpush1.msra.mxu0 0.0
    %2306 = vmatprep.subr.mxu0 0.0
    %2307 = vmatpush1.msra.mxu0 0.0
    %2308 = vmatprep.subr.mxu0 0.0
    %2309 = vmatpush1.msra.mxu0 0.0
    %2310 = vmatprep.subr.mxu0 0.0
    %2311 = vmatpush1.msra.mxu0 0.0
    %2312 = vmatprep.subr.mxu0 0.0
    %2313 = vmatpush1.msra.mxu0 0.0
    %2314 = vmatprep.subr.mxu0 0.0
    %2315 = vmatpush1.msra.mxu0 %v608
    %2316 = vmatprep.subr.mxu0 0.0
    %2317 = vmatpush1.msra.mxu0 %v607
    %2318 = vmatprep.subr.mxu0 0.0
    %2319 = vmatpush1.msra.mxu0 %v606
    %2320 = vmatprep.subr.mxu0 0.0
    %2321 = vmatpush1.msra.mxu0 %v605
    %2322 = vmatprep.subr.mxu0 0.0
    %2323 = vmatpush2.msra.mxu0 0.0
    %2324 = vmatprep.subr.mxu0 0.0
    %2325 = vmatpush2.msra.mxu0 0.0
    %2326 = vmatprep.subr.mxu0 0.0
    %2327 = vmatpush2.msra.mxu0 0.0
    %2328 = vmatprep.subr.mxu0 0.0
    %2329 = vmatpush2.msra.mxu0 0.0
    %2330 = vmatprep.subr.mxu0 0.0
    %2331 = vmatpush2.msra.mxu0 0.0
    %2332 = vmatprep.subr.mxu0 0.0
    %2333 = vmatpush2.msra.mxu0 0.0
    %2334 = vmatprep.subr.mxu0 0.0
    %2335 = vmatpush2.msra.mxu0 0.0
    %2336 = vmatprep.subr.mxu0 0.0
    %2337 = vmatpush2.msra.mxu0 0.0
    %2338 = vmatprep.subr.mxu0 0.0
    %2339 = vmatpush2.msra.mxu0 0.0
    %2340 = vmatprep.subr.mxu0 0.0
    %2341 = vmatpush2.msra.mxu0 0.0
    %2342 = vmatprep.subr.mxu0 0.0
    %2343 = vmatpush2.msra.mxu0 0.0
    %2344 = vmatprep.subr.mxu0 0.0
    %2345 = vmatpush2.msra.mxu0 0.0
    %2346 = vmatprep.subr.mxu0 0.0
    %2347 = vmatpush2.msra.mxu0 0.0
    %2348 = vmatprep.subr.mxu0 0.0
    %2349 = vmatpush2.msra.mxu0 0.0
    %2350 = vmatprep.subr.mxu0 0.0
    %2351 = vmatpush2.msra.mxu0 0.0
    %2352 = vmatprep.subr.mxu0 0.0
    %2353 = vmatpush2.msra.mxu0 0.0
    %2354 = vmatprep.mubr.f32.mxu0 0.0
    %2355 = vmatmul.mubr.f32.gmra.mxu0 %v2146
    %v2356 = vpop.f32.mrf.mxu0
    %v2357 = vadd.f32 0.0, %v2356
    %v2358 = vpop.f32.mrf.mxu0
    %2359 = vdwg.mxu0
    %v2360 = vadd.f32 %v466, %v2357
    %2361 = vmatprep.subr.mxu0 0.0
    %2362 = vmatpush1.msra.mxu0 0.0
    %2363 = vmatprep.subr.mxu0 0.0
    %2364 = vmatpush1.msra.mxu0 0.0
    %2365 = vmatprep.subr.mxu0 0.0
    %2366 = vmatpush1.msra.mxu0 0.0
    %2367 = vmatprep.subr.mxu0 0.0
    %2368 = vmatpush1.msra.mxu0 0.0
    %2369 = vmatprep.subr.mxu0 0.0
    %2370 = vmatpush1.msra.mxu0 0.0
    %2371 = vmatprep.subr.mxu0 0.0
    %2372 = vmatpush1.msra.mxu0 0.0
    %2373 = vmatprep.subr.mxu0 0.0
    %2374 = vmatpush1.msra.mxu0 0.0
    %2375 = vmatprep.subr.mxu0 0.0
    %2376 = vmatpush1.msra.mxu0 0.0
    %2377 = vmatprep.subr.mxu0 0.0
    %2378 = vmatpush1.msra.mxu0 0.0
    %2379 = vmatprep.subr.mxu0 0.0
    %2380 = vmatpush1.msra.mxu0 0.0
    %2381 = vmatprep.subr.mxu0 0.0
    %2382 = vmatpush1.msra.mxu0 0.0
    %2383 = vmatprep.subr.mxu0 0.0
    %2384 = vmatpush1.msra.mxu0 0.0
    %2385 = vmatprep.subr.mxu0 0.0
    %2386 = vmatpush1.msra.mxu0 %v613
    %2387 = vmatprep.subr.mxu0 0.0
    %2388 = vmatpush1.msra.mxu0 %v612
    %2389 = vmatprep.subr.mxu0 0.0
    %2390 = vmatpush1.msra.mxu0 %v611
    %2391 = vmatprep.subr.mxu0 0.0
    %2392 = vmatpush1.msra.mxu0 %v610
    %2393 = vmatprep.subr.mxu0 0.0
    %2394 = vmatpush2.msra.mxu0 0.0
    %2395 = vmatprep.subr.mxu0 0.0
    %2396 = vmatpush2.msra.mxu0 0.0
    %2397 = vmatprep.subr.mxu0 0.0
    %2398 = vmatpush2.msra.mxu0 0.0
    %2399 = vmatprep.subr.mxu0 0.0
    %2400 = vmatpush2.msra.mxu0 0.0
    %2401 = vmatprep.subr.mxu0 0.0
    %2402 = vmatpush2.msra.mxu0 0.0
    %2403 = vmatprep.subr.mxu0 0.0
    %2404 = vmatpush2.msra.mxu0 0.0
    %2405 = vmatprep.subr.mxu0 0.0
    %2406 = vmatpush2.msra.mxu0 0.0
    %2407 = vmatprep.subr.mxu0 0.0
    %2408 = vmatpush2.msra.mxu0 0.0
    %2409 = vmatprep.subr.mxu0 0.0
    %2410 = vmatpush2.msra.mxu0 0.0
    %2411 = vmatprep.subr.mxu0 0.0
    %2412 = vmatpush2.msra.mxu0 0.0
    %2413 = vmatprep.subr.mxu0 0.0
    %2414 = vmatpush2.msra.mxu0 0.0
    %2415 = vmatprep.subr.mxu0 0.0
    %2416 = vmatpush2.msra.mxu0 0.0
    %2417 = vmatprep.subr.mxu0 0.0
    %2418 = vmatpush2.msra.mxu0 0.0
    %2419 = vmatprep.subr.mxu0 0.0
    %2420 = vmatpush2.msra.mxu0 0.0
    %2421 = vmatprep.subr.mxu0 0.0
    %2422 = vmatpush2.msra.mxu0 0.0
    %2423 = vmatprep.subr.mxu0 0.0
    %2424 = vmatpush2.msra.mxu0 0.0
    %2425 = vmatprep.mubr.f32.mxu0 0.0
    %2426 = vmatmul.mubr.f32.gmra.mxu0 %v2146
    %v2427 = vpop.f32.mrf.mxu0
    %v2428 = vadd.f32 0.0, %v2427
    %v2429 = vpop.f32.mrf.mxu0
    %2430 = vdwg.mxu0
    %v2431 = vadd.f32 %v582, %v2428
    %v2432 = vmul.f32 %v2218, 0.5
    %v2433 = vtanh.pop %v2432
    %v2434 = vmul.f32 %v2433, 0.5
    %v2435 = vadd.f32 %v2434, 0.5
    %v2436 = vmul.f32 %v2289, 0.5
    %v2437 = vtanh.pop %v2436
    %v2438 = vmul.f32 %v2437, 0.5
    %v2439 = vadd.f32 %v2438, 0.5
    %v2440 = vtanh.pop %v2360
    %v2441 = vmul.f32 %v2431, 0.5
    %v2442 = vtanh.pop %v2441
    %v2443 = vmul.f32 %v2442, 0.5
    %v2444 = vadd.f32 %v2443, 0.5
    %v2445 = vmul.f32 %v2439, %v2141
    %v2446 = vmul.f32 %v2435, %v2440
    %v2447 = vadd.f32 %v2445, %v2446
    %v2448 = vtanh.pop %v2447
    %v2449 = vmul.f32 %v2444, %v2448
    %2450 = vst.msk [vmem:[#allocation2 + $0x28] sm:$0xff] %vm614, %v2449
    %v2452 = vsel %vm614, %v2449, 0
    %2454 = vmatprep.subr.mxu0 0.0
    %2455 = vmatpush1.msra.mxu0 0.0
    %2456 = vmatprep.subr.mxu0 0.0
    %2457 = vmatpush1.msra.mxu0 0.0
    %2458 = vmatprep.subr.mxu0 0.0
    %2459 = vmatpush1.msra.mxu0 0.0
    %2460 = vmatprep.subr.mxu0 0.0
    %2461 = vmatpush1.msra.mxu0 0.0
    %2462 = vmatprep.subr.mxu0 0.0
    %2463 = vmatpush1.msra.mxu0 0.0
    %2464 = vmatprep.subr.mxu0 0.0
    %2465 = vmatpush1.msra.mxu0 0.0
    %2466 = vmatprep.subr.mxu0 0.0
    %2467 = vmatpush1.msra.mxu0 0.0
    %2468 = vmatprep.subr.mxu0 0.0
    %2469 = vmatpush1.msra.mxu0 0.0
    %2470 = vmatprep.subr.mxu0 0.0
    %2471 = vmatpush1.msra.mxu0 0.0
    %2472 = vmatprep.subr.mxu0 0.0
    %2473 = vmatpush1.msra.mxu0 0.0
    %2474 = vmatprep.subr.mxu0 0.0
    %2475 = vmatpush1.msra.mxu0 0.0
    %2476 = vmatprep.subr.mxu0 0.0
    %2477 = vmatpush1.msra.mxu0 0.0
    %2478 = vmatprep.subr.mxu0 0.0
    %2479 = vmatpush1.msra.mxu0 %v598
    %2480 = vmatprep.subr.mxu0 0.0
    %2481 = vmatpush1.msra.mxu0 %v597
    %2482 = vmatprep.subr.mxu0 0.0
    %2483 = vmatpush1.msra.mxu0 %v596
    %2484 = vmatprep.subr.mxu0 0.0
    %2485 = vmatpush1.msra.mxu0 %v595
    %2486 = vmatprep.subr.mxu0 0.0
    %2487 = vmatpush2.msra.mxu0 0.0
    %2488 = vmatprep.subr.mxu0 0.0
    %2489 = vmatpush2.msra.mxu0 0.0
    %2490 = vmatprep.subr.mxu0 0.0
    %2491 = vmatpush2.msra.mxu0 0.0
    %2492 = vmatprep.subr.mxu0 0.0
    %2493 = vmatpush2.msra.mxu0 0.0
    %2494 = vmatprep.subr.mxu0 0.0
    %2495 = vmatpush2.msra.mxu0 0.0
    %2496 = vmatprep.subr.mxu0 0.0
    %2497 = vmatpush2.msra.mxu0 0.0
    %2498 = vmatprep.subr.mxu0 0.0
    %2499 = vmatpush2.msra.mxu0 0.0
    %2500 = vmatprep.subr.mxu0 0.0
    %2501 = vmatpush2.msra.mxu0 0.0
    %2502 = vmatprep.subr.mxu0 0.0
    %2503 = vmatpush2.msra.mxu0 0.0
    %2504 = vmatprep.subr.mxu0 0.0
    %2505 = vmatpush2.msra.mxu0 0.0
    %2506 = vmatprep.subr.mxu0 0.0
    %2507 = vmatpush2.msra.mxu0 0.0
    %2508 = vmatprep.subr.mxu0 0.0
    %2509 = vmatpush2.msra.mxu0 0.0
    %2510 = vmatprep.subr.mxu0 0.0
    %2511 = vmatpush2.msra.mxu0 0.0
    %2512 = vmatprep.subr.mxu0 0.0
    %2513 = vmatpush2.msra.mxu0 0.0
    %2514 = vmatprep.subr.mxu0 0.0
    %2515 = vmatpush2.msra.mxu0 0.0
    %2516 = vmatprep.subr.mxu0 0.0
    %2517 = vmatpush2.msra.mxu0 0.0
    %2518 = vmatprep.mubr.f32.mxu0 0.0
    %2519 = vmatmul.mubr.f32.gmra.mxu0 %v2452
    %v2520 = vpop.f32.mrf.mxu0
    %v2521 = vadd.f32 0.0, %v2520
    %v2522 = vpop.f32.mrf.mxu0
    %2523 = vdwg.mxu0
    %v2524 = vadd.f32 %v239, %v2521
    %2525 = vmatprep.subr.mxu0 0.0
    %2526 = vmatpush1.msra.mxu0 0.0
    %2527 = vmatprep.subr.mxu0 0.0
    %2528 = vmatpush1.msra.mxu0 0.0
    %2529 = vmatprep.subr.mxu0 0.0
    %2530 = vmatpush1.msra.mxu0 0.0
    %2531 = vmatprep.subr.mxu0 0.0
    %2532 = vmatpush1.msra.mxu0 0.0
    %2533 = vmatprep.subr.mxu0 0.0
    %2534 = vmatpush1.msra.mxu0 0.0
    %2535 = vmatprep.subr.mxu0 0.0
    %2536 = vmatpush1.msra.mxu0 0.0
    %2537 = vmatprep.subr.mxu0 0.0
    %2538 = vmatpush1.msra.mxu0 0.0
    %2539 = vmatprep.subr.mxu0 0.0
    %2540 = vmatpush1.msra.mxu0 0.0
    %2541 = vmatprep.subr.mxu0 0.0
    %2542 = vmatpush1.msra.mxu0 0.0
    %2543 = vmatprep.subr.mxu0 0.0
    %2544 = vmatpush1.msra.mxu0 0.0
    %2545 = vmatprep.subr.mxu0 0.0
    %2546 = vmatpush1.msra.mxu0 0.0
    %2547 = vmatprep.subr.mxu0 0.0
    %2548 = vmatpush1.msra.mxu0 0.0
    %2549 = vmatprep.subr.mxu0 0.0
    %2550 = vmatpush1.msra.mxu0 %v603
    %2551 = vmatprep.subr.mxu0 0.0
    %2552 = vmatpush1.msra.mxu0 %v602
    %2553 = vmatprep.subr.mxu0 0.0
    %2554 = vmatpush1.msra.mxu0 %v601
    %2555 = vmatprep.subr.mxu0 0.0
    %2556 = vmatpush1.msra.mxu0 %v600
    %2557 = vmatprep.subr.mxu0 0.0
    %2558 = vmatpush2.msra.mxu0 0.0
    %2559 = vmatprep.subr.mxu0 0.0
    %2560 = vmatpush2.msra.mxu0 0.0
    %2561 = vmatprep.subr.mxu0 0.0
    %2562 = vmatpush2.msra.mxu0 0.0
    %2563 = vmatprep.subr.mxu0 0.0
    %2564 = vmatpush2.msra.mxu0 0.0
    %2565 = vmatprep.subr.mxu0 0.0
    %2566 = vmatpush2.msra.mxu0 0.0
    %2567 = vmatprep.subr.mxu0 0.0
    %2568 = vmatpush2.msra.mxu0 0.0
    %2569 = vmatprep.subr.mxu0 0.0
    %2570 = vmatpush2.msra.mxu0 0.0
    %2571 = vmatprep.subr.mxu0 0.0
    %2572 = vmatpush2.msra.mxu0 0.0
    %2573 = vmatprep.subr.mxu0 0.0
    %2574 = vmatpush2.msra.mxu0 0.0
    %2575 = vmatprep.subr.mxu0 0.0
    %2576 = vmatpush2.msra.mxu0 0.0
    %2577 = vmatprep.subr.mxu0 0.0
    %2578 = vmatpush2.msra.mxu0 0.0
    %2579 = vmatprep.subr.mxu0 0.0
    %2580 = vmatpush2.msra.mxu0 0.0
    %2581 = vmatprep.subr.mxu0 0.0
    %2582 = vmatpush2.msra.mxu0 0.0
    %2583 = vmatprep.subr.mxu0 0.0
    %2584 = vmatpush2.msra.mxu0 0.0
    %2585 = vmatprep.subr.mxu0 0.0
    %2586 = vmatpush2.msra.mxu0 0.0
    %2587 = vmatprep.subr.mxu0 0.0
    %2588 = vmatpush2.msra.mxu0 0.0
    %2589 = vmatprep.mubr.f32.mxu0 0.0
    %2590 = vmatmul.mubr.f32.gmra.mxu0 %v2452
    %v2591 = vpop.f32.mrf.mxu0
    %v2592 = vadd.f32 0.0, %v2591
    %v2593 = vpop.f32.mrf.mxu0
    %2594 = vdwg.mxu0
    %v2595 = vadd.f32 %v355, %v2592
    %2596 = vmatprep.subr.mxu0 0.0
    %2597 = vmatpush1.msra.mxu0 0.0
    %2598 = vmatprep.subr.mxu0 0.0
    %2599 = vmatpush1.msra.mxu0 0.0
    %2600 = vmatprep.subr.mxu0 0.0
    %2601 = vmatpush1.msra.mxu0 0.0
    %2602 = vmatprep.subr.mxu0 0.0
    %2603 = vmatpush1.msra.mxu0 0.0
    %2604 = vmatprep.subr.mxu0 0.0
    %2605 = vmatpush1.msra.mxu0 0.0
    %2606 = vmatprep.subr.mxu0 0.0
    %2607 = vmatpush1.msra.mxu0 0.0
    %2608 = vmatprep.subr.mxu0 0.0
    %2609 = vmatpush1.msra.mxu0 0.0
    %2610 = vmatprep.subr.mxu0 0.0
    %2611 = vmatpush1.msra.mxu0 0.0
    %2612 = vmatprep.subr.mxu0 0.0
    %2613 = vmatpush1.msra.mxu0 0.0
    %2614 = vmatprep.subr.mxu0 0.0
    %2615 = vmatpush1.msra.mxu0 0.0
    %2616 = vmatprep.subr.mxu0 0.0
    %2617 = vmatpush1.msra.mxu0 0.0
    %2618 = vmatprep.subr.mxu0 0.0
    %2619 = vmatpush1.msra.mxu0 0.0
    %2620 = vmatprep.subr.mxu0 0.0
    %2621 = vmatpush1.msra.mxu0 %v608
    %2622 = vmatprep.subr.mxu0 0.0
    %2623 = vmatpush1.msra.mxu0 %v607
    %2624 = vmatprep.subr.mxu0 0.0
    %2625 = vmatpush1.msra.mxu0 %v606
    %2626 = vmatprep.subr.mxu0 0.0
    %2627 = vmatpush1.msra.mxu0 %v605
    %2628 = vmatprep.subr.mxu0 0.0
    %2629 = vmatpush2.msra.mxu0 0.0
    %2630 = vmatprep.subr.mxu0 0.0
    %2631 = vmatpush2.msra.mxu0 0.0
    %2632 = vmatprep.subr.mxu0 0.0
    %2633 = vmatpush2.msra.mxu0 0.0
    %2634 = vmatprep.subr.mxu0 0.0
    %2635 = vmatpush2.msra.mxu0 0.0
    %2636 = vmatprep.subr.mxu0 0.0
    %2637 = vmatpush2.msra.mxu0 0.0
    %2638 = vmatprep.subr.mxu0 0.0
    %2639 = vmatpush2.msra.mxu0 0.0
    %2640 = vmatprep.subr.mxu0 0.0
    %2641 = vmatpush2.msra.mxu0 0.0
    %2642 = vmatprep.subr.mxu0 0.0
    %2643 = vmatpush2.msra.mxu0 0.0
    %2644 = vmatprep.subr.mxu0 0.0
    %2645 = vmatpush2.msra.mxu0 0.0
    %2646 = vmatprep.subr.mxu0 0.0
    %2647 = vmatpush2.msra.mxu0 0.0
    %2648 = vmatprep.subr.mxu0 0.0
    %2649 = vmatpush2.msra.mxu0 0.0
    %2650 = vmatprep.subr.mxu0 0.0
    %2651 = vmatpush2.msra.mxu0 0.0
    %2652 = vmatprep.subr.mxu0 0.0
    %2653 = vmatpush2.msra.mxu0 0.0
    %2654 = vmatprep.subr.mxu0 0.0
    %2655 = vmatpush2.msra.mxu0 0.0
    %2656 = vmatprep.subr.mxu0 0.0
    %2657 = vmatpush2.msra.mxu0 0.0
    %2658 = vmatprep.subr.mxu0 0.0
    %2659 = vmatpush2.msra.mxu0 0.0
    %2660 = vmatprep.mubr.f32.mxu0 0.0
    %2661 = vmatmul.mubr.f32.gmra.mxu0 %v2452
    %v2662 = vpop.f32.mrf.mxu0
    %v2663 = vadd.f32 0.0, %v2662
    %v2664 = vpop.f32.mrf.mxu0
    %2665 = vdwg.mxu0
    %v2666 = vadd.f32 %v471, %v2663
    %2667 = vmatprep.subr.mxu0 0.0
    %2668 = vmatpush1.msra.mxu0 0.0
    %2669 = vmatprep.subr.mxu0 0.0
    %2670 = vmatpush1.msra.mxu0 0.0
    %2671 = vmatprep.subr.mxu0 0.0
    %2672 = vmatpush1.msra.mxu0 0.0
    %2673 = vmatprep.subr.mxu0 0.0
    %2674 = vmatpush1.msra.mxu0 0.0
    %2675 = vmatprep.subr.mxu0 0.0
    %2676 = vmatpush1.msra.mxu0 0.0
    %2677 = vmatprep.subr.mxu0 0.0
    %2678 = vmatpush1.msra.mxu0 0.0
    %2679 = vmatprep.subr.mxu0 0.0
    %2680 = vmatpush1.msra.mxu0 0.0
    %2681 = vmatprep.subr.mxu0 0.0
    %2682 = vmatpush1.msra.mxu0 0.0
    %2683 = vmatprep.subr.mxu0 0.0
    %2684 = vmatpush1.msra.mxu0 0.0
    %2685 = vmatprep.subr.mxu0 0.0
    %2686 = vmatpush1.msra.mxu0 0.0
    %2687 = vmatprep.subr.mxu0 0.0
    %2688 = vmatpush1.msra.mxu0 0.0
    %2689 = vmatprep.subr.mxu0 0.0
    %2690 = vmatpush1.msra.mxu0 0.0
    %2691 = vmatprep.subr.mxu0 0.0
    %2692 = vmatpush1.msra.mxu0 %v613
    %2693 = vmatprep.subr.mxu0 0.0
    %2694 = vmatpush1.msra.mxu0 %v612
    %2695 = vmatprep.subr.mxu0 0.0
    %2696 = vmatpush1.msra.mxu0 %v611
    %2697 = vmatprep.subr.mxu0 0.0
    %2698 = vmatpush1.msra.mxu0 %v610
    %2699 = vmatprep.subr.mxu0 0.0
    %2700 = vmatpush2.msra.mxu0 0.0
    %2701 = vmatprep.subr.mxu0 0.0
    %2702 = vmatpush2.msra.mxu0 0.0
    %2703 = vmatprep.subr.mxu0 0.0
    %2704 = vmatpush2.msra.mxu0 0.0
    %2705 = vmatprep.subr.mxu0 0.0
    %2706 = vmatpush2.msra.mxu0 0.0
    %2707 = vmatprep.subr.mxu0 0.0
    %2708 = vmatpush2.msra.mxu0 0.0
    %2709 = vmatprep.subr.mxu0 0.0
    %2710 = vmatpush2.msra.mxu0 0.0
    %2711 = vmatprep.subr.mxu0 0.0
    %2712 = vmatpush2.msra.mxu0 0.0
    %2713 = vmatprep.subr.mxu0 0.0
    %2714 = vmatpush2.msra.mxu0 0.0
    %2715 = vmatprep.subr.mxu0 0.0
    %2716 = vmatpush2.msra.mxu0 0.0
    %2717 = vmatprep.subr.mxu0 0.0
    %2718 = vmatpush2.msra.mxu0 0.0
    %2719 = vmatprep.subr.mxu0 0.0
    %2720 = vmatpush2.msra.mxu0 0.0
    %2721 = vmatprep.subr.mxu0 0.0
    %2722 = vmatpush2.msra.mxu0 0.0
    %2723 = vmatprep.subr.mxu0 0.0
    %2724 = vmatpush2.msra.mxu0 0.0
    %2725 = vmatprep.subr.mxu0 0.0
    %2726 = vmatpush2.msra.mxu0 0.0
    %2727 = vmatprep.subr.mxu0 0.0
    %2728 = vmatpush2.msra.mxu0 0.0
    %2729 = vmatprep.subr.mxu0 0.0
    %2730 = vmatpush2.msra.mxu0 0.0
    %2731 = vmatprep.mubr.f32.mxu0 0.0
    %2732 = vmatmul.mubr.f32.gmra.mxu0 %v2452
    %v2733 = vpop.f32.mrf.mxu0
    %v2734 = vadd.f32 0.0, %v2733
    %v2735 = vpop.f32.mrf.mxu0
    %2736 = vdwg.mxu0
    %v2737 = vadd.f32 %v587, %v2734
    %v2738 = vmul.f32 %v2524, 0.5
    %v2739 = vtanh.pop %v2738
    %v2740 = vmul.f32 %v2739, 0.5
    %v2741 = vadd.f32 %v2740, 0.5
    %v2742 = vmul.f32 %v2595, 0.5
    %v2743 = vtanh.pop %v2742
    %v2744 = vmul.f32 %v2743, 0.5
    %v2745 = vadd.f32 %v2744, 0.5
    %v2746 = vtanh.pop %v2666
    %v2747 = vmul.f32 %v2737, 0.5
    %v2748 = vtanh.pop %v2747
    %v2749 = vmul.f32 %v2748, 0.5
    %v2750 = vadd.f32 %v2749, 0.5
    %v2751 = vmul.f32 %v2745, %v2447
    %v2752 = vmul.f32 %v2741, %v2746
    %v2753 = vadd.f32 %v2751, %v2752
    %v2754 = vtanh.pop %v2753
    %v2755 = vmul.f32 %v2750, %v2754
    %2756 = vst.msk [vmem:[#allocation2 + $0x30] sm:$0xff] %vm614, %v2755
    %v2758 = vsel %vm614, %v2755, 0
    %2760 = vmatprep.subr.mxu0 0.0
    %2761 = vmatpush1.msra.mxu0 0.0
    %2762 = vmatprep.subr.mxu0 0.0
    %2763 = vmatpush1.msra.mxu0 0.0
    %2764 = vmatprep.subr.mxu0 0.0
    %2765 = vmatpush1.msra.mxu0 0.0
    %2766 = vmatprep.subr.mxu0 0.0
    %2767 = vmatpush1.msra.mxu0 0.0
    %2768 = vmatprep.subr.mxu0 0.0
    %2769 = vmatpush1.msra.mxu0 0.0
    %2770 = vmatprep.subr.mxu0 0.0
    %2771 = vmatpush1.msra.mxu0 0.0
    %2772 = vmatprep.subr.mxu0 0.0
    %2773 = vmatpush1.msra.mxu0 0.0
    %2774 = vmatprep.subr.mxu0 0.0
    %2775 = vmatpush1.msra.mxu0 0.0
    %2776 = vmatprep.subr.mxu0 0.0
    %2777 = vmatpush1.msra.mxu0 0.0
    %2778 = vmatprep.subr.mxu0 0.0
    %2779 = vmatpush1.msra.mxu0 0.0
    %2780 = vmatprep.subr.mxu0 0.0
    %2781 = vmatpush1.msra.mxu0 0.0
    %2782 = vmatprep.subr.mxu0 0.0
    %2783 = vmatpush1.msra.mxu0 0.0
    %2784 = vmatprep.subr.mxu0 0.0
    %2785 = vmatpush1.msra.mxu0 %v598
    %2786 = vmatprep.subr.mxu0 0.0
    %2787 = vmatpush1.msra.mxu0 %v597
    %2788 = vmatprep.subr.mxu0 0.0
    %2789 = vmatpush1.msra.mxu0 %v596
    %2790 = vmatprep.subr.mxu0 0.0
    %2791 = vmatpush1.msra.mxu0 %v595
    %2792 = vmatprep.subr.mxu0 0.0
    %2793 = vmatpush2.msra.mxu0 0.0
    %2794 = vmatprep.subr.mxu0 0.0
    %2795 = vmatpush2.msra.mxu0 0.0
    %2796 = vmatprep.subr.mxu0 0.0
    %2797 = vmatpush2.msra.mxu0 0.0
    %2798 = vmatprep.subr.mxu0 0.0
    %2799 = vmatpush2.msra.mxu0 0.0
    %2800 = vmatprep.subr.mxu0 0.0
    %2801 = vmatpush2.msra.mxu0 0.0
    %2802 = vmatprep.subr.mxu0 0.0
    %2803 = vmatpush2.msra.mxu0 0.0
    %2804 = vmatprep.subr.mxu0 0.0
    %2805 = vmatpush2.msra.mxu0 0.0
    %2806 = vmatprep.subr.mxu0 0.0
    %2807 = vmatpush2.msra.mxu0 0.0
    %2808 = vmatprep.subr.mxu0 0.0
    %2809 = vmatpush2.msra.mxu0 0.0
    %2810 = vmatprep.subr.mxu0 0.0
    %2811 = vmatpush2.msra.mxu0 0.0
    %2812 = vmatprep.subr.mxu0 0.0
    %2813 = vmatpush2.msra.mxu0 0.0
    %2814 = vmatprep.subr.mxu0 0.0
    %2815 = vmatpush2.msra.mxu0 0.0
    %2816 = vmatprep.subr.mxu0 0.0
    %2817 = vmatpush2.msra.mxu0 0.0
    %2818 = vmatprep.subr.mxu0 0.0
    %2819 = vmatpush2.msra.mxu0 0.0
    %2820 = vmatprep.subr.mxu0 0.0
    %2821 = vmatpush2.msra.mxu0 0.0
    %2822 = vmatprep.subr.mxu0 0.0
    %2823 = vmatpush2.msra.mxu0 0.0
    %2824 = vmatprep.mubr.f32.mxu0 0.0
    %2825 = vmatmul.mubr.f32.gmra.mxu0 %v2758
    %v2826 = vpop.f32.mrf.mxu0
    %v2827 = vadd.f32 0.0, %v2826
    %v2828 = vpop.f32.mrf.mxu0
    %2829 = vdwg.mxu0
    %v2830 = vadd.f32 %v244, %v2827
    %2831 = vmatprep.subr.mxu0 0.0
    %2832 = vmatpush1.msra.mxu0 0.0
    %2833 = vmatprep.subr.mxu0 0.0
    %2834 = vmatpush1.msra.mxu0 0.0
    %2835 = vmatprep.subr.mxu0 0.0
    %2836 = vmatpush1.msra.mxu0 0.0
    %2837 = vmatprep.subr.mxu0 0.0
    %2838 = vmatpush1.msra.mxu0 0.0
    %2839 = vmatprep.subr.mxu0 0.0
    %2840 = vmatpush1.msra.mxu0 0.0
    %2841 = vmatprep.subr.mxu0 0.0
    %2842 = vmatpush1.msra.mxu0 0.0
    %2843 = vmatprep.subr.mxu0 0.0
    %2844 = vmatpush1.msra.mxu0 0.0
    %2845 = vmatprep.subr.mxu0 0.0
    %2846 = vmatpush1.msra.mxu0 0.0
    %2847 = vmatprep.subr.mxu0 0.0
    %2848 = vmatpush1.msra.mxu0 0.0
    %2849 = vmatprep.subr.mxu0 0.0
    %2850 = vmatpush1.msra.mxu0 0.0
    %2851 = vmatprep.subr.mxu0 0.0
    %2852 = vmatpush1.msra.mxu0 0.0
    %2853 = vmatprep.subr.mxu0 0.0
    %2854 = vmatpush1.msra.mxu0 0.0
    %2855 = vmatprep.subr.mxu0 0.0
    %2856 = vmatpush1.msra.mxu0 %v603
    %2857 = vmatprep.subr.mxu0 0.0
    %2858 = vmatpush1.msra.mxu0 %v602
    %2859 = vmatprep.subr.mxu0 0.0
    %2860 = vmatpush1.msra.mxu0 %v601
    %2861 = vmatprep.subr.mxu0 0.0
    %2862 = vmatpush1.msra.mxu0 %v600
    %2863 = vmatprep.subr.mxu0 0.0
    %2864 = vmatpush2.msra.mxu0 0.0
    %2865 = vmatprep.subr.mxu0 0.0
    %2866 = vmatpush2.msra.mxu0 0.0
    %2867 = vmatprep.subr.mxu0 0.0
    %2868 = vmatpush2.msra.mxu0 0.0
    %2869 = vmatprep.subr.mxu0 0.0
    %2870 = vmatpush2.msra.mxu0 0.0
    %2871 = vmatprep.subr.mxu0 0.0
    %2872 = vmatpush2.msra.mxu0 0.0
    %2873 = vmatprep.subr.mxu0 0.0
    %2874 = vmatpush2.msra.mxu0 0.0
    %2875 = vmatprep.subr.mxu0 0.0
    %2876 = vmatpush2.msra.mxu0 0.0
    %2877 = vmatprep.subr.mxu0 0.0
    %2878 = vmatpush2.msra.mxu0 0.0
    %2879 = vmatprep.subr.mxu0 0.0
    %2880 = vmatpush2.msra.mxu0 0.0
    %2881 = vmatprep.subr.mxu0 0.0
    %2882 = vmatpush2.msra.mxu0 0.0
    %2883 = vmatprep.subr.mxu0 0.0
    %2884 = vmatpush2.msra.mxu0 0.0
    %2885 = vmatprep.subr.mxu0 0.0
    %2886 = vmatpush2.msra.mxu0 0.0
    %2887 = vmatprep.subr.mxu0 0.0
    %2888 = vmatpush2.msra.mxu0 0.0
    %2889 = vmatprep.subr.mxu0 0.0
    %2890 = vmatpush2.msra.mxu0 0.0
    %2891 = vmatprep.subr.mxu0 0.0
    %2892 = vmatpush2.msra.mxu0 0.0
    %2893 = vmatprep.subr.mxu0 0.0
    %2894 = vmatpush2.msra.mxu0 0.0
    %2895 = vmatprep.mubr.f32.mxu0 0.0
    %2896 = vmatmul.mubr.f32.gmra.mxu0 %v2758
    %v2897 = vpop.f32.mrf.mxu0
    %v2898 = vadd.f32 0.0, %v2897
    %v2899 = vpop.f32.mrf.mxu0
    %2900 = vdwg.mxu0
    %v2901 = vadd.f32 %v360, %v2898
    %2902 = vmatprep.subr.mxu0 0.0
    %2903 = vmatpush1.msra.mxu0 0.0
    %2904 = vmatprep.subr.mxu0 0.0
    %2905 = vmatpush1.msra.mxu0 0.0
    %2906 = vmatprep.subr.mxu0 0.0
    %2907 = vmatpush1.msra.mxu0 0.0
    %2908 = vmatprep.subr.mxu0 0.0
    %2909 = vmatpush1.msra.mxu0 0.0
    %2910 = vmatprep.subr.mxu0 0.0
    %2911 = vmatpush1.msra.mxu0 0.0
    %2912 = vmatprep.subr.mxu0 0.0
    %2913 = vmatpush1.msra.mxu0 0.0
    %2914 = vmatprep.subr.mxu0 0.0
    %2915 = vmatpush1.msra.mxu0 0.0
    %2916 = vmatprep.subr.mxu0 0.0
    %2917 = vmatpush1.msra.mxu0 0.0
    %2918 = vmatprep.subr.mxu0 0.0
    %2919 = vmatpush1.msra.mxu0 0.0
    %2920 = vmatprep.subr.mxu0 0.0
    %2921 = vmatpush1.msra.mxu0 0.0
    %2922 = vmatprep.subr.mxu0 0.0
    %2923 = vmatpush1.msra.mxu0 0.0
    %2924 = vmatprep.subr.mxu0 0.0
    %2925 = vmatpush1.msra.mxu0 0.0
    %2926 = vmatprep.subr.mxu0 0.0
    %2927 = vmatpush1.msra.mxu0 %v608
    %2928 = vmatprep.subr.mxu0 0.0
    %2929 = vmatpush1.msra.mxu0 %v607
    %2930 = vmatprep.subr.mxu0 0.0
    %2931 = vmatpush1.msra.mxu0 %v606
    %2932 = vmatprep.subr.mxu0 0.0
    %2933 = vmatpush1.msra.mxu0 %v605
    %2934 = vmatprep.subr.mxu0 0.0
    %2935 = vmatpush2.msra.mxu0 0.0
    %2936 = vmatprep.subr.mxu0 0.0
    %2937 = vmatpush2.msra.mxu0 0.0
    %2938 = vmatprep.subr.mxu0 0.0
    %2939 = vmatpush2.msra.mxu0 0.0
    %2940 = vmatprep.subr.mxu0 0.0
    %2941 = vmatpush2.msra.mxu0 0.0
    %2942 = vmatprep.subr.mxu0 0.0
    %2943 = vmatpush2.msra.mxu0 0.0
    %2944 = vmatprep.subr.mxu0 0.0
    %2945 = vmatpush2.msra.mxu0 0.0
    %2946 = vmatprep.subr.mxu0 0.0
    %2947 = vmatpush2.msra.mxu0 0.0
    %2948 = vmatprep.subr.mxu0 0.0
    %2949 = vmatpush2.msra.mxu0 0.0
    %2950 = vmatprep.subr.mxu0 0.0
    %2951 = vmatpush2.msra.mxu0 0.0
    %2952 = vmatprep.subr.mxu0 0.0
    %2953 = vmatpush2.msra.mxu0 0.0
    %2954 = vmatprep.subr.mxu0 0.0
    %2955 = vmatpush2.msra.mxu0 0.0
    %2956 = vmatprep.subr.mxu0 0.0
    %2957 = vmatpush2.msra.mxu0 0.0
    %2958 = vmatprep.subr.mxu0 0.0
    %2959 = vmatpush2.msra.mxu0 0.0
    %2960 = vmatprep.subr.mxu0 0.0
    %2961 = vmatpush2.msra.mxu0 0.0
    %2962 = vmatprep.subr.mxu0 0.0
    %2963 = vmatpush2.msra.mxu0 0.0
    %2964 = vmatprep.subr.mxu0 0.0
    %2965 = vmatpush2.msra.mxu0 0.0
    %2966 = vmatprep.mubr.f32.mxu0 0.0
    %2967 = vmatmul.mubr.f32.gmra.mxu0 %v2758
    %v2968 = vpop.f32.mrf.mxu0
    %v2969 = vadd.f32 0.0, %v2968
    %v2970 = vpop.f32.mrf.mxu0
    %2971 = vdwg.mxu0
    %v2972 = vadd.f32 %v476, %v2969
    %2973 = vmatprep.subr.mxu0 0.0
    %2974 = vmatpush1.msra.mxu0 0.0
    %2975 = vmatprep.subr.mxu0 0.0
    %2976 = vmatpush1.msra.mxu0 0.0
    %2977 = vmatprep.subr.mxu0 0.0
    %2978 = vmatpush1.msra.mxu0 0.0
    %2979 = vmatprep.subr.mxu0 0.0
    %2980 = vmatpush1.msra.mxu0 0.0
    %2981 = vmatprep.subr.mxu0 0.0
    %2982 = vmatpush1.msra.mxu0 0.0
    %2983 = vmatprep.subr.mxu0 0.0
    %2984 = vmatpush1.msra.mxu0 0.0
    %2985 = vmatprep.subr.mxu0 0.0
    %2986 = vmatpush1.msra.mxu0 0.0
    %2987 = vmatprep.subr.mxu0 0.0
    %2988 = vmatpush1.msra.mxu0 0.0
    %2989 = vmatprep.subr.mxu0 0.0
    %2990 = vmatpush1.msra.mxu0 0.0
    %2991 = vmatprep.subr.mxu0 0.0
    %2992 = vmatpush1.msra.mxu0 0.0
    %2993 = vmatprep.subr.mxu0 0.0
    %2994 = vmatpush1.msra.mxu0 0.0
    %2995 = vmatprep.subr.mxu0 0.0
    %2996 = vmatpush1.msra.mxu0 0.0
    %2997 = vmatprep.subr.mxu0 0.0
    %2998 = vmatpush1.msra.mxu0 %v613
    %2999 = vmatprep.subr.mxu0 0.0
    %3000 = vmatpush1.msra.mxu0 %v612
    %3001 = vmatprep.subr.mxu0 0.0
    %3002 = vmatpush1.msra.mxu0 %v611
    %3003 = vmatprep.subr.mxu0 0.0
    %3004 = vmatpush1.msra.mxu0 %v610
    %3005 = vmatprep.subr.mxu0 0.0
    %3006 = vmatpush2.msra.mxu0 0.0
    %3007 = vmatprep.subr.mxu0 0.0
    %3008 = vmatpush2.msra.mxu0 0.0
    %3009 = vmatprep.subr.mxu0 0.0
    %3010 = vmatpush2.msra.mxu0 0.0
    %3011 = vmatprep.subr.mxu0 0.0
    %3012 = vmatpush2.msra.mxu0 0.0
    %3013 = vmatprep.subr.mxu0 0.0
    %3014 = vmatpush2.msra.mxu0 0.0
    %3015 = vmatprep.subr.mxu0 0.0
    %3016 = vmatpush2.msra.mxu0 0.0
    %3017 = vmatprep.subr.mxu0 0.0
    %3018 = vmatpush2.msra.mxu0 0.0
    %3019 = vmatprep.subr.mxu0 0.0
    %3020 = vmatpush2.msra.mxu0 0.0
    %3021 = vmatprep.subr.mxu0 0.0
    %3022 = vmatpush2.msra.mxu0 0.0
    %3023 = vmatprep.subr.mxu0 0.0
    %3024 = vmatpush2.msra.mxu0 0.0
    %3025 = vmatprep.subr.mxu0 0.0
    %3026 = vmatpush2.msra.mxu0 0.0
    %3027 = vmatprep.subr.mxu0 0.0
    %3028 = vmatpush2.msra.mxu0 0.0
    %3029 = vmatprep.subr.mxu0 0.0
    %3030 = vmatpush2.msra.mxu0 0.0
    %3031 = vmatprep.subr.mxu0 0.0
    %3032 = vmatpush2.msra.mxu0 0.0
    %3033 = vmatprep.subr.mxu0 0.0
    %3034 = vmatpush2.msra.mxu0 0.0
    %3035 = vmatprep.subr.mxu0 0.0
    %3036 = vmatpush2.msra.mxu0 0.0
    %3037 = vmatprep.mubr.f32.mxu0 0.0
    %3038 = vmatmul.mubr.f32.gmra.mxu0 %v2758
    %v3039 = vpop.f32.mrf.mxu0
    %v3040 = vadd.f32 0.0, %v3039
    %v3041 = vpop.f32.mrf.mxu0
    %3042 = vdwg.mxu0
    %v3043 = vadd.f32 %v592, %v3040
    %v3044 = vmul.f32 %v2830, 0.5
    %v3045 = vtanh.pop %v3044
    %v3046 = vmul.f32 %v3045, 0.5
    %v3047 = vadd.f32 %v3046, 0.5
    %v3048 = vmul.f32 %v2901, 0.5
    %v3049 = vtanh.pop %v3048
    %v3050 = vmul.f32 %v3049, 0.5
    %v3051 = vadd.f32 %v3050, 0.5
    %v3052 = vtanh.pop %v2972
    %v3053 = vmul.f32 %v3043, 0.5
    %v3054 = vtanh.pop %v3053
    %v3055 = vmul.f32 %v3054, 0.5
    %v3056 = vadd.f32 %v3055, 0.5
    %v3057 = vmul.f32 %v3051, %v2753
    %v3058 = vmul.f32 %v3047, %v3052
    %v3059 = vadd.f32 %v3057, %v3058
    %v3060 = vtanh.pop %v3059
    %v3061 = vmul.f32 %v3056, %v3060
    %3062 = vst.msk [vmem:[#allocation2 + $0x38] sm:$0xff] %vm614, %v3061
    %v3063 = vld [vmem:[#allocation2] sm:$0xff]
    %v3064 = vld [vmem:[#allocation2 + $0x8] sm:$0xff]
    %v3065 = vld [vmem:[#allocation2 + $0x10] sm:$0xff]
    %v3066 = vld [vmem:[#allocation2 + $0x18] sm:$0xff]
    %v3067 = vld [vmem:[#allocation2 + $0x20] sm:$0xff]
    %v3068 = vld [vmem:[#allocation2 + $0x28] sm:$0xff]
    %v3069 = vld [vmem:[#allocation2 + $0x30] sm:$0xff]
    %v3070 = vld [vmem:[#allocation2 + $0x38] sm:$0xff]
    %v3071 = vld [vmem:[#allocation8] sm:$0xff]
    %v3072 = vld [vmem:[#allocation8 + $0x8] sm:$0xff]
    %v3073 = vld [vmem:[#allocation8 + $0x10] sm:$0xff]
    %v3074 = vld [vmem:[#allocation8 + $0x18] sm:$0xff]
    %v3075 = vld [vmem:[%s6] sm:$0x1]
    %v3077 = vlaneseq
    %v3078 = vshrl.u32 %v3077, 7
    %v3079 = vsub.s32 0, %v3078
    %v3080 = vrot.slane %v3075, %v3079
    %v3083 = vsel %vm614, %v3063, 0
    %v3086 = vsel %vm614, %v3064, 0
    %v3089 = vsel %vm614, %v3065, 0
    %v3092 = vsel %vm614, %v3066, 0
    %v3095 = vsel %vm614, %v3067, 0
    %v3098 = vsel %vm614, %v3068, 0
    %v3101 = vsel %vm614, %v3069, 0
    %v3104 = vsel %vm614, %v3070, 0
    %3106 = vmatprep.subr.mxu0 0.0
    %3107 = vmatpush1.msra.mxu0 0.0
    %3108 = vmatprep.subr.mxu0 0.0
    %3109 = vmatpush1.msra.mxu0 0.0
    %3110 = vmatprep.subr.mxu0 0.0
    %3111 = vmatpush1.msra.mxu0 0.0
    %3112 = vmatprep.subr.mxu0 0.0
    %3113 = vmatpush1.msra.mxu0 0.0
    %3114 = vmatprep.subr.mxu0 0.0
    %3115 = vmatpush1.msra.mxu0 0.0
    %3116 = vmatprep.subr.mxu0 0.0
    %3117 = vmatpush1.msra.mxu0 0.0
    %3118 = vmatprep.subr.mxu0 0.0
    %3119 = vmatpush1.msra.mxu0 0.0
    %3120 = vmatprep.subr.mxu0 0.0
    %3121 = vmatpush1.msra.mxu0 0.0
    %3122 = vmatprep.subr.mxu0 0.0
    %3123 = vmatpush1.msra.mxu0 0.0
    %3124 = vmatprep.subr.mxu0 0.0
    %3125 = vmatpush1.msra.mxu0 0.0
    %3126 = vmatprep.subr.mxu0 0.0
    %3127 = vmatpush1.msra.mxu0 0.0
    %3128 = vmatprep.subr.mxu0 0.0
    %3129 = vmatpush1.msra.mxu0 0.0
    %3130 = vmatprep.subr.mxu0 0.0
    %3131 = vmatpush1.msra.mxu0 %v3074
    %3132 = vmatprep.subr.mxu0 0.0
    %3133 = vmatpush1.msra.mxu0 %v3073
    %3134 = vmatprep.subr.mxu0 0.0
    %3135 = vmatpush1.msra.mxu0 %v3072
    %3136 = vmatprep.subr.mxu0 0.0
    %3137 = vmatpush1.msra.mxu0 %v3071
    %3138 = vmatprep.subr.mxu0 0.0
    %3139 = vmatpush2.msra.mxu0 0.0
    %3140 = vmatprep.subr.mxu0 0.0
    %3141 = vmatpush2.msra.mxu0 0.0
    %3142 = vmatprep.subr.mxu0 0.0
    %3143 = vmatpush2.msra.mxu0 0.0
    %3144 = vmatprep.subr.mxu0 0.0
    %3145 = vmatpush2.msra.mxu0 0.0
    %3146 = vmatprep.subr.mxu0 0.0
    %3147 = vmatpush2.msra.mxu0 0.0
    %3148 = vmatprep.subr.mxu0 0.0
    %3149 = vmatpush2.msra.mxu0 0.0
    %3150 = vmatprep.subr.mxu0 0.0
    %3151 = vmatpush2.msra.mxu0 0.0
    %3152 = vmatprep.subr.mxu0 0.0
    %3153 = vmatpush2.msra.mxu0 0.0
    %3154 = vmatprep.subr.mxu0 0.0
    %3155 = vmatpush2.msra.mxu0 0.0
    %3156 = vmatprep.subr.mxu0 0.0
    %3157 = vmatpush2.msra.mxu0 0.0
    %3158 = vmatprep.subr.mxu0 0.0
    %3159 = vmatpush2.msra.mxu0 0.0
    %3160 = vmatprep.subr.mxu0 0.0
    %3161 = vmatpush2.msra.mxu0 0.0
    %3162 = vmatprep.subr.mxu0 0.0
    %3163 = vmatpush2.msra.mxu0 0.0
    %3164 = vmatprep.subr.mxu0 0.0
    %3165 = vmatpush2.msra.mxu0 0.0
    %3166 = vmatprep.subr.mxu0 0.0
    %3167 = vmatpush2.msra.mxu0 0.0
    %3168 = vmatprep.subr.mxu0 0.0
    %3169 = vmatpush2.msra.mxu0 0.0
    %3170 = vmatprep.mubr.f32.mxu0 0.0
    %3171 = vmatmul.mubr.f32.gmra.mxu0 %v3083
    %v3172 = vpop.f32.mrf.mxu0
    %v3173 = vadd.f32 %v3080, %v3172
    %v3174 = vpop.f32.mrf.mxu0
    %3175 = vmatprep.mubr.f32.mxu0 0.0
    %3176 = vmatmul.mubr.f32.gmra.mxu0 %v3086
    %v3177 = vpop.f32.mrf.mxu0
    %v3178 = vadd.f32 %v3080, %v3177
    %v3179 = vpop.f32.mrf.mxu0
    %3180 = vmatprep.mubr.f32.mxu0 0.0
    %3181 = vmatmul.mubr.f32.gmra.mxu0 %v3089
    %v3182 = vpop.f32.mrf.mxu0
    %v3183 = vadd.f32 %v3080, %v3182
    %v3184 = vpop.f32.mrf.mxu0
    %3185 = vmatprep.mubr.f32.mxu0 0.0
    %3186 = vmatmul.mubr.f32.gmra.mxu0 %v3092
    %v3187 = vpop.f32.mrf.mxu0
    %v3188 = vadd.f32 %v3080, %v3187
    %v3189 = vpop.f32.mrf.mxu0
    %3190 = vmatprep.mubr.f32.mxu0 0.0
    %3191 = vmatmul.mubr.f32.gmra.mxu0 %v3095
    %v3192 = vpop.f32.mrf.mxu0
    %v3193 = vadd.f32 %v3080, %v3192
    %v3194 = vpop.f32.mrf.mxu0
    %3195 = vmatprep.mubr.f32.mxu0 0.0
    %3196 = vmatmul.mubr.f32.gmra.mxu0 %v3098
    %v3197 = vpop.f32.mrf.mxu0
    %v3198 = vadd.f32 %v3080, %v3197
    %v3199 = vpop.f32.mrf.mxu0
    %3200 = vmatprep.mubr.f32.mxu0 0.0
    %3201 = vmatmul.mubr.f32.gmra.mxu0 %v3101
    %v3202 = vpop.f32.mrf.mxu0
    %v3203 = vadd.f32 %v3080, %v3202
    %v3204 = vpop.f32.mrf.mxu0
    %3205 = vmatprep.mubr.f32.mxu0 0.0
    %3206 = vmatmul.mubr.f32.gmra.mxu0 %v3104
    %v3207 = vpop.f32.mrf.mxu0
    %v3208 = vadd.f32 %v3080, %v3207
    %v3209 = vpop.f32.mrf.mxu0
    %3210 = vdwg.mxu0
    %s3211 = scalar_lea.vmem [#allocation8], 32
    %v3212 = vld [vmem:[%s3211] sm:$0xff]
    %v3213 = vld [vmem:[%s3211 + $0x8] sm:$0xff]
    %v3214 = vld [vmem:[%s3211 + $0x10] sm:$0xff]
    %v3215 = vld [vmem:[%s3211 + $0x18] sm:$0xff]
    %s3216 = scalar_lea.vmem %s6, 1
    %v3217 = vld [vmem:[%s3216] sm:$0x1]
    %v3219 = vlaneseq
    %v3220 = vshrl.u32 %v3219, 7
    %v3221 = vsub.s32 0, %v3220
    %v3222 = vrot.slane %v3217, %v3221
    %3224 = vmatprep.subr.mxu0 0.0
    %3225 = vmatpush1.msra.mxu0 0.0
    %3226 = vmatprep.subr.mxu0 0.0
    %3227 = vmatpush1.msra.mxu0 0.0
    %3228 = vmatprep.subr.mxu0 0.0
    %3229 = vmatpush1.msra.mxu0 0.0
    %3230 = vmatprep.subr.mxu0 0.0
    %3231 = vmatpush1.msra.mxu0 0.0
    %3232 = vmatprep.subr.mxu0 0.0
    %3233 = vmatpush1.msra.mxu0 0.0
    %3234 = vmatprep.subr.mxu0 0.0
    %3235 = vmatpush1.msra.mxu0 0.0
    %3236 = vmatprep.subr.mxu0 0.0
    %3237 = vmatpush1.msra.mxu0 0.0
    %3238 = vmatprep.subr.mxu0 0.0
    %3239 = vmatpush1.msra.mxu0 0.0
    %3240 = vmatprep.subr.mxu0 0.0
    %3241 = vmatpush1.msra.mxu0 0.0
    %3242 = vmatprep.subr.mxu0 0.0
    %3243 = vmatpush1.msra.mxu0 0.0
    %3244 = vmatprep.subr.mxu0 0.0
    %3245 = vmatpush1.msra.mxu0 0.0
    %3246 = vmatprep.subr.mxu0 0.0
    %3247 = vmatpush1.msra.mxu0 0.0
    %3248 = vmatprep.subr.mxu0 0.0
    %3249 = vmatpush1.msra.mxu0 %v3215
    %3250 = vmatprep.subr.mxu0 0.0
    %3251 = vmatpush1.msra.mxu0 %v3214
    %3252 = vmatprep.subr.mxu0 0.0
    %3253 = vmatpush1.msra.mxu0 %v3213
    %3254 = vmatprep.subr.mxu0 0.0
    %3255 = vmatpush1.msra.mxu0 %v3212
    %3256 = vmatprep.subr.mxu0 0.0
    %3257 = vmatpush2.msra.mxu0 0.0
    %3258 = vmatprep.subr.mxu0 0.0
    %3259 = vmatpush2.msra.mxu0 0.0
    %3260 = vmatprep.subr.mxu0 0.0
    %3261 = vmatpush2.msra.mxu0 0.0
    %3262 = vmatprep.subr.mxu0 0.0
    %3263 = vmatpush2.msra.mxu0 0.0
    %3264 = vmatprep.subr.mxu0 0.0
    %3265 = vmatpush2.msra.mxu0 0.0
    %3266 = vmatprep.subr.mxu0 0.0
    %3267 = vmatpush2.msra.mxu0 0.0
    %3268 = vmatprep.subr.mxu0 0.0
    %3269 = vmatpush2.msra.mxu0 0.0
    %3270 = vmatprep.subr.mxu0 0.0
    %3271 = vmatpush2.msra.mxu0 0.0
    %3272 = vmatprep.subr.mxu0 0.0
    %3273 = vmatpush2.msra.mxu0 0.0
    %3274 = vmatprep.subr.mxu0 0.0
    %3275 = vmatpush2.msra.mxu0 0.0
    %3276 = vmatprep.subr.mxu0 0.0
    %3277 = vmatpush2.msra.mxu0 0.0
    %3278 = vmatprep.subr.mxu0 0.0
    %3279 = vmatpush2.msra.mxu0 0.0
    %3280 = vmatprep.subr.mxu0 0.0
    %3281 = vmatpush2.msra.mxu0 0.0
    %3282 = vmatprep.subr.mxu0 0.0
    %3283 = vmatpush2.msra.mxu0 0.0
    %3284 = vmatprep.subr.mxu0 0.0
    %3285 = vmatpush2.msra.mxu0 0.0
    %3286 = vmatprep.subr.mxu0 0.0
    %3287 = vmatpush2.msra.mxu0 0.0
    %3288 = vmatprep.mubr.f32.mxu0 0.0
    %3289 = vmatmul.mubr.f32.gmra.mxu0 %v3083
    %v3290 = vpop.f32.mrf.mxu0
    %v3291 = vadd.f32 %v3222, %v3290
    %v3292 = vpop.f32.mrf.mxu0
    %3293 = vmatprep.mubr.f32.mxu0 0.0
    %3294 = vmatmul.mubr.f32.gmra.mxu0 %v3086
    %v3295 = vpop.f32.mrf.mxu0
    %v3296 = vadd.f32 %v3222, %v3295
    %v3297 = vpop.f32.mrf.mxu0
    %3298 = vmatprep.mubr.f32.mxu0 0.0
    %3299 = vmatmul.mubr.f32.gmra.mxu0 %v3089
    %v3300 = vpop.f32.mrf.mxu0
    %v3301 = vadd.f32 %v3222, %v3300
    %v3302 = vpop.f32.mrf.mxu0
    %3303 = vmatprep.mubr.f32.mxu0 0.0
    %3304 = vmatmul.mubr.f32.gmra.mxu0 %v3092
    %v3305 = vpop.f32.mrf.mxu0
    %v3306 = vadd.f32 %v3222, %v3305
    %v3307 = vpop.f32.mrf.mxu0
    %3308 = vmatprep.mubr.f32.mxu0 0.0
    %3309 = vmatmul.mubr.f32.gmra.mxu0 %v3095
    %v3310 = vpop.f32.mrf.mxu0
    %v3311 = vadd.f32 %v3222, %v3310
    %v3312 = vpop.f32.mrf.mxu0
    %3313 = vmatprep.mubr.f32.mxu0 0.0
    %3314 = vmatmul.mubr.f32.gmra.mxu0 %v3098
    %v3315 = vpop.f32.mrf.mxu0
    %v3316 = vadd.f32 %v3222, %v3315
    %v3317 = vpop.f32.mrf.mxu0
    %3318 = vmatprep.mubr.f32.mxu0 0.0
    %3319 = vmatmul.mubr.f32.gmra.mxu0 %v3101
    %v3320 = vpop.f32.mrf.mxu0
    %v3321 = vadd.f32 %v3222, %v3320
    %v3322 = vpop.f32.mrf.mxu0
    %3323 = vmatprep.mubr.f32.mxu0 0.0
    %3324 = vmatmul.mubr.f32.gmra.mxu0 %v3104
    %v3325 = vpop.f32.mrf.mxu0
    %v3326 = vadd.f32 %v3222, %v3325
    %v3327 = vpop.f32.mrf.mxu0
    %3328 = vdwg.mxu0
    %s3329 = scalar_lea.vmem [#allocation8], 64
    %v3330 = vld [vmem:[%s3329] sm:$0xff]
    %v3331 = vld [vmem:[%s3329 + $0x8] sm:$0xff]
    %v3332 = vld [vmem:[%s3329 + $0x10] sm:$0xff]
    %v3333 = vld [vmem:[%s3329 + $0x18] sm:$0xff]
    %s3334 = scalar_lea.vmem %s6, 2
    %v3335 = vld [vmem:[%s3334] sm:$0x1]
    %v3337 = vlaneseq
    %v3338 = vshrl.u32 %v3337, 7
    %v3339 = vsub.s32 0, %v3338
    %v3340 = vrot.slane %v3335, %v3339
    %3342 = vmatprep.subr.mxu0 0.0
    %3343 = vmatpush1.msra.mxu0 0.0
    %3344 = vmatprep.subr.mxu0 0.0
    %3345 = vmatpush1.msra.mxu0 0.0
    %3346 = vmatprep.subr.mxu0 0.0
    %3347 = vmatpush1.msra.mxu0 0.0
    %3348 = vmatprep.subr.mxu0 0.0
    %3349 = vmatpush1.msra.mxu0 0.0
    %3350 = vmatprep.subr.mxu0 0.0
    %3351 = vmatpush1.msra.mxu0 0.0
    %3352 = vmatprep.subr.mxu0 0.0
    %3353 = vmatpush1.msra.mxu0 0.0
    %3354 = vmatprep.subr.mxu0 0.0
    %3355 = vmatpush1.msra.mxu0 0.0
    %3356 = vmatprep.subr.mxu0 0.0
    %3357 = vmatpush1.msra.mxu0 0.0
    %3358 = vmatprep.subr.mxu0 0.0
    %3359 = vmatpush1.msra.mxu0 0.0
    %3360 = vmatprep.subr.mxu0 0.0
    %3361 = vmatpush1.msra.mxu0 0.0
    %3362 = vmatprep.subr.mxu0 0.0
    %3363 = vmatpush1.msra.mxu0 0.0
    %3364 = vmatprep.subr.mxu0 0.0
    %3365 = vmatpush1.msra.mxu0 0.0
    %3366 = vmatprep.subr.mxu0 0.0
    %3367 = vmatpush1.msra.mxu0 %v3333
    %3368 = vmatprep.subr.mxu0 0.0
    %3369 = vmatpush1.msra.mxu0 %v3332
    %3370 = vmatprep.subr.mxu0 0.0
    %3371 = vmatpush1.msra.mxu0 %v3331
    %3372 = vmatprep.subr.mxu0 0.0
    %3373 = vmatpush1.msra.mxu0 %v3330
    %3374 = vmatprep.subr.mxu0 0.0
    %3375 = vmatpush2.msra.mxu0 0.0
    %3376 = vmatprep.subr.mxu0 0.0
    %3377 = vmatpush2.msra.mxu0 0.0
    %3378 = vmatprep.subr.mxu0 0.0
    %3379 = vmatpush2.msra.mxu0 0.0
    %3380 = vmatprep.subr.mxu0 0.0
    %3381 = vmatpush2.msra.mxu0 0.0
    %3382 = vmatprep.subr.mxu0 0.0
    %3383 = vmatpush2.msra.mxu0 0.0
    %3384 = vmatprep.subr.mxu0 0.0
    %3385 = vmatpush2.msra.mxu0 0.0
    %3386 = vmatprep.subr.mxu0 0.0
    %3387 = vmatpush2.msra.mxu0 0.0
    %3388 = vmatprep.subr.mxu0 0.0
    %3389 = vmatpush2.msra.mxu0 0.0
    %3390 = vmatprep.subr.mxu0 0.0
    %3391 = vmatpush2.msra.mxu0 0.0
    %3392 = vmatprep.subr.mxu0 0.0
    %3393 = vmatpush2.msra.mxu0 0.0
    %3394 = vmatprep.subr.mxu0 0.0
    %3395 = vmatpush2.msra.mxu0 0.0
    %3396 = vmatprep.subr.mxu0 0.0
    %3397 = vmatpush2.msra.mxu0 0.0
    %3398 = vmatprep.subr.mxu0 0.0
    %3399 = vmatpush2.msra.mxu0 0.0
    %3400 = vmatprep.subr.mxu0 0.0
    %3401 = vmatpush2.msra.mxu0 0.0
    %3402 = vmatprep.subr.mxu0 0.0
    %3403 = vmatpush2.msra.mxu0 0.0
    %3404 = vmatprep.subr.mxu0 0.0
    %3405 = vmatpush2.msra.mxu0 0.0
    %3406 = vmatprep.mubr.f32.mxu0 0.0
    %3407 = vmatmul.mubr.f32.gmra.mxu0 %v3083
    %v3408 = vpop.f32.mrf.mxu0
    %v3409 = vadd.f32 %v3340, %v3408
    %v3410 = vpop.f32.mrf.mxu0
    %3411 = vmatprep.mubr.f32.mxu0 0.0
    %3412 = vmatmul.mubr.f32.gmra.mxu0 %v3086
    %v3413 = vpop.f32.mrf.mxu0
    %v3414 = vadd.f32 %v3340, %v3413
    %v3415 = vpop.f32.mrf.mxu0
    %3416 = vmatprep.mubr.f32.mxu0 0.0
    %3417 = vmatmul.mubr.f32.gmra.mxu0 %v3089
    %v3418 = vpop.f32.mrf.mxu0
    %v3419 = vadd.f32 %v3340, %v3418
    %v3420 = vpop.f32.mrf.mxu0
    %3421 = vmatprep.mubr.f32.mxu0 0.0
    %3422 = vmatmul.mubr.f32.gmra.mxu0 %v3092
    %v3423 = vpop.f32.mrf.mxu0
    %v3424 = vadd.f32 %v3340, %v3423
    %v3425 = vpop.f32.mrf.mxu0
    %3426 = vmatprep.mubr.f32.mxu0 0.0
    %3427 = vmatmul.mubr.f32.gmra.mxu0 %v3095
    %v3428 = vpop.f32.mrf.mxu0
    %v3429 = vadd.f32 %v3340, %v3428
    %v3430 = vpop.f32.mrf.mxu0
    %3431 = vmatprep.mubr.f32.mxu0 0.0
    %3432 = vmatmul.mubr.f32.gmra.mxu0 %v3098
    %v3433 = vpop.f32.mrf.mxu0
    %v3434 = vadd.f32 %v3340, %v3433
    %v3435 = vpop.f32.mrf.mxu0
    %3436 = vmatprep.mubr.f32.mxu0 0.0
    %3437 = vmatmul.mubr.f32.gmra.mxu0 %v3101
    %v3438 = vpop.f32.mrf.mxu0
    %v3439 = vadd.f32 %v3340, %v3438
    %v3440 = vpop.f32.mrf.mxu0
    %3441 = vmatprep.mubr.f32.mxu0 0.0
    %3442 = vmatmul.mubr.f32.gmra.mxu0 %v3104
    %v3443 = vpop.f32.mrf.mxu0
    %v3444 = vadd.f32 %v3340, %v3443
    %v3445 = vpop.f32.mrf.mxu0
    %3446 = vdwg.mxu0
    %s3447 = scalar_lea.vmem [#allocation8], 96
    %v3448 = vld [vmem:[%s3447] sm:$0xff]
    %v3449 = vld [vmem:[%s3447 + $0x8] sm:$0xff]
    %v3450 = vld [vmem:[%s3447 + $0x10] sm:$0xff]
    %v3451 = vld [vmem:[%s3447 + $0x18] sm:$0xff]
    %s3452 = scalar_lea.vmem %s6, 3
    %v3453 = vld [vmem:[%s3452] sm:$0x1]
    %v3455 = vlaneseq
    %v3456 = vshrl.u32 %v3455, 7
    %v3457 = vsub.s32 0, %v3456
    %v3458 = vrot.slane %v3453, %v3457
    %3460 = vmatprep.subr.mxu0 0.0
    %3461 = vmatpush1.msra.mxu0 0.0
    %3462 = vmatprep.subr.mxu0 0.0
    %3463 = vmatpush1.msra.mxu0 0.0
    %3464 = vmatprep.subr.mxu0 0.0
    %3465 = vmatpush1.msra.mxu0 0.0
    %3466 = vmatprep.subr.mxu0 0.0
    %3467 = vmatpush1.msra.mxu0 0.0
    %3468 = vmatprep.subr.mxu0 0.0
    %3469 = vmatpush1.msra.mxu0 0.0
    %3470 = vmatprep.subr.mxu0 0.0
    %3471 = vmatpush1.msra.mxu0 0.0
    %3472 = vmatprep.subr.mxu0 0.0
    %3473 = vmatpush1.msra.mxu0 0.0
    %3474 = vmatprep.subr.mxu0 0.0
    %3475 = vmatpush1.msra.mxu0 0.0
    %3476 = vmatprep.subr.mxu0 0.0
    %3477 = vmatpush1.msra.mxu0 0.0
    %3478 = vmatprep.subr.mxu0 0.0
    %3479 = vmatpush1.msra.mxu0 0.0
    %3480 = vmatprep.subr.mxu0 0.0
    %3481 = vmatpush1.msra.mxu0 0.0
    %3482 = vmatprep.subr.mxu0 0.0
    %3483 = vmatpush1.msra.mxu0 0.0
    %3484 = vmatprep.subr.mxu0 0.0
    %3485 = vmatpush1.msra.mxu0 %v3451
    %3486 = vmatprep.subr.mxu0 0.0
    %3487 = vmatpush1.msra.mxu0 %v3450
    %3488 = vmatprep.subr.mxu0 0.0
    %3489 = vmatpush1.msra.mxu0 %v3449
    %3490 = vmatprep.subr.mxu0 0.0
    %3491 = vmatpush1.msra.mxu0 %v3448
    %3492 = vmatprep.subr.mxu0 0.0
    %3493 = vmatpush2.msra.mxu0 0.0
    %3494 = vmatprep.subr.mxu0 0.0
    %3495 = vmatpush2.msra.mxu0 0.0
    %3496 = vmatprep.subr.mxu0 0.0
    %3497 = vmatpush2.msra.mxu0 0.0
    %3498 = vmatprep.subr.mxu0 0.0
    %3499 = vmatpush2.msra.mxu0 0.0
    %3500 = vmatprep.subr.mxu0 0.0
    %3501 = vmatpush2.msra.mxu0 0.0
    %3502 = vmatprep.subr.mxu0 0.0
    %3503 = vmatpush2.msra.mxu0 0.0
    %3504 = vmatprep.subr.mxu0 0.0
    %3505 = vmatpush2.msra.mxu0 0.0
    %3506 = vmatprep.subr.mxu0 0.0
    %3507 = vmatpush2.msra.mxu0 0.0
    %3508 = vmatprep.subr.mxu0 0.0
    %3509 = vmatpush2.msra.mxu0 0.0
    %3510 = vmatprep.subr.mxu0 0.0
    %3511 = vmatpush2.msra.mxu0 0.0
    %3512 = vmatprep.subr.mxu0 0.0
    %3513 = vmatpush2.msra.mxu0 0.0
    %3514 = vmatprep.subr.mxu0 0.0
    %3515 = vmatpush2.msra.mxu0 0.0
    %3516 = vmatprep.subr.mxu0 0.0
    %3517 = vmatpush2.msra.mxu0 0.0
    %3518 = vmatprep.subr.mxu0 0.0
    %3519 = vmatpush2.msra.mxu0 0.0
    %3520 = vmatprep.subr.mxu0 0.0
    %3521 = vmatpush2.msra.mxu0 0.0
    %3522 = vmatprep.subr.mxu0 0.0
    %3523 = vmatpush2.msra.mxu0 0.0
    %3524 = vmatprep.mubr.f32.mxu0 0.0
    %3525 = vmatmul.mubr.f32.gmra.mxu0 %v3083
    %v3526 = vpop.f32.mrf.mxu0
    %v3527 = vadd.f32 %v3458, %v3526
    %v3528 = vpop.f32.mrf.mxu0
    %3529 = vmatprep.mubr.f32.mxu0 0.0
    %3530 = vmatmul.mubr.f32.gmra.mxu0 %v3086
    %v3531 = vpop.f32.mrf.mxu0
    %v3532 = vadd.f32 %v3458, %v3531
    %v3533 = vpop.f32.mrf.mxu0
    %3534 = vmatprep.mubr.f32.mxu0 0.0
    %3535 = vmatmul.mubr.f32.gmra.mxu0 %v3089
    %v3536 = vpop.f32.mrf.mxu0
    %v3537 = vadd.f32 %v3458, %v3536
    %v3538 = vpop.f32.mrf.mxu0
    %3539 = vmatprep.mubr.f32.mxu0 0.0
    %3540 = vmatmul.mubr.f32.gmra.mxu0 %v3092
    %v3541 = vpop.f32.mrf.mxu0
    %v3542 = vadd.f32 %v3458, %v3541
    %v3543 = vpop.f32.mrf.mxu0
    %3544 = vmatprep.mubr.f32.mxu0 0.0
    %3545 = vmatmul.mubr.f32.gmra.mxu0 %v3095
    %v3546 = vpop.f32.mrf.mxu0
    %v3547 = vadd.f32 %v3458, %v3546
    %v3548 = vpop.f32.mrf.mxu0
    %3549 = vmatprep.mubr.f32.mxu0 0.0
    %3550 = vmatmul.mubr.f32.gmra.mxu0 %v3098
    %v3551 = vpop.f32.mrf.mxu0
    %v3552 = vadd.f32 %v3458, %v3551
    %v3553 = vpop.f32.mrf.mxu0
    %3554 = vmatprep.mubr.f32.mxu0 0.0
    %3555 = vmatmul.mubr.f32.gmra.mxu0 %v3101
    %v3556 = vpop.f32.mrf.mxu0
    %v3557 = vadd.f32 %v3458, %v3556
    %v3558 = vpop.f32.mrf.mxu0
    %3559 = vmatprep.mubr.f32.mxu0 0.0
    %3560 = vmatmul.mubr.f32.gmra.mxu0 %v3104
    %v3561 = vpop.f32.mrf.mxu0
    %v3562 = vadd.f32 %v3458, %v3561
    %v3563 = vpop.f32.mrf.mxu0
    %3564 = vdwg.mxu0
    %v3565 = vld [vmem:[#allocation10] sm:$0xff]
    %v3566 = vld [vmem:[#allocation10 + $0x8] sm:$0xff]
    %v3567 = vld [vmem:[#allocation10 + $0x10] sm:$0xff]
    %v3568 = vld [vmem:[#allocation10 + $0x18] sm:$0xff]
    %s3569 = scalar_lea.vmem [#allocation10], 32
    %v3570 = vld [vmem:[%s3569] sm:$0xff]
    %v3571 = vld [vmem:[%s3569 + $0x8] sm:$0xff]
    %v3572 = vld [vmem:[%s3569 + $0x10] sm:$0xff]
    %v3573 = vld [vmem:[%s3569 + $0x18] sm:$0xff]
    %s3574 = scalar_lea.vmem [#allocation10], 64
    %v3575 = vld [vmem:[%s3574] sm:$0xff]
    %v3576 = vld [vmem:[%s3574 + $0x8] sm:$0xff]
    %v3577 = vld [vmem:[%s3574 + $0x10] sm:$0xff]
    %v3578 = vld [vmem:[%s3574 + $0x18] sm:$0xff]
    %s3579 = scalar_lea.vmem [#allocation10], 96
    %v3580 = vld [vmem:[%s3579] sm:$0xff]
    %v3581 = vld [vmem:[%s3579 + $0x8] sm:$0xff]
    %v3582 = vld [vmem:[%s3579 + $0x10] sm:$0xff]
    %v3583 = vld [vmem:[%s3579 + $0x18] sm:$0xff]
    %3584 = vmatprep.subr.mxu0 0.0
    %3585 = vmatpush1.msra.mxu0 0.0
    %3586 = vmatprep.subr.mxu0 0.0
    %3587 = vmatpush1.msra.mxu0 0.0
    %3588 = vmatprep.subr.mxu0 0.0
    %3589 = vmatpush1.msra.mxu0 0.0
    %3590 = vmatprep.subr.mxu0 0.0
    %3591 = vmatpush1.msra.mxu0 0.0
    %3592 = vmatprep.subr.mxu0 0.0
    %3593 = vmatpush1.msra.mxu0 0.0
    %3594 = vmatprep.subr.mxu0 0.0
    %3595 = vmatpush1.msra.mxu0 0.0
    %3596 = vmatprep.subr.mxu0 0.0
    %3597 = vmatpush1.msra.mxu0 0.0
    %3598 = vmatprep.subr.mxu0 0.0
    %3599 = vmatpush1.msra.mxu0 0.0
    %3600 = vmatprep.subr.mxu0 0.0
    %3601 = vmatpush1.msra.mxu0 0.0
    %3602 = vmatprep.subr.mxu0 0.0
    %3603 = vmatpush1.msra.mxu0 0.0
    %3604 = vmatprep.subr.mxu0 0.0
    %3605 = vmatpush1.msra.mxu0 0.0
    %3606 = vmatprep.subr.mxu0 0.0
    %3607 = vmatpush1.msra.mxu0 0.0
    %3608 = vmatprep.subr.mxu0 0.0
    %3609 = vmatpush1.msra.mxu0 %v3568
    %3610 = vmatprep.subr.mxu0 0.0
    %3611 = vmatpush1.msra.mxu0 %v3567
    %3612 = vmatprep.subr.mxu0 0.0
    %3613 = vmatpush1.msra.mxu0 %v3566
    %3614 = vmatprep.subr.mxu0 0.0
    %3615 = vmatpush1.msra.mxu0 %v3565
    %3616 = vmatprep.subr.mxu0 0.0
    %3617 = vmatpush2.msra.mxu0 0.0
    %3618 = vmatprep.subr.mxu0 0.0
    %3619 = vmatpush2.msra.mxu0 0.0
    %3620 = vmatprep.subr.mxu0 0.0
    %3621 = vmatpush2.msra.mxu0 0.0
    %3622 = vmatprep.subr.mxu0 0.0
    %3623 = vmatpush2.msra.mxu0 0.0
    %3624 = vmatprep.subr.mxu0 0.0
    %3625 = vmatpush2.msra.mxu0 0.0
    %3626 = vmatprep.subr.mxu0 0.0
    %3627 = vmatpush2.msra.mxu0 0.0
    %3628 = vmatprep.subr.mxu0 0.0
    %3629 = vmatpush2.msra.mxu0 0.0
    %3630 = vmatprep.subr.mxu0 0.0
    %3631 = vmatpush2.msra.mxu0 0.0
    %3632 = vmatprep.subr.mxu0 0.0
    %3633 = vmatpush2.msra.mxu0 0.0
    %3634 = vmatprep.subr.mxu0 0.0
    %3635 = vmatpush2.msra.mxu0 0.0
    %3636 = vmatprep.subr.mxu0 0.0
    %3637 = vmatpush2.msra.mxu0 0.0
    %3638 = vmatprep.subr.mxu0 0.0
    %3639 = vmatpush2.msra.mxu0 0.0
    %3640 = vmatprep.subr.mxu0 0.0
    %3641 = vmatpush2.msra.mxu0 0.0
    %3642 = vmatprep.subr.mxu0 0.0
    %3643 = vmatpush2.msra.mxu0 0.0
    %3644 = vmatprep.subr.mxu0 0.0
    %3645 = vmatpush2.msra.mxu0 0.0
    %3646 = vmatprep.subr.mxu0 0.0
    %3647 = vmatpush2.msra.mxu0 0.0
    %3648 = vmatprep.mubr.f32.mxu0 0.0
    %3649 = vmatmul.mubr.f32.gmra.mxu0 %v616
    %v3650 = vpop.f32.mrf.mxu0
    %v3651 = vadd.f32 0.0, %v3650
    %v3652 = vpop.f32.mrf.mxu0
    %3653 = vdwg.mxu0
    %v3654 = vadd.f32 %v3173, %v3651
    %3655 = vmatprep.subr.mxu0 0.0
    %3656 = vmatpush1.msra.mxu0 0.0
    %3657 = vmatprep.subr.mxu0 0.0
    %3658 = vmatpush1.msra.mxu0 0.0
    %3659 = vmatprep.subr.mxu0 0.0
    %3660 = vmatpush1.msra.mxu0 0.0
    %3661 = vmatprep.subr.mxu0 0.0
    %3662 = vmatpush1.msra.mxu0 0.0
    %3663 = vmatprep.subr.mxu0 0.0
    %3664 = vmatpush1.msra.mxu0 0.0
    %3665 = vmatprep.subr.mxu0 0.0
    %3666 = vmatpush1.msra.mxu0 0.0
    %3667 = vmatprep.subr.mxu0 0.0
    %3668 = vmatpush1.msra.mxu0 0.0
    %3669 = vmatprep.subr.mxu0 0.0
    %3670 = vmatpush1.msra.mxu0 0.0
    %3671 = vmatprep.subr.mxu0 0.0
    %3672 = vmatpush1.msra.mxu0 0.0
    %3673 = vmatprep.subr.mxu0 0.0
    %3674 = vmatpush1.msra.mxu0 0.0
    %3675 = vmatprep.subr.mxu0 0.0
    %3676 = vmatpush1.msra.mxu0 0.0
    %3677 = vmatprep.subr.mxu0 0.0
    %3678 = vmatpush1.msra.mxu0 0.0
    %3679 = vmatprep.subr.mxu0 0.0
    %3680 = vmatpush1.msra.mxu0 %v3573
    %3681 = vmatprep.subr.mxu0 0.0
    %3682 = vmatpush1.msra.mxu0 %v3572
    %3683 = vmatprep.subr.mxu0 0.0
    %3684 = vmatpush1.msra.mxu0 %v3571
    %3685 = vmatprep.subr.mxu0 0.0
    %3686 = vmatpush1.msra.mxu0 %v3570
    %3687 = vmatprep.subr.mxu0 0.0
    %3688 = vmatpush2.msra.mxu0 0.0
    %3689 = vmatprep.subr.mxu0 0.0
    %3690 = vmatpush2.msra.mxu0 0.0
    %3691 = vmatprep.subr.mxu0 0.0
    %3692 = vmatpush2.msra.mxu0 0.0
    %3693 = vmatprep.subr.mxu0 0.0
    %3694 = vmatpush2.msra.mxu0 0.0
    %3695 = vmatprep.subr.mxu0 0.0
    %3696 = vmatpush2.msra.mxu0 0.0
    %3697 = vmatprep.subr.mxu0 0.0
    %3698 = vmatpush2.msra.mxu0 0.0
    %3699 = vmatprep.subr.mxu0 0.0
    %3700 = vmatpush2.msra.mxu0 0.0
    %3701 = vmatprep.subr.mxu0 0.0
    %3702 = vmatpush2.msra.mxu0 0.0
    %3703 = vmatprep.subr.mxu0 0.0
    %3704 = vmatpush2.msra.mxu0 0.0
    %3705 = vmatprep.subr.mxu0 0.0
    %3706 = vmatpush2.msra.mxu0 0.0
    %3707 = vmatprep.subr.mxu0 0.0
    %3708 = vmatpush2.msra.mxu0 0.0
    %3709 = vmatprep.subr.mxu0 0.0
    %3710 = vmatpush2.msra.mxu0 0.0
    %3711 = vmatprep.subr.mxu0 0.0
    %3712 = vmatpush2.msra.mxu0 0.0
    %3713 = vmatprep.subr.mxu0 0.0
    %3714 = vmatpush2.msra.mxu0 0.0
    %3715 = vmatprep.subr.mxu0 0.0
    %3716 = vmatpush2.msra.mxu0 0.0
    %3717 = vmatprep.subr.mxu0 0.0
    %3718 = vmatpush2.msra.mxu0 0.0
    %3719 = vmatprep.mubr.f32.mxu0 0.0
    %3720 = vmatmul.mubr.f32.gmra.mxu0 %v616
    %v3721 = vpop.f32.mrf.mxu0
    %v3722 = vadd.f32 0.0, %v3721
    %v3723 = vpop.f32.mrf.mxu0
    %3724 = vdwg.mxu0
    %v3725 = vadd.f32 %v3291, %v3722
    %3726 = vmatprep.subr.mxu0 0.0
    %3727 = vmatpush1.msra.mxu0 0.0
    %3728 = vmatprep.subr.mxu0 0.0
    %3729 = vmatpush1.msra.mxu0 0.0
    %3730 = vmatprep.subr.mxu0 0.0
    %3731 = vmatpush1.msra.mxu0 0.0
    %3732 = vmatprep.subr.mxu0 0.0
    %3733 = vmatpush1.msra.mxu0 0.0
    %3734 = vmatprep.subr.mxu0 0.0
    %3735 = vmatpush1.msra.mxu0 0.0
    %3736 = vmatprep.subr.mxu0 0.0
    %3737 = vmatpush1.msra.mxu0 0.0
    %3738 = vmatprep.subr.mxu0 0.0
    %3739 = vmatpush1.msra.mxu0 0.0
    %3740 = vmatprep.subr.mxu0 0.0
    %3741 = vmatpush1.msra.mxu0 0.0
    %3742 = vmatprep.subr.mxu0 0.0
    %3743 = vmatpush1.msra.mxu0 0.0
    %3744 = vmatprep.subr.mxu0 0.0
    %3745 = vmatpush1.msra.mxu0 0.0
    %3746 = vmatprep.subr.mxu0 0.0
    %3747 = vmatpush1.msra.mxu0 0.0
    %3748 = vmatprep.subr.mxu0 0.0
    %3749 = vmatpush1.msra.mxu0 0.0
    %3750 = vmatprep.subr.mxu0 0.0
    %3751 = vmatpush1.msra.mxu0 %v3578
    %3752 = vmatprep.subr.mxu0 0.0
    %3753 = vmatpush1.msra.mxu0 %v3577
    %3754 = vmatprep.subr.mxu0 0.0
    %3755 = vmatpush1.msra.mxu0 %v3576
    %3756 = vmatprep.subr.mxu0 0.0
    %3757 = vmatpush1.msra.mxu0 %v3575
    %3758 = vmatprep.subr.mxu0 0.0
    %3759 = vmatpush2.msra.mxu0 0.0
    %3760 = vmatprep.subr.mxu0 0.0
    %3761 = vmatpush2.msra.mxu0 0.0
    %3762 = vmatprep.subr.mxu0 0.0
    %3763 = vmatpush2.msra.mxu0 0.0
    %3764 = vmatprep.subr.mxu0 0.0
    %3765 = vmatpush2.msra.mxu0 0.0
    %3766 = vmatprep.subr.mxu0 0.0
    %3767 = vmatpush2.msra.mxu0 0.0
    %3768 = vmatprep.subr.mxu0 0.0
    %3769 = vmatpush2.msra.mxu0 0.0
    %3770 = vmatprep.subr.mxu0 0.0
    %3771 = vmatpush2.msra.mxu0 0.0
    %3772 = vmatprep.subr.mxu0 0.0
    %3773 = vmatpush2.msra.mxu0 0.0
    %3774 = vmatprep.subr.mxu0 0.0
    %3775 = vmatpush2.msra.mxu0 0.0
    %3776 = vmatprep.subr.mxu0 0.0
    %3777 = vmatpush2.msra.mxu0 0.0
    %3778 = vmatprep.subr.mxu0 0.0
    %3779 = vmatpush2.msra.mxu0 0.0
    %3780 = vmatprep.subr.mxu0 0.0
    %3781 = vmatpush2.msra.mxu0 0.0
    %3782 = vmatprep.subr.mxu0 0.0
    %3783 = vmatpush2.msra.mxu0 0.0
    %3784 = vmatprep.subr.mxu0 0.0
    %3785 = vmatpush2.msra.mxu0 0.0
    %3786 = vmatprep.subr.mxu0 0.0
    %3787 = vmatpush2.msra.mxu0 0.0
    %3788 = vmatprep.subr.mxu0 0.0
    %3789 = vmatpush2.msra.mxu0 0.0
    %3790 = vmatprep.mubr.f32.mxu0 0.0
    %3791 = vmatmul.mubr.f32.gmra.mxu0 %v616
    %v3792 = vpop.f32.mrf.mxu0
    %v3793 = vadd.f32 0.0, %v3792
    %v3794 = vpop.f32.mrf.mxu0
    %3795 = vdwg.mxu0
    %v3796 = vadd.f32 %v3409, %v3793
    %3797 = vmatprep.subr.mxu0 0.0
    %3798 = vmatpush1.msra.mxu0 0.0
    %3799 = vmatprep.subr.mxu0 0.0
    %3800 = vmatpush1.msra.mxu0 0.0
    %3801 = vmatprep.subr.mxu0 0.0
    %3802 = vmatpush1.msra.mxu0 0.0
    %3803 = vmatprep.subr.mxu0 0.0
    %3804 = vmatpush1.msra.mxu0 0.0
    %3805 = vmatprep.subr.mxu0 0.0
    %3806 = vmatpush1.msra.mxu0 0.0
    %3807 = vmatprep.subr.mxu0 0.0
    %3808 = vmatpush1.msra.mxu0 0.0
    %3809 = vmatprep.subr.mxu0 0.0
    %3810 = vmatpush1.msra.mxu0 0.0
    %3811 = vmatprep.subr.mxu0 0.0
    %3812 = vmatpush1.msra.mxu0 0.0
    %3813 = vmatprep.subr.mxu0 0.0
    %3814 = vmatpush1.msra.mxu0 0.0
    %3815 = vmatprep.subr.mxu0 0.0
    %3816 = vmatpush1.msra.mxu0 0.0
    %3817 = vmatprep.subr.mxu0 0.0
    %3818 = vmatpush1.msra.mxu0 0.0
    %3819 = vmatprep.subr.mxu0 0.0
    %3820 = vmatpush1.msra.mxu0 0.0
    %3821 = vmatprep.subr.mxu0 0.0
    %3822 = vmatpush1.msra.mxu0 %v3583
    %3823 = vmatprep.subr.mxu0 0.0
    %3824 = vmatpush1.msra.mxu0 %v3582
    %3825 = vmatprep.subr.mxu0 0.0
    %3826 = vmatpush1.msra.mxu0 %v3581
    %3827 = vmatprep.subr.mxu0 0.0
    %3828 = vmatpush1.msra.mxu0 %v3580
    %3829 = vmatprep.subr.mxu0 0.0
    %3830 = vmatpush2.msra.mxu0 0.0
    %3831 = vmatprep.subr.mxu0 0.0
    %3832 = vmatpush2.msra.mxu0 0.0
    %3833 = vmatprep.subr.mxu0 0.0
    %3834 = vmatpush2.msra.mxu0 0.0
    %3835 = vmatprep.subr.mxu0 0.0
    %3836 = vmatpush2.msra.mxu0 0.0
    %3837 = vmatprep.subr.mxu0 0.0
    %3838 = vmatpush2.msra.mxu0 0.0
    %3839 = vmatprep.subr.mxu0 0.0
    %3840 = vmatpush2.msra.mxu0 0.0
    %3841 = vmatprep.subr.mxu0 0.0
    %3842 = vmatpush2.msra.mxu0 0.0
    %3843 = vmatprep.subr.mxu0 0.0
    %3844 = vmatpush2.msra.mxu0 0.0
    %3845 = vmatprep.subr.mxu0 0.0
    %3846 = vmatpush2.msra.mxu0 0.0
    %3847 = vmatprep.subr.mxu0 0.0
    %3848 = vmatpush2.msra.mxu0 0.0
    %3849 = vmatprep.subr.mxu0 0.0
    %3850 = vmatpush2.msra.mxu0 0.0
    %3851 = vmatprep.subr.mxu0 0.0
    %3852 = vmatpush2.msra.mxu0 0.0
    %3853 = vmatprep.subr.mxu0 0.0
    %3854 = vmatpush2.msra.mxu0 0.0
    %3855 = vmatprep.subr.mxu0 0.0
    %3856 = vmatpush2.msra.mxu0 0.0
    %3857 = vmatprep.subr.mxu0 0.0
    %3858 = vmatpush2.msra.mxu0 0.0
    %3859 = vmatprep.subr.mxu0 0.0
    %3860 = vmatpush2.msra.mxu0 0.0
    %3861 = vmatprep.mubr.f32.mxu0 0.0
    %3862 = vmatmul.mubr.f32.gmra.mxu0 %v616
    %v3863 = vpop.f32.mrf.mxu0
    %v3864 = vadd.f32 0.0, %v3863
    %v3865 = vpop.f32.mrf.mxu0
    %3866 = vdwg.mxu0
    %v3867 = vadd.f32 %v3527, %v3864
    %v3868 = vmul.f32 %v3654, 0.5
    %v3869 = vtanh.pop %v3868
    %v3870 = vmul.f32 %v3869, 0.5
    %v3871 = vadd.f32 %v3870, 0.5
    %v3872 = vmul.f32 %v3725, 0.5
    %v3873 = vtanh.pop %v3872
    %v3874 = vmul.f32 %v3873, 0.5
    %v3875 = vadd.f32 %v3874, 0.5
    %v3876 = vtanh.pop %v3796
    %v3877 = vmul.f32 %v3867, 0.5
    %v3878 = vtanh.pop %v3877
    %v3879 = vmul.f32 %v3878, 0.5
    %v3880 = vadd.f32 %v3879, 0.5
    %v3881 = vmul.f32 %v3875, 0.0
    %v3882 = vmul.f32 %v3871, %v3876
    %v3883 = vadd.f32 %v3881, %v3882
    %v3884 = vtanh.pop %v3883
    %v3885 = vmul.f32 %v3880, %v3884
    %v3887 = vsel %vm614, %v3885, 0
    %3889 = vmatprep.subr.mxu0 0.0
    %3890 = vmatpush1.msra.mxu0 0.0
    %3891 = vmatprep.subr.mxu0 0.0
    %3892 = vmatpush1.msra.mxu0 0.0
    %3893 = vmatprep.subr.mxu0 0.0
    %3894 = vmatpush1.msra.mxu0 0.0
    %3895 = vmatprep.subr.mxu0 0.0
    %3896 = vmatpush1.msra.mxu0 0.0
    %3897 = vmatprep.subr.mxu0 0.0
    %3898 = vmatpush1.msra.mxu0 0.0
    %3899 = vmatprep.subr.mxu0 0.0
    %3900 = vmatpush1.msra.mxu0 0.0
    %3901 = vmatprep.subr.mxu0 0.0
    %3902 = vmatpush1.msra.mxu0 0.0
    %3903 = vmatprep.subr.mxu0 0.0
    %3904 = vmatpush1.msra.mxu0 0.0
    %3905 = vmatprep.subr.mxu0 0.0
    %3906 = vmatpush1.msra.mxu0 0.0
    %3907 = vmatprep.subr.mxu0 0.0
    %3908 = vmatpush1.msra.mxu0 0.0
    %3909 = vmatprep.subr.mxu0 0.0
    %3910 = vmatpush1.msra.mxu0 0.0
    %3911 = vmatprep.subr.mxu0 0.0
    %3912 = vmatpush1.msra.mxu0 0.0
    %3913 = vmatprep.subr.mxu0 0.0
    %3914 = vmatpush1.msra.mxu0 %v3568
    %3915 = vmatprep.subr.mxu0 0.0
    %3916 = vmatpush1.msra.mxu0 %v3567
    %3917 = vmatprep.subr.mxu0 0.0
    %3918 = vmatpush1.msra.mxu0 %v3566
    %3919 = vmatprep.subr.mxu0 0.0
    %3920 = vmatpush1.msra.mxu0 %v3565
    %3921 = vmatprep.subr.mxu0 0.0
    %3922 = vmatpush2.msra.mxu0 0.0
    %3923 = vmatprep.subr.mxu0 0.0
    %3924 = vmatpush2.msra.mxu0 0.0
    %3925 = vmatprep.subr.mxu0 0.0
    %3926 = vmatpush2.msra.mxu0 0.0
    %3927 = vmatprep.subr.mxu0 0.0
    %3928 = vmatpush2.msra.mxu0 0.0
    %3929 = vmatprep.subr.mxu0 0.0
    %3930 = vmatpush2.msra.mxu0 0.0
    %3931 = vmatprep.subr.mxu0 0.0
    %3932 = vmatpush2.msra.mxu0 0.0
    %3933 = vmatprep.subr.mxu0 0.0
    %3934 = vmatpush2.msra.mxu0 0.0
    %3935 = vmatprep.subr.mxu0 0.0
    %3936 = vmatpush2.msra.mxu0 0.0
    %3937 = vmatprep.subr.mxu0 0.0
    %3938 = vmatpush2.msra.mxu0 0.0
    %3939 = vmatprep.subr.mxu0 0.0
    %3940 = vmatpush2.msra.mxu0 0.0
    %3941 = vmatprep.subr.mxu0 0.0
    %3942 = vmatpush2.msra.mxu0 0.0
    %3943 = vmatprep.subr.mxu0 0.0
    %3944 = vmatpush2.msra.mxu0 0.0
    %3945 = vmatprep.subr.mxu0 0.0
    %3946 = vmatpush2.msra.mxu0 0.0
    %3947 = vmatprep.subr.mxu0 0.0
    %3948 = vmatpush2.msra.mxu0 0.0
    %3949 = vmatprep.subr.mxu0 0.0
    %3950 = vmatpush2.msra.mxu0 0.0
    %3951 = vmatprep.subr.mxu0 0.0
    %3952 = vmatpush2.msra.mxu0 0.0
    %3953 = vmatprep.mubr.f32.mxu0 0.0
    %3954 = vmatmul.mubr.f32.gmra.mxu0 %v3887
    %v3955 = vpop.f32.mrf.mxu0
    %v3956 = vadd.f32 0.0, %v3955
    %v3957 = vpop.f32.mrf.mxu0
    %3958 = vdwg.mxu0
    %v3959 = vadd.f32 %v3178, %v3956
    %3960 = vmatprep.subr.mxu0 0.0
    %3961 = vmatpush1.msra.mxu0 0.0
    %3962 = vmatprep.subr.mxu0 0.0
    %3963 = vmatpush1.msra.mxu0 0.0
    %3964 = vmatprep.subr.mxu0 0.0
    %3965 = vmatpush1.msra.mxu0 0.0
    %3966 = vmatprep.subr.mxu0 0.0
    %3967 = vmatpush1.msra.mxu0 0.0
    %3968 = vmatprep.subr.mxu0 0.0
    %3969 = vmatpush1.msra.mxu0 0.0
    %3970 = vmatprep.subr.mxu0 0.0
    %3971 = vmatpush1.msra.mxu0 0.0
    %3972 = vmatprep.subr.mxu0 0.0
    %3973 = vmatpush1.msra.mxu0 0.0
    %3974 = vmatprep.subr.mxu0 0.0
    %3975 = vmatpush1.msra.mxu0 0.0
    %3976 = vmatprep.subr.mxu0 0.0
    %3977 = vmatpush1.msra.mxu0 0.0
    %3978 = vmatprep.subr.mxu0 0.0
    %3979 = vmatpush1.msra.mxu0 0.0
    %3980 = vmatprep.subr.mxu0 0.0
    %3981 = vmatpush1.msra.mxu0 0.0
    %3982 = vmatprep.subr.mxu0 0.0
    %3983 = vmatpush1.msra.mxu0 0.0
    %3984 = vmatprep.subr.mxu0 0.0
    %3985 = vmatpush1.msra.mxu0 %v3573
    %3986 = vmatprep.subr.mxu0 0.0
    %3987 = vmatpush1.msra.mxu0 %v3572
    %3988 = vmatprep.subr.mxu0 0.0
    %3989 = vmatpush1.msra.mxu0 %v3571
    %3990 = vmatprep.subr.mxu0 0.0
    %3991 = vmatpush1.msra.mxu0 %v3570
    %3992 = vmatprep.subr.mxu0 0.0
    %3993 = vmatpush2.msra.mxu0 0.0
    %3994 = vmatprep.subr.mxu0 0.0
    %3995 = vmatpush2.msra.mxu0 0.0
    %3996 = vmatprep.subr.mxu0 0.0
    %3997 = vmatpush2.msra.mxu0 0.0
    %3998 = vmatprep.subr.mxu0 0.0
    %3999 = vmatpush2.msra.mxu0 0.0
    %4000 = vmatprep.subr.mxu0 0.0
    %4001 = vmatpush2.msra.mxu0 0.0
    %4002 = vmatprep.subr.mxu0 0.0
    %4003 = vmatpush2.msra.mxu0 0.0
    %4004 = vmatprep.subr.mxu0 0.0
    %4005 = vmatpush2.msra.mxu0 0.0
    %4006 = vmatprep.subr.mxu0 0.0
    %4007 = vmatpush2.msra.mxu0 0.0
    %4008 = vmatprep.subr.mxu0 0.0
    %4009 = vmatpush2.msra.mxu0 0.0
    %4010 = vmatprep.subr.mxu0 0.0
    %4011 = vmatpush2.msra.mxu0 0.0
    %4012 = vmatprep.subr.mxu0 0.0
    %4013 = vmatpush2.msra.mxu0 0.0
    %4014 = vmatprep.subr.mxu0 0.0
    %4015 = vmatpush2.msra.mxu0 0.0
    %4016 = vmatprep.subr.mxu0 0.0
    %4017 = vmatpush2.msra.mxu0 0.0
    %4018 = vmatprep.subr.mxu0 0.0
    %4019 = vmatpush2.msra.mxu0 0.0
    %4020 = vmatprep.subr.mxu0 0.0
    %4021 = vmatpush2.msra.mxu0 0.0
    %4022 = vmatprep.subr.mxu0 0.0
    %4023 = vmatpush2.msra.mxu0 0.0
    %4024 = vmatprep.mubr.f32.mxu0 0.0
    %4025 = vmatmul.mubr.f32.gmra.mxu0 %v3887
    %v4026 = vpop.f32.mrf.mxu0
    %v4027 = vadd.f32 0.0, %v4026
    %v4028 = vpop.f32.mrf.mxu0
    %4029 = vdwg.mxu0
    %v4030 = vadd.f32 %v3296, %v4027
    %4031 = vmatprep.subr.mxu0 0.0
    %4032 = vmatpush1.msra.mxu0 0.0
    %4033 = vmatprep.subr.mxu0 0.0
    %4034 = vmatpush1.msra.mxu0 0.0
    %4035 = vmatprep.subr.mxu0 0.0
    %4036 = vmatpush1.msra.mxu0 0.0
    %4037 = vmatprep.subr.mxu0 0.0
    %4038 = vmatpush1.msra.mxu0 0.0
    %4039 = vmatprep.subr.mxu0 0.0
    %4040 = vmatpush1.msra.mxu0 0.0
    %4041 = vmatprep.subr.mxu0 0.0
    %4042 = vmatpush1.msra.mxu0 0.0
    %4043 = vmatprep.subr.mxu0 0.0
    %4044 = vmatpush1.msra.mxu0 0.0
    %4045 = vmatprep.subr.mxu0 0.0
    %4046 = vmatpush1.msra.mxu0 0.0
    %4047 = vmatprep.subr.mxu0 0.0
    %4048 = vmatpush1.msra.mxu0 0.0
    %4049 = vmatprep.subr.mxu0 0.0
    %4050 = vmatpush1.msra.mxu0 0.0
    %4051 = vmatprep.subr.mxu0 0.0
    %4052 = vmatpush1.msra.mxu0 0.0
    %4053 = vmatprep.subr.mxu0 0.0
    %4054 = vmatpush1.msra.mxu0 0.0
    %4055 = vmatprep.subr.mxu0 0.0
    %4056 = vmatpush1.msra.mxu0 %v3578
    %4057 = vmatprep.subr.mxu0 0.0
    %4058 = vmatpush1.msra.mxu0 %v3577
    %4059 = vmatprep.subr.mxu0 0.0
    %4060 = vmatpush1.msra.mxu0 %v3576
    %4061 = vmatprep.subr.mxu0 0.0
    %4062 = vmatpush1.msra.mxu0 %v3575
    %4063 = vmatprep.subr.mxu0 0.0
    %4064 = vmatpush2.msra.mxu0 0.0
    %4065 = vmatprep.subr.mxu0 0.0
    %4066 = vmatpush2.msra.mxu0 0.0
    %4067 = vmatprep.subr.mxu0 0.0
    %4068 = vmatpush2.msra.mxu0 0.0
    %4069 = vmatprep.subr.mxu0 0.0
    %4070 = vmatpush2.msra.mxu0 0.0
    %4071 = vmatprep.subr.mxu0 0.0
    %4072 = vmatpush2.msra.mxu0 0.0
    %4073 = vmatprep.subr.mxu0 0.0
    %4074 = vmatpush2.msra.mxu0 0.0
    %4075 = vmatprep.subr.mxu0 0.0
    %4076 = vmatpush2.msra.mxu0 0.0
    %4077 = vmatprep.subr.mxu0 0.0
    %4078 = vmatpush2.msra.mxu0 0.0
    %4079 = vmatprep.subr.mxu0 0.0
    %4080 = vmatpush2.msra.mxu0 0.0
    %4081 = vmatprep.subr.mxu0 0.0
    %4082 = vmatpush2.msra.mxu0 0.0
    %4083 = vmatprep.subr.mxu0 0.0
    %4084 = vmatpush2.msra.mxu0 0.0
    %4085 = vmatprep.subr.mxu0 0.0
    %4086 = vmatpush2.msra.mxu0 0.0
    %4087 = vmatprep.subr.mxu0 0.0
    %4088 = vmatpush2.msra.mxu0 0.0
    %4089 = vmatprep.subr.mxu0 0.0
    %4090 = vmatpush2.msra.mxu0 0.0
    %4091 = vmatprep.subr.mxu0 0.0
    %4092 = vmatpush2.msra.mxu0 0.0
    %4093 = vmatprep.subr.mxu0 0.0
    %4094 = vmatpush2.msra.mxu0 0.0
    %4095 = vmatprep.mubr.f32.mxu0 0.0
    %4096 = vmatmul.mubr.f32.gmra.mxu0 %v3887
    %v4097 = vpop.f32.mrf.mxu0
    %v4098 = vadd.f32 0.0, %v4097
    %v4099 = vpop.f32.mrf.mxu0
    %4100 = vdwg.mxu0
    %v4101 = vadd.f32 %v3414, %v4098
    %4102 = vmatprep.subr.mxu0 0.0
    %4103 = vmatpush1.msra.mxu0 0.0
    %4104 = vmatprep.subr.mxu0 0.0
    %4105 = vmatpush1.msra.mxu0 0.0
    %4106 = vmatprep.subr.mxu0 0.0
    %4107 = vmatpush1.msra.mxu0 0.0
    %4108 = vmatprep.subr.mxu0 0.0
    %4109 = vmatpush1.msra.mxu0 0.0
    %4110 = vmatprep.subr.mxu0 0.0
    %4111 = vmatpush1.msra.mxu0 0.0
    %4112 = vmatprep.subr.mxu0 0.0
    %4113 = vmatpush1.msra.mxu0 0.0
    %4114 = vmatprep.subr.mxu0 0.0
    %4115 = vmatpush1.msra.mxu0 0.0
    %4116 = vmatprep.subr.mxu0 0.0
    %4117 = vmatpush1.msra.mxu0 0.0
    %4118 = vmatprep.subr.mxu0 0.0
    %4119 = vmatpush1.msra.mxu0 0.0
    %4120 = vmatprep.subr.mxu0 0.0
    %4121 = vmatpush1.msra.mxu0 0.0
    %4122 = vmatprep.subr.mxu0 0.0
    %4123 = vmatpush1.msra.mxu0 0.0
    %4124 = vmatprep.subr.mxu0 0.0
    %4125 = vmatpush1.msra.mxu0 0.0
    %4126 = vmatprep.subr.mxu0 0.0
    %4127 = vmatpush1.msra.mxu0 %v3583
    %4128 = vmatprep.subr.mxu0 0.0
    %4129 = vmatpush1.msra.mxu0 %v3582
    %4130 = vmatprep.subr.mxu0 0.0
    %4131 = vmatpush1.msra.mxu0 %v3581
    %4132 = vmatprep.subr.mxu0 0.0
    %4133 = vmatpush1.msra.mxu0 %v3580
    %4134 = vmatprep.subr.mxu0 0.0
    %4135 = vmatpush2.msra.mxu0 0.0
    %4136 = vmatprep.subr.mxu0 0.0
    %4137 = vmatpush2.msra.mxu0 0.0
    %4138 = vmatprep.subr.mxu0 0.0
    %4139 = vmatpush2.msra.mxu0 0.0
    %4140 = vmatprep.subr.mxu0 0.0
    %4141 = vmatpush2.msra.mxu0 0.0
    %4142 = vmatprep.subr.mxu0 0.0
    %4143 = vmatpush2.msra.mxu0 0.0
    %4144 = vmatprep.subr.mxu0 0.0
    %4145 = vmatpush2.msra.mxu0 0.0
    %4146 = vmatprep.subr.mxu0 0.0
    %4147 = vmatpush2.msra.mxu0 0.0
    %4148 = vmatprep.subr.mxu0 0.0
    %4149 = vmatpush2.msra.mxu0 0.0
    %4150 = vmatprep.subr.mxu0 0.0
    %4151 = vmatpush2.msra.mxu0 0.0
    %4152 = vmatprep.subr.mxu0 0.0
    %4153 = vmatpush2.msra.mxu0 0.0
    %4154 = vmatprep.subr.mxu0 0.0
    %4155 = vmatpush2.msra.mxu0 0.0
    %4156 = vmatprep.subr.mxu0 0.0
    %4157 = vmatpush2.msra.mxu0 0.0
    %4158 = vmatprep.subr.mxu0 0.0
    %4159 = vmatpush2.msra.mxu0 0.0
    %4160 = vmatprep.subr.mxu0 0.0
    %4161 = vmatpush2.msra.mxu0 0.0
    %4162 = vmatprep.subr.mxu0 0.0
    %4163 = vmatpush2.msra.mxu0 0.0
    %4164 = vmatprep.subr.mxu0 0.0
    %4165 = vmatpush2.msra.mxu0 0.0
    %4166 = vmatprep.mubr.f32.mxu0 0.0
    %4167 = vmatmul.mubr.f32.gmra.mxu0 %v3887
    %v4168 = vpop.f32.mrf.mxu0
    %v4169 = vadd.f32 0.0, %v4168
    %v4170 = vpop.f32.mrf.mxu0
    %4171 = vdwg.mxu0
    %v4172 = vadd.f32 %v3532, %v4169
    %v4173 = vmul.f32 %v3959, 0.5
    %v4174 = vtanh.pop %v4173
    %v4175 = vmul.f32 %v4174, 0.5
    %v4176 = vadd.f32 %v4175, 0.5
    %v4177 = vmul.f32 %v4030, 0.5
    %v4178 = vtanh.pop %v4177
    %v4179 = vmul.f32 %v4178, 0.5
    %v4180 = vadd.f32 %v4179, 0.5
    %v4181 = vtanh.pop %v4101
    %v4182 = vmul.f32 %v4172, 0.5
    %v4183 = vtanh.pop %v4182
    %v4184 = vmul.f32 %v4183, 0.5
    %v4185 = vadd.f32 %v4184, 0.5
    %v4186 = vmul.f32 %v4180, %v3883
    %v4187 = vmul.f32 %v4176, %v4181
    %v4188 = vadd.f32 %v4186, %v4187
    %v4189 = vtanh.pop %v4188
    %v4190 = vmul.f32 %v4185, %v4189
    %v4192 = vsel %vm614, %v4190, 0
    %4194 = vmatprep.subr.mxu0 0.0
    %4195 = vmatpush1.msra.mxu0 0.0
    %4196 = vmatprep.subr.mxu0 0.0
    %4197 = vmatpush1.msra.mxu0 0.0
    %4198 = vmatprep.subr.mxu0 0.0
    %4199 = vmatpush1.msra.mxu0 0.0
    %4200 = vmatprep.subr.mxu0 0.0
    %4201 = vmatpush1.msra.mxu0 0.0
    %4202 = vmatprep.subr.mxu0 0.0
    %4203 = vmatpush1.msra.mxu0 0.0
    %4204 = vmatprep.subr.mxu0 0.0
    %4205 = vmatpush1.msra.mxu0 0.0
    %4206 = vmatprep.subr.mxu0 0.0
    %4207 = vmatpush1.msra.mxu0 0.0
    %4208 = vmatprep.subr.mxu0 0.0
    %4209 = vmatpush1.msra.mxu0 0.0
    %4210 = vmatprep.subr.mxu0 0.0
    %4211 = vmatpush1.msra.mxu0 0.0
    %4212 = vmatprep.subr.mxu0 0.0
    %4213 = vmatpush1.msra.mxu0 0.0
    %4214 = vmatprep.subr.mxu0 0.0
    %4215 = vmatpush1.msra.mxu0 0.0
    %4216 = vmatprep.subr.mxu0 0.0
    %4217 = vmatpush1.msra.mxu0 0.0
    %4218 = vmatprep.subr.mxu0 0.0
    %4219 = vmatpush1.msra.mxu0 %v3568
    %4220 = vmatprep.subr.mxu0 0.0
    %4221 = vmatpush1.msra.mxu0 %v3567
    %4222 = vmatprep.subr.mxu0 0.0
    %4223 = vmatpush1.msra.mxu0 %v3566
    %4224 = vmatprep.subr.mxu0 0.0
    %4225 = vmatpush1.msra.mxu0 %v3565
    %4226 = vmatprep.subr.mxu0 0.0
    %4227 = vmatpush2.msra.mxu0 0.0
    %4228 = vmatprep.subr.mxu0 0.0
    %4229 = vmatpush2.msra.mxu0 0.0
    %4230 = vmatprep.subr.mxu0 0.0
    %4231 = vmatpush2.msra.mxu0 0.0
    %4232 = vmatprep.subr.mxu0 0.0
    %4233 = vmatpush2.msra.mxu0 0.0
    %4234 = vmatprep.subr.mxu0 0.0
    %4235 = vmatpush2.msra.mxu0 0.0
    %4236 = vmatprep.subr.mxu0 0.0
    %4237 = vmatpush2.msra.mxu0 0.0
    %4238 = vmatprep.subr.mxu0 0.0
    %4239 = vmatpush2.msra.mxu0 0.0
    %4240 = vmatprep.subr.mxu0 0.0
    %4241 = vmatpush2.msra.mxu0 0.0
    %4242 = vmatprep.subr.mxu0 0.0
    %4243 = vmatpush2.msra.mxu0 0.0
    %4244 = vmatprep.subr.mxu0 0.0
    %4245 = vmatpush2.msra.mxu0 0.0
    %4246 = vmatprep.subr.mxu0 0.0
    %4247 = vmatpush2.msra.mxu0 0.0
    %4248 = vmatprep.subr.mxu0 0.0
    %4249 = vmatpush2.msra.mxu0 0.0
    %4250 = vmatprep.subr.mxu0 0.0
    %4251 = vmatpush2.msra.mxu0 0.0
    %4252 = vmatprep.subr.mxu0 0.0
    %4253 = vmatpush2.msra.mxu0 0.0
    %4254 = vmatprep.subr.mxu0 0.0
    %4255 = vmatpush2.msra.mxu0 0.0
    %4256 = vmatprep.subr.mxu0 0.0
    %4257 = vmatpush2.msra.mxu0 0.0
    %4258 = vmatprep.mubr.f32.mxu0 0.0
    %4259 = vmatmul.mubr.f32.gmra.mxu0 %v4192
    %v4260 = vpop.f32.mrf.mxu0
    %v4261 = vadd.f32 0.0, %v4260
    %v4262 = vpop.f32.mrf.mxu0
    %4263 = vdwg.mxu0
    %v4264 = vadd.f32 %v3183, %v4261
    %4265 = vmatprep.subr.mxu0 0.0
    %4266 = vmatpush1.msra.mxu0 0.0
    %4267 = vmatprep.subr.mxu0 0.0
    %4268 = vmatpush1.msra.mxu0 0.0
    %4269 = vmatprep.subr.mxu0 0.0
    %4270 = vmatpush1.msra.mxu0 0.0
    %4271 = vmatprep.subr.mxu0 0.0
    %4272 = vmatpush1.msra.mxu0 0.0
    %4273 = vmatprep.subr.mxu0 0.0
    %4274 = vmatpush1.msra.mxu0 0.0
    %4275 = vmatprep.subr.mxu0 0.0
    %4276 = vmatpush1.msra.mxu0 0.0
    %4277 = vmatprep.subr.mxu0 0.0
    %4278 = vmatpush1.msra.mxu0 0.0
    %4279 = vmatprep.subr.mxu0 0.0
    %4280 = vmatpush1.msra.mxu0 0.0
    %4281 = vmatprep.subr.mxu0 0.0
    %4282 = vmatpush1.msra.mxu0 0.0
    %4283 = vmatprep.subr.mxu0 0.0
    %4284 = vmatpush1.msra.mxu0 0.0
    %4285 = vmatprep.subr.mxu0 0.0
    %4286 = vmatpush1.msra.mxu0 0.0
    %4287 = vmatprep.subr.mxu0 0.0
    %4288 = vmatpush1.msra.mxu0 0.0
    %4289 = vmatprep.subr.mxu0 0.0
    %4290 = vmatpush1.msra.mxu0 %v3573
    %4291 = vmatprep.subr.mxu0 0.0
    %4292 = vmatpush1.msra.mxu0 %v3572
    %4293 = vmatprep.subr.mxu0 0.0
    %4294 = vmatpush1.msra.mxu0 %v3571
    %4295 = vmatprep.subr.mxu0 0.0
    %4296 = vmatpush1.msra.mxu0 %v3570
    %4297 = vmatprep.subr.mxu0 0.0
    %4298 = vmatpush2.msra.mxu0 0.0
    %4299 = vmatprep.subr.mxu0 0.0
    %4300 = vmatpush2.msra.mxu0 0.0
    %4301 = vmatprep.subr.mxu0 0.0
    %4302 = vmatpush2.msra.mxu0 0.0
    %4303 = vmatprep.subr.mxu0 0.0
    %4304 = vmatpush2.msra.mxu0 0.0
    %4305 = vmatprep.subr.mxu0 0.0
    %4306 = vmatpush2.msra.mxu0 0.0
    %4307 = vmatprep.subr.mxu0 0.0
    %4308 = vmatpush2.msra.mxu0 0.0
    %4309 = vmatprep.subr.mxu0 0.0
    %4310 = vmatpush2.msra.mxu0 0.0
    %4311 = vmatprep.subr.mxu0 0.0
    %4312 = vmatpush2.msra.mxu0 0.0
    %4313 = vmatprep.subr.mxu0 0.0
    %4314 = vmatpush2.msra.mxu0 0.0
    %4315 = vmatprep.subr.mxu0 0.0
    %4316 = vmatpush2.msra.mxu0 0.0
    %4317 = vmatprep.subr.mxu0 0.0
    %4318 = vmatpush2.msra.mxu0 0.0
    %4319 = vmatprep.subr.mxu0 0.0
    %4320 = vmatpush2.msra.mxu0 0.0
    %4321 = vmatprep.subr.mxu0 0.0
    %4322 = vmatpush2.msra.mxu0 0.0
    %4323 = vmatprep.subr.mxu0 0.0
    %4324 = vmatpush2.msra.mxu0 0.0
    %4325 = vmatprep.subr.mxu0 0.0
    %4326 = vmatpush2.msra.mxu0 0.0
    %4327 = vmatprep.subr.mxu0 0.0
    %4328 = vmatpush2.msra.mxu0 0.0
    %4329 = vmatprep.mubr.f32.mxu0 0.0
    %4330 = vmatmul.mubr.f32.gmra.mxu0 %v4192
    %v4331 = vpop.f32.mrf.mxu0
    %v4332 = vadd.f32 0.0, %v4331
    %v4333 = vpop.f32.mrf.mxu0
    %4334 = vdwg.mxu0
    %v4335 = vadd.f32 %v3301, %v4332
    %4336 = vmatprep.subr.mxu0 0.0
    %4337 = vmatpush1.msra.mxu0 0.0
    %4338 = vmatprep.subr.mxu0 0.0
    %4339 = vmatpush1.msra.mxu0 0.0
    %4340 = vmatprep.subr.mxu0 0.0
    %4341 = vmatpush1.msra.mxu0 0.0
    %4342 = vmatprep.subr.mxu0 0.0
    %4343 = vmatpush1.msra.mxu0 0.0
    %4344 = vmatprep.subr.mxu0 0.0
    %4345 = vmatpush1.msra.mxu0 0.0
    %4346 = vmatprep.subr.mxu0 0.0
    %4347 = vmatpush1.msra.mxu0 0.0
    %4348 = vmatprep.subr.mxu0 0.0
    %4349 = vmatpush1.msra.mxu0 0.0
    %4350 = vmatprep.subr.mxu0 0.0
    %4351 = vmatpush1.msra.mxu0 0.0
    %4352 = vmatprep.subr.mxu0 0.0
    %4353 = vmatpush1.msra.mxu0 0.0
    %4354 = vmatprep.subr.mxu0 0.0
    %4355 = vmatpush1.msra.mxu0 0.0
    %4356 = vmatprep.subr.mxu0 0.0
    %4357 = vmatpush1.msra.mxu0 0.0
    %4358 = vmatprep.subr.mxu0 0.0
    %4359 = vmatpush1.msra.mxu0 0.0
    %4360 = vmatprep.subr.mxu0 0.0
    %4361 = vmatpush1.msra.mxu0 %v3578
    %4362 = vmatprep.subr.mxu0 0.0
    %4363 = vmatpush1.msra.mxu0 %v3577
    %4364 = vmatprep.subr.mxu0 0.0
    %4365 = vmatpush1.msra.mxu0 %v3576
    %4366 = vmatprep.subr.mxu0 0.0
    %4367 = vmatpush1.msra.mxu0 %v3575
    %4368 = vmatprep.subr.mxu0 0.0
    %4369 = vmatpush2.msra.mxu0 0.0
    %4370 = vmatprep.subr.mxu0 0.0
    %4371 = vmatpush2.msra.mxu0 0.0
    %4372 = vmatprep.subr.mxu0 0.0
    %4373 = vmatpush2.msra.mxu0 0.0
    %4374 = vmatprep.subr.mxu0 0.0
    %4375 = vmatpush2.msra.mxu0 0.0
    %4376 = vmatprep.subr.mxu0 0.0
    %4377 = vmatpush2.msra.mxu0 0.0
    %4378 = vmatprep.subr.mxu0 0.0
    %4379 = vmatpush2.msra.mxu0 0.0
    %4380 = vmatprep.subr.mxu0 0.0
    %4381 = vmatpush2.msra.mxu0 0.0
    %4382 = vmatprep.subr.mxu0 0.0
    %4383 = vmatpush2.msra.mxu0 0.0
    %4384 = vmatprep.subr.mxu0 0.0
    %4385 = vmatpush2.msra.mxu0 0.0
    %4386 = vmatprep.subr.mxu0 0.0
    %4387 = vmatpush2.msra.mxu0 0.0
    %4388 = vmatprep.subr.mxu0 0.0
    %4389 = vmatpush2.msra.mxu0 0.0
    %4390 = vmatprep.subr.mxu0 0.0
    %4391 = vmatpush2.msra.mxu0 0.0
    %4392 = vmatprep.subr.mxu0 0.0
    %4393 = vmatpush2.msra.mxu0 0.0
    %4394 = vmatprep.subr.mxu0 0.0
    %4395 = vmatpush2.msra.mxu0 0.0
    %4396 = vmatprep.subr.mxu0 0.0
    %4397 = vmatpush2.msra.mxu0 0.0
    %4398 = vmatprep.subr.mxu0 0.0
    %4399 = vmatpush2.msra.mxu0 0.0
    %4400 = vmatprep.mubr.f32.mxu0 0.0
    %4401 = vmatmul.mubr.f32.gmra.mxu0 %v4192
    %v4402 = vpop.f32.mrf.mxu0
    %v4403 = vadd.f32 0.0, %v4402
    %v4404 = vpop.f32.mrf.mxu0
    %4405 = vdwg.mxu0
    %v4406 = vadd.f32 %v3419, %v4403
    %4407 = vmatprep.subr.mxu0 0.0
    %4408 = vmatpush1.msra.mxu0 0.0
    %4409 = vmatprep.subr.mxu0 0.0
    %4410 = vmatpush1.msra.mxu0 0.0
    %4411 = vmatprep.subr.mxu0 0.0
    %4412 = vmatpush1.msra.mxu0 0.0
    %4413 = vmatprep.subr.mxu0 0.0
    %4414 = vmatpush1.msra.mxu0 0.0
    %4415 = vmatprep.subr.mxu0 0.0
    %4416 = vmatpush1.msra.mxu0 0.0
    %4417 = vmatprep.subr.mxu0 0.0
    %4418 = vmatpush1.msra.mxu0 0.0
    %4419 = vmatprep.subr.mxu0 0.0
    %4420 = vmatpush1.msra.mxu0 0.0
    %4421 = vmatprep.subr.mxu0 0.0
    %4422 = vmatpush1.msra.mxu0 0.0
    %4423 = vmatprep.subr.mxu0 0.0
    %4424 = vmatpush1.msra.mxu0 0.0
    %4425 = vmatprep.subr.mxu0 0.0
    %4426 = vmatpush1.msra.mxu0 0.0
    %4427 = vmatprep.subr.mxu0 0.0
    %4428 = vmatpush1.msra.mxu0 0.0
    %4429 = vmatprep.subr.mxu0 0.0
    %4430 = vmatpush1.msra.mxu0 0.0
    %4431 = vmatprep.subr.mxu0 0.0
    %4432 = vmatpush1.msra.mxu0 %v3583
    %4433 = vmatprep.subr.mxu0 0.0
    %4434 = vmatpush1.msra.mxu0 %v3582
    %4435 = vmatprep.subr.mxu0 0.0
    %4436 = vmatpush1.msra.mxu0 %v3581
    %4437 = vmatprep.subr.mxu0 0.0
    %4438 = vmatpush1.msra.mxu0 %v3580
    %4439 = vmatprep.subr.mxu0 0.0
    %4440 = vmatpush2.msra.mxu0 0.0
    %4441 = vmatprep.subr.mxu0 0.0
    %4442 = vmatpush2.msra.mxu0 0.0
    %4443 = vmatprep.subr.mxu0 0.0
    %4444 = vmatpush2.msra.mxu0 0.0
    %4445 = vmatprep.subr.mxu0 0.0
    %4446 = vmatpush2.msra.mxu0 0.0
    %4447 = vmatprep.subr.mxu0 0.0
    %4448 = vmatpush2.msra.mxu0 0.0
    %4449 = vmatprep.subr.mxu0 0.0
    %4450 = vmatpush2.msra.mxu0 0.0
    %4451 = vmatprep.subr.mxu0 0.0
    %4452 = vmatpush2.msra.mxu0 0.0
    %4453 = vmatprep.subr.mxu0 0.0
    %4454 = vmatpush2.msra.mxu0 0.0
    %4455 = vmatprep.subr.mxu0 0.0
    %4456 = vmatpush2.msra.mxu0 0.0
    %4457 = vmatprep.subr.mxu0 0.0
    %4458 = vmatpush2.msra.mxu0 0.0
    %4459 = vmatprep.subr.mxu0 0.0
    %4460 = vmatpush2.msra.mxu0 0.0
    %4461 = vmatprep.subr.mxu0 0.0
    %4462 = vmatpush2.msra.mxu0 0.0
    %4463 = vmatprep.subr.mxu0 0.0
    %4464 = vmatpush2.msra.mxu0 0.0
    %4465 = vmatprep.subr.mxu0 0.0
    %4466 = vmatpush2.msra.mxu0 0.0
    %4467 = vmatprep.subr.mxu0 0.0
    %4468 = vmatpush2.msra.mxu0 0.0
    %4469 = vmatprep.subr.mxu0 0.0
    %4470 = vmatpush2.msra.mxu0 0.0
    %4471 = vmatprep.mubr.f32.mxu0 0.0
    %4472 = vmatmul.mubr.f32.gmra.mxu0 %v4192
    %v4473 = vpop.f32.mrf.mxu0
    %v4474 = vadd.f32 0.0, %v4473
    %v4475 = vpop.f32.mrf.mxu0
    %4476 = vdwg.mxu0
    %v4477 = vadd.f32 %v3537, %v4474
    %v4478 = vmul.f32 %v4264, 0.5
    %v4479 = vtanh.pop %v4478
    %v4480 = vmul.f32 %v4479, 0.5
    %v4481 = vadd.f32 %v4480, 0.5
    %v4482 = vmul.f32 %v4335, 0.5
    %v4483 = vtanh.pop %v4482
    %v4484 = vmul.f32 %v4483, 0.5
    %v4485 = vadd.f32 %v4484, 0.5
    %v4486 = vtanh.pop %v4406
    %v4487 = vmul.f32 %v4477, 0.5
    %v4488 = vtanh.pop %v4487
    %v4489 = vmul.f32 %v4488, 0.5
    %v4490 = vadd.f32 %v4489, 0.5
    %v4491 = vmul.f32 %v4485, %v4188
    %v4492 = vmul.f32 %v4481, %v4486
    %v4493 = vadd.f32 %v4491, %v4492
    %v4494 = vtanh.pop %v4493
    %v4495 = vmul.f32 %v4490, %v4494
    %v4497 = vsel %vm614, %v4495, 0
    %4499 = vmatprep.subr.mxu0 0.0
    %4500 = vmatpush1.msra.mxu0 0.0
    %4501 = vmatprep.subr.mxu0 0.0
    %4502 = vmatpush1.msra.mxu0 0.0
    %4503 = vmatprep.subr.mxu0 0.0
    %4504 = vmatpush1.msra.mxu0 0.0
    %4505 = vmatprep.subr.mxu0 0.0
    %4506 = vmatpush1.msra.mxu0 0.0
    %4507 = vmatprep.subr.mxu0 0.0
    %4508 = vmatpush1.msra.mxu0 0.0
    %4509 = vmatprep.subr.mxu0 0.0
    %4510 = vmatpush1.msra.mxu0 0.0
    %4511 = vmatprep.subr.mxu0 0.0
    %4512 = vmatpush1.msra.mxu0 0.0
    %4513 = vmatprep.subr.mxu0 0.0
    %4514 = vmatpush1.msra.mxu0 0.0
    %4515 = vmatprep.subr.mxu0 0.0
    %4516 = vmatpush1.msra.mxu0 0.0
    %4517 = vmatprep.subr.mxu0 0.0
    %4518 = vmatpush1.msra.mxu0 0.0
    %4519 = vmatprep.subr.mxu0 0.0
    %4520 = vmatpush1.msra.mxu0 0.0
    %4521 = vmatprep.subr.mxu0 0.0
    %4522 = vmatpush1.msra.mxu0 0.0
    %4523 = vmatprep.subr.mxu0 0.0
    %4524 = vmatpush1.msra.mxu0 %v3568
    %4525 = vmatprep.subr.mxu0 0.0
    %4526 = vmatpush1.msra.mxu0 %v3567
    %4527 = vmatprep.subr.mxu0 0.0
    %4528 = vmatpush1.msra.mxu0 %v3566
    %4529 = vmatprep.subr.mxu0 0.0
    %4530 = vmatpush1.msra.mxu0 %v3565
    %4531 = vmatprep.subr.mxu0 0.0
    %4532 = vmatpush2.msra.mxu0 0.0
    %4533 = vmatprep.subr.mxu0 0.0
    %4534 = vmatpush2.msra.mxu0 0.0
    %4535 = vmatprep.subr.mxu0 0.0
    %4536 = vmatpush2.msra.mxu0 0.0
    %4537 = vmatprep.subr.mxu0 0.0
    %4538 = vmatpush2.msra.mxu0 0.0
    %4539 = vmatprep.subr.mxu0 0.0
    %4540 = vmatpush2.msra.mxu0 0.0
    %4541 = vmatprep.subr.mxu0 0.0
    %4542 = vmatpush2.msra.mxu0 0.0
    %4543 = vmatprep.subr.mxu0 0.0
    %4544 = vmatpush2.msra.mxu0 0.0
    %4545 = vmatprep.subr.mxu0 0.0
    %4546 = vmatpush2.msra.mxu0 0.0
    %4547 = vmatprep.subr.mxu0 0.0
    %4548 = vmatpush2.msra.mxu0 0.0
    %4549 = vmatprep.subr.mxu0 0.0
    %4550 = vmatpush2.msra.mxu0 0.0
    %4551 = vmatprep.subr.mxu0 0.0
    %4552 = vmatpush2.msra.mxu0 0.0
    %4553 = vmatprep.subr.mxu0 0.0
    %4554 = vmatpush2.msra.mxu0 0.0
    %4555 = vmatprep.subr.mxu0 0.0
    %4556 = vmatpush2.msra.mxu0 0.0
    %4557 = vmatprep.subr.mxu0 0.0
    %4558 = vmatpush2.msra.mxu0 0.0
    %4559 = vmatprep.subr.mxu0 0.0
    %4560 = vmatpush2.msra.mxu0 0.0
    %4561 = vmatprep.subr.mxu0 0.0
    %4562 = vmatpush2.msra.mxu0 0.0
    %4563 = vmatprep.mubr.f32.mxu0 0.0
    %4564 = vmatmul.mubr.f32.gmra.mxu0 %v4497
    %v4565 = vpop.f32.mrf.mxu0
    %v4566 = vadd.f32 0.0, %v4565
    %v4567 = vpop.f32.mrf.mxu0
    %4568 = vdwg.mxu0
    %v4569 = vadd.f32 %v3188, %v4566
    %4570 = vmatprep.subr.mxu0 0.0
    %4571 = vmatpush1.msra.mxu0 0.0
    %4572 = vmatprep.subr.mxu0 0.0
    %4573 = vmatpush1.msra.mxu0 0.0
    %4574 = vmatprep.subr.mxu0 0.0
    %4575 = vmatpush1.msra.mxu0 0.0
    %4576 = vmatprep.subr.mxu0 0.0
    %4577 = vmatpush1.msra.mxu0 0.0
    %4578 = vmatprep.subr.mxu0 0.0
    %4579 = vmatpush1.msra.mxu0 0.0
    %4580 = vmatprep.subr.mxu0 0.0
    %4581 = vmatpush1.msra.mxu0 0.0
    %4582 = vmatprep.subr.mxu0 0.0
    %4583 = vmatpush1.msra.mxu0 0.0
    %4584 = vmatprep.subr.mxu0 0.0
    %4585 = vmatpush1.msra.mxu0 0.0
    %4586 = vmatprep.subr.mxu0 0.0
    %4587 = vmatpush1.msra.mxu0 0.0
    %4588 = vmatprep.subr.mxu0 0.0
    %4589 = vmatpush1.msra.mxu0 0.0
    %4590 = vmatprep.subr.mxu0 0.0
    %4591 = vmatpush1.msra.mxu0 0.0
    %4592 = vmatprep.subr.mxu0 0.0
    %4593 = vmatpush1.msra.mxu0 0.0
    %4594 = vmatprep.subr.mxu0 0.0
    %4595 = vmatpush1.msra.mxu0 %v3573
    %4596 = vmatprep.subr.mxu0 0.0
    %4597 = vmatpush1.msra.mxu0 %v3572
    %4598 = vmatprep.subr.mxu0 0.0
    %4599 = vmatpush1.msra.mxu0 %v3571
    %4600 = vmatprep.subr.mxu0 0.0
    %4601 = vmatpush1.msra.mxu0 %v3570
    %4602 = vmatprep.subr.mxu0 0.0
    %4603 = vmatpush2.msra.mxu0 0.0
    %4604 = vmatprep.subr.mxu0 0.0
    %4605 = vmatpush2.msra.mxu0 0.0
    %4606 = vmatprep.subr.mxu0 0.0
    %4607 = vmatpush2.msra.mxu0 0.0
    %4608 = vmatprep.subr.mxu0 0.0
    %4609 = vmatpush2.msra.mxu0 0.0
    %4610 = vmatprep.subr.mxu0 0.0
    %4611 = vmatpush2.msra.mxu0 0.0
    %4612 = vmatprep.subr.mxu0 0.0
    %4613 = vmatpush2.msra.mxu0 0.0
    %4614 = vmatprep.subr.mxu0 0.0
    %4615 = vmatpush2.msra.mxu0 0.0
    %4616 = vmatprep.subr.mxu0 0.0
    %4617 = vmatpush2.msra.mxu0 0.0
    %4618 = vmatprep.subr.mxu0 0.0
    %4619 = vmatpush2.msra.mxu0 0.0
    %4620 = vmatprep.subr.mxu0 0.0
    %4621 = vmatpush2.msra.mxu0 0.0
    %4622 = vmatprep.subr.mxu0 0.0
    %4623 = vmatpush2.msra.mxu0 0.0
    %4624 = vmatprep.subr.mxu0 0.0
    %4625 = vmatpush2.msra.mxu0 0.0
    %4626 = vmatprep.subr.mxu0 0.0
    %4627 = vmatpush2.msra.mxu0 0.0
    %4628 = vmatprep.subr.mxu0 0.0
    %4629 = vmatpush2.msra.mxu0 0.0
    %4630 = vmatprep.subr.mxu0 0.0
    %4631 = vmatpush2.msra.mxu0 0.0
    %4632 = vmatprep.subr.mxu0 0.0
    %4633 = vmatpush2.msra.mxu0 0.0
    %4634 = vmatprep.mubr.f32.mxu0 0.0
    %4635 = vmatmul.mubr.f32.gmra.mxu0 %v4497
    %v4636 = vpop.f32.mrf.mxu0
    %v4637 = vadd.f32 0.0, %v4636
    %v4638 = vpop.f32.mrf.mxu0
    %4639 = vdwg.mxu0
    %v4640 = vadd.f32 %v3306, %v4637
    %4641 = vmatprep.subr.mxu0 0.0
    %4642 = vmatpush1.msra.mxu0 0.0
    %4643 = vmatprep.subr.mxu0 0.0
    %4644 = vmatpush1.msra.mxu0 0.0
    %4645 = vmatprep.subr.mxu0 0.0
    %4646 = vmatpush1.msra.mxu0 0.0
    %4647 = vmatprep.subr.mxu0 0.0
    %4648 = vmatpush1.msra.mxu0 0.0
    %4649 = vmatprep.subr.mxu0 0.0
    %4650 = vmatpush1.msra.mxu0 0.0
    %4651 = vmatprep.subr.mxu0 0.0
    %4652 = vmatpush1.msra.mxu0 0.0
    %4653 = vmatprep.subr.mxu0 0.0
    %4654 = vmatpush1.msra.mxu0 0.0
    %4655 = vmatprep.subr.mxu0 0.0
    %4656 = vmatpush1.msra.mxu0 0.0
    %4657 = vmatprep.subr.mxu0 0.0
    %4658 = vmatpush1.msra.mxu0 0.0
    %4659 = vmatprep.subr.mxu0 0.0
    %4660 = vmatpush1.msra.mxu0 0.0
    %4661 = vmatprep.subr.mxu0 0.0
    %4662 = vmatpush1.msra.mxu0 0.0
    %4663 = vmatprep.subr.mxu0 0.0
    %4664 = vmatpush1.msra.mxu0 0.0
    %4665 = vmatprep.subr.mxu0 0.0
    %4666 = vmatpush1.msra.mxu0 %v3578
    %4667 = vmatprep.subr.mxu0 0.0
    %4668 = vmatpush1.msra.mxu0 %v3577
    %4669 = vmatprep.subr.mxu0 0.0
    %4670 = vmatpush1.msra.mxu0 %v3576
    %4671 = vmatprep.subr.mxu0 0.0
    %4672 = vmatpush1.msra.mxu0 %v3575
    %4673 = vmatprep.subr.mxu0 0.0
    %4674 = vmatpush2.msra.mxu0 0.0
    %4675 = vmatprep.subr.mxu0 0.0
    %4676 = vmatpush2.msra.mxu0 0.0
    %4677 = vmatprep.subr.mxu0 0.0
    %4678 = vmatpush2.msra.mxu0 0.0
    %4679 = vmatprep.subr.mxu0 0.0
    %4680 = vmatpush2.msra.mxu0 0.0
    %4681 = vmatprep.subr.mxu0 0.0
    %4682 = vmatpush2.msra.mxu0 0.0
    %4683 = vmatprep.subr.mxu0 0.0
    %4684 = vmatpush2.msra.mxu0 0.0
    %4685 = vmatprep.subr.mxu0 0.0
    %4686 = vmatpush2.msra.mxu0 0.0
    %4687 = vmatprep.subr.mxu0 0.0
    %4688 = vmatpush2.msra.mxu0 0.0
    %4689 = vmatprep.subr.mxu0 0.0
    %4690 = vmatpush2.msra.mxu0 0.0
    %4691 = vmatprep.subr.mxu0 0.0
    %4692 = vmatpush2.msra.mxu0 0.0
    %4693 = vmatprep.subr.mxu0 0.0
    %4694 = vmatpush2.msra.mxu0 0.0
    %4695 = vmatprep.subr.mxu0 0.0
    %4696 = vmatpush2.msra.mxu0 0.0
    %4697 = vmatprep.subr.mxu0 0.0
    %4698 = vmatpush2.msra.mxu0 0.0
    %4699 = vmatprep.subr.mxu0 0.0
    %4700 = vmatpush2.msra.mxu0 0.0
    %4701 = vmatprep.subr.mxu0 0.0
    %4702 = vmatpush2.msra.mxu0 0.0
    %4703 = vmatprep.subr.mxu0 0.0
    %4704 = vmatpush2.msra.mxu0 0.0
    %4705 = vmatprep.mubr.f32.mxu0 0.0
    %4706 = vmatmul.mubr.f32.gmra.mxu0 %v4497
    %v4707 = vpop.f32.mrf.mxu0
    %v4708 = vadd.f32 0.0, %v4707
    %v4709 = vpop.f32.mrf.mxu0
    %4710 = vdwg.mxu0
    %v4711 = vadd.f32 %v3424, %v4708
    %4712 = vmatprep.subr.mxu0 0.0
    %4713 = vmatpush1.msra.mxu0 0.0
    %4714 = vmatprep.subr.mxu0 0.0
    %4715 = vmatpush1.msra.mxu0 0.0
    %4716 = vmatprep.subr.mxu0 0.0
    %4717 = vmatpush1.msra.mxu0 0.0
    %4718 = vmatprep.subr.mxu0 0.0
    %4719 = vmatpush1.msra.mxu0 0.0
    %4720 = vmatprep.subr.mxu0 0.0
    %4721 = vmatpush1.msra.mxu0 0.0
    %4722 = vmatprep.subr.mxu0 0.0
    %4723 = vmatpush1.msra.mxu0 0.0
    %4724 = vmatprep.subr.mxu0 0.0
    %4725 = vmatpush1.msra.mxu0 0.0
    %4726 = vmatprep.subr.mxu0 0.0
    %4727 = vmatpush1.msra.mxu0 0.0
    %4728 = vmatprep.subr.mxu0 0.0
    %4729 = vmatpush1.msra.mxu0 0.0
    %4730 = vmatprep.subr.mxu0 0.0
    %4731 = vmatpush1.msra.mxu0 0.0
    %4732 = vmatprep.subr.mxu0 0.0
    %4733 = vmatpush1.msra.mxu0 0.0
    %4734 = vmatprep.subr.mxu0 0.0
    %4735 = vmatpush1.msra.mxu0 0.0
    %4736 = vmatprep.subr.mxu0 0.0
    %4737 = vmatpush1.msra.mxu0 %v3583
    %4738 = vmatprep.subr.mxu0 0.0
    %4739 = vmatpush1.msra.mxu0 %v3582
    %4740 = vmatprep.subr.mxu0 0.0
    %4741 = vmatpush1.msra.mxu0 %v3581
    %4742 = vmatprep.subr.mxu0 0.0
    %4743 = vmatpush1.msra.mxu0 %v3580
    %4744 = vmatprep.subr.mxu0 0.0
    %4745 = vmatpush2.msra.mxu0 0.0
    %4746 = vmatprep.subr.mxu0 0.0
    %4747 = vmatpush2.msra.mxu0 0.0
    %4748 = vmatprep.subr.mxu0 0.0
    %4749 = vmatpush2.msra.mxu0 0.0
    %4750 = vmatprep.subr.mxu0 0.0
    %4751 = vmatpush2.msra.mxu0 0.0
    %4752 = vmatprep.subr.mxu0 0.0
    %4753 = vmatpush2.msra.mxu0 0.0
    %4754 = vmatprep.subr.mxu0 0.0
    %4755 = vmatpush2.msra.mxu0 0.0
    %4756 = vmatprep.subr.mxu0 0.0
    %4757 = vmatpush2.msra.mxu0 0.0
    %4758 = vmatprep.subr.mxu0 0.0
    %4759 = vmatpush2.msra.mxu0 0.0
    %4760 = vmatprep.subr.mxu0 0.0
    %4761 = vmatpush2.msra.mxu0 0.0
    %4762 = vmatprep.subr.mxu0 0.0
    %4763 = vmatpush2.msra.mxu0 0.0
    %4764 = vmatprep.subr.mxu0 0.0
    %4765 = vmatpush2.msra.mxu0 0.0
    %4766 = vmatprep.subr.mxu0 0.0
    %4767 = vmatpush2.msra.mxu0 0.0
    %4768 = vmatprep.subr.mxu0 0.0
    %4769 = vmatpush2.msra.mxu0 0.0
    %4770 = vmatprep.subr.mxu0 0.0
    %4771 = vmatpush2.msra.mxu0 0.0
    %4772 = vmatprep.subr.mxu0 0.0
    %4773 = vmatpush2.msra.mxu0 0.0
    %4774 = vmatprep.subr.mxu0 0.0
    %4775 = vmatpush2.msra.mxu0 0.0
    %4776 = vmatprep.mubr.f32.mxu0 0.0
    %4777 = vmatmul.mubr.f32.gmra.mxu0 %v4497
    %v4778 = vpop.f32.mrf.mxu0
    %v4779 = vadd.f32 0.0, %v4778
    %v4780 = vpop.f32.mrf.mxu0
    %4781 = vdwg.mxu0
    %v4782 = vadd.f32 %v3542, %v4779
    %v4783 = vmul.f32 %v4569, 0.5
    %v4784 = vtanh.pop %v4783
    %v4785 = vmul.f32 %v4784, 0.5
    %v4786 = vadd.f32 %v4785, 0.5
    %v4787 = vmul.f32 %v4640, 0.5
    %v4788 = vtanh.pop %v4787
    %v4789 = vmul.f32 %v4788, 0.5
    %v4790 = vadd.f32 %v4789, 0.5
    %v4791 = vtanh.pop %v4711
    %v4792 = vmul.f32 %v4782, 0.5
    %v4793 = vtanh.pop %v4792
    %v4794 = vmul.f32 %v4793, 0.5
    %v4795 = vadd.f32 %v4794, 0.5
    %v4796 = vmul.f32 %v4790, %v4493
    %v4797 = vmul.f32 %v4786, %v4791
    %v4798 = vadd.f32 %v4796, %v4797
    %v4799 = vtanh.pop %v4798
    %v4800 = vmul.f32 %v4795, %v4799
    %v4802 = vsel %vm614, %v4800, 0
    %4804 = vmatprep.subr.mxu0 0.0
    %4805 = vmatpush1.msra.mxu0 0.0
    %4806 = vmatprep.subr.mxu0 0.0
    %4807 = vmatpush1.msra.mxu0 0.0
    %4808 = vmatprep.subr.mxu0 0.0
    %4809 = vmatpush1.msra.mxu0 0.0
    %4810 = vmatprep.subr.mxu0 0.0
    %4811 = vmatpush1.msra.mxu0 0.0
    %4812 = vmatprep.subr.mxu0 0.0
    %4813 = vmatpush1.msra.mxu0 0.0
    %4814 = vmatprep.subr.mxu0 0.0
    %4815 = vmatpush1.msra.mxu0 0.0
    %4816 = vmatprep.subr.mxu0 0.0
    %4817 = vmatpush1.msra.mxu0 0.0
    %4818 = vmatprep.subr.mxu0 0.0
    %4819 = vmatpush1.msra.mxu0 0.0
    %4820 = vmatprep.subr.mxu0 0.0
    %4821 = vmatpush1.msra.mxu0 0.0
    %4822 = vmatprep.subr.mxu0 0.0
    %4823 = vmatpush1.msra.mxu0 0.0
    %4824 = vmatprep.subr.mxu0 0.0
    %4825 = vmatpush1.msra.mxu0 0.0
    %4826 = vmatprep.subr.mxu0 0.0
    %4827 = vmatpush1.msra.mxu0 0.0
    %4828 = vmatprep.subr.mxu0 0.0
    %4829 = vmatpush1.msra.mxu0 %v3568
    %4830 = vmatprep.subr.mxu0 0.0
    %4831 = vmatpush1.msra.mxu0 %v3567
    %4832 = vmatprep.subr.mxu0 0.0
    %4833 = vmatpush1.msra.mxu0 %v3566
    %4834 = vmatprep.subr.mxu0 0.0
    %4835 = vmatpush1.msra.mxu0 %v3565
    %4836 = vmatprep.subr.mxu0 0.0
    %4837 = vmatpush2.msra.mxu0 0.0
    %4838 = vmatprep.subr.mxu0 0.0
    %4839 = vmatpush2.msra.mxu0 0.0
    %4840 = vmatprep.subr.mxu0 0.0
    %4841 = vmatpush2.msra.mxu0 0.0
    %4842 = vmatprep.subr.mxu0 0.0
    %4843 = vmatpush2.msra.mxu0 0.0
    %4844 = vmatprep.subr.mxu0 0.0
    %4845 = vmatpush2.msra.mxu0 0.0
    %4846 = vmatprep.subr.mxu0 0.0
    %4847 = vmatpush2.msra.mxu0 0.0
    %4848 = vmatprep.subr.mxu0 0.0
    %4849 = vmatpush2.msra.mxu0 0.0
    %4850 = vmatprep.subr.mxu0 0.0
    %4851 = vmatpush2.msra.mxu0 0.0
    %4852 = vmatprep.subr.mxu0 0.0
    %4853 = vmatpush2.msra.mxu0 0.0
    %4854 = vmatprep.subr.mxu0 0.0
    %4855 = vmatpush2.msra.mxu0 0.0
    %4856 = vmatprep.subr.mxu0 0.0
    %4857 = vmatpush2.msra.mxu0 0.0
    %4858 = vmatprep.subr.mxu0 0.0
    %4859 = vmatpush2.msra.mxu0 0.0
    %4860 = vmatprep.subr.mxu0 0.0
    %4861 = vmatpush2.msra.mxu0 0.0
    %4862 = vmatprep.subr.mxu0 0.0
    %4863 = vmatpush2.msra.mxu0 0.0
    %4864 = vmatprep.subr.mxu0 0.0
    %4865 = vmatpush2.msra.mxu0 0.0
    %4866 = vmatprep.subr.mxu0 0.0
    %4867 = vmatpush2.msra.mxu0 0.0
    %4868 = vmatprep.mubr.f32.mxu0 0.0
    %4869 = vmatmul.mubr.f32.gmra.mxu0 %v4802
    %v4870 = vpop.f32.mrf.mxu0
    %v4871 = vadd.f32 0.0, %v4870
    %v4872 = vpop.f32.mrf.mxu0
    %4873 = vdwg.mxu0
    %v4874 = vadd.f32 %v3193, %v4871
    %4875 = vmatprep.subr.mxu0 0.0
    %4876 = vmatpush1.msra.mxu0 0.0
    %4877 = vmatprep.subr.mxu0 0.0
    %4878 = vmatpush1.msra.mxu0 0.0
    %4879 = vmatprep.subr.mxu0 0.0
    %4880 = vmatpush1.msra.mxu0 0.0
    %4881 = vmatprep.subr.mxu0 0.0
    %4882 = vmatpush1.msra.mxu0 0.0
    %4883 = vmatprep.subr.mxu0 0.0
    %4884 = vmatpush1.msra.mxu0 0.0
    %4885 = vmatprep.subr.mxu0 0.0
    %4886 = vmatpush1.msra.mxu0 0.0
    %4887 = vmatprep.subr.mxu0 0.0
    %4888 = vmatpush1.msra.mxu0 0.0
    %4889 = vmatprep.subr.mxu0 0.0
    %4890 = vmatpush1.msra.mxu0 0.0
    %4891 = vmatprep.subr.mxu0 0.0
    %4892 = vmatpush1.msra.mxu0 0.0
    %4893 = vmatprep.subr.mxu0 0.0
    %4894 = vmatpush1.msra.mxu0 0.0
    %4895 = vmatprep.subr.mxu0 0.0
    %4896 = vmatpush1.msra.mxu0 0.0
    %4897 = vmatprep.subr.mxu0 0.0
    %4898 = vmatpush1.msra.mxu0 0.0
    %4899 = vmatprep.subr.mxu0 0.0
    %4900 = vmatpush1.msra.mxu0 %v3573
    %4901 = vmatprep.subr.mxu0 0.0
    %4902 = vmatpush1.msra.mxu0 %v3572
    %4903 = vmatprep.subr.mxu0 0.0
    %4904 = vmatpush1.msra.mxu0 %v3571
    %4905 = vmatprep.subr.mxu0 0.0
    %4906 = vmatpush1.msra.mxu0 %v3570
    %4907 = vmatprep.subr.mxu0 0.0
    %4908 = vmatpush2.msra.mxu0 0.0
    %4909 = vmatprep.subr.mxu0 0.0
    %4910 = vmatpush2.msra.mxu0 0.0
    %4911 = vmatprep.subr.mxu0 0.0
    %4912 = vmatpush2.msra.mxu0 0.0
    %4913 = vmatprep.subr.mxu0 0.0
    %4914 = vmatpush2.msra.mxu0 0.0
    %4915 = vmatprep.subr.mxu0 0.0
    %4916 = vmatpush2.msra.mxu0 0.0
    %4917 = vmatprep.subr.mxu0 0.0
    %4918 = vmatpush2.msra.mxu0 0.0
    %4919 = vmatprep.subr.mxu0 0.0
    %4920 = vmatpush2.msra.mxu0 0.0
    %4921 = vmatprep.subr.mxu0 0.0
    %4922 = vmatpush2.msra.mxu0 0.0
    %4923 = vmatprep.subr.mxu0 0.0
    %4924 = vmatpush2.msra.mxu0 0.0
    %4925 = vmatprep.subr.mxu0 0.0
    %4926 = vmatpush2.msra.mxu0 0.0
    %4927 = vmatprep.subr.mxu0 0.0
    %4928 = vmatpush2.msra.mxu0 0.0
    %4929 = vmatprep.subr.mxu0 0.0
    %4930 = vmatpush2.msra.mxu0 0.0
    %4931 = vmatprep.subr.mxu0 0.0
    %4932 = vmatpush2.msra.mxu0 0.0
    %4933 = vmatprep.subr.mxu0 0.0
    %4934 = vmatpush2.msra.mxu0 0.0
    %4935 = vmatprep.subr.mxu0 0.0
    %4936 = vmatpush2.msra.mxu0 0.0
    %4937 = vmatprep.subr.mxu0 0.0
    %4938 = vmatpush2.msra.mxu0 0.0
    %4939 = vmatprep.mubr.f32.mxu0 0.0
    %4940 = vmatmul.mubr.f32.gmra.mxu0 %v4802
    %v4941 = vpop.f32.mrf.mxu0
    %v4942 = vadd.f32 0.0, %v4941
    %v4943 = vpop.f32.mrf.mxu0
    %4944 = vdwg.mxu0
    %v4945 = vadd.f32 %v3311, %v4942
    %4946 = vmatprep.subr.mxu0 0.0
    %4947 = vmatpush1.msra.mxu0 0.0
    %4948 = vmatprep.subr.mxu0 0.0
    %4949 = vmatpush1.msra.mxu0 0.0
    %4950 = vmatprep.subr.mxu0 0.0
    %4951 = vmatpush1.msra.mxu0 0.0
    %4952 = vmatprep.subr.mxu0 0.0
    %4953 = vmatpush1.msra.mxu0 0.0
    %4954 = vmatprep.subr.mxu0 0.0
    %4955 = vmatpush1.msra.mxu0 0.0
    %4956 = vmatprep.subr.mxu0 0.0
    %4957 = vmatpush1.msra.mxu0 0.0
    %4958 = vmatprep.subr.mxu0 0.0
    %4959 = vmatpush1.msra.mxu0 0.0
    %4960 = vmatprep.subr.mxu0 0.0
    %4961 = vmatpush1.msra.mxu0 0.0
    %4962 = vmatprep.subr.mxu0 0.0
    %4963 = vmatpush1.msra.mxu0 0.0
    %4964 = vmatprep.subr.mxu0 0.0
    %4965 = vmatpush1.msra.mxu0 0.0
    %4966 = vmatprep.subr.mxu0 0.0
    %4967 = vmatpush1.msra.mxu0 0.0
    %4968 = vmatprep.subr.mxu0 0.0
    %4969 = vmatpush1.msra.mxu0 0.0
    %4970 = vmatprep.subr.mxu0 0.0
    %4971 = vmatpush1.msra.mxu0 %v3578
    %4972 = vmatprep.subr.mxu0 0.0
    %4973 = vmatpush1.msra.mxu0 %v3577
    %4974 = vmatprep.subr.mxu0 0.0
    %4975 = vmatpush1.msra.mxu0 %v3576
    %4976 = vmatprep.subr.mxu0 0.0
    %4977 = vmatpush1.msra.mxu0 %v3575
    %4978 = vmatprep.subr.mxu0 0.0
    %4979 = vmatpush2.msra.mxu0 0.0
    %4980 = vmatprep.subr.mxu0 0.0
    %4981 = vmatpush2.msra.mxu0 0.0
    %4982 = vmatprep.subr.mxu0 0.0
    %4983 = vmatpush2.msra.mxu0 0.0
    %4984 = vmatprep.subr.mxu0 0.0
    %4985 = vmatpush2.msra.mxu0 0.0
    %4986 = vmatprep.subr.mxu0 0.0
    %4987 = vmatpush2.msra.mxu0 0.0
    %4988 = vmatprep.subr.mxu0 0.0
    %4989 = vmatpush2.msra.mxu0 0.0
    %4990 = vmatprep.subr.mxu0 0.0
    %4991 = vmatpush2.msra.mxu0 0.0
    %4992 = vmatprep.subr.mxu0 0.0
    %4993 = vmatpush2.msra.mxu0 0.0
    %4994 = vmatprep.subr.mxu0 0.0
    %4995 = vmatpush2.msra.mxu0 0.0
    %4996 = vmatprep.subr.mxu0 0.0
    %4997 = vmatpush2.msra.mxu0 0.0
    %4998 = vmatprep.subr.mxu0 0.0
    %4999 = vmatpush2.msra.mxu0 0.0
    %5000 = vmatprep.subr.mxu0 0.0
    %5001 = vmatpush2.msra.mxu0 0.0
    %5002 = vmatprep.subr.mxu0 0.0
    %5003 = vmatpush2.msra.mxu0 0.0
    %5004 = vmatprep.subr.mxu0 0.0
    %5005 = vmatpush2.msra.mxu0 0.0
    %5006 = vmatprep.subr.mxu0 0.0
    %5007 = vmatpush2.msra.mxu0 0.0
    %5008 = vmatprep.subr.mxu0 0.0
    %5009 = vmatpush2.msra.mxu0 0.0
    %5010 = vmatprep.mubr.f32.mxu0 0.0
    %5011 = vmatmul.mubr.f32.gmra.mxu0 %v4802
    %v5012 = vpop.f32.mrf.mxu0
    %v5013 = vadd.f32 0.0, %v5012
    %v5014 = vpop.f32.mrf.mxu0
    %5015 = vdwg.mxu0
    %v5016 = vadd.f32 %v3429, %v5013
    %5017 = vmatprep.subr.mxu0 0.0
    %5018 = vmatpush1.msra.mxu0 0.0
    %5019 = vmatprep.subr.mxu0 0.0
    %5020 = vmatpush1.msra.mxu0 0.0
    %5021 = vmatprep.subr.mxu0 0.0
    %5022 = vmatpush1.msra.mxu0 0.0
    %5023 = vmatprep.subr.mxu0 0.0
    %5024 = vmatpush1.msra.mxu0 0.0
    %5025 = vmatprep.subr.mxu0 0.0
    %5026 = vmatpush1.msra.mxu0 0.0
    %5027 = vmatprep.subr.mxu0 0.0
    %5028 = vmatpush1.msra.mxu0 0.0
    %5029 = vmatprep.subr.mxu0 0.0
    %5030 = vmatpush1.msra.mxu0 0.0
    %5031 = vmatprep.subr.mxu0 0.0
    %5032 = vmatpush1.msra.mxu0 0.0
    %5033 = vmatprep.subr.mxu0 0.0
    %5034 = vmatpush1.msra.mxu0 0.0
    %5035 = vmatprep.subr.mxu0 0.0
    %5036 = vmatpush1.msra.mxu0 0.0
    %5037 = vmatprep.subr.mxu0 0.0
    %5038 = vmatpush1.msra.mxu0 0.0
    %5039 = vmatprep.subr.mxu0 0.0
    %5040 = vmatpush1.msra.mxu0 0.0
    %5041 = vmatprep.subr.mxu0 0.0
    %5042 = vmatpush1.msra.mxu0 %v3583
    %5043 = vmatprep.subr.mxu0 0.0
    %5044 = vmatpush1.msra.mxu0 %v3582
    %5045 = vmatprep.subr.mxu0 0.0
    %5046 = vmatpush1.msra.mxu0 %v3581
    %5047 = vmatprep.subr.mxu0 0.0
    %5048 = vmatpush1.msra.mxu0 %v3580
    %5049 = vmatprep.subr.mxu0 0.0
    %5050 = vmatpush2.msra.mxu0 0.0
    %5051 = vmatprep.subr.mxu0 0.0
    %5052 = vmatpush2.msra.mxu0 0.0
    %5053 = vmatprep.subr.mxu0 0.0
    %5054 = vmatpush2.msra.mxu0 0.0
    %5055 = vmatprep.subr.mxu0 0.0
    %5056 = vmatpush2.msra.mxu0 0.0
    %5057 = vmatprep.subr.mxu0 0.0
    %5058 = vmatpush2.msra.mxu0 0.0
    %5059 = vmatprep.subr.mxu0 0.0
    %5060 = vmatpush2.msra.mxu0 0.0
    %5061 = vmatprep.subr.mxu0 0.0
    %5062 = vmatpush2.msra.mxu0 0.0
    %5063 = vmatprep.subr.mxu0 0.0
    %5064 = vmatpush2.msra.mxu0 0.0
    %5065 = vmatprep.subr.mxu0 0.0
    %5066 = vmatpush2.msra.mxu0 0.0
    %5067 = vmatprep.subr.mxu0 0.0
    %5068 = vmatpush2.msra.mxu0 0.0
    %5069 = vmatprep.subr.mxu0 0.0
    %5070 = vmatpush2.msra.mxu0 0.0
    %5071 = vmatprep.subr.mxu0 0.0
    %5072 = vmatpush2.msra.mxu0 0.0
    %5073 = vmatprep.subr.mxu0 0.0
    %5074 = vmatpush2.msra.mxu0 0.0
    %5075 = vmatprep.subr.mxu0 0.0
    %5076 = vmatpush2.msra.mxu0 0.0
    %5077 = vmatprep.subr.mxu0 0.0
    %5078 = vmatpush2.msra.mxu0 0.0
    %5079 = vmatprep.subr.mxu0 0.0
    %5080 = vmatpush2.msra.mxu0 0.0
    %5081 = vmatprep.mubr.f32.mxu0 0.0
    %5082 = vmatmul.mubr.f32.gmra.mxu0 %v4802
    %v5083 = vpop.f32.mrf.mxu0
    %v5084 = vadd.f32 0.0, %v5083
    %v5085 = vpop.f32.mrf.mxu0
    %5086 = vdwg.mxu0
    %v5087 = vadd.f32 %v3547, %v5084
    %v5088 = vmul.f32 %v4874, 0.5
    %v5089 = vtanh.pop %v5088
    %v5090 = vmul.f32 %v5089, 0.5
    %v5091 = vadd.f32 %v5090, 0.5
    %v5092 = vmul.f32 %v4945, 0.5
    %v5093 = vtanh.pop %v5092
    %v5094 = vmul.f32 %v5093, 0.5
    %v5095 = vadd.f32 %v5094, 0.5
    %v5096 = vtanh.pop %v5016
    %v5097 = vmul.f32 %v5087, 0.5
    %v5098 = vtanh.pop %v5097
    %v5099 = vmul.f32 %v5098, 0.5
    %v5100 = vadd.f32 %v5099, 0.5
    %v5101 = vmul.f32 %v5095, %v4798
    %v5102 = vmul.f32 %v5091, %v5096
    %v5103 = vadd.f32 %v5101, %v5102
    %v5104 = vtanh.pop %v5103
    %v5105 = vmul.f32 %v5100, %v5104
    %v5107 = vsel %vm614, %v5105, 0
    %5109 = vmatprep.subr.mxu0 0.0
    %5110 = vmatpush1.msra.mxu0 0.0
    %5111 = vmatprep.subr.mxu0 0.0
    %5112 = vmatpush1.msra.mxu0 0.0
    %5113 = vmatprep.subr.mxu0 0.0
    %5114 = vmatpush1.msra.mxu0 0.0
    %5115 = vmatprep.subr.mxu0 0.0
    %5116 = vmatpush1.msra.mxu0 0.0
    %5117 = vmatprep.subr.mxu0 0.0
    %5118 = vmatpush1.msra.mxu0 0.0
    %5119 = vmatprep.subr.mxu0 0.0
    %5120 = vmatpush1.msra.mxu0 0.0
    %5121 = vmatprep.subr.mxu0 0.0
    %5122 = vmatpush1.msra.mxu0 0.0
    %5123 = vmatprep.subr.mxu0 0.0
    %5124 = vmatpush1.msra.mxu0 0.0
    %5125 = vmatprep.subr.mxu0 0.0
    %5126 = vmatpush1.msra.mxu0 0.0
    %5127 = vmatprep.subr.mxu0 0.0
    %5128 = vmatpush1.msra.mxu0 0.0
    %5129 = vmatprep.subr.mxu0 0.0
    %5130 = vmatpush1.msra.mxu0 0.0
    %5131 = vmatprep.subr.mxu0 0.0
    %5132 = vmatpush1.msra.mxu0 0.0
    %5133 = vmatprep.subr.mxu0 0.0
    %5134 = vmatpush1.msra.mxu0 %v3568
    %5135 = vmatprep.subr.mxu0 0.0
    %5136 = vmatpush1.msra.mxu0 %v3567
    %5137 = vmatprep.subr.mxu0 0.0
    %5138 = vmatpush1.msra.mxu0 %v3566
    %5139 = vmatprep.subr.mxu0 0.0
    %5140 = vmatpush1.msra.mxu0 %v3565
    %5141 = vmatprep.subr.mxu0 0.0
    %5142 = vmatpush2.msra.mxu0 0.0
    %5143 = vmatprep.subr.mxu0 0.0
    %5144 = vmatpush2.msra.mxu0 0.0
    %5145 = vmatprep.subr.mxu0 0.0
    %5146 = vmatpush2.msra.mxu0 0.0
    %5147 = vmatprep.subr.mxu0 0.0
    %5148 = vmatpush2.msra.mxu0 0.0
    %5149 = vmatprep.subr.mxu0 0.0
    %5150 = vmatpush2.msra.mxu0 0.0
    %5151 = vmatprep.subr.mxu0 0.0
    %5152 = vmatpush2.msra.mxu0 0.0
    %5153 = vmatprep.subr.mxu0 0.0
    %5154 = vmatpush2.msra.mxu0 0.0
    %5155 = vmatprep.subr.mxu0 0.0
    %5156 = vmatpush2.msra.mxu0 0.0
    %5157 = vmatprep.subr.mxu0 0.0
    %5158 = vmatpush2.msra.mxu0 0.0
    %5159 = vmatprep.subr.mxu0 0.0
    %5160 = vmatpush2.msra.mxu0 0.0
    %5161 = vmatprep.subr.mxu0 0.0
    %5162 = vmatpush2.msra.mxu0 0.0
    %5163 = vmatprep.subr.mxu0 0.0
    %5164 = vmatpush2.msra.mxu0 0.0
    %5165 = vmatprep.subr.mxu0 0.0
    %5166 = vmatpush2.msra.mxu0 0.0
    %5167 = vmatprep.subr.mxu0 0.0
    %5168 = vmatpush2.msra.mxu0 0.0
    %5169 = vmatprep.subr.mxu0 0.0
    %5170 = vmatpush2.msra.mxu0 0.0
    %5171 = vmatprep.subr.mxu0 0.0
    %5172 = vmatpush2.msra.mxu0 0.0
    %5173 = vmatprep.mubr.f32.mxu0 0.0
    %5174 = vmatmul.mubr.f32.gmra.mxu0 %v5107
    %v5175 = vpop.f32.mrf.mxu0
    %v5176 = vadd.f32 0.0, %v5175
    %v5177 = vpop.f32.mrf.mxu0
    %5178 = vdwg.mxu0
    %v5179 = vadd.f32 %v3198, %v5176
    %5180 = vmatprep.subr.mxu0 0.0
    %5181 = vmatpush1.msra.mxu0 0.0
    %5182 = vmatprep.subr.mxu0 0.0
    %5183 = vmatpush1.msra.mxu0 0.0
    %5184 = vmatprep.subr.mxu0 0.0
    %5185 = vmatpush1.msra.mxu0 0.0
    %5186 = vmatprep.subr.mxu0 0.0
    %5187 = vmatpush1.msra.mxu0 0.0
    %5188 = vmatprep.subr.mxu0 0.0
    %5189 = vmatpush1.msra.mxu0 0.0
    %5190 = vmatprep.subr.mxu0 0.0
    %5191 = vmatpush1.msra.mxu0 0.0
    %5192 = vmatprep.subr.mxu0 0.0
    %5193 = vmatpush1.msra.mxu0 0.0
    %5194 = vmatprep.subr.mxu0 0.0
    %5195 = vmatpush1.msra.mxu0 0.0
    %5196 = vmatprep.subr.mxu0 0.0
    %5197 = vmatpush1.msra.mxu0 0.0
    %5198 = vmatprep.subr.mxu0 0.0
    %5199 = vmatpush1.msra.mxu0 0.0
    %5200 = vmatprep.subr.mxu0 0.0
    %5201 = vmatpush1.msra.mxu0 0.0
    %5202 = vmatprep.subr.mxu0 0.0
    %5203 = vmatpush1.msra.mxu0 0.0
    %5204 = vmatprep.subr.mxu0 0.0
    %5205 = vmatpush1.msra.mxu0 %v3573
    %5206 = vmatprep.subr.mxu0 0.0
    %5207 = vmatpush1.msra.mxu0 %v3572
    %5208 = vmatprep.subr.mxu0 0.0
    %5209 = vmatpush1.msra.mxu0 %v3571
    %5210 = vmatprep.subr.mxu0 0.0
    %5211 = vmatpush1.msra.mxu0 %v3570
    %5212 = vmatprep.subr.mxu0 0.0
    %5213 = vmatpush2.msra.mxu0 0.0
    %5214 = vmatprep.subr.mxu0 0.0
    %5215 = vmatpush2.msra.mxu0 0.0
    %5216 = vmatprep.subr.mxu0 0.0
    %5217 = vmatpush2.msra.mxu0 0.0
    %5218 = vmatprep.subr.mxu0 0.0
    %5219 = vmatpush2.msra.mxu0 0.0
    %5220 = vmatprep.subr.mxu0 0.0
    %5221 = vmatpush2.msra.mxu0 0.0
    %5222 = vmatprep.subr.mxu0 0.0
    %5223 = vmatpush2.msra.mxu0 0.0
    %5224 = vmatprep.subr.mxu0 0.0
    %5225 = vmatpush2.msra.mxu0 0.0
    %5226 = vmatprep.subr.mxu0 0.0
    %5227 = vmatpush2.msra.mxu0 0.0
    %5228 = vmatprep.subr.mxu0 0.0
    %5229 = vmatpush2.msra.mxu0 0.0
    %5230 = vmatprep.subr.mxu0 0.0
    %5231 = vmatpush2.msra.mxu0 0.0
    %5232 = vmatprep.subr.mxu0 0.0
    %5233 = vmatpush2.msra.mxu0 0.0
    %5234 = vmatprep.subr.mxu0 0.0
    %5235 = vmatpush2.msra.mxu0 0.0
    %5236 = vmatprep.subr.mxu0 0.0
    %5237 = vmatpush2.msra.mxu0 0.0
    %5238 = vmatprep.subr.mxu0 0.0
    %5239 = vmatpush2.msra.mxu0 0.0
    %5240 = vmatprep.subr.mxu0 0.0
    %5241 = vmatpush2.msra.mxu0 0.0
    %5242 = vmatprep.subr.mxu0 0.0
    %5243 = vmatpush2.msra.mxu0 0.0
    %5244 = vmatprep.mubr.f32.mxu0 0.0
    %5245 = vmatmul.mubr.f32.gmra.mxu0 %v5107
    %v5246 = vpop.f32.mrf.mxu0
    %v5247 = vadd.f32 0.0, %v5246
    %v5248 = vpop.f32.mrf.mxu0
    %5249 = vdwg.mxu0
    %v5250 = vadd.f32 %v3316, %v5247
    %5251 = vmatprep.subr.mxu0 0.0
    %5252 = vmatpush1.msra.mxu0 0.0
    %5253 = vmatprep.subr.mxu0 0.0
    %5254 = vmatpush1.msra.mxu0 0.0
    %5255 = vmatprep.subr.mxu0 0.0
    %5256 = vmatpush1.msra.mxu0 0.0
    %5257 = vmatprep.subr.mxu0 0.0
    %5258 = vmatpush1.msra.mxu0 0.0
    %5259 = vmatprep.subr.mxu0 0.0
    %5260 = vmatpush1.msra.mxu0 0.0
    %5261 = vmatprep.subr.mxu0 0.0
    %5262 = vmatpush1.msra.mxu0 0.0
    %5263 = vmatprep.subr.mxu0 0.0
    %5264 = vmatpush1.msra.mxu0 0.0
    %5265 = vmatprep.subr.mxu0 0.0
    %5266 = vmatpush1.msra.mxu0 0.0
    %5267 = vmatprep.subr.mxu0 0.0
    %5268 = vmatpush1.msra.mxu0 0.0
    %5269 = vmatprep.subr.mxu0 0.0
    %5270 = vmatpush1.msra.mxu0 0.0
    %5271 = vmatprep.subr.mxu0 0.0
    %5272 = vmatpush1.msra.mxu0 0.0
    %5273 = vmatprep.subr.mxu0 0.0
    %5274 = vmatpush1.msra.mxu0 0.0
    %5275 = vmatprep.subr.mxu0 0.0
    %5276 = vmatpush1.msra.mxu0 %v3578
    %5277 = vmatprep.subr.mxu0 0.0
    %5278 = vmatpush1.msra.mxu0 %v3577
    %5279 = vmatprep.subr.mxu0 0.0
    %5280 = vmatpush1.msra.mxu0 %v3576
    %5281 = vmatprep.subr.mxu0 0.0
    %5282 = vmatpush1.msra.mxu0 %v3575
    %5283 = vmatprep.subr.mxu0 0.0
    %5284 = vmatpush2.msra.mxu0 0.0
    %5285 = vmatprep.subr.mxu0 0.0
    %5286 = vmatpush2.msra.mxu0 0.0
    %5287 = vmatprep.subr.mxu0 0.0
    %5288 = vmatpush2.msra.mxu0 0.0
    %5289 = vmatprep.subr.mxu0 0.0
    %5290 = vmatpush2.msra.mxu0 0.0
    %5291 = vmatprep.subr.mxu0 0.0
    %5292 = vmatpush2.msra.mxu0 0.0
    %5293 = vmatprep.subr.mxu0 0.0
    %5294 = vmatpush2.msra.mxu0 0.0
    %5295 = vmatprep.subr.mxu0 0.0
    %5296 = vmatpush2.msra.mxu0 0.0
    %5297 = vmatprep.subr.mxu0 0.0
    %5298 = vmatpush2.msra.mxu0 0.0
    %5299 = vmatprep.subr.mxu0 0.0
    %5300 = vmatpush2.msra.mxu0 0.0
    %5301 = vmatprep.subr.mxu0 0.0
    %5302 = vmatpush2.msra.mxu0 0.0
    %5303 = vmatprep.subr.mxu0 0.0
    %5304 = vmatpush2.msra.mxu0 0.0
    %5305 = vmatprep.subr.mxu0 0.0
    %5306 = vmatpush2.msra.mxu0 0.0
    %5307 = vmatprep.subr.mxu0 0.0
    %5308 = vmatpush2.msra.mxu0 0.0
    %5309 = vmatprep.subr.mxu0 0.0
    %5310 = vmatpush2.msra.mxu0 0.0
    %5311 = vmatprep.subr.mxu0 0.0
    %5312 = vmatpush2.msra.mxu0 0.0
    %5313 = vmatprep.subr.mxu0 0.0
    %5314 = vmatpush2.msra.mxu0 0.0
    %5315 = vmatprep.mubr.f32.mxu0 0.0
    %5316 = vmatmul.mubr.f32.gmra.mxu0 %v5107
    %v5317 = vpop.f32.mrf.mxu0
    %v5318 = vadd.f32 0.0, %v5317
    %v5319 = vpop.f32.mrf.mxu0
    %5320 = vdwg.mxu0
    %v5321 = vadd.f32 %v3434, %v5318
    %5322 = vmatprep.subr.mxu0 0.0
    %5323 = vmatpush1.msra.mxu0 0.0
    %5324 = vmatprep.subr.mxu0 0.0
    %5325 = vmatpush1.msra.mxu0 0.0
    %5326 = vmatprep.subr.mxu0 0.0
    %5327 = vmatpush1.msra.mxu0 0.0
    %5328 = vmatprep.subr.mxu0 0.0
    %5329 = vmatpush1.msra.mxu0 0.0
    %5330 = vmatprep.subr.mxu0 0.0
    %5331 = vmatpush1.msra.mxu0 0.0
    %5332 = vmatprep.subr.mxu0 0.0
    %5333 = vmatpush1.msra.mxu0 0.0
    %5334 = vmatprep.subr.mxu0 0.0
    %5335 = vmatpush1.msra.mxu0 0.0
    %5336 = vmatprep.subr.mxu0 0.0
    %5337 = vmatpush1.msra.mxu0 0.0
    %5338 = vmatprep.subr.mxu0 0.0
    %5339 = vmatpush1.msra.mxu0 0.0
    %5340 = vmatprep.subr.mxu0 0.0
    %5341 = vmatpush1.msra.mxu0 0.0
    %5342 = vmatprep.subr.mxu0 0.0
    %5343 = vmatpush1.msra.mxu0 0.0
    %5344 = vmatprep.subr.mxu0 0.0
    %5345 = vmatpush1.msra.mxu0 0.0
    %5346 = vmatprep.subr.mxu0 0.0
    %5347 = vmatpush1.msra.mxu0 %v3583
    %5348 = vmatprep.subr.mxu0 0.0
    %5349 = vmatpush1.msra.mxu0 %v3582
    %5350 = vmatprep.subr.mxu0 0.0
    %5351 = vmatpush1.msra.mxu0 %v3581
    %5352 = vmatprep.subr.mxu0 0.0
    %5353 = vmatpush1.msra.mxu0 %v3580
    %5354 = vmatprep.subr.mxu0 0.0
    %5355 = vmatpush2.msra.mxu0 0.0
    %5356 = vmatprep.subr.mxu0 0.0
    %5357 = vmatpush2.msra.mxu0 0.0
    %5358 = vmatprep.subr.mxu0 0.0
    %5359 = vmatpush2.msra.mxu0 0.0
    %5360 = vmatprep.subr.mxu0 0.0
    %5361 = vmatpush2.msra.mxu0 0.0
    %5362 = vmatprep.subr.mxu0 0.0
    %5363 = vmatpush2.msra.mxu0 0.0
    %5364 = vmatprep.subr.mxu0 0.0
    %5365 = vmatpush2.msra.mxu0 0.0
    %5366 = vmatprep.subr.mxu0 0.0
    %5367 = vmatpush2.msra.mxu0 0.0
    %5368 = vmatprep.subr.mxu0 0.0
    %5369 = vmatpush2.msra.mxu0 0.0
    %5370 = vmatprep.subr.mxu0 0.0
    %5371 = vmatpush2.msra.mxu0 0.0
    %5372 = vmatprep.subr.mxu0 0.0
    %5373 = vmatpush2.msra.mxu0 0.0
    %5374 = vmatprep.subr.mxu0 0.0
    %5375 = vmatpush2.msra.mxu0 0.0
    %5376 = vmatprep.subr.mxu0 0.0
    %5377 = vmatpush2.msra.mxu0 0.0
    %5378 = vmatprep.subr.mxu0 0.0
    %5379 = vmatpush2.msra.mxu0 0.0
    %5380 = vmatprep.subr.mxu0 0.0
    %5381 = vmatpush2.msra.mxu0 0.0
    %5382 = vmatprep.subr.mxu0 0.0
    %5383 = vmatpush2.msra.mxu0 0.0
    %5384 = vmatprep.subr.mxu0 0.0
    %5385 = vmatpush2.msra.mxu0 0.0
    %5386 = vmatprep.mubr.f32.mxu0 0.0
    %5387 = vmatmul.mubr.f32.gmra.mxu0 %v5107
    %v5388 = vpop.f32.mrf.mxu0
    %v5389 = vadd.f32 0.0, %v5388
    %v5390 = vpop.f32.mrf.mxu0
    %5391 = vdwg.mxu0
    %v5392 = vadd.f32 %v3552, %v5389
    %v5393 = vmul.f32 %v5179, 0.5
    %v5394 = vtanh.pop %v5393
    %v5395 = vmul.f32 %v5394, 0.5
    %v5396 = vadd.f32 %v5395, 0.5
    %v5397 = vmul.f32 %v5250, 0.5
    %v5398 = vtanh.pop %v5397
    %v5399 = vmul.f32 %v5398, 0.5
    %v5400 = vadd.f32 %v5399, 0.5
    %v5401 = vtanh.pop %v5321
    %v5402 = vmul.f32 %v5392, 0.5
    %v5403 = vtanh.pop %v5402
    %v5404 = vmul.f32 %v5403, 0.5
    %v5405 = vadd.f32 %v5404, 0.5
    %v5406 = vmul.f32 %v5400, %v5103
    %v5407 = vmul.f32 %v5396, %v5401
    %v5408 = vadd.f32 %v5406, %v5407
    %v5409 = vtanh.pop %v5408
    %v5410 = vmul.f32 %v5405, %v5409
    %v5412 = vsel %vm614, %v5410, 0
    %5414 = vmatprep.subr.mxu0 0.0
    %5415 = vmatpush1.msra.mxu0 0.0
    %5416 = vmatprep.subr.mxu0 0.0
    %5417 = vmatpush1.msra.mxu0 0.0
    %5418 = vmatprep.subr.mxu0 0.0
    %5419 = vmatpush1.msra.mxu0 0.0
    %5420 = vmatprep.subr.mxu0 0.0
    %5421 = vmatpush1.msra.mxu0 0.0
    %5422 = vmatprep.subr.mxu0 0.0
    %5423 = vmatpush1.msra.mxu0 0.0
    %5424 = vmatprep.subr.mxu0 0.0
    %5425 = vmatpush1.msra.mxu0 0.0
    %5426 = vmatprep.subr.mxu0 0.0
    %5427 = vmatpush1.msra.mxu0 0.0
    %5428 = vmatprep.subr.mxu0 0.0
    %5429 = vmatpush1.msra.mxu0 0.0
    %5430 = vmatprep.subr.mxu0 0.0
    %5431 = vmatpush1.msra.mxu0 0.0
    %5432 = vmatprep.subr.mxu0 0.0
    %5433 = vmatpush1.msra.mxu0 0.0
    %5434 = vmatprep.subr.mxu0 0.0
    %5435 = vmatpush1.msra.mxu0 0.0
    %5436 = vmatprep.subr.mxu0 0.0
    %5437 = vmatpush1.msra.mxu0 0.0
    %5438 = vmatprep.subr.mxu0 0.0
    %5439 = vmatpush1.msra.mxu0 %v3568
    %5440 = vmatprep.subr.mxu0 0.0
    %5441 = vmatpush1.msra.mxu0 %v3567
    %5442 = vmatprep.subr.mxu0 0.0
    %5443 = vmatpush1.msra.mxu0 %v3566
    %5444 = vmatprep.subr.mxu0 0.0
    %5445 = vmatpush1.msra.mxu0 %v3565
    %5446 = vmatprep.subr.mxu0 0.0
    %5447 = vmatpush2.msra.mxu0 0.0
    %5448 = vmatprep.subr.mxu0 0.0
    %5449 = vmatpush2.msra.mxu0 0.0
    %5450 = vmatprep.subr.mxu0 0.0
    %5451 = vmatpush2.msra.mxu0 0.0
    %5452 = vmatprep.subr.mxu0 0.0
    %5453 = vmatpush2.msra.mxu0 0.0
    %5454 = vmatprep.subr.mxu0 0.0
    %5455 = vmatpush2.msra.mxu0 0.0
    %5456 = vmatprep.subr.mxu0 0.0
    %5457 = vmatpush2.msra.mxu0 0.0
    %5458 = vmatprep.subr.mxu0 0.0
    %5459 = vmatpush2.msra.mxu0 0.0
    %5460 = vmatprep.subr.mxu0 0.0
    %5461 = vmatpush2.msra.mxu0 0.0
    %5462 = vmatprep.subr.mxu0 0.0
    %5463 = vmatpush2.msra.mxu0 0.0
    %5464 = vmatprep.subr.mxu0 0.0
    %5465 = vmatpush2.msra.mxu0 0.0
    %5466 = vmatprep.subr.mxu0 0.0
    %5467 = vmatpush2.msra.mxu0 0.0
    %5468 = vmatprep.subr.mxu0 0.0
    %5469 = vmatpush2.msra.mxu0 0.0
    %5470 = vmatprep.subr.mxu0 0.0
    %5471 = vmatpush2.msra.mxu0 0.0
    %5472 = vmatprep.subr.mxu0 0.0
    %5473 = vmatpush2.msra.mxu0 0.0
    %5474 = vmatprep.subr.mxu0 0.0
    %5475 = vmatpush2.msra.mxu0 0.0
    %5476 = vmatprep.subr.mxu0 0.0
    %5477 = vmatpush2.msra.mxu0 0.0
    %5478 = vmatprep.mubr.f32.mxu0 0.0
    %5479 = vmatmul.mubr.f32.gmra.mxu0 %v5412
    %v5480 = vpop.f32.mrf.mxu0
    %v5481 = vadd.f32 0.0, %v5480
    %v5482 = vpop.f32.mrf.mxu0
    %5483 = vdwg.mxu0
    %v5484 = vadd.f32 %v3203, %v5481
    %5485 = vmatprep.subr.mxu0 0.0
    %5486 = vmatpush1.msra.mxu0 0.0
    %5487 = vmatprep.subr.mxu0 0.0
    %5488 = vmatpush1.msra.mxu0 0.0
    %5489 = vmatprep.subr.mxu0 0.0
    %5490 = vmatpush1.msra.mxu0 0.0
    %5491 = vmatprep.subr.mxu0 0.0
    %5492 = vmatpush1.msra.mxu0 0.0
    %5493 = vmatprep.subr.mxu0 0.0
    %5494 = vmatpush1.msra.mxu0 0.0
    %5495 = vmatprep.subr.mxu0 0.0
    %5496 = vmatpush1.msra.mxu0 0.0
    %5497 = vmatprep.subr.mxu0 0.0
    %5498 = vmatpush1.msra.mxu0 0.0
    %5499 = vmatprep.subr.mxu0 0.0
    %5500 = vmatpush1.msra.mxu0 0.0
    %5501 = vmatprep.subr.mxu0 0.0
    %5502 = vmatpush1.msra.mxu0 0.0
    %5503 = vmatprep.subr.mxu0 0.0
    %5504 = vmatpush1.msra.mxu0 0.0
    %5505 = vmatprep.subr.mxu0 0.0
    %5506 = vmatpush1.msra.mxu0 0.0
    %5507 = vmatprep.subr.mxu0 0.0
    %5508 = vmatpush1.msra.mxu0 0.0
    %5509 = vmatprep.subr.mxu0 0.0
    %5510 = vmatpush1.msra.mxu0 %v3573
    %5511 = vmatprep.subr.mxu0 0.0
    %5512 = vmatpush1.msra.mxu0 %v3572
    %5513 = vmatprep.subr.mxu0 0.0
    %5514 = vmatpush1.msra.mxu0 %v3571
    %5515 = vmatprep.subr.mxu0 0.0
    %5516 = vmatpush1.msra.mxu0 %v3570
    %5517 = vmatprep.subr.mxu0 0.0
    %5518 = vmatpush2.msra.mxu0 0.0
    %5519 = vmatprep.subr.mxu0 0.0
    %5520 = vmatpush2.msra.mxu0 0.0
    %5521 = vmatprep.subr.mxu0 0.0
    %5522 = vmatpush2.msra.mxu0 0.0
    %5523 = vmatprep.subr.mxu0 0.0
    %5524 = vmatpush2.msra.mxu0 0.0
    %5525 = vmatprep.subr.mxu0 0.0
    %5526 = vmatpush2.msra.mxu0 0.0
    %5527 = vmatprep.subr.mxu0 0.0
    %5528 = vmatpush2.msra.mxu0 0.0
    %5529 = vmatprep.subr.mxu0 0.0
    %5530 = vmatpush2.msra.mxu0 0.0
    %5531 = vmatprep.subr.mxu0 0.0
    %5532 = vmatpush2.msra.mxu0 0.0
    %5533 = vmatprep.subr.mxu0 0.0
    %5534 = vmatpush2.msra.mxu0 0.0
    %5535 = vmatprep.subr.mxu0 0.0
    %5536 = vmatpush2.msra.mxu0 0.0
    %5537 = vmatprep.subr.mxu0 0.0
    %5538 = vmatpush2.msra.mxu0 0.0
    %5539 = vmatprep.subr.mxu0 0.0
    %5540 = vmatpush2.msra.mxu0 0.0
    %5541 = vmatprep.subr.mxu0 0.0
    %5542 = vmatpush2.msra.mxu0 0.0
    %5543 = vmatprep.subr.mxu0 0.0
    %5544 = vmatpush2.msra.mxu0 0.0
    %5545 = vmatprep.subr.mxu0 0.0
    %5546 = vmatpush2.msra.mxu0 0.0
    %5547 = vmatprep.subr.mxu0 0.0
    %5548 = vmatpush2.msra.mxu0 0.0
    %5549 = vmatprep.mubr.f32.mxu0 0.0
    %5550 = vmatmul.mubr.f32.gmra.mxu0 %v5412
    %v5551 = vpop.f32.mrf.mxu0
    %v5552 = vadd.f32 0.0, %v5551
    %v5553 = vpop.f32.mrf.mxu0
    %5554 = vdwg.mxu0
    %v5555 = vadd.f32 %v3321, %v5552
    %5556 = vmatprep.subr.mxu0 0.0
    %5557 = vmatpush1.msra.mxu0 0.0
    %5558 = vmatprep.subr.mxu0 0.0
    %5559 = vmatpush1.msra.mxu0 0.0
    %5560 = vmatprep.subr.mxu0 0.0
    %5561 = vmatpush1.msra.mxu0 0.0
    %5562 = vmatprep.subr.mxu0 0.0
    %5563 = vmatpush1.msra.mxu0 0.0
    %5564 = vmatprep.subr.mxu0 0.0
    %5565 = vmatpush1.msra.mxu0 0.0
    %5566 = vmatprep.subr.mxu0 0.0
    %5567 = vmatpush1.msra.mxu0 0.0
    %5568 = vmatprep.subr.mxu0 0.0
    %5569 = vmatpush1.msra.mxu0 0.0
    %5570 = vmatprep.subr.mxu0 0.0
    %5571 = vmatpush1.msra.mxu0 0.0
    %5572 = vmatprep.subr.mxu0 0.0
    %5573 = vmatpush1.msra.mxu0 0.0
    %5574 = vmatprep.subr.mxu0 0.0
    %5575 = vmatpush1.msra.mxu0 0.0
    %5576 = vmatprep.subr.mxu0 0.0
    %5577 = vmatpush1.msra.mxu0 0.0
    %5578 = vmatprep.subr.mxu0 0.0
    %5579 = vmatpush1.msra.mxu0 0.0
    %5580 = vmatprep.subr.mxu0 0.0
    %5581 = vmatpush1.msra.mxu0 %v3578
    %5582 = vmatprep.subr.mxu0 0.0
    %5583 = vmatpush1.msra.mxu0 %v3577
    %5584 = vmatprep.subr.mxu0 0.0
    %5585 = vmatpush1.msra.mxu0 %v3576
    %5586 = vmatprep.subr.mxu0 0.0
    %5587 = vmatpush1.msra.mxu0 %v3575
    %5588 = vmatprep.subr.mxu0 0.0
    %5589 = vmatpush2.msra.mxu0 0.0
    %5590 = vmatprep.subr.mxu0 0.0
    %5591 = vmatpush2.msra.mxu0 0.0
    %5592 = vmatprep.subr.mxu0 0.0
    %5593 = vmatpush2.msra.mxu0 0.0
    %5594 = vmatprep.subr.mxu0 0.0
    %5595 = vmatpush2.msra.mxu0 0.0
    %5596 = vmatprep.subr.mxu0 0.0
    %5597 = vmatpush2.msra.mxu0 0.0
    %5598 = vmatprep.subr.mxu0 0.0
    %5599 = vmatpush2.msra.mxu0 0.0
    %5600 = vmatprep.subr.mxu0 0.0
    %5601 = vmatpush2.msra.mxu0 0.0
    %5602 = vmatprep.subr.mxu0 0.0
    %5603 = vmatpush2.msra.mxu0 0.0
    %5604 = vmatprep.subr.mxu0 0.0
    %5605 = vmatpush2.msra.mxu0 0.0
    %5606 = vmatprep.subr.mxu0 0.0
    %5607 = vmatpush2.msra.mxu0 0.0
    %5608 = vmatprep.subr.mxu0 0.0
    %5609 = vmatpush2.msra.mxu0 0.0
    %5610 = vmatprep.subr.mxu0 0.0
    %5611 = vmatpush2.msra.mxu0 0.0
    %5612 = vmatprep.subr.mxu0 0.0
    %5613 = vmatpush2.msra.mxu0 0.0
    %5614 = vmatprep.subr.mxu0 0.0
    %5615 = vmatpush2.msra.mxu0 0.0
    %5616 = vmatprep.subr.mxu0 0.0
    %5617 = vmatpush2.msra.mxu0 0.0
    %5618 = vmatprep.subr.mxu0 0.0
    %5619 = vmatpush2.msra.mxu0 0.0
    %5620 = vmatprep.mubr.f32.mxu0 0.0
    %5621 = vmatmul.mubr.f32.gmra.mxu0 %v5412
    %v5622 = vpop.f32.mrf.mxu0
    %v5623 = vadd.f32 0.0, %v5622
    %v5624 = vpop.f32.mrf.mxu0
    %5625 = vdwg.mxu0
    %v5626 = vadd.f32 %v3439, %v5623
    %5627 = vmatprep.subr.mxu0 0.0
    %5628 = vmatpush1.msra.mxu0 0.0
    %5629 = vmatprep.subr.mxu0 0.0
    %5630 = vmatpush1.msra.mxu0 0.0
    %5631 = vmatprep.subr.mxu0 0.0
    %5632 = vmatpush1.msra.mxu0 0.0
    %5633 = vmatprep.subr.mxu0 0.0
    %5634 = vmatpush1.msra.mxu0 0.0
    %5635 = vmatprep.subr.mxu0 0.0
    %5636 = vmatpush1.msra.mxu0 0.0
    %5637 = vmatprep.subr.mxu0 0.0
    %5638 = vmatpush1.msra.mxu0 0.0
    %5639 = vmatprep.subr.mxu0 0.0
    %5640 = vmatpush1.msra.mxu0 0.0
    %5641 = vmatprep.subr.mxu0 0.0
    %5642 = vmatpush1.msra.mxu0 0.0
    %5643 = vmatprep.subr.mxu0 0.0
    %5644 = vmatpush1.msra.mxu0 0.0
    %5645 = vmatprep.subr.mxu0 0.0
    %5646 = vmatpush1.msra.mxu0 0.0
    %5647 = vmatprep.subr.mxu0 0.0
    %5648 = vmatpush1.msra.mxu0 0.0
    %5649 = vmatprep.subr.mxu0 0.0
    %5650 = vmatpush1.msra.mxu0 0.0
    %5651 = vmatprep.subr.mxu0 0.0
    %5652 = vmatpush1.msra.mxu0 %v3583
    %5653 = vmatprep.subr.mxu0 0.0
    %5654 = vmatpush1.msra.mxu0 %v3582
    %5655 = vmatprep.subr.mxu0 0.0
    %5656 = vmatpush1.msra.mxu0 %v3581
    %5657 = vmatprep.subr.mxu0 0.0
    %5658 = vmatpush1.msra.mxu0 %v3580
    %5659 = vmatprep.subr.mxu0 0.0
    %5660 = vmatpush2.msra.mxu0 0.0
    %5661 = vmatprep.subr.mxu0 0.0
    %5662 = vmatpush2.msra.mxu0 0.0
    %5663 = vmatprep.subr.mxu0 0.0
    %5664 = vmatpush2.msra.mxu0 0.0
    %5665 = vmatprep.subr.mxu0 0.0
    %5666 = vmatpush2.msra.mxu0 0.0
    %5667 = vmatprep.subr.mxu0 0.0
    %5668 = vmatpush2.msra.mxu0 0.0
    %5669 = vmatprep.subr.mxu0 0.0
    %5670 = vmatpush2.msra.mxu0 0.0
    %5671 = vmatprep.subr.mxu0 0.0
    %5672 = vmatpush2.msra.mxu0 0.0
    %5673 = vmatprep.subr.mxu0 0.0
    %5674 = vmatpush2.msra.mxu0 0.0
    %5675 = vmatprep.subr.mxu0 0.0
    %5676 = vmatpush2.msra.mxu0 0.0
    %5677 = vmatprep.subr.mxu0 0.0
    %5678 = vmatpush2.msra.mxu0 0.0
    %5679 = vmatprep.subr.mxu0 0.0
    %5680 = vmatpush2.msra.mxu0 0.0
    %5681 = vmatprep.subr.mxu0 0.0
    %5682 = vmatpush2.msra.mxu0 0.0
    %5683 = vmatprep.subr.mxu0 0.0
    %5684 = vmatpush2.msra.mxu0 0.0
    %5685 = vmatprep.subr.mxu0 0.0
    %5686 = vmatpush2.msra.mxu0 0.0
    %5687 = vmatprep.subr.mxu0 0.0
    %5688 = vmatpush2.msra.mxu0 0.0
    %5689 = vmatprep.subr.mxu0 0.0
    %5690 = vmatpush2.msra.mxu0 0.0
    %5691 = vmatprep.mubr.f32.mxu0 0.0
    %5692 = vmatmul.mubr.f32.gmra.mxu0 %v5412
    %v5693 = vpop.f32.mrf.mxu0
    %v5694 = vadd.f32 0.0, %v5693
    %v5695 = vpop.f32.mrf.mxu0
    %5696 = vdwg.mxu0
    %v5697 = vadd.f32 %v3557, %v5694
    %v5698 = vmul.f32 %v5484, 0.5
    %v5699 = vtanh.pop %v5698
    %v5700 = vmul.f32 %v5699, 0.5
    %v5701 = vadd.f32 %v5700, 0.5
    %v5702 = vmul.f32 %v5555, 0.5
    %v5703 = vtanh.pop %v5702
    %v5704 = vmul.f32 %v5703, 0.5
    %v5705 = vadd.f32 %v5704, 0.5
    %v5706 = vtanh.pop %v5626
    %v5707 = vmul.f32 %v5697, 0.5
    %v5708 = vtanh.pop %v5707
    %v5709 = vmul.f32 %v5708, 0.5
    %v5710 = vadd.f32 %v5709, 0.5
    %v5711 = vmul.f32 %v5705, %v5408
    %v5712 = vmul.f32 %v5701, %v5706
    %v5713 = vadd.f32 %v5711, %v5712
    %v5714 = vtanh.pop %v5713
    %v5715 = vmul.f32 %v5710, %v5714
    %v5717 = vsel %vm614, %v5715, 0
    %5719 = vmatprep.subr.mxu0 0.0
    %5720 = vmatpush1.msra.mxu0 0.0
    %5721 = vmatprep.subr.mxu0 0.0
    %5722 = vmatpush1.msra.mxu0 0.0
    %5723 = vmatprep.subr.mxu0 0.0
    %5724 = vmatpush1.msra.mxu0 0.0
    %5725 = vmatprep.subr.mxu0 0.0
    %5726 = vmatpush1.msra.mxu0 0.0
    %5727 = vmatprep.subr.mxu0 0.0
    %5728 = vmatpush1.msra.mxu0 0.0
    %5729 = vmatprep.subr.mxu0 0.0
    %5730 = vmatpush1.msra.mxu0 0.0
    %5731 = vmatprep.subr.mxu0 0.0
    %5732 = vmatpush1.msra.mxu0 0.0
    %5733 = vmatprep.subr.mxu0 0.0
    %5734 = vmatpush1.msra.mxu0 0.0
    %5735 = vmatprep.subr.mxu0 0.0
    %5736 = vmatpush1.msra.mxu0 0.0
    %5737 = vmatprep.subr.mxu0 0.0
    %5738 = vmatpush1.msra.mxu0 0.0
    %5739 = vmatprep.subr.mxu0 0.0
    %5740 = vmatpush1.msra.mxu0 0.0
    %5741 = vmatprep.subr.mxu0 0.0
    %5742 = vmatpush1.msra.mxu0 0.0
    %5743 = vmatprep.subr.mxu0 0.0
    %5744 = vmatpush1.msra.mxu0 %v3568
    %5745 = vmatprep.subr.mxu0 0.0
    %5746 = vmatpush1.msra.mxu0 %v3567
    %5747 = vmatprep.subr.mxu0 0.0
    %5748 = vmatpush1.msra.mxu0 %v3566
    %5749 = vmatprep.subr.mxu0 0.0
    %5750 = vmatpush1.msra.mxu0 %v3565
    %5751 = vmatprep.subr.mxu0 0.0
    %5752 = vmatpush2.msra.mxu0 0.0
    %5753 = vmatprep.subr.mxu0 0.0
    %5754 = vmatpush2.msra.mxu0 0.0
    %5755 = vmatprep.subr.mxu0 0.0
    %5756 = vmatpush2.msra.mxu0 0.0
    %5757 = vmatprep.subr.mxu0 0.0
    %5758 = vmatpush2.msra.mxu0 0.0
    %5759 = vmatprep.subr.mxu0 0.0
    %5760 = vmatpush2.msra.mxu0 0.0
    %5761 = vmatprep.subr.mxu0 0.0
    %5762 = vmatpush2.msra.mxu0 0.0
    %5763 = vmatprep.subr.mxu0 0.0
    %5764 = vmatpush2.msra.mxu0 0.0
    %5765 = vmatprep.subr.mxu0 0.0
    %5766 = vmatpush2.msra.mxu0 0.0
    %5767 = vmatprep.subr.mxu0 0.0
    %5768 = vmatpush2.msra.mxu0 0.0
    %5769 = vmatprep.subr.mxu0 0.0
    %5770 = vmatpush2.msra.mxu0 0.0
    %5771 = vmatprep.subr.mxu0 0.0
    %5772 = vmatpush2.msra.mxu0 0.0
    %5773 = vmatprep.subr.mxu0 0.0
    %5774 = vmatpush2.msra.mxu0 0.0
    %5775 = vmatprep.subr.mxu0 0.0
    %5776 = vmatpush2.msra.mxu0 0.0
    %5777 = vmatprep.subr.mxu0 0.0
    %5778 = vmatpush2.msra.mxu0 0.0
    %5779 = vmatprep.subr.mxu0 0.0
    %5780 = vmatpush2.msra.mxu0 0.0
    %5781 = vmatprep.subr.mxu0 0.0
    %5782 = vmatpush2.msra.mxu0 0.0
    %5783 = vmatprep.mubr.f32.mxu0 0.0
    %5784 = vmatmul.mubr.f32.gmra.mxu0 %v5717
    %v5785 = vpop.f32.mrf.mxu0
    %v5786 = vadd.f32 0.0, %v5785
    %v5787 = vpop.f32.mrf.mxu0
    %5788 = vdwg.mxu0
    %v5789 = vadd.f32 %v3208, %v5786
    %5790 = vmatprep.subr.mxu0 0.0
    %5791 = vmatpush1.msra.mxu0 0.0
    %5792 = vmatprep.subr.mxu0 0.0
    %5793 = vmatpush1.msra.mxu0 0.0
    %5794 = vmatprep.subr.mxu0 0.0
    %5795 = vmatpush1.msra.mxu0 0.0
    %5796 = vmatprep.subr.mxu0 0.0
    %5797 = vmatpush1.msra.mxu0 0.0
    %5798 = vmatprep.subr.mxu0 0.0
    %5799 = vmatpush1.msra.mxu0 0.0
    %5800 = vmatprep.subr.mxu0 0.0
    %5801 = vmatpush1.msra.mxu0 0.0
    %5802 = vmatprep.subr.mxu0 0.0
    %5803 = vmatpush1.msra.mxu0 0.0
    %5804 = vmatprep.subr.mxu0 0.0
    %5805 = vmatpush1.msra.mxu0 0.0
    %5806 = vmatprep.subr.mxu0 0.0
    %5807 = vmatpush1.msra.mxu0 0.0
    %5808 = vmatprep.subr.mxu0 0.0
    %5809 = vmatpush1.msra.mxu0 0.0
    %5810 = vmatprep.subr.mxu0 0.0
    %5811 = vmatpush1.msra.mxu0 0.0
    %5812 = vmatprep.subr.mxu0 0.0
    %5813 = vmatpush1.msra.mxu0 0.0
    %5814 = vmatprep.subr.mxu0 0.0
    %5815 = vmatpush1.msra.mxu0 %v3573
    %5816 = vmatprep.subr.mxu0 0.0
    %5817 = vmatpush1.msra.mxu0 %v3572
    %5818 = vmatprep.subr.mxu0 0.0
    %5819 = vmatpush1.msra.mxu0 %v3571
    %5820 = vmatprep.subr.mxu0 0.0
    %5821 = vmatpush1.msra.mxu0 %v3570
    %5822 = vmatprep.subr.mxu0 0.0
    %5823 = vmatpush2.msra.mxu0 0.0
    %5824 = vmatprep.subr.mxu0 0.0
    %5825 = vmatpush2.msra.mxu0 0.0
    %5826 = vmatprep.subr.mxu0 0.0
    %5827 = vmatpush2.msra.mxu0 0.0
    %5828 = vmatprep.subr.mxu0 0.0
    %5829 = vmatpush2.msra.mxu0 0.0
    %5830 = vmatprep.subr.mxu0 0.0
    %5831 = vmatpush2.msra.mxu0 0.0
    %5832 = vmatprep.subr.mxu0 0.0
    %5833 = vmatpush2.msra.mxu0 0.0
    %5834 = vmatprep.subr.mxu0 0.0
    %5835 = vmatpush2.msra.mxu0 0.0
    %5836 = vmatprep.subr.mxu0 0.0
    %5837 = vmatpush2.msra.mxu0 0.0
    %5838 = vmatprep.subr.mxu0 0.0
    %5839 = vmatpush2.msra.mxu0 0.0
    %5840 = vmatprep.subr.mxu0 0.0
    %5841 = vmatpush2.msra.mxu0 0.0
    %5842 = vmatprep.subr.mxu0 0.0
    %5843 = vmatpush2.msra.mxu0 0.0
    %5844 = vmatprep.subr.mxu0 0.0
    %5845 = vmatpush2.msra.mxu0 0.0
    %5846 = vmatprep.subr.mxu0 0.0
    %5847 = vmatpush2.msra.mxu0 0.0
    %5848 = vmatprep.subr.mxu0 0.0
    %5849 = vmatpush2.msra.mxu0 0.0
    %5850 = vmatprep.subr.mxu0 0.0
    %5851 = vmatpush2.msra.mxu0 0.0
    %5852 = vmatprep.subr.mxu0 0.0
    %5853 = vmatpush2.msra.mxu0 0.0
    %5854 = vmatprep.mubr.f32.mxu0 0.0
    %5855 = vmatmul.mubr.f32.gmra.mxu0 %v5717
    %v5856 = vpop.f32.mrf.mxu0
    %v5857 = vadd.f32 0.0, %v5856
    %v5858 = vpop.f32.mrf.mxu0
    %5859 = vdwg.mxu0
    %v5860 = vadd.f32 %v3326, %v5857
    %5861 = vmatprep.subr.mxu0 0.0
    %5862 = vmatpush1.msra.mxu0 0.0
    %5863 = vmatprep.subr.mxu0 0.0
    %5864 = vmatpush1.msra.mxu0 0.0
    %5865 = vmatprep.subr.mxu0 0.0
    %5866 = vmatpush1.msra.mxu0 0.0
    %5867 = vmatprep.subr.mxu0 0.0
    %5868 = vmatpush1.msra.mxu0 0.0
    %5869 = vmatprep.subr.mxu0 0.0
    %5870 = vmatpush1.msra.mxu0 0.0
    %5871 = vmatprep.subr.mxu0 0.0
    %5872 = vmatpush1.msra.mxu0 0.0
    %5873 = vmatprep.subr.mxu0 0.0
    %5874 = vmatpush1.msra.mxu0 0.0
    %5875 = vmatprep.subr.mxu0 0.0
    %5876 = vmatpush1.msra.mxu0 0.0
    %5877 = vmatprep.subr.mxu0 0.0
    %5878 = vmatpush1.msra.mxu0 0.0
    %5879 = vmatprep.subr.mxu0 0.0
    %5880 = vmatpush1.msra.mxu0 0.0
    %5881 = vmatprep.subr.mxu0 0.0
    %5882 = vmatpush1.msra.mxu0 0.0
    %5883 = vmatprep.subr.mxu0 0.0
    %5884 = vmatpush1.msra.mxu0 0.0
    %5885 = vmatprep.subr.mxu0 0.0
    %5886 = vmatpush1.msra.mxu0 %v3578
    %5887 = vmatprep.subr.mxu0 0.0
    %5888 = vmatpush1.msra.mxu0 %v3577
    %5889 = vmatprep.subr.mxu0 0.0
    %5890 = vmatpush1.msra.mxu0 %v3576
    %5891 = vmatprep.subr.mxu0 0.0
    %5892 = vmatpush1.msra.mxu0 %v3575
    %5893 = vmatprep.subr.mxu0 0.0
    %5894 = vmatpush2.msra.mxu0 0.0
    %5895 = vmatprep.subr.mxu0 0.0
    %5896 = vmatpush2.msra.mxu0 0.0
    %5897 = vmatprep.subr.mxu0 0.0
    %5898 = vmatpush2.msra.mxu0 0.0
    %5899 = vmatprep.subr.mxu0 0.0
    %5900 = vmatpush2.msra.mxu0 0.0
    %5901 = vmatprep.subr.mxu0 0.0
    %5902 = vmatpush2.msra.mxu0 0.0
    %5903 = vmatprep.subr.mxu0 0.0
    %5904 = vmatpush2.msra.mxu0 0.0
    %5905 = vmatprep.subr.mxu0 0.0
    %5906 = vmatpush2.msra.mxu0 0.0
    %5907 = vmatprep.subr.mxu0 0.0
    %5908 = vmatpush2.msra.mxu0 0.0
    %5909 = vmatprep.subr.mxu0 0.0
    %5910 = vmatpush2.msra.mxu0 0.0
    %5911 = vmatprep.subr.mxu0 0.0
    %5912 = vmatpush2.msra.mxu0 0.0
    %5913 = vmatprep.subr.mxu0 0.0
    %5914 = vmatpush2.msra.mxu0 0.0
    %5915 = vmatprep.subr.mxu0 0.0
    %5916 = vmatpush2.msra.mxu0 0.0
    %5917 = vmatprep.subr.mxu0 0.0
    %5918 = vmatpush2.msra.mxu0 0.0
    %5919 = vmatprep.subr.mxu0 0.0
    %5920 = vmatpush2.msra.mxu0 0.0
    %5921 = vmatprep.subr.mxu0 0.0
    %5922 = vmatpush2.msra.mxu0 0.0
    %5923 = vmatprep.subr.mxu0 0.0
    %5924 = vmatpush2.msra.mxu0 0.0
    %5925 = vmatprep.mubr.f32.mxu0 0.0
    %5926 = vmatmul.mubr.f32.gmra.mxu0 %v5717
    %v5927 = vpop.f32.mrf.mxu0
    %v5928 = vadd.f32 0.0, %v5927
    %v5929 = vpop.f32.mrf.mxu0
    %5930 = vdwg.mxu0
    %v5931 = vadd.f32 %v3444, %v5928
    %5932 = vmatprep.subr.mxu0 0.0
    %5933 = vmatpush1.msra.mxu0 0.0
    %5934 = vmatprep.subr.mxu0 0.0
    %5935 = vmatpush1.msra.mxu0 0.0
    %5936 = vmatprep.subr.mxu0 0.0
    %5937 = vmatpush1.msra.mxu0 0.0
    %5938 = vmatprep.subr.mxu0 0.0
    %5939 = vmatpush1.msra.mxu0 0.0
    %5940 = vmatprep.subr.mxu0 0.0
    %5941 = vmatpush1.msra.mxu0 0.0
    %5942 = vmatprep.subr.mxu0 0.0
    %5943 = vmatpush1.msra.mxu0 0.0
    %5944 = vmatprep.subr.mxu0 0.0
    %5945 = vmatpush1.msra.mxu0 0.0
    %5946 = vmatprep.subr.mxu0 0.0
    %5947 = vmatpush1.msra.mxu0 0.0
    %5948 = vmatprep.subr.mxu0 0.0
    %5949 = vmatpush1.msra.mxu0 0.0
    %5950 = vmatprep.subr.mxu0 0.0
    %5951 = vmatpush1.msra.mxu0 0.0
    %5952 = vmatprep.subr.mxu0 0.0
    %5953 = vmatpush1.msra.mxu0 0.0
    %5954 = vmatprep.subr.mxu0 0.0
    %5955 = vmatpush1.msra.mxu0 0.0
    %5956 = vmatprep.subr.mxu0 0.0
    %5957 = vmatpush1.msra.mxu0 %v3583
    %5958 = vmatprep.subr.mxu0 0.0
    %5959 = vmatpush1.msra.mxu0 %v3582
    %5960 = vmatprep.subr.mxu0 0.0
    %5961 = vmatpush1.msra.mxu0 %v3581
    %5962 = vmatprep.subr.mxu0 0.0
    %5963 = vmatpush1.msra.mxu0 %v3580
    %5964 = vmatprep.subr.mxu0 0.0
    %5965 = vmatpush2.msra.mxu0 0.0
    %5966 = vmatprep.subr.mxu0 0.0
    %5967 = vmatpush2.msra.mxu0 0.0
    %5968 = vmatprep.subr.mxu0 0.0
    %5969 = vmatpush2.msra.mxu0 0.0
    %5970 = vmatprep.subr.mxu0 0.0
    %5971 = vmatpush2.msra.mxu0 0.0
    %5972 = vmatprep.subr.mxu0 0.0
    %5973 = vmatpush2.msra.mxu0 0.0
    %5974 = vmatprep.subr.mxu0 0.0
    %5975 = vmatpush2.msra.mxu0 0.0
    %5976 = vmatprep.subr.mxu0 0.0
    %5977 = vmatpush2.msra.mxu0 0.0
    %5978 = vmatprep.subr.mxu0 0.0
    %5979 = vmatpush2.msra.mxu0 0.0
    %5980 = vmatprep.subr.mxu0 0.0
    %5981 = vmatpush2.msra.mxu0 0.0
    %5982 = vmatprep.subr.mxu0 0.0
    %5983 = vmatpush2.msra.mxu0 0.0
    %5984 = vmatprep.subr.mxu0 0.0
    %5985 = vmatpush2.msra.mxu0 0.0
    %5986 = vmatprep.subr.mxu0 0.0
    %5987 = vmatpush2.msra.mxu0 0.0
    %5988 = vmatprep.subr.mxu0 0.0
    %5989 = vmatpush2.msra.mxu0 0.0
    %5990 = vmatprep.subr.mxu0 0.0
    %5991 = vmatpush2.msra.mxu0 0.0
    %5992 = vmatprep.subr.mxu0 0.0
    %5993 = vmatpush2.msra.mxu0 0.0
    %5994 = vmatprep.subr.mxu0 0.0
    %5995 = vmatpush2.msra.mxu0 0.0
    %5996 = vmatprep.mubr.f32.mxu0 0.0
    %5997 = vmatmul.mubr.f32.gmra.mxu0 %v5717
    %v5998 = vpop.f32.mrf.mxu0
    %v5999 = vadd.f32 0.0, %v5998
    %v6000 = vpop.f32.mrf.mxu0
    %6001 = vdwg.mxu0
    %v6002 = vadd.f32 %v3562, %v5999
    %v6003 = vmul.f32 %v5789, 0.5
    %v6004 = vtanh.pop %v6003
    %v6005 = vmul.f32 %v6004, 0.5
    %v6006 = vadd.f32 %v6005, 0.5
    %v6007 = vmul.f32 %v5860, 0.5
    %v6008 = vtanh.pop %v6007
    %v6009 = vmul.f32 %v6008, 0.5
    %v6010 = vadd.f32 %v6009, 0.5
    %v6011 = vtanh.pop %v5931
    %v6012 = vmul.f32 %v6002, 0.5
    %v6013 = vtanh.pop %v6012
    %v6014 = vmul.f32 %v6013, 0.5
    %v6015 = vadd.f32 %v6014, 0.5
    %v6016 = vmul.f32 %v6010, %v5713
    %v6017 = vmul.f32 %v6006, %v6011
    %v6018 = vadd.f32 %v6016, %v6017
    %v6019 = vtanh.pop %v6018
    %v6020 = vmul.f32 %v6015, %v6019
    %v6021 = vld [vmem:[%s7] sm:$0xff]
    %v6022 = vld [vmem:[%s7 + $0x8] sm:$0xff]
    %v6023 = vld [vmem:[%s7 + $0x10] sm:$0xff]
    %v6024 = vld [vmem:[%s7 + $0x18] sm:$0xff]
    %v6025 = vld [vmem:[%s8] sm:$0x1]
    %v6027 = vlaneseq
    %v6028 = vshrl.u32 %v6027, 7
    %v6029 = vsub.s32 0, %v6028
    %v6030 = vrot.slane %v6025, %v6029
    %v6033 = vsel %vm614, %v6020, 0
    %6035 = vmatprep.subr.mxu0 0.0
    %6036 = vmatpush1.msra.mxu0 0.0
    %6037 = vmatprep.subr.mxu0 0.0
    %6038 = vmatpush1.msra.mxu0 0.0
    %6039 = vmatprep.subr.mxu0 0.0
    %6040 = vmatpush1.msra.mxu0 0.0
    %6041 = vmatprep.subr.mxu0 0.0
    %6042 = vmatpush1.msra.mxu0 0.0
    %6043 = vmatprep.subr.mxu0 0.0
    %6044 = vmatpush1.msra.mxu0 0.0
    %6045 = vmatprep.subr.mxu0 0.0
    %6046 = vmatpush1.msra.mxu0 0.0
    %6047 = vmatprep.subr.mxu0 0.0
    %6048 = vmatpush1.msra.mxu0 0.0
    %6049 = vmatprep.subr.mxu0 0.0
    %6050 = vmatpush1.msra.mxu0 0.0
    %6051 = vmatprep.subr.mxu0 0.0
    %6052 = vmatpush1.msra.mxu0 0.0
    %6053 = vmatprep.subr.mxu0 0.0
    %6054 = vmatpush1.msra.mxu0 0.0
    %6055 = vmatprep.subr.mxu0 0.0
    %6056 = vmatpush1.msra.mxu0 0.0
    %6057 = vmatprep.subr.mxu0 0.0
    %6058 = vmatpush1.msra.mxu0 0.0
    %6059 = vmatprep.subr.mxu0 0.0
    %6060 = vmatpush1.msra.mxu0 %v6024
    %6061 = vmatprep.subr.mxu0 0.0
    %6062 = vmatpush1.msra.mxu0 %v6023
    %6063 = vmatprep.subr.mxu0 0.0
    %6064 = vmatpush1.msra.mxu0 %v6022
    %6065 = vmatprep.subr.mxu0 0.0
    %6066 = vmatpush1.msra.mxu0 %v6021
    %6067 = vmatprep.subr.mxu0 0.0
    %6068 = vmatpush2.msra.mxu0 0.0
    %6069 = vmatprep.subr.mxu0 0.0
    %6070 = vmatpush2.msra.mxu0 0.0
    %6071 = vmatprep.subr.mxu0 0.0
    %6072 = vmatpush2.msra.mxu0 0.0
    %6073 = vmatprep.subr.mxu0 0.0
    %6074 = vmatpush2.msra.mxu0 0.0
    %6075 = vmatprep.subr.mxu0 0.0
    %6076 = vmatpush2.msra.mxu0 0.0
    %6077 = vmatprep.subr.mxu0 0.0
    %6078 = vmatpush2.msra.mxu0 0.0
    %6079 = vmatprep.subr.mxu0 0.0
    %6080 = vmatpush2.msra.mxu0 0.0
    %6081 = vmatprep.subr.mxu0 0.0
    %6082 = vmatpush2.msra.mxu0 0.0
    %6083 = vmatprep.subr.mxu0 0.0
    %6084 = vmatpush2.msra.mxu0 0.0
    %6085 = vmatprep.subr.mxu0 0.0
    %6086 = vmatpush2.msra.mxu0 0.0
    %6087 = vmatprep.subr.mxu0 0.0
    %6088 = vmatpush2.msra.mxu0 0.0
    %6089 = vmatprep.subr.mxu0 0.0
    %6090 = vmatpush2.msra.mxu0 0.0
    %6091 = vmatprep.subr.mxu0 0.0
    %6092 = vmatpush2.msra.mxu0 0.0
    %6093 = vmatprep.subr.mxu0 0.0
    %6094 = vmatpush2.msra.mxu0 0.0
    %6095 = vmatprep.subr.mxu0 0.0
    %6096 = vmatpush2.msra.mxu0 0.0
    %6097 = vmatprep.subr.mxu0 0.0
    %6098 = vmatpush2.msra.mxu0 0.0
    %6099 = vmatprep.mubr.f32.mxu0 0.0
    %6100 = vmatmul.mubr.f32.gmra.mxu0 %v6033
    %v6101 = vpop.f32.mrf.mxu0
    %v6102 = vadd.f32 %v6030, %v6101
    %v6103 = vpop.f32.mrf.mxu0
    %6104 = vdwg.mxu0
    %vm6105 = vcmask 31744
    %6106 = vst.msk [vmem:[%s9] sm:$0xff] %vm6105, %v6102
    // Predicated region
    $region58: #{tpu_custom_call.1} parent=1 // pred_check
      _
    $region59: #{tpu_custom_call.1} parent=1 // pred_check_branch
      %6108 = sbr.rel (0) target = $region61
    $region60: #{tpu_custom_call.1} parent=1 // pred_region
      _
    $region61: #{tpu_custom_call.1} parent=1 // pred_fallthru
      _
    // Predicated region
    $region62: #{tpu_custom_call.1} parent=1 // pred_check
      _
    $region63: #{tpu_custom_call.1} parent=1 // pred_check_branch
      %6110 = sbr.rel (0) target = $region65
    $region64: #{tpu_custom_call.1} parent=1 // pred_region
      _
    $region65: #{tpu_custom_call.1} parent=1 // pred_fallthru
      _
    %6111 = vsyncpa [#allocation4], 1
    %6112 = vsyncpa [#allocation6], 1
    %6113 = vsyncpa [#allocation9], 1

</llo_original>
